<compile_context>
chip_gen: v7x
topology: tpu7x:2x2x1
jax: 0.10.0
libtpu: 0.0.40
codegen_flags: <defaults>
</compile_context>

<pallas_src>
import functools

import jax
import jax.numpy as jnp
from jax import lax
from jax.experimental import pallas as pl
from jax.experimental.pallas import tpu as pltpu


# ----------------------------------------------------------------------------
# Fused matmul + bias (+ ReLU) Pallas kernel  (conv_low 1x1)
# ----------------------------------------------------------------------------
def _matmul_bias_kernel(x_ref, w_ref, b_ref, o_ref, *, relu):
    y = jnp.dot(x_ref[...], w_ref[...], preferred_element_type=jnp.float32)
    y = y + b_ref[...]
    if relu:
        y = jnp.maximum(y, 0.0)
    o_ref[...] = y.astype(o_ref.dtype)


def matmul_bias(x, w, bias, *, relu, out_dtype, tm=512):
    """y = relu?( x @ w + bias ).  x:(M,K) bf16, w:(K,N) bf16, bias:(N,) f32."""
    M, K = x.shape
    N = w.shape[1]
    tm = min(tm, M)
    pad = (-M) % tm
    if pad:
        x = jnp.pad(x, ((0, pad), (0, 0)))
    Mp = M + pad

    out = pl.pallas_call(
        functools.partial(_matmul_bias_kernel, relu=relu),
        out_shape=jax.ShapeDtypeStruct((Mp, N), out_dtype),
        grid=(Mp // tm,),
        in_specs=[
            pl.BlockSpec((tm, K), lambda i: (i, 0)),
            pl.BlockSpec((K, N), lambda i: (0, 0)),
            pl.BlockSpec((1, N), lambda i: (0, 0)),
        ],
        out_specs=pl.BlockSpec((tm, N), lambda i: (i, 0)),
        compiler_params=pltpu.CompilerParams(dimension_semantics=("parallel",)),
    )(x, w, bias.reshape(1, N))
    return out[:M]


# ----------------------------------------------------------------------------
# Spatial tile size: tile_h rows per grid step; prefer tile_h*W == 128 rows so
# the f32 register accumulator is 32 vregs and classifier tiles are lane-dense.
# ----------------------------------------------------------------------------
def _pick_tile_h(h, w):
    for th in (8, 16, 4, 32, 2, 64, 1):
        if th <= h and h % th == 0 and (th * w) % 128 == 0:
            return th
    return h  # fallback: one tile per image (block == full flattened dim)


# ----------------------------------------------------------------------------
# conv_cat1: fused [concat(x_up, low)] -> 3x3 conv -> BN -> ReLU
# Register-accumulated 9-tap conv over two channel slabs, spatially tiled.
# ----------------------------------------------------------------------------
def _conv3x3_cat_kernel(xpx_ref, xpl_ref, wx_ref, wl_ref, b_ref, o_ref,
                        *, TH, W, Co):
    # xpx_ref: (1, H+2, W+2, Cx) bf16   xpl_ref: (1, H+2, W+2, Cl) bf16
    # wx_ref : (9, Cx, Co) bf16          wl_ref : (9, Cl, Co) bf16
    # b_ref  : (1, Co) f32               o_ref  : (1, TH, W, Co)
    row0 = pl.multiple_of(pl.program_id(1) * TH, TH)
    acc = None
    for dw in range(3):
        # one (TH+2)-row, dw-shifted slab per input, reused for all 3 dh taps
        slab_x = xpx_ref[0, pl.ds(row0, TH + 2), pl.ds(dw, W), :]
        slab_l = xpl_ref[0, pl.ds(row0, TH + 2), pl.ds(dw, W), :]
        for dh in range(3):
            k = 3 * dh + dw
            win_x = slab_x[dh:dh + TH].reshape(TH * W, -1)
            p = jnp.dot(win_x, wx_ref[k], preferred_element_type=jnp.float32)
            acc = p if acc is None else acc + p
            win_l = slab_l[dh:dh + TH].reshape(TH * W, -1)
            acc = acc + jnp.dot(win_l, wl_ref[k],
                                preferred_element_type=jnp.float32)
    y = jnp.maximum(acc + b_ref[...], 0.0)                     # f32 epilogue
    o_ref[0] = y.reshape(TH, W, Co).astype(o_ref.dtype)


def conv3x3_cat_bn_relu(xp_x, xp_l, w9x, w9l, bias, *, out_dtype=jnp.bfloat16):
    n, hp, wp, cx = xp_x.shape
    h, w = hp - 2, wp - 2
    cl = xp_l.shape[-1]
    co = w9x.shape[-1]
    th = _pick_tile_h(h, w)

    return pl.pallas_call(
        functools.partial(_conv3x3_cat_kernel, TH=th, W=w, Co=co),
        out_shape=jax.ShapeDtypeStruct((n, h, w, co), out_dtype),
        grid=(n, h // th),
        in_specs=[
            pl.BlockSpec((1, hp, wp, cx), lambda b, t: (b, 0, 0, 0)),
            pl.BlockSpec((1, hp, wp, cl), lambda b, t: (b, 0, 0, 0)),
            pl.BlockSpec((9, cx, co), lambda b, t: (0, 0, 0)),
            pl.BlockSpec((9, cl, co), lambda b, t: (0, 0, 0)),
            pl.BlockSpec((1, co), lambda b, t: (0, 0)),
        ],
        out_specs=pl.BlockSpec((1, th, w, co), lambda b, t: (b, t, 0, 0)),
        compiler_params=pltpu.CompilerParams(
            dimension_semantics=("parallel", "arbitrary")),
    )(xp_x, xp_l, w9x, w9l, bias.reshape(1, co))


# ----------------------------------------------------------------------------
# conv_cat2 + classifier fused: 3x3 conv -> BN -> ReLU -> 1x1 classifier.
# Classifier output is emitted transposed (C_pad, M) so stores are lane-dense
# and the result is already in NCHW order; the 256-ch map never hits HBM.
# ----------------------------------------------------------------------------
def _conv3x3_cls_kernel(xp_ref, w_ref, b_ref, wc_ref, bc_ref, o_ref, *, TH, W):
    # xp_ref: (1, H+2, W+2, Ci) bf16   w_ref: (9, Ci, Co) bf16   b_ref: (1, Co)
    # wc_ref: (Cpad, Co) bf16          bc_ref: (Cpad, 1) f32
    # o_ref : (1, Cpad, TH*W) f32
    row0 = pl.multiple_of(pl.program_id(1) * TH, TH)
    acc = None
    for dw in range(3):
        slab = xp_ref[0, pl.ds(row0, TH + 2), pl.ds(dw, W), :]
        for dh in range(3):
            win = slab[dh:dh + TH].reshape(TH * W, -1)
            p = jnp.dot(win, w_ref[3 * dh + dw],
                        preferred_element_type=jnp.float32)
            acc = p if acc is None else acc + p
    y = jnp.maximum(acc + b_ref[...], 0.0).astype(jnp.bfloat16)   # (TH*W, Co)
    cls = jnp.dot(wc_ref[...], y.T, preferred_element_type=jnp.float32)
    o_ref[0] = cls + bc_ref[...]                                  # (Cpad, TH*W)


def conv3x3_bn_relu_cls(xp, w9, bias, wc, bc):
    n, hp, wp, ci = xp.shape
    h, w = hp - 2, wp - 2
    co = w9.shape[-1]
    cpad = wc.shape[0]
    th = _pick_tile_h(h, w)

    return pl.pallas_call(
        functools.partial(_conv3x3_cls_kernel, TH=th, W=w),
        out_shape=jax.ShapeDtypeStruct((n, cpad, h * w), jnp.float32),
        grid=(n, h // th),
        in_specs=[
            pl.BlockSpec((1, hp, wp, ci), lambda b, t: (b, 0, 0, 0)),
            pl.BlockSpec((9, ci, co), lambda b, t: (0, 0, 0)),
            pl.BlockSpec((1, co), lambda b, t: (0, 0)),
            pl.BlockSpec((cpad, ci), lambda b, t: (0, 0)),
            pl.BlockSpec((cpad, 1), lambda b, t: (0, 0)),
        ],
        out_specs=pl.BlockSpec((1, cpad, th * w), lambda b, t: (b, 0, t)),
        compiler_params=pltpu.CompilerParams(
            dimension_semantics=("parallel", "arbitrary")),
    )(xp, w9, bias.reshape(1, co), wc, bc)


# ----------------------------------------------------------------------------
# Parameter prep: fold BN into weights, cast to bf16
# ----------------------------------------------------------------------------
def fold_bn(gamma, beta, mean, var, eps=1e-5):
    scale = gamma / jnp.sqrt(var + eps)
    return scale, beta - mean * scale


def prep_conv1x1(w_oihw, scale, bias):
    co, ci = w_oihw.shape[:2]
    wm = w_oihw.reshape(co, ci)
    if scale is not None:
        wm = wm * scale[:, None]
    return wm.T.astype(jnp.bfloat16), bias.astype(jnp.float32)


def prep_conv3x3(w_oihw, scale, bias):
    co, ci = w_oihw.shape[:2]
    w9 = jnp.transpose(w_oihw, (2, 3, 1, 0)).reshape(9, ci, co)    # (kh*kw,Ci,Co)
    w9 = w9 * scale[None, None, :]
    return w9.astype(jnp.bfloat16), bias.astype(jnp.float32)


def prep_classifier(w_oihw, bias, min_pad=8):
    co, ci = w_oihw.shape[:2]
    cpad = max(min_pad, ((co + 7) // 8) * 8)                       # sublane pad
    w = jnp.pad(w_oihw.reshape(co, ci), ((0, cpad - co), (0, 0)))
    b = jnp.pad(bias, (0, cpad - co))
    return w.astype(jnp.bfloat16), b.astype(jnp.float32).reshape(cpad, 1)


# ----------------------------------------------------------------------------
# Bilinear upsample (align_corners=True), NHWC (f32 lerp math)
# ----------------------------------------------------------------------------
def bilinear_align_corners(x_nhwc, out_h, out_w):
    n, h, w, c = x_nhwc.shape

    def src(out_size, in_size):
        if out_size == 1 or in_size == 1:
            return jnp.zeros((out_size,), jnp.float32)
        return jnp.arange(out_size, dtype=jnp.float32) * ((in_size - 1) / (out_size - 1))

    ys, xs = src(out_h, h), src(out_w, w)
    y0 = jnp.floor(ys).astype(jnp.int32)
    y1 = jnp.minimum(y0 + 1, h - 1)
    x0 = jnp.floor(xs).astype(jnp.int32)
    x1 = jnp.minimum(x0 + 1, w - 1)
    wy = (ys - y0).reshape(1, out_h, 1, 1)
    wx = (xs - x0).reshape(1, 1, out_w, 1)

    top, bot = x_nhwc[:, y0], x_nhwc[:, y1]
    tl, tr = top[:, :, x0], top[:, :, x1]
    bl, br = bot[:, :, x0], bot[:, :, x1]
    t = tl * (1.0 - wx) + tr * wx
    b = bl * (1.0 - wx) + br * wx
    return t * (1.0 - wy) + b * wy


# ----------------------------------------------------------------------------
# Decoder forward (public interface: NCHW, like PyTorch)
# ----------------------------------------------------------------------------
def decoder_forward(params, x_nchw, low_nchw):
    x = jnp.transpose(x_nchw, (0, 2, 3, 1))            # NCHW -> NHWC
    low = jnp.transpose(low_nchw, (0, 2, 3, 1))
    n, lh, lw, lc = low.shape
    nc = params["w_cls"].shape[0]

    # conv_low: 1x1 conv + BN + ReLU (output kept at its real 48 channels)
    s, b = fold_bn(*params["bn_low"])
    w_low, b_low = prep_conv1x1(params["w_low"], s, b)
    low48 = matmul_bias(low.reshape(-1, lc).astype(jnp.bfloat16), w_low, b_low,
                        relu=True, out_dtype=jnp.bfloat16)
    low48 = low48.reshape(n, lh, lw, -1)

    # bilinear upsample of x to the low-level resolution (bf16 gathers)
    x_up = bilinear_align_corners(x.astype(jnp.bfloat16), lh, lw)
    x_up = x_up.astype(jnp.bfloat16)

    # 1-pixel halo zero-pads for the 3x3 convs (XLA glue; see TODO above)
    xp_x = jnp.pad(x_up, ((0, 0), (1, 1), (1, 1), (0, 0)))
    xp_l = jnp.pad(low48, ((0, 0), (1, 1), (1, 1), (0, 0)))

    # conv_cat[0]: fused concat + 3x3 conv + BN + ReLU (split weight slabs)
    s, b = fold_bn(*params["bn_cat1"])
    w9_1, b1 = prep_conv3x3(params["w_cat1"], s, b)
    cx = x_up.shape[-1]
    y1 = conv3x3_cat_bn_relu(xp_x, xp_l, w9_1[:, :cx, :], w9_1[:, cx:, :], b1)

    # conv_cat[1] + classifier fused; output already (N, Cpad, H*W) = NCHW-ish
    s, b = fold_bn(*params["bn_cat2"])
    w9_2, b2 = prep_conv3x3(params["w_cat2"], s, b)
    wc, bc = prep_classifier(params["w_cls"], params["b_cls"])
    y1p = jnp.pad(y1, ((0, 0), (1, 1), (1, 1), (0, 0)))
    out_t = conv3x3_bn_relu_cls(y1p, w9_2, b2, wc, bc)   # (n, Cpad, lh*lw) f32

    return out_t.reshape(n, -1, lh, lw)[:, :nc]


# ----------------------------------------------------------------------------
# Deterministic parameter initialization
# ----------------------------------------------------------------------------
def init_params(key, low_in, low_out, num_classes):
    ks = jax.random.split(key, 8)

    def conv_w(k, shape, fan_in):
        return jax.random.normal(k, shape, jnp.float32) * (2.0 / fan_in) ** 0.5

    def bn_params(k, c):
        k1, k2, k3, k4 = jax.random.split(k, 4)
        gamma = 1.0 + 0.1 * jax.random.normal(k1, (c,), jnp.float32)
        beta = 0.1 * jax.random.normal(k2, (c,), jnp.float32)
        mean = 0.1 * jax.random.normal(k3, (c,), jnp.float32)
        var = jax.random.uniform(k4, (c,), jnp.float32, minval=0.5, maxval=1.5)
        return (gamma, beta, mean, var)

    return dict(
        w_low=conv_w(ks[0], (low_out, low_in, 1, 1), low_in),
        bn_low=bn_params(ks[1], low_out),
        w_cat1=conv_w(ks[2], (256, low_out + 256, 3, 3), 9 * (low_out + 256)),
        bn_cat1=bn_params(ks[3], 256),
        w_cat2=conv_w(ks[4], (256, 256, 3, 3), 9 * 256),
        bn_cat2=bn_params(ks[5], 256),
        w_cls=conv_w(ks[6], (num_classes, 256, 1, 1), 256),
        b_cls=0.1 * jax.random.normal(ks[7], (num_classes,), jnp.float32),
    )


# ----------------------------------------------------------------------------
# Pure-JAX f32 reference (lax.conv) for a sanity check
# ----------------------------------------------------------------------------
def _conv_nchw(x, w, padding):
    return lax.conv_general_dilated(
        x, w, (1, 1), padding, dimension_numbers=("NCHW", "OIHW", "NCHW"))


def _bn_relu_nchw(x, bn, relu=True):
    s, b = fold_bn(*bn)
    y = x * s.reshape(1, -1, 1, 1) + b.reshape(1, -1, 1, 1)
    return jnp.maximum(y, 0.0) if relu else y


def reference_forward(params, x, low):
    low = _bn_relu_nchw(_conv_nchw(low, params["w_low"], "VALID"), params["bn_low"])
    x_up = bilinear_align_corners(jnp.transpose(x, (0, 2, 3, 1)),
                                  low.shape[2], low.shape[3])
    x = jnp.concatenate([jnp.transpose(x_up, (0, 3, 1, 2)), low], axis=1)
    x = _bn_relu_nchw(_conv_nchw(x, params["w_cat1"], "SAME"), params["bn_cat1"])
    x = _bn_relu_nchw(_conv_nchw(x, params["w_cat2"], "SAME"), params["bn_cat2"])
    x = _conv_nchw(x, params["w_cls"], "VALID") + params["b_cls"].reshape(1, -1, 1, 1)
    return x


# ----------------------------------------------------------------------------
if __name__ == "__main__":
    key = jax.random.PRNGKey(0)
    kp, kx, kl = jax.random.split(key, 3)

    low_in, low_out, num_classes = 24, 48, 7
    params = init_params(kp, low_in, low_out, num_classes)

    # x is the ASPP output (256 channels, stride 16); low-level feat is stride 4.
    x = jax.random.normal(kx, (2, 256, 4, 4), jnp.float32)
    low_level_feat = jax.random.normal(kl, (2, low_in, 16, 16), jnp.float32)

    fwd = jax.jit(decoder_forward)
    out = jax.block_until_ready(fwd(params, x, low_level_feat))
    assert out.shape == (2, num_classes, 16, 16), out.shape

    ref = jax.block_until_ready(reference_forward(params, x, low_level_feat))
    rel_err = float(jnp.max(jnp.abs(out - ref)) / (jnp.max(jnp.abs(ref)) + 1e-6))
    assert rel_err < 5e-2, f"mismatch vs reference: rel_err={rel_err}"

    print("KERNEL_OK")
</pallas_src>

<mosaic_0001>
module attributes {stable_mosaic.version = 11 : i64} {
  func.func @_matmul_bias_kernel(%arg0: i32, %arg1: memref<512x24xbf16, #tpu.memory_space<vmem>>, %arg2: memref<24x48xbf16, #tpu.memory_space<vmem>>, %arg3: memref<1x48xf32, #tpu.memory_space<vmem>>, %arg4: memref<512x48xbf16, #tpu.memory_space<vmem>>) attributes {dimension_semantics = [#tpu.dimension_semantics<parallel>], iteration_bounds = array<i64: 1>, scalar_prefetch = 0 : i64, scratch_operands = 0 : i64, tpu.core_type = #tpu.core_type<tc>, window_params = [{transform_indices = @transform_0, window_bounds = array<i64: 512, 24>}, {pipeline_mode = #tpu.pipeline_mode<synchronous>, transform_indices = @transform_1, window_bounds = array<i64: 24, 48>}, {pipeline_mode = #tpu.pipeline_mode<synchronous>, transform_indices = @transform_2, window_bounds = array<i64: 1, 48>}, {transform_indices = @transform_3, window_bounds = array<i64: 512, 48>}]} {
    %c0 = arith.constant 0 : index
    %c0_0 = arith.constant 0 : index
    %0 = vector.load %arg1[%c0, %c0_0] : memref<512x24xbf16, #tpu.memory_space<vmem>>, vector<512x24xbf16>
    %c0_1 = arith.constant 0 : index
    %c0_2 = arith.constant 0 : index
    %1 = vector.load %arg2[%c0_1, %c0_2] : memref<24x48xbf16, #tpu.memory_space<vmem>>, vector<24x48xbf16>
    %cst = arith.constant dense<0.000000e+00> : vector<512x48xf32>
    %2 = tpu.matmul %0, %1, %cst {dimension_numbers = #tpu.dot_dimension_numbers<[1], [0], [0], [1], [0, 0, 1, 1], [], []>} : vector<512x24xbf16>, vector<24x48xbf16>, vector<512x48xf32> -> vector<512x48xf32>
    %c0_3 = arith.constant 0 : index
    %c0_4 = arith.constant 0 : index
    %3 = vector.load %arg3[%c0_3, %c0_4] : memref<1x48xf32, #tpu.memory_space<vmem>>, vector<1x48xf32>
    %4 = vector.broadcast %3 : vector<1x48xf32> to vector<512x48xf32>
    %5 = arith.addf %2, %4 : vector<512x48xf32>
    %cst_5 = arith.constant 0.000000e+00 : f32
    %6 = vector.broadcast %cst_5 : f32 to vector<512x48xf32>
    %7 = arith.maximumf %5, %6 : vector<512x48xf32>
    %8 = arith.truncf %7 : vector<512x48xf32> to vector<512x48xbf16>
    %c0_6 = arith.constant 0 : index
    %c0_7 = arith.constant 0 : index
    %9 = vector.load %arg4[%c0_6, %c0_7] : memref<512x48xbf16, #tpu.memory_space<vmem>>, vector<512x48xbf16>
    tpu.vector_store %arg4[%c0_6, %c0_7], %8 {strides = array<i32>} : memref<512x48xbf16, #tpu.memory_space<vmem>>, vector<512x48xbf16>,
    return
  }
  func.func @transform_0(%arg0: i32) -> (i32, i32) {
    %c0_i32 = arith.constant 0 : i32
    %c0_i32_0 = arith.constant 0 : i32
    return %arg0, %c0_i32 : i32, i32
  }
  func.func @transform_1(%arg0: i32) -> (i32, i32) {
    %c0_i32 = arith.constant 0 : i32
    %c0_i32_0 = arith.constant 0 : i32
    %c0_i32_1 = arith.constant 0 : i32
    return %c0_i32, %c0_i32_0 : i32, i32
  }
  func.func @transform_2(%arg0: i32) -> (i32, i32) {
    %c0_i32 = arith.constant 0 : i32
    %c0_i32_0 = arith.constant 0 : i32
    %c0_i32_1 = arith.constant 0 : i32
    return %c0_i32, %c0_i32_0 : i32, i32
  }
  func.func @transform_3(%arg0: i32) -> (i32, i32) {
    %c0_i32 = arith.constant 0 : i32
    %c0_i32_0 = arith.constant 0 : i32
    return %arg0, %c0_i32 : i32, i32
  }
}

module attributes {stable_mosaic.version = 11 : i64} {
  func.func @_conv3x3_cat_kernel(%arg0: i32, %arg1: i32, %arg2: memref<1x18x18x256xbf16, #tpu.memory_space<vmem>>, %arg3: memref<1x18x18x48xbf16, #tpu.memory_space<vmem>>, %arg4: memref<9x256x256xbf16, #tpu.memory_space<vmem>>, %arg5: memref<9x48x256xbf16, #tpu.memory_space<vmem>>, %arg6: memref<1x256xf32, #tpu.memory_space<vmem>>, %arg7: memref<1x8x16x256xbf16, #tpu.memory_space<vmem>>) attributes {dimension_semantics = [#tpu.dimension_semantics<parallel>, #tpu.dimension_semantics<arbitrary>], iteration_bounds = array<i64: 2, 2>, scalar_prefetch = 0 : i64, scratch_operands = 0 : i64, tpu.core_type = #tpu.core_type<tc>, window_params = [{transform_indices = @transform_0, window_bounds = array<i64: 1, 18, 18, 256>}, {transform_indices = @transform_1, window_bounds = array<i64: 1, 18, 18, 48>}, {pipeline_mode = #tpu.pipeline_mode<synchronous>, transform_indices = @transform_2, window_bounds = array<i64: 9, 256, 256>}, {pipeline_mode = #tpu.pipeline_mode<synchronous>, transform_indices = @transform_3, window_bounds = array<i64: 9, 48, 256>}, {pipeline_mode = #tpu.pipeline_mode<synchronous>, transform_indices = @transform_4, window_bounds = array<i64: 1, 256>}, {transform_indices = @transform_5, window_bounds = array<i64: 1, 8, 16, 256>}]} {
    %c8_i32 = arith.constant 8 : i32
    %0 = arith.muli %arg1, %c8_i32 : i32
    %1 = tpu.assume_multiple %0, 8 : i32
    %c0 = arith.constant 0 : index
    %2 = arith.index_cast %1 : i32 to index
    %c0_0 = arith.constant 0 : index
    %c0_1 = arith.constant 0 : index
    %3 = vector.load %arg2[%c0, %2, %c0_0, %c0_1] : memref<1x18x18x256xbf16, #tpu.memory_space<vmem>>, vector<1x10x16x256xbf16>
    %4 = vector.shape_cast %3 : vector<1x10x16x256xbf16> to vector<10x16x256xbf16>
    %c0_2 = arith.constant 0 : index
    %5 = arith.index_cast %1 : i32 to index
    %c0_3 = arith.constant 0 : index
    %c0_4 = arith.constant 0 : index
    %6 = vector.load %arg3[%c0_2, %5, %c0_3, %c0_4] : memref<1x18x18x48xbf16, #tpu.memory_space<vmem>>, vector<1x10x16x48xbf16>
    %7 = vector.shape_cast %6 : vector<1x10x16x48xbf16> to vector<10x16x48xbf16>
    %8 = vector.extract_strided_slice %4 {offsets = [0, 0, 0], sizes = [8, 16, 256], strides = [1, 1, 1]} : vector<10x16x256xbf16> to vector<8x16x256xbf16>
    %9 = vector.shape_cast %8 : vector<8x16x256xbf16> to vector<128x256xbf16>
    %c0_5 = arith.constant 0 : index
    %c0_6 = arith.constant 0 : index
    %c0_7 = arith.constant 0 : index
    %10 = vector.load %arg4[%c0_5, %c0_6, %c0_7] : memref<9x256x256xbf16, #tpu.memory_space<vmem>>, vector<1x256x256xbf16>
    %11 = vector.shape_cast %10 : vector<1x256x256xbf16> to vector<256x256xbf16>
    %cst = arith.constant dense<0.000000e+00> : vector<128x256xf32>
    %12 = tpu.matmul %9, %11, %cst {dimension_numbers = #tpu.dot_dimension_numbers<[1], [0], [0], [1], [0, 0, 1, 1], [], []>} : vector<128x256xbf16>, vector<256x256xbf16>, vector<128x256xf32> -> vector<128x256xf32>
    %13 = vector.extract_strided_slice %7 {offsets = [0, 0, 0], sizes = [8, 16, 48], strides = [1, 1, 1]} : vector<10x16x48xbf16> to vector<8x16x48xbf16>
    %14 = vector.shape_cast %13 : vector<8x16x48xbf16> to vector<128x48xbf16>
    %c0_8 = arith.constant 0 : index
    %c0_9 = arith.constant 0 : index
    %c0_10 = arith.constant 0 : index
    %15 = vector.load %arg5[%c0_8, %c0_9, %c0_10] : memref<9x48x256xbf16, #tpu.memory_space<vmem>>, vector<1x48x256xbf16>
    %16 = vector.shape_cast %15 : vector<1x48x256xbf16> to vector<48x256xbf16>
    %cst_11 = arith.constant dense<0.000000e+00> : vector<128x256xf32>
    %17 = tpu.matmul %14, %16, %cst_11 {dimension_numbers = #tpu.dot_dimension_numbers<[1], [0], [0], [1], [0, 0, 1, 1], [], []>} : vector<128x48xbf16>, vector<48x256xbf16>, vector<128x256xf32> -> vector<128x256xf32>
    %18 = arith.addf %12, %17 : vector<128x256xf32>
    %19 = vector.extract_strided_slice %4 {offsets = [1, 0, 0], sizes = [8, 16, 256], strides = [1, 1, 1]} : vector<10x16x256xbf16> to vector<8x16x256xbf16>
    %20 = vector.shape_cast %19 : vector<8x16x256xbf16> to vector<128x256xbf16>
    %c3 = arith.constant 3 : index
    %c0_12 = arith.constant 0 : index
    %c0_13 = arith.constant 0 : index
    %21 = vector.load %arg4[%c3, %c0_12, %c0_13] : memref<9x256x256xbf16, #tpu.memory_space<vmem>>, vector<1x256x256xbf16>
    %22 = vector.shape_cast %21 : vector<1x256x256xbf16> to vector<256x256xbf16>
    %cst_14 = arith.constant dense<0.000000e+00> : vector<128x256xf32>
    %23 = tpu.matmul %20, %22, %cst_14 {dimension_numbers = #tpu.dot_dimension_numbers<[1], [0], [0], [1], [0, 0, 1, 1], [], []>} : vector<128x256xbf16>, vector<256x256xbf16>, vector<128x256xf32> -> vector<128x256xf32>
    %24 = arith.addf %18, %23 : vector<128x256xf32>
    %25 = vector.extract_strided_slice %7 {offsets = [1, 0, 0], sizes = [8, 16, 48], strides = [1, 1, 1]} : vector<10x16x48xbf16> to vector<8x16x48xbf16>
    %26 = vector.shape_cast %25 : vector<8x16x48xbf16> to vector<128x48xbf16>
    %c3_15 = arith.constant 3 : index
    %c0_16 = arith.constant 0 : index
    %c0_17 = arith.constant 0 : index
    %27 = vector.load %arg5[%c3_15, %c0_16, %c0_17] : memref<9x48x256xbf16, #tpu.memory_space<vmem>>, vector<1x48x256xbf16>
    %28 = vector.shape_cast %27 : vector<1x48x256xbf16> to vector<48x256xbf16>
    %cst_18 = arith.constant dense<0.000000e+00> : vector<128x256xf32>
    %29 = tpu.matmul %26, %28, %cst_18 {dimension_numbers = #tpu.dot_dimension_numbers<[1], [0], [0], [1], [0, 0, 1, 1], [], []>} : vector<128x48xbf16>, vector<48x256xbf16>, vector<128x256xf32> -> vector<128x256xf32>
    %30 = arith.addf %24, %29 : vector<128x256xf32>
    %31 = vector.extract_strided_slice %4 {offsets = [2, 0, 0], sizes = [8, 16, 256], strides = [1, 1, 1]} : vector<10x16x256xbf16> to vector<8x16x256xbf16>
    %32 = vector.shape_cast %31 : vector<8x16x256xbf16> to vector<128x256xbf16>
    %c6 = arith.constant 6 : index
    %c0_19 = arith.constant 0 : index
    %c0_20 = arith.constant 0 : index
    %33 = vector.load %arg4[%c6, %c0_19, %c0_20] : memref<9x256x256xbf16, #tpu.memory_space<vmem>>, vector<1x256x256xbf16>
    %34 = vector.shape_cast %33 : vector<1x256x256xbf16> to vector<256x256xbf16>
    %cst_21 = arith.constant dense<0.000000e+00> : vector<128x256xf32>
    %35 = tpu.matmul %32, %34, %cst_21 {dimension_numbers = #tpu.dot_dimension_numbers<[1], [0], [0], [1], [0, 0, 1, 1], [], []>} : vector<128x256xbf16>, vector<256x256xbf16>, vector<128x256xf32> -> vector<128x256xf32>
    %36 = arith.addf %30, %35 : vector<128x256xf32>
    %37 = vector.extract_strided_slice %7 {offsets = [2, 0, 0], sizes = [8, 16, 48], strides = [1, 1, 1]} : vector<10x16x48xbf16> to vector<8x16x48xbf16>
    %38 = vector.shape_cast %37 : vector<8x16x48xbf16> to vector<128x48xbf16>
    %c6_22 = arith.constant 6 : index
    %c0_23 = arith.constant 0 : index
    %c0_24 = arith.constant 0 : index
    %39 = vector.load %arg5[%c6_22, %c0_23, %c0_24] : memref<9x48x256xbf16, #tpu.memory_space<vmem>>, vector<1x48x256xbf16>
    %40 = vector.shape_cast %39 : vector<1x48x256xbf16> to vector<48x256xbf16>
    %cst_25 = arith.constant dense<0.000000e+00> : vector<128x256xf32>
    %41 = tpu.matmul %38, %40, %cst_25 {dimension_numbers = #tpu.dot_dimension_numbers<[1], [0], [0], [1], [0, 0, 1, 1], [], []>} : vector<128x48xbf16>, vector<48x256xbf16>, vector<128x256xf32> -> vector<128x256xf32>
    %42 = arith.addf %36, %41 : vector<128x256xf32>
    %c0_26 = arith.constant 0 : index
    %43 = arith.index_cast %1 : i32 to index
    %c1 = arith.constant 1 : index
    %c0_27 = arith.constant 0 : index
    %44 = vector.load %arg2[%c0_26, %43, %c1, %c0_27] : memref<1x18x18x256xbf16, #tpu.memory_space<vmem>>, vector<1x10x16x256xbf16>
    %45 = vector.shape_cast %44 : vector<1x10x16x256xbf16> to vector<10x16x256xbf16>
    %c0_28 = arith.constant 0 : index
    %46 = arith.index_cast %1 : i32 to index
    %c1_29 = arith.constant 1 : index
    %c0_30 = arith.constant 0 : index
    %47 = vector.load %arg3[%c0_28, %46, %c1_29, %c0_30] : memref<1x18x18x48xbf16, #tpu.memory_space<vmem>>, vector<1x10x16x48xbf16>
    %48 = vector.shape_cast %47 : vector<1x10x16x48xbf16> to vector<10x16x48xbf16>
    %49 = vector.extract_strided_slice %45 {offsets = [0, 0, 0], sizes = [8, 16, 256], strides = [1, 1, 1]} : vector<10x16x256xbf16> to vector<8x16x256xbf16>
    %50 = vector.shape_cast %49 : vector<8x16x256xbf16> to vector<128x256xbf16>
    %c1_31 = arith.constant 1 : index
    %c0_32 = arith.constant 0 : index
    %c0_33 = arith.constant 0 : index
    %51 = vector.load %arg4[%c1_31, %c0_32, %c0_33] : memref<9x256x256xbf16, #tpu.memory_space<vmem>>, vector<1x256x256xbf16>
    %52 = vector.shape_cast %51 : vector<1x256x256xbf16> to vector<256x256xbf16>
    %cst_34 = arith.constant dense<0.000000e+00> : vector<128x256xf32>
    %53 = tpu.matmul %50, %52, %cst_34 {dimension_numbers = #tpu.dot_dimension_numbers<[1], [0], [0], [1], [0, 0, 1, 1], [], []>} : vector<128x256xbf16>, vector<256x256xbf16>, vector<128x256xf32> -> vector<128x256xf32>
    %54 = arith.addf %42, %53 : vector<128x256xf32>
    %55 = vector.extract_strided_slice %48 {offsets = [0, 0, 0], sizes = [8, 16, 48], strides = [1, 1, 1]} : vector<10x16x48xbf16> to vector<8x16x48xbf16>
    %56 = vector.shape_cast %55 : vector<8x16x48xbf16> to vector<128x48xbf16>
    %c1_35 = arith.constant 1 : index
    %c0_36 = arith.constant 0 : index
    %c0_37 = arith.constant 0 : index
    %57 = vector.load %arg5[%c1_35, %c0_36, %c0_37] : memref<9x48x256xbf16, #tpu.memory_space<vmem>>, vector<1x48x256xbf16>
    %58 = vector.shape_cast %57 : vector<1x48x256xbf16> to vector<48x256xbf16>
    %cst_38 = arith.constant dense<0.000000e+00> : vector<128x256xf32>
    %59 = tpu.matmul %56, %58, %cst_38 {dimension_numbers = #tpu.dot_dimension_numbers<[1], [0], [0], [1], [0, 0, 1, 1], [], []>} : vector<128x48xbf16>, vector<48x256xbf16>, vector<128x256xf32> -> vector<128x256xf32>
    %60 = arith.addf %54, %59 : vector<128x256xf32>
    %61 = vector.extract_strided_slice %45 {offsets = [1, 0, 0], sizes = [8, 16, 256], strides = [1, 1, 1]} : vector<10x16x256xbf16> to vector<8x16x256xbf16>
    %62 = vector.shape_cast %61 : vector<8x16x256xbf16> to vector<128x256xbf16>
    %c4 = arith.constant 4 : index
    %c0_39 = arith.constant 0 : index
    %c0_40 = arith.constant 0 : index
    %63 = vector.load %arg4[%c4, %c0_39, %c0_40] : memref<9x256x256xbf16, #tpu.memory_space<vmem>>, vector<1x256x256xbf16>
    %64 = vector.shape_cast %63 : vector<1x256x256xbf16> to vector<256x256xbf16>
    %cst_41 = arith.constant dense<0.000000e+00> : vector<128x256xf32>
    %65 = tpu.matmul %62, %64, %cst_41 {dimension_numbers = #tpu.dot_dimension_numbers<[1], [0], [0], [1], [0, 0, 1, 1], [], []>} : vector<128x256xbf16>, vector<256x256xbf16>, vector<128x256xf32> -> vector<128x256xf32>
    %66 = arith.addf %60, %65 : vector<128x256xf32>
    %67 = vector.extract_strided_slice %48 {offsets = [1, 0, 0], sizes = [8, 16, 48], strides = [1, 1, 1]} : vector<10x16x48xbf16> to vector<8x16x48xbf16>
    %68 = vector.shape_cast %67 : vector<8x16x48xbf16> to vector<128x48xbf16>
    %c4_42 = arith.constant 4 : index
    %c0_43 = arith.constant 0 : index
    %c0_44 = arith.constant 0 : index
    %69 = vector.load %arg5[%c4_42, %c0_43, %c0_44] : memref<9x48x256xbf16, #tpu.memory_space<vmem>>, vector<1x48x256xbf16>
    %70 = vector.shape_cast %69 : vector<1x48x256xbf16> to vector<48x256xbf16>
    %cst_45 = arith.constant dense<0.000000e+00> : vector<128x256xf32>
    %71 = tpu.matmul %68, %70, %cst_45 {dimension_numbers = #tpu.dot_dimension_numbers<[1], [0], [0], [1], [0, 0, 1, 1], [], []>} : vector<128x48xbf16>, vector<48x256xbf16>, vector<128x256xf32> -> vector<128x256xf32>
    %72 = arith.addf %66, %71 : vector<128x256xf32>
    %73 = vector.extract_strided_slice %45 {offsets = [2, 0, 0], sizes = [8, 16, 256], strides = [1, 1, 1]} : vector<10x16x256xbf16> to vector<8x16x256xbf16>
    %74 = vector.shape_cast %73 : vector<8x16x256xbf16> to vector<128x256xbf16>
    %c7 = arith.constant 7 : index
    %c0_46 = arith.constant 0 : index
    %c0_47 = arith.constant 0 : index
    %75 = vector.load %arg4[%c7, %c0_46, %c0_47] : memref<9x256x256xbf16, #tpu.memory_space<vmem>>, vector<1x256x256xbf16>
    %76 = vector.shape_cast %75 : vector<1x256x256xbf16> to vector<256x256xbf16>
    %cst_48 = arith.constant dense<0.000000e+00> : vector<128x256xf32>
    %77 = tpu.matmul %74, %76, %cst_48 {dimension_numbers = #tpu.dot_dimension_numbers<[1], [0], [0], [1], [0, 0, 1, 1], [], []>} : vector<128x256xbf16>, vector<256x256xbf16>, vector<128x256xf32> -> vector<128x256xf32>
    %78 = arith.addf %72, %77 : vector<128x256xf32>
    %79 = vector.extract_strided_slice %48 {offsets = [2, 0, 0], sizes = [8, 16, 48], strides = [1, 1, 1]} : vector<10x16x48xbf16> to vector<8x16x48xbf16>
    %80 = vector.shape_cast %79 : vector<8x16x48xbf16> to vector<128x48xbf16>
    %c7_49 = arith.constant 7 : index
    %c0_50 = arith.constant 0 : index
    %c0_51 = arith.constant 0 : index
    %81 = vector.load %arg5[%c7_49, %c0_50, %c0_51] : memref<9x48x256xbf16, #tpu.memory_space<vmem>>, vector<1x48x256xbf16>
    %82 = vector.shape_cast %81 : vector<1x48x256xbf16> to vector<48x256xbf16>
    %cst_52 = arith.constant dense<0.000000e+00> : vector<128x256xf32>
    %83 = tpu.matmul %80, %82, %cst_52 {dimension_numbers = #tpu.dot_dimension_numbers<[1], [0], [0], [1], [0, 0, 1, 1], [], []>} : vector<128x48xbf16>, vector<48x256xbf16>, vector<128x256xf32> -> vector<128x256xf32>
    %84 = arith.addf %78, %83 : vector<128x256xf32>
    %c0_53 = arith.constant 0 : index
    %85 = arith.index_cast %1 : i32 to index
    %c2 = arith.constant 2 : index
    %c0_54 = arith.constant 0 : index
    %86 = vector.load %arg2[%c0_53, %85, %c2, %c0_54] : memref<1x18x18x256xbf16, #tpu.memory_space<vmem>>, vector<1x10x16x256xbf16>
    %87 = vector.shape_cast %86 : vector<1x10x16x256xbf16> to vector<10x16x256xbf16>
    %c0_55 = arith.constant 0 : index
    %88 = arith.index_cast %1 : i32 to index
    %c2_56 = arith.constant 2 : index
    %c0_57 = arith.constant 0 : index
    %89 = vector.load %arg3[%c0_55, %88, %c2_56, %c0_57] : memref<1x18x18x48xbf16, #tpu.memory_space<vmem>>, vector<1x10x16x48xbf16>
    %90 = vector.shape_cast %89 : vector<1x10x16x48xbf16> to vector<10x16x48xbf16>
    %91 = vector.extract_strided_slice %87 {offsets = [0, 0, 0], sizes = [8, 16, 256], strides = [1, 1, 1]} : vector<10x16x256xbf16> to vector<8x16x256xbf16>
    %92 = vector.shape_cast %91 : vector<8x16x256xbf16> to vector<128x256xbf16>
    %c2_58 = arith.constant 2 : index
    %c0_59 = arith.constant 0 : index
    %c0_60 = arith.constant 0 : index
    %93 = vector.load %arg4[%c2_58, %c0_59, %c0_60] : memref<9x256x256xbf16, #tpu.memory_space<vmem>>, vector<1x256x256xbf16>
    %94 = vector.shape_cast %93 : vector<1x256x256xbf16> to vector<256x256xbf16>
    %cst_61 = arith.constant dense<0.000000e+00> : vector<128x256xf32>
    %95 = tpu.matmul %92, %94, %cst_61 {dimension_numbers = #tpu.dot_dimension_numbers<[1], [0], [0], [1], [0, 0, 1, 1], [], []>} : vector<128x256xbf16>, vector<256x256xbf16>, vector<128x256xf32> -> vector<128x256xf32>
    %96 = arith.addf %84, %95 : vector<128x256xf32>
    %97 = vector.extract_strided_slice %90 {offsets = [0, 0, 0], sizes = [8, 16, 48], strides = [1, 1, 1]} : vector<10x16x48xbf16> to vector<8x16x48xbf16>
    %98 = vector.shape_cast %97 : vector<8x16x48xbf16> to vector<128x48xbf16>
    %c2_62 = arith.constant 2 : index
    %c0_63 = arith.constant 0 : index
    %c0_64 = arith.constant 0 : index
    %99 = vector.load %arg5[%c2_62, %c0_63, %c0_64] : memref<9x48x256xbf16, #tpu.memory_space<vmem>>, vector<1x48x256xbf16>
    %100 = vector.shape_cast %99 : vector<1x48x256xbf16> to vector<48x256xbf16>
    %cst_65 = arith.constant dense<0.000000e+00> : vector<128x256xf32>
    %101 = tpu.matmul %98, %100, %cst_65 {dimension_numbers = #tpu.dot_dimension_numbers<[1], [0], [0], [1], [0, 0, 1, 1], [], []>} : vector<128x48xbf16>, vector<48x256xbf16>, vector<128x256xf32> -> vector<128x256xf32>
    %102 = arith.addf %96, %101 : vector<128x256xf32>
    %103 = vector.extract_strided_slice %87 {offsets = [1, 0, 0], sizes = [8, 16, 256], strides = [1, 1, 1]} : vector<10x16x256xbf16> to vector<8x16x256xbf16>
    %104 = vector.shape_cast %103 : vector<8x16x256xbf16> to vector<128x256xbf16>
    %c5 = arith.constant 5 : index
    %c0_66 = arith.constant 0 : index
    %c0_67 = arith.constant 0 : index
    %105 = vector.load %arg4[%c5, %c0_66, %c0_67] : memref<9x256x256xbf16, #tpu.memory_space<vmem>>, vector<1x256x256xbf16>
    %106 = vector.shape_cast %105 : vector<1x256x256xbf16> to vector<256x256xbf16>
    %cst_68 = arith.constant dense<0.000000e+00> : vector<128x256xf32>
    %107 = tpu.matmul %104, %106, %cst_68 {dimension_numbers = #tpu.dot_dimension_numbers<[1], [0], [0], [1], [0, 0, 1, 1], [], []>} : vector<128x256xbf16>, vector<256x256xbf16>, vector<128x256xf32> -> vector<128x256xf32>
    %108 = arith.addf %102, %107 : vector<128x256xf32>
    %109 = vector.extract_strided_slice %90 {offsets = [1, 0, 0], sizes = [8, 16, 48], strides = [1, 1, 1]} : vector<10x16x48xbf16> to vector<8x16x48xbf16>
    %110 = vector.shape_cast %109 : vector<8x16x48xbf16> to vector<128x48xbf16>
    %c5_69 = arith.constant 5 : index
    %c0_70 = arith.constant 0 : index
    %c0_71 = arith.constant 0 : index
    %111 = vector.load %arg5[%c5_69, %c0_70, %c0_71] : memref<9x48x256xbf16, #tpu.memory_space<vmem>>, vector<1x48x256xbf16>
    %112 = vector.shape_cast %111 : vector<1x48x256xbf16> to vector<48x256xbf16>
    %cst_72 = arith.constant dense<0.000000e+00> : vector<128x256xf32>
    %113 = tpu.matmul %110, %112, %cst_72 {dimension_numbers = #tpu.dot_dimension_numbers<[1], [0], [0], [1], [0, 0, 1, 1], [], []>} : vector<128x48xbf16>, vector<48x256xbf16>, vector<128x256xf32> -> vector<128x256xf32>
    %114 = arith.addf %108, %113 : vector<128x256xf32>
    %115 = vector.extract_strided_slice %87 {offsets = [2, 0, 0], sizes = [8, 16, 256], strides = [1, 1, 1]} : vector<10x16x256xbf16> to vector<8x16x256xbf16>
    %116 = vector.shape_cast %115 : vector<8x16x256xbf16> to vector<128x256xbf16>
    %c8 = arith.constant 8 : index
    %c0_73 = arith.constant 0 : index
    %c0_74 = arith.constant 0 : index
    %117 = vector.load %arg4[%c8, %c0_73, %c0_74] : memref<9x256x256xbf16, #tpu.memory_space<vmem>>, vector<1x256x256xbf16>
    %118 = vector.shape_cast %117 : vector<1x256x256xbf16> to vector<256x256xbf16>
    %cst_75 = arith.constant dense<0.000000e+00> : vector<128x256xf32>
    %119 = tpu.matmul %116, %118, %cst_75 {dimension_numbers = #tpu.dot_dimension_numbers<[1], [0], [0], [1], [0, 0, 1, 1], [], []>} : vector<128x256xbf16>, vector<256x256xbf16>, vector<128x256xf32> -> vector<128x256xf32>
    %120 = arith.addf %114, %119 : vector<128x256xf32>
    %121 = vector.extract_strided_slice %90 {offsets = [2, 0, 0], sizes = [8, 16, 48], strides = [1, 1, 1]} : vector<10x16x48xbf16> to vector<8x16x48xbf16>
    %122 = vector.shape_cast %121 : vector<8x16x48xbf16> to vector<128x48xbf16>
    %c8_76 = arith.constant 8 : index
    %c0_77 = arith.constant 0 : index
    %c0_78 = arith.constant 0 : index
    %123 = vector.load %arg5[%c8_76, %c0_77, %c0_78] : memref<9x48x256xbf16, #tpu.memory_space<vmem>>, vector<1x48x256xbf16>
    %124 = vector.shape_cast %123 : vector<1x48x256xbf16> to vector<48x256xbf16>
    %cst_79 = arith.constant dense<0.000000e+00> : vector<128x256xf32>
    %125 = tpu.matmul %122, %124, %cst_79 {dimension_numbers = #tpu.dot_dimension_numbers<[1], [0], [0], [1], [0, 0, 1, 1], [], []>} : vector<128x48xbf16>, vector<48x256xbf16>, vector<128x256xf32> -> vector<128x256xf32>
    %126 = arith.addf %120, %125 : vector<128x256xf32>
    %c0_80 = arith.constant 0 : index
    %c0_81 = arith.constant 0 : index
    %127 = vector.load %arg6[%c0_80, %c0_81] : memref<1x256xf32, #tpu.memory_space<vmem>>, vector<1x256xf32>
    %128 = vector.broadcast %127 : vector<1x256xf32> to vector<128x256xf32>
    %129 = arith.addf %126, %128 : vector<128x256xf32>
    %cst_82 = arith.constant 0.000000e+00 : f32
    %130 = vector.broadcast %cst_82 : f32 to vector<128x256xf32>
    %131 = arith.maximumf %129, %130 : vector<128x256xf32>
    %132 = vector.shape_cast %131 : vector<128x256xf32> to vector<8x16x256xf32>
    %133 = arith.truncf %132 : vector<8x16x256xf32> to vector<8x16x256xbf16>
    %c0_83 = arith.constant 0 : index
    %c0_84 = arith.constant 0 : index
    %c0_85 = arith.constant 0 : index
    %c0_86 = arith.constant 0 : index
    %134 = vector.load %arg7[%c0_83, %c0_84, %c0_85, %c0_86] : memref<1x8x16x256xbf16, #tpu.memory_space<vmem>>, vector<1x8x16x256xbf16>
    %135 = vector.shape_cast %134 : vector<1x8x16x256xbf16> to vector<8x16x256xbf16>
    %136 = vector.shape_cast %133 : vector<8x16x256xbf16> to vector<1x8x16x256xbf16>
    tpu.vector_store %arg7[%c0_83, %c0_84, %c0_85, %c0_86], %136 {strides = array<i32>} : memref<1x8x16x256xbf16, #tpu.memory_space<vmem>>, vector<1x8x16x256xbf16>,
    return
  }
  func.func @transform_0(%arg0: i32, %arg1: i32) -> (i32, i32, i32, i32) {
    %c0_i32 = arith.constant 0 : i32
    %c0_i32_0 = arith.constant 0 : i32
    %c0_i32_1 = arith.constant 0 : i32
    %c0_i32_2 = arith.constant 0 : i32
    return %arg0, %c0_i32, %c0_i32_0, %c0_i32_1 : i32, i32, i32, i32
  }
  func.func @transform_1(%arg0: i32, %arg1: i32) -> (i32, i32, i32, i32) {
    %c0_i32 = arith.constant 0 : i32
    %c0_i32_0 = arith.constant 0 : i32
    %c0_i32_1 = arith.constant 0 : i32
    %c0_i32_2 = arith.constant 0 : i32
    return %arg0, %c0_i32, %c0_i32_0, %c0_i32_1 : i32, i32, i32, i32
  }
  func.func @transform_2(%arg0: i32, %arg1: i32) -> (i32, i32, i32) {
    %c0_i32 = arith.constant 0 : i32
    %c0_i32_0 = arith.constant 0 : i32
    %c0_i32_1 = arith.constant 0 : i32
    %c0_i32_2 = arith.constant 0 : i32
    return %c0_i32, %c0_i32_0, %c0_i32_1 : i32, i32, i32
  }
  func.func @transform_3(%arg0: i32, %arg1: i32) -> (i32, i32, i32) {
    %c0_i32 = arith.constant 0 : i32
    %c0_i32_0 = arith.constant 0 : i32
    %c0_i32_1 = arith.constant 0 : i32
    %c0_i32_2 = arith.constant 0 : i32
    return %c0_i32, %c0_i32_0, %c0_i32_1 : i32, i32, i32
  }
  func.func @transform_4(%arg0: i32, %arg1: i32) -> (i32, i32) {
    %c0_i32 = arith.constant 0 : i32
    %c0_i32_0 = arith.constant 0 : i32
    %c0_i32_1 = arith.constant 0 : i32
    return %c0_i32, %c0_i32_0 : i32, i32
  }
  func.func @transform_5(%arg0: i32, %arg1: i32) -> (i32, i32, i32, i32) {
    %c0_i32 = arith.constant 0 : i32
    %c0_i32_0 = arith.constant 0 : i32
    %c0_i32_1 = arith.constant 0 : i32
    return %arg0, %arg1, %c0_i32, %c0_i32_0 : i32, i32, i32, i32
  }
}

module attributes {stable_mosaic.version = 11 : i64} {
  func.func @_conv3x3_cls_kernel(%arg0: i32, %arg1: i32, %arg2: memref<1x18x18x256xbf16, #tpu.memory_space<vmem>>, %arg3: memref<9x256x256xbf16, #tpu.memory_space<vmem>>, %arg4: memref<1x256xf32, #tpu.memory_space<vmem>>, %arg5: memref<8x256xbf16, #tpu.memory_space<vmem>>, %arg6: memref<8x1xf32, #tpu.memory_space<vmem>>, %arg7: memref<1x8x128xf32, #tpu.memory_space<vmem>>) attributes {dimension_semantics = [#tpu.dimension_semantics<parallel>, #tpu.dimension_semantics<arbitrary>], iteration_bounds = array<i64: 2, 2>, scalar_prefetch = 0 : i64, scratch_operands = 0 : i64, tpu.core_type = #tpu.core_type<tc>, window_params = [{transform_indices = @transform_0, window_bounds = array<i64: 1, 18, 18, 256>}, {pipeline_mode = #tpu.pipeline_mode<synchronous>, transform_indices = @transform_1, window_bounds = array<i64: 9, 256, 256>}, {pipeline_mode = #tpu.pipeline_mode<synchronous>, transform_indices = @transform_2, window_bounds = array<i64: 1, 256>}, {pipeline_mode = #tpu.pipeline_mode<synchronous>, transform_indices = @transform_3, window_bounds = array<i64: 8, 256>}, {pipeline_mode = #tpu.pipeline_mode<synchronous>, transform_indices = @transform_4, window_bounds = array<i64: 8, 1>}, {transform_indices = @transform_5, window_bounds = array<i64: 1, 8, 128>}]} {
    %c8_i32 = arith.constant 8 : i32
    %0 = arith.muli %arg1, %c8_i32 : i32
    %1 = tpu.assume_multiple %0, 8 : i32
    %c0 = arith.constant 0 : index
    %2 = arith.index_cast %1 : i32 to index
    %c0_0 = arith.constant 0 : index
    %c0_1 = arith.constant 0 : index
    %3 = vector.load %arg2[%c0, %2, %c0_0, %c0_1] : memref<1x18x18x256xbf16, #tpu.memory_space<vmem>>, vector<1x10x16x256xbf16>
    %4 = vector.shape_cast %3 : vector<1x10x16x256xbf16> to vector<10x16x256xbf16>
    %5 = vector.extract_strided_slice %4 {offsets = [0, 0, 0], sizes = [8, 16, 256], strides = [1, 1, 1]} : vector<10x16x256xbf16> to vector<8x16x256xbf16>
    %6 = vector.shape_cast %5 : vector<8x16x256xbf16> to vector<128x256xbf16>
    %c0_2 = arith.constant 0 : index
    %c0_3 = arith.constant 0 : index
    %c0_4 = arith.constant 0 : index
    %7 = vector.load %arg3[%c0_2, %c0_3, %c0_4] : memref<9x256x256xbf16, #tpu.memory_space<vmem>>, vector<1x256x256xbf16>
    %8 = vector.shape_cast %7 : vector<1x256x256xbf16> to vector<256x256xbf16>
    %cst = arith.constant dense<0.000000e+00> : vector<128x256xf32>
    %9 = tpu.matmul %6, %8, %cst {dimension_numbers = #tpu.dot_dimension_numbers<[1], [0], [0], [1], [0, 0, 1, 1], [], []>} : vector<128x256xbf16>, vector<256x256xbf16>, vector<128x256xf32> -> vector<128x256xf32>
    %10 = vector.extract_strided_slice %4 {offsets = [1, 0, 0], sizes = [8, 16, 256], strides = [1, 1, 1]} : vector<10x16x256xbf16> to vector<8x16x256xbf16>
    %11 = vector.shape_cast %10 : vector<8x16x256xbf16> to vector<128x256xbf16>
    %c3 = arith.constant 3 : index
    %c0_5 = arith.constant 0 : index
    %c0_6 = arith.constant 0 : index
    %12 = vector.load %arg3[%c3, %c0_5, %c0_6] : memref<9x256x256xbf16, #tpu.memory_space<vmem>>, vector<1x256x256xbf16>
    %13 = vector.shape_cast %12 : vector<1x256x256xbf16> to vector<256x256xbf16>
    %cst_7 = arith.constant dense<0.000000e+00> : vector<128x256xf32>
    %14 = tpu.matmul %11, %13, %cst_7 {dimension_numbers = #tpu.dot_dimension_numbers<[1], [0], [0], [1], [0, 0, 1, 1], [], []>} : vector<128x256xbf16>, vector<256x256xbf16>, vector<128x256xf32> -> vector<128x256xf32>
    %15 = arith.addf %9, %14 : vector<128x256xf32>
    %16 = vector.extract_strided_slice %4 {offsets = [2, 0, 0], sizes = [8, 16, 256], strides = [1, 1, 1]} : vector<10x16x256xbf16> to vector<8x16x256xbf16>
    %17 = vector.shape_cast %16 : vector<8x16x256xbf16> to vector<128x256xbf16>
    %c6 = arith.constant 6 : index
    %c0_8 = arith.constant 0 : index
    %c0_9 = arith.constant 0 : index
    %18 = vector.load %arg3[%c6, %c0_8, %c0_9] : memref<9x256x256xbf16, #tpu.memory_space<vmem>>, vector<1x256x256xbf16>
    %19 = vector.shape_cast %18 : vector<1x256x256xbf16> to vector<256x256xbf16>
    %cst_10 = arith.constant dense<0.000000e+00> : vector<128x256xf32>
    %20 = tpu.matmul %17, %19, %cst_10 {dimension_numbers = #tpu.dot_dimension_numbers<[1], [0], [0], [1], [0, 0, 1, 1], [], []>} : vector<128x256xbf16>, vector<256x256xbf16>, vector<128x256xf32> -> vector<128x256xf32>
    %21 = arith.addf %15, %20 : vector<128x256xf32>
    %c0_11 = arith.constant 0 : index
    %22 = arith.index_cast %1 : i32 to index
    %c1 = arith.constant 1 : index
    %c0_12 = arith.constant 0 : index
    %23 = vector.load %arg2[%c0_11, %22, %c1, %c0_12] : memref<1x18x18x256xbf16, #tpu.memory_space<vmem>>, vector<1x10x16x256xbf16>
    %24 = vector.shape_cast %23 : vector<1x10x16x256xbf16> to vector<10x16x256xbf16>
    %25 = vector.extract_strided_slice %24 {offsets = [0, 0, 0], sizes = [8, 16, 256], strides = [1, 1, 1]} : vector<10x16x256xbf16> to vector<8x16x256xbf16>
    %26 = vector.shape_cast %25 : vector<8x16x256xbf16> to vector<128x256xbf16>
    %c1_13 = arith.constant 1 : index
    %c0_14 = arith.constant 0 : index
    %c0_15 = arith.constant 0 : index
    %27 = vector.load %arg3[%c1_13, %c0_14, %c0_15] : memref<9x256x256xbf16, #tpu.memory_space<vmem>>, vector<1x256x256xbf16>
    %28 = vector.shape_cast %27 : vector<1x256x256xbf16> to vector<256x256xbf16>
    %cst_16 = arith.constant dense<0.000000e+00> : vector<128x256xf32>
    %29 = tpu.matmul %26, %28, %cst_16 {dimension_numbers = #tpu.dot_dimension_numbers<[1], [0], [0], [1], [0, 0, 1, 1], [], []>} : vector<128x256xbf16>, vector<256x256xbf16>, vector<128x256xf32> -> vector<128x256xf32>
    %30 = arith.addf %21, %29 : vector<128x256xf32>
    %31 = vector.extract_strided_slice %24 {offsets = [1, 0, 0], sizes = [8, 16, 256], strides = [1, 1, 1]} : vector<10x16x256xbf16> to vector<8x16x256xbf16>
    %32 = vector.shape_cast %31 : vector<8x16x256xbf16> to vector<128x256xbf16>
    %c4 = arith.constant 4 : index
    %c0_17 = arith.constant 0 : index
    %c0_18 = arith.constant 0 : index
    %33 = vector.load %arg3[%c4, %c0_17, %c0_18] : memref<9x256x256xbf16, #tpu.memory_space<vmem>>, vector<1x256x256xbf16>
    %34 = vector.shape_cast %33 : vector<1x256x256xbf16> to vector<256x256xbf16>
    %cst_19 = arith.constant dense<0.000000e+00> : vector<128x256xf32>
    %35 = tpu.matmul %32, %34, %cst_19 {dimension_numbers = #tpu.dot_dimension_numbers<[1], [0], [0], [1], [0, 0, 1, 1], [], []>} : vector<128x256xbf16>, vector<256x256xbf16>, vector<128x256xf32> -> vector<128x256xf32>
    %36 = arith.addf %30, %35 : vector<128x256xf32>
    %37 = vector.extract_strided_slice %24 {offsets = [2, 0, 0], sizes = [8, 16, 256], strides = [1, 1, 1]} : vector<10x16x256xbf16> to vector<8x16x256xbf16>
    %38 = vector.shape_cast %37 : vector<8x16x256xbf16> to vector<128x256xbf16>
    %c7 = arith.constant 7 : index
    %c0_20 = arith.constant 0 : index
    %c0_21 = arith.constant 0 : index
    %39 = vector.load %arg3[%c7, %c0_20, %c0_21] : memref<9x256x256xbf16, #tpu.memory_space<vmem>>, vector<1x256x256xbf16>
    %40 = vector.shape_cast %39 : vector<1x256x256xbf16> to vector<256x256xbf16>
    %cst_22 = arith.constant dense<0.000000e+00> : vector<128x256xf32>
    %41 = tpu.matmul %38, %40, %cst_22 {dimension_numbers = #tpu.dot_dimension_numbers<[1], [0], [0], [1], [0, 0, 1, 1], [], []>} : vector<128x256xbf16>, vector<256x256xbf16>, vector<128x256xf32> -> vector<128x256xf32>
    %42 = arith.addf %36, %41 : vector<128x256xf32>
    %c0_23 = arith.constant 0 : index
    %43 = arith.index_cast %1 : i32 to index
    %c2 = arith.constant 2 : index
    %c0_24 = arith.constant 0 : index
    %44 = vector.load %arg2[%c0_23, %43, %c2, %c0_24] : memref<1x18x18x256xbf16, #tpu.memory_space<vmem>>, vector<1x10x16x256xbf16>
    %45 = vector.shape_cast %44 : vector<1x10x16x256xbf16> to vector<10x16x256xbf16>
    %46 = vector.extract_strided_slice %45 {offsets = [0, 0, 0], sizes = [8, 16, 256], strides = [1, 1, 1]} : vector<10x16x256xbf16> to vector<8x16x256xbf16>
    %47 = vector.shape_cast %46 : vector<8x16x256xbf16> to vector<128x256xbf16>
    %c2_25 = arith.constant 2 : index
    %c0_26 = arith.constant 0 : index
    %c0_27 = arith.constant 0 : index
    %48 = vector.load %arg3[%c2_25, %c0_26, %c0_27] : memref<9x256x256xbf16, #tpu.memory_space<vmem>>, vector<1x256x256xbf16>
    %49 = vector.shape_cast %48 : vector<1x256x256xbf16> to vector<256x256xbf16>
    %cst_28 = arith.constant dense<0.000000e+00> : vector<128x256xf32>
    %50 = tpu.matmul %47, %49, %cst_28 {dimension_numbers = #tpu.dot_dimension_numbers<[1], [0], [0], [1], [0, 0, 1, 1], [], []>} : vector<128x256xbf16>, vector<256x256xbf16>, vector<128x256xf32> -> vector<128x256xf32>
    %51 = arith.addf %42, %50 : vector<128x256xf32>
    %52 = vector.extract_strided_slice %45 {offsets = [1, 0, 0], sizes = [8, 16, 256], strides = [1, 1, 1]} : vector<10x16x256xbf16> to vector<8x16x256xbf16>
    %53 = vector.shape_cast %52 : vector<8x16x256xbf16> to vector<128x256xbf16>
    %c5 = arith.constant 5 : index
    %c0_29 = arith.constant 0 : index
    %c0_30 = arith.constant 0 : index
    %54 = vector.load %arg3[%c5, %c0_29, %c0_30] : memref<9x256x256xbf16, #tpu.memory_space<vmem>>, vector<1x256x256xbf16>
    %55 = vector.shape_cast %54 : vector<1x256x256xbf16> to vector<256x256xbf16>
    %cst_31 = arith.constant dense<0.000000e+00> : vector<128x256xf32>
    %56 = tpu.matmul %53, %55, %cst_31 {dimension_numbers = #tpu.dot_dimension_numbers<[1], [0], [0], [1], [0, 0, 1, 1], [], []>} : vector<128x256xbf16>, vector<256x256xbf16>, vector<128x256xf32> -> vector<128x256xf32>
    %57 = arith.addf %51, %56 : vector<128x256xf32>
    %58 = vector.extract_strided_slice %45 {offsets = [2, 0, 0], sizes = [8, 16, 256], strides = [1, 1, 1]} : vector<10x16x256xbf16> to vector<8x16x256xbf16>
    %59 = vector.shape_cast %58 : vector<8x16x256xbf16> to vector<128x256xbf16>
    %c8 = arith.constant 8 : index
    %c0_32 = arith.constant 0 : index
    %c0_33 = arith.constant 0 : index
    %60 = vector.load %arg3[%c8, %c0_32, %c0_33] : memref<9x256x256xbf16, #tpu.memory_space<vmem>>, vector<1x256x256xbf16>
    %61 = vector.shape_cast %60 : vector<1x256x256xbf16> to vector<256x256xbf16>
    %cst_34 = arith.constant dense<0.000000e+00> : vector<128x256xf32>
    %62 = tpu.matmul %59, %61, %cst_34 {dimension_numbers = #tpu.dot_dimension_numbers<[1], [0], [0], [1], [0, 0, 1, 1], [], []>} : vector<128x256xbf16>, vector<256x256xbf16>, vector<128x256xf32> -> vector<128x256xf32>
    %63 = arith.addf %57, %62 : vector<128x256xf32>
    %c0_35 = arith.constant 0 : index
    %c0_36 = arith.constant 0 : index
    %64 = vector.load %arg4[%c0_35, %c0_36] : memref<1x256xf32, #tpu.memory_space<vmem>>, vector<1x256xf32>
    %65 = vector.broadcast %64 : vector<1x256xf32> to vector<128x256xf32>
    %66 = arith.addf %63, %65 : vector<128x256xf32>
    %cst_37 = arith.constant 0.000000e+00 : f32
    %67 = vector.broadcast %cst_37 : f32 to vector<128x256xf32>
    %68 = arith.maximumf %66, %67 : vector<128x256xf32>
    %69 = arith.truncf %68 : vector<128x256xf32> to vector<128x256xbf16>
    %c0_38 = arith.constant 0 : index
    %c0_39 = arith.constant 0 : index
    %70 = vector.load %arg5[%c0_38, %c0_39] : memref<8x256xbf16, #tpu.memory_space<vmem>>, vector<8x256xbf16>
    %71 = tpu.transpose %69, [1, 0] : vector<128x256xbf16> -> vector<256x128xbf16>
    %cst_40 = arith.constant dense<0.000000e+00> : vector<8x128xf32>
    %72 = tpu.matmul %70, %71, %cst_40 {dimension_numbers = #tpu.dot_dimension_numbers<[1], [0], [0], [1], [0, 0, 1, 1], [], []>} : vector<8x256xbf16>, vector<256x128xbf16>, vector<8x128xf32> -> vector<8x128xf32>
    %c0_41 = arith.constant 0 : index
    %c0_42 = arith.constant 0 : index
    %73 = vector.load %arg6[%c0_41, %c0_42] : memref<8x1xf32, #tpu.memory_space<vmem>>, vector<8x1xf32>
    %74 = vector.broadcast %73 : vector<8x1xf32> to vector<8x128xf32>
    %75 = arith.addf %72, %74 : vector<8x128xf32>
    %c0_43 = arith.constant 0 : index
    %c0_44 = arith.constant 0 : index
    %c0_45 = arith.constant 0 : index
    %76 = vector.load %arg7[%c0_43, %c0_44, %c0_45] : memref<1x8x128xf32, #tpu.memory_space<vmem>>, vector<1x8x128xf32>
    %77 = vector.shape_cast %76 : vector<1x8x128xf32> to vector<8x128xf32>
    %78 = vector.shape_cast %75 : vector<8x128xf32> to vector<1x8x128xf32>
    tpu.vector_store %arg7[%c0_43, %c0_44, %c0_45], %78 {strides = array<i32>} : memref<1x8x128xf32, #tpu.memory_space<vmem>>, vector<1x8x128xf32>,
    return
  }
  func.func @transform_0(%arg0: i32, %arg1: i32) -> (i32, i32, i32, i32) {
    %c0_i32 = arith.constant 0 : i32
    %c0_i32_0 = arith.constant 0 : i32
    %c0_i32_1 = arith.constant 0 : i32
    %c0_i32_2 = arith.constant 0 : i32
    return %arg0, %c0_i32, %c0_i32_0, %c0_i32_1 : i32, i32, i32, i32
  }
  func.func @transform_1(%arg0: i32, %arg1: i32) -> (i32, i32, i32) {
    %c0_i32 = arith.constant 0 : i32
    %c0_i32_0 = arith.constant 0 : i32
    %c0_i32_1 = arith.constant 0 : i32
    %c0_i32_2 = arith.constant 0 : i32
    return %c0_i32, %c0_i32_0, %c0_i32_1 : i32, i32, i32
  }
  func.func @transform_2(%arg0: i32, %arg1: i32) -> (i32, i32) {
    %c0_i32 = arith.constant 0 : i32
    %c0_i32_0 = arith.constant 0 : i32
    %c0_i32_1 = arith.constant 0 : i32
    return %c0_i32, %c0_i32_0 : i32, i32
  }
  func.func @transform_3(%arg0: i32, %arg1: i32) -> (i32, i32) {
    %c0_i32 = arith.constant 0 : i32
    %c0_i32_0 = arith.constant 0 : i32
    %c0_i32_1 = arith.constant 0 : i32
    return %c0_i32, %c0_i32_0 : i32, i32
  }
  func.func @transform_4(%arg0: i32, %arg1: i32) -> (i32, i32) {
    %c0_i32 = arith.constant 0 : i32
    %c0_i32_0 = arith.constant 0 : i32
    %c0_i32_1 = arith.constant 0 : i32
    return %c0_i32, %c0_i32_0 : i32, i32
  }
  func.func @transform_5(%arg0: i32, %arg1: i32) -> (i32, i32, i32) {
    %c0_i32 = arith.constant 0 : i32
    %c0_i32_0 = arith.constant 0 : i32
    return %arg0, %c0_i32, %arg1 : i32, i32, i32
  }
}

</mosaic_0001>

<llo_original>
// kernel: decoder_forward.3
$region0: #{decoder_forward.3}
  #allocation0 [shape = 'u32[]', space=smem, size = 0x4, offset = 0x4, fixed_abs, tag = 'smem constant byte address 0x4 - core index']
  #allocation1 [shape = 'u32[144,128]{1,0:T(1,128)}', space=vmem, size = 0x12000, scoped, tag = 'internal scratch']
  %s0 = inlined_call_operand.vmem [shape: bf16[512,24], index: 0, kind: input, shape index: {}]
  %s1 = inlined_call_operand.vmem [shape: bf16[24,48], index: 1, kind: input, shape index: {}]
  %s2 = inlined_call_operand.vmem [shape: f32[1,48], index: 2, kind: input, shape index: {}]
  %s3 = inlined_call_operand.vmem [shape: bf16[512,48], index: 3, kind: output, shape index: {}]
  %s4 = sld [smem:[#allocation0]]
  $region22: #{decoder_forward.3} parent=0
    _
  %s6 = ssub.s32 1, %s4
  %s7 = scalar_select 0, %s6, %s4
  // Predicated region
  $region2: #{decoder_forward.3} parent=0 // pred_check
    _
  $region3: #{decoder_forward.3} parent=0 // pred_check_branch
    %9 = sbr.rel (0) target = $region5
  $region4: #{decoder_forward.3} parent=0 // pred_region
    _
  $region5: #{decoder_forward.3} parent=0 // pred_fallthru
    _
  // Predicated region
  $region6: #{decoder_forward.3} parent=0 // pred_check
    _
  $region7: #{decoder_forward.3} parent=0 // pred_check_branch
    %11 = sbr.rel (0) target = $region9
  $region8: #{decoder_forward.3} parent=0 // pred_region
    _
  $region9: #{decoder_forward.3} parent=0 // pred_fallthru
    _
  // Predicated region
  $region10: #{decoder_forward.3} parent=0 // pred_check
    _
  $region11: #{decoder_forward.3} parent=0 // pred_check_branch
    %13 = sbr.rel (0) target = $region13
  $region12: #{decoder_forward.3} parent=0 // pred_region
    _
  $region13: #{decoder_forward.3} parent=0 // pred_fallthru
    _
  %v15 = vld [vmem:[%s0] sm:$0xf]
  %v16 = vld [vmem:[%s0 + $0x4] sm:$0xf]
  %v17 = vld [vmem:[%s0 + $0x8] sm:$0xf]
  %v18 = vld [vmem:[%s0 + $0xc] sm:$0xf]
  %v19 = vld [vmem:[%s0 + $0x10] sm:$0xf]
  %v20 = vld [vmem:[%s0 + $0x14] sm:$0xf]
  %v21 = vld [vmem:[%s0 + $0x18] sm:$0xf]
  %v22 = vld [vmem:[%s0 + $0x1c] sm:$0xf]
  %v23 = vld [vmem:[%s0 + $0x20] sm:$0xf]
  %v24 = vld [vmem:[%s0 + $0x24] sm:$0xf]
  %v25 = vld [vmem:[%s0 + $0x28] sm:$0xf]
  %v26 = vld [vmem:[%s0 + $0x2c] sm:$0xf]
  %v27 = vld [vmem:[%s0 + $0x30] sm:$0xf]
  %v28 = vld [vmem:[%s0 + $0x34] sm:$0xf]
  %v29 = vld [vmem:[%s0 + $0x38] sm:$0xf]
  %v30 = vld [vmem:[%s0 + $0x3c] sm:$0xf]
  %v31 = vld [vmem:[%s0 + $0x40] sm:$0xf]
  %v32 = vld [vmem:[%s0 + $0x44] sm:$0xf]
  %v33 = vld [vmem:[%s0 + $0x48] sm:$0xf]
  %v34 = vld [vmem:[%s0 + $0x4c] sm:$0xf]
  %v35 = vld [vmem:[%s0 + $0x50] sm:$0xf]
  %v36 = vld [vmem:[%s0 + $0x54] sm:$0xf]
  %v37 = vld [vmem:[%s0 + $0x58] sm:$0xf]
  %v38 = vld [vmem:[%s0 + $0x5c] sm:$0xf]
  %v39 = vld [vmem:[%s0 + $0x60] sm:$0xf]
  %v40 = vld [vmem:[%s0 + $0x64] sm:$0xf]
  %v41 = vld [vmem:[%s0 + $0x68] sm:$0xf]
  %v42 = vld [vmem:[%s0 + $0x6c] sm:$0xf]
  %v43 = vld [vmem:[%s0 + $0x70] sm:$0xf]
  %v44 = vld [vmem:[%s0 + $0x74] sm:$0xf]
  %v45 = vld [vmem:[%s0 + $0x78] sm:$0xf]
  %v46 = vld [vmem:[%s0 + $0x7c] sm:$0xf]
  %v47 = vld [vmem:[%s0 + $0x80] sm:$0xf]
  %v48 = vld [vmem:[%s0 + $0x84] sm:$0xf]
  %v49 = vld [vmem:[%s0 + $0x88] sm:$0xf]
  %v50 = vld [vmem:[%s0 + $0x8c] sm:$0xf]
  %v51 = vld [vmem:[%s0 + $0x90] sm:$0xf]
  %v52 = vld [vmem:[%s0 + $0x94] sm:$0xf]
  %v53 = vld [vmem:[%s0 + $0x98] sm:$0xf]
  %v54 = vld [vmem:[%s0 + $0x9c] sm:$0xf]
  %v55 = vld [vmem:[%s0 + $0xa0] sm:$0xf]
  %v56 = vld [vmem:[%s0 + $0xa4] sm:$0xf]
  %v57 = vld [vmem:[%s0 + $0xa8] sm:$0xf]
  %v58 = vld [vmem:[%s0 + $0xac] sm:$0xf]
  %v59 = vld [vmem:[%s0 + $0xb0] sm:$0xf]
  %v60 = vld [vmem:[%s0 + $0xb4] sm:$0xf]
  %v61 = vld [vmem:[%s0 + $0xb8] sm:$0xf]
  %v62 = vld [vmem:[%s0 + $0xbc] sm:$0xf]
  %v63 = vld [vmem:[%s0 + $0xc0] sm:$0xf]
  %v64 = vld [vmem:[%s0 + $0xc4] sm:$0xf]
  %v65 = vld [vmem:[%s0 + $0xc8] sm:$0xf]
  %v66 = vld [vmem:[%s0 + $0xcc] sm:$0xf]
  %v67 = vld [vmem:[%s0 + $0xd0] sm:$0xf]
  %v68 = vld [vmem:[%s0 + $0xd4] sm:$0xf]
  %v69 = vld [vmem:[%s0 + $0xd8] sm:$0xf]
  %v70 = vld [vmem:[%s0 + $0xdc] sm:$0xf]
  %v71 = vld [vmem:[%s0 + $0xe0] sm:$0xf]
  %v72 = vld [vmem:[%s0 + $0xe4] sm:$0xf]
  %v73 = vld [vmem:[%s0 + $0xe8] sm:$0xf]
  %v74 = vld [vmem:[%s0 + $0xec] sm:$0xf]
  %v75 = vld [vmem:[%s0 + $0xf0] sm:$0xf]
  %v76 = vld [vmem:[%s0 + $0xf4] sm:$0xf]
  %v77 = vld [vmem:[%s0 + $0xf8] sm:$0xf]
  %v78 = vld [vmem:[%s0 + $0xfc] sm:$0xf]
  %v79 = vld [vmem:[%s1] sm:$0xf]
  %v80 = vld [vmem:[%s1 + $0x4] sm:$0xf]
  %v81 = vld [vmem:[%s1 + $0x8] sm:$0xf]
  %v82 = vld [vmem:[%s2] sm:$0x1]
  %v84 = vlaneseq
  %v85 = vshrl.u32 %v84, 7
  %v86 = vsub.s32 0, %v85
  %v87 = vrot.slane %v82, %v86
  %v153 = vunpack.c.l.b16 %v15
  %v154 = vunpack.c.l.b16 %v16
  %v155 = vunpack.c.l.b16 %v17
  %v156 = vunpack.c.l.b16 %v18
  %v157 = vunpack.c.l.b16 %v19
  %v158 = vunpack.c.l.b16 %v20
  %v159 = vunpack.c.l.b16 %v21
  %v160 = vunpack.c.l.b16 %v22
  %v161 = vunpack.c.l.b16 %v23
  %v162 = vunpack.c.l.b16 %v24
  %v163 = vunpack.c.l.b16 %v25
  %v164 = vunpack.c.l.b16 %v26
  %v165 = vunpack.c.l.b16 %v27
  %v166 = vunpack.c.l.b16 %v28
  %v167 = vunpack.c.l.b16 %v29
  %v168 = vunpack.c.l.b16 %v30
  %v169 = vunpack.c.l.b16 %v31
  %v170 = vunpack.c.l.b16 %v32
  %v171 = vunpack.c.l.b16 %v33
  %v172 = vunpack.c.l.b16 %v34
  %v173 = vunpack.c.l.b16 %v35
  %v174 = vunpack.c.l.b16 %v36
  %v175 = vunpack.c.l.b16 %v37
  %v176 = vunpack.c.l.b16 %v38
  %v177 = vunpack.c.l.b16 %v39
  %v178 = vunpack.c.l.b16 %v40
  %v179 = vunpack.c.l.b16 %v41
  %v180 = vunpack.c.l.b16 %v42
  %v181 = vunpack.c.l.b16 %v43
  %v182 = vunpack.c.l.b16 %v44
  %v183 = vunpack.c.l.b16 %v45
  %v184 = vunpack.c.l.b16 %v46
  %v185 = vunpack.c.l.b16 %v47
  %v186 = vunpack.c.l.b16 %v48
  %v187 = vunpack.c.l.b16 %v49
  %v188 = vunpack.c.l.b16 %v50
  %v189 = vunpack.c.l.b16 %v51
  %v190 = vunpack.c.l.b16 %v52
  %v191 = vunpack.c.l.b16 %v53
  %v192 = vunpack.c.l.b16 %v54
  %v193 = vunpack.c.l.b16 %v55
  %v194 = vunpack.c.l.b16 %v56
  %v195 = vunpack.c.l.b16 %v57
  %v196 = vunpack.c.l.b16 %v58
  %v197 = vunpack.c.l.b16 %v59
  %v198 = vunpack.c.l.b16 %v60
  %v199 = vunpack.c.l.b16 %v61
  %v200 = vunpack.c.l.b16 %v62
  %v201 = vunpack.c.l.b16 %v63
  %v202 = vunpack.c.l.b16 %v64
  %v203 = vunpack.c.l.b16 %v65
  %v204 = vunpack.c.l.b16 %v66
  %v205 = vunpack.c.l.b16 %v67
  %v206 = vunpack.c.l.b16 %v68
  %v207 = vunpack.c.l.b16 %v69
  %v208 = vunpack.c.l.b16 %v70
  %v209 = vunpack.c.l.b16 %v71
  %v210 = vunpack.c.l.b16 %v72
  %v211 = vunpack.c.l.b16 %v73
  %v212 = vunpack.c.l.b16 %v74
  %v213 = vunpack.c.l.b16 %v75
  %v214 = vunpack.c.l.b16 %v76
  %v215 = vunpack.c.l.b16 %v77
  %v216 = vunpack.c.l.b16 %v78
  %v217 = vpack.c.b16 %v154, %v153
  %v218 = vpack.c.b16 %v156, %v155
  %v219 = vpack.c.b16 %v158, %v157
  %v220 = vpack.c.b16 %v160, %v159
  %v221 = vpack.c.b16 %v162, %v161
  %v222 = vpack.c.b16 %v164, %v163
  %v223 = vpack.c.b16 %v166, %v165
  %v224 = vpack.c.b16 %v168, %v167
  %v225 = vpack.c.b16 %v170, %v169
  %v226 = vpack.c.b16 %v172, %v171
  %v227 = vpack.c.b16 %v174, %v173
  %v228 = vpack.c.b16 %v176, %v175
  %v229 = vpack.c.b16 %v178, %v177
  %v230 = vpack.c.b16 %v180, %v179
  %v231 = vpack.c.b16 %v182, %v181
  %v232 = vpack.c.b16 %v184, %v183
  %v233 = vpack.c.b16 %v186, %v185
  %v234 = vpack.c.b16 %v188, %v187
  %v235 = vpack.c.b16 %v190, %v189
  %v236 = vpack.c.b16 %v192, %v191
  %v237 = vpack.c.b16 %v194, %v193
  %v238 = vpack.c.b16 %v196, %v195
  %v239 = vpack.c.b16 %v198, %v197
  %v240 = vpack.c.b16 %v200, %v199
  %v241 = vpack.c.b16 %v202, %v201
  %v242 = vpack.c.b16 %v204, %v203
  %v243 = vpack.c.b16 %v206, %v205
  %v244 = vpack.c.b16 %v208, %v207
  %v245 = vpack.c.b16 %v210, %v209
  %v246 = vpack.c.b16 %v212, %v211
  %v247 = vpack.c.b16 %v214, %v213
  %v248 = vpack.c.b16 %v216, %v215
  %v252 = vunpack.c.l.b16 %v79
  %v253 = vunpack.c.l.b16 %v80
  %v254 = vunpack.c.l.b16 %v81
  %v255 = vpack.c.b16 %v253, %v252
  %v256 = vpack.c.b16 %v254, %v254
  %vm258 = vcmask 195584
  %v260 = vsel %vm258, %v217, 0
  %v263 = vsel %vm258, %v218, 0
  %v266 = vsel %vm258, %v219, 0
  %v269 = vsel %vm258, %v220, 0
  %v272 = vsel %vm258, %v221, 0
  %v275 = vsel %vm258, %v222, 0
  %v278 = vsel %vm258, %v223, 0
  %v281 = vsel %vm258, %v224, 0
  %v284 = vsel %vm258, %v225, 0
  %v287 = vsel %vm258, %v226, 0
  %v290 = vsel %vm258, %v227, 0
  %v293 = vsel %vm258, %v228, 0
  %v296 = vsel %vm258, %v229, 0
  %v299 = vsel %vm258, %v230, 0
  %v302 = vsel %vm258, %v231, 0
  %v305 = vsel %vm258, %v232, 0
  %v308 = vsel %vm258, %v233, 0
  %v311 = vsel %vm258, %v234, 0
  %v314 = vsel %vm258, %v235, 0
  %v317 = vsel %vm258, %v236, 0
  %v320 = vsel %vm258, %v237, 0
  %v323 = vsel %vm258, %v238, 0
  %v326 = vsel %vm258, %v239, 0
  %v329 = vsel %vm258, %v240, 0
  %v332 = vsel %vm258, %v241, 0
  %v335 = vsel %vm258, %v242, 0
  %v338 = vsel %vm258, %v243, 0
  %v341 = vsel %vm258, %v244, 0
  %v344 = vsel %vm258, %v245, 0
  %v347 = vsel %vm258, %v246, 0
  %v350 = vsel %vm258, %v247, 0
  %v353 = vsel %vm258, %v248, 0
  %vm355 = vcmask 1043456
  %v357 = vsel %vm355, %v256, 0
  %359 = vmatprep.subr.bf16.mxu0 0
  %360 = vmatpush1.bf16.msra.mxu0 %v255
  %361 = vmatprep.subr.bf16.mxu0 0
  %362 = vmatpush1.bf16.msra.mxu0 %v357
  %363 = vmatprep.subr.bf16.mxu0 0
  %364 = vmatpush1.bf16.msra.mxu0 0
  %365 = vmatprep.subr.bf16.mxu0 0
  %366 = vmatpush1.bf16.msra.mxu0 0
  %367 = vmatprep.subr.bf16.mxu0 0
  %368 = vmatpush1.bf16.msra.mxu0 0
  %369 = vmatprep.subr.bf16.mxu0 0
  %370 = vmatpush1.bf16.msra.mxu0 0
  %371 = vmatprep.subr.bf16.mxu0 0
  %372 = vmatpush1.bf16.msra.mxu0 0
  %373 = vmatprep.subr.bf16.mxu0 0
  %374 = vmatpush1.bf16.msra.mxu0 0
  %375 = vmatprep.subr.bf16.mxu0 0
  %376 = vmatpush1.bf16.msra.mxu0 0
  %377 = vmatprep.subr.bf16.mxu0 0
  %378 = vmatpush1.bf16.msra.mxu0 0
  %379 = vmatprep.subr.bf16.mxu0 0
  %380 = vmatpush1.bf16.msra.mxu0 0
  %381 = vmatprep.subr.bf16.mxu0 0
  %382 = vmatpush1.bf16.msra.mxu0 0
  %383 = vmatprep.subr.bf16.mxu0 0
  %384 = vmatpush1.bf16.msra.mxu0 0
  %385 = vmatprep.subr.bf16.mxu0 0
  %386 = vmatpush1.bf16.msra.mxu0 0
  %387 = vmatprep.subr.bf16.mxu0 0
  %388 = vmatpush1.bf16.msra.mxu0 0
  %389 = vmatprep.subr.bf16.mxu0 0
  %390 = vmatpush1.bf16.msra.mxu0 0
  %391 = vmatprep.mubr.bf16.mxu0 0
  %392 = vmatmul.mubr.bf16.gmra.mrb[0].mxu0 %v260
  %v393 = vpop.f32.mrb[0].mxu0
  %v394 = vadd.f32 %v87, %v393
  %v395 = vpop.f32.mrb[0].mxu0
  %v396 = vpop.f32.mrb[0].mxu0
  %v397 = vadd.f32 %v87, %v396
  %v398 = vpop.f32.mrb[0].mxu0
  %399 = vmatprep.mubr.bf16.mxu0 0
  %400 = vmatmul.mubr.bf16.gmra.mrb[0].mxu0 %v263
  %v401 = vpop.f32.mrb[0].mxu0
  %v402 = vadd.f32 %v87, %v401
  %v403 = vpop.f32.mrb[0].mxu0
  %v404 = vpop.f32.mrb[0].mxu0
  %v405 = vadd.f32 %v87, %v404
  %v406 = vpop.f32.mrb[0].mxu0
  %407 = vmatprep.mubr.bf16.mxu0 0
  %408 = vmatmul.mubr.bf16.gmra.mrb[0].mxu0 %v266
  %v409 = vpop.f32.mrb[0].mxu0
  %v410 = vadd.f32 %v87, %v409
  %v411 = vpop.f32.mrb[0].mxu0
  %v412 = vpop.f32.mrb[0].mxu0
  %v413 = vadd.f32 %v87, %v412
  %v414 = vpop.f32.mrb[0].mxu0
  %415 = vmatprep.mubr.bf16.mxu0 0
  %416 = vmatmul.mubr.bf16.gmra.mrb[0].mxu0 %v269
  %v417 = vpop.f32.mrb[0].mxu0
  %v418 = vadd.f32 %v87, %v417
  %v419 = vpop.f32.mrb[0].mxu0
  %v420 = vpop.f32.mrb[0].mxu0
  %v421 = vadd.f32 %v87, %v420
  %v422 = vpop.f32.mrb[0].mxu0
  %423 = vmatprep.mubr.bf16.mxu0 0
  %424 = vmatmul.mubr.bf16.gmra.mrb[0].mxu0 %v272
  %v425 = vpop.f32.mrb[0].mxu0
  %v426 = vadd.f32 %v87, %v425
  %v427 = vpop.f32.mrb[0].mxu0
  %v428 = vpop.f32.mrb[0].mxu0
  %v429 = vadd.f32 %v87, %v428
  %v430 = vpop.f32.mrb[0].mxu0
  %431 = vmatprep.mubr.bf16.mxu0 0
  %432 = vmatmul.mubr.bf16.gmra.mrb[0].mxu0 %v275
  %v433 = vpop.f32.mrb[0].mxu0
  %v434 = vadd.f32 %v87, %v433
  %v435 = vpop.f32.mrb[0].mxu0
  %v436 = vpop.f32.mrb[0].mxu0
  %v437 = vadd.f32 %v87, %v436
  %v438 = vpop.f32.mrb[0].mxu0
  %439 = vmatprep.mubr.bf16.mxu0 0
  %440 = vmatmul.mubr.bf16.gmra.mrb[0].mxu0 %v278
  %v441 = vpop.f32.mrb[0].mxu0
  %v442 = vadd.f32 %v87, %v441
  %v443 = vpop.f32.mrb[0].mxu0
  %v444 = vpop.f32.mrb[0].mxu0
  %v445 = vadd.f32 %v87, %v444
  %v446 = vpop.f32.mrb[0].mxu0
  %447 = vmatprep.mubr.bf16.mxu0 0
  %448 = vmatmul.mubr.bf16.gmra.mrb[0].mxu0 %v281
  %v449 = vpop.f32.mrb[0].mxu0
  %v450 = vadd.f32 %v87, %v449
  %v451 = vpop.f32.mrb[0].mxu0
  %v452 = vpop.f32.mrb[0].mxu0
  %v453 = vadd.f32 %v87, %v452
  %v454 = vpop.f32.mrb[0].mxu0
  %455 = vmatprep.mubr.bf16.mxu0 0
  %456 = vmatmul.mubr.bf16.gmra.mrb[0].mxu0 %v284
  %v457 = vpop.f32.mrb[0].mxu0
  %v458 = vadd.f32 %v87, %v457
  %v459 = vpop.f32.mrb[0].mxu0
  %v460 = vpop.f32.mrb[0].mxu0
  %v461 = vadd.f32 %v87, %v460
  %v462 = vpop.f32.mrb[0].mxu0
  %463 = vmatprep.mubr.bf16.mxu0 0
  %464 = vmatmul.mubr.bf16.gmra.mrb[0].mxu0 %v287
  %v465 = vpop.f32.mrb[0].mxu0
  %v466 = vadd.f32 %v87, %v465
  %v467 = vpop.f32.mrb[0].mxu0
  %v468 = vpop.f32.mrb[0].mxu0
  %v469 = vadd.f32 %v87, %v468
  %v470 = vpop.f32.mrb[0].mxu0
  %471 = vmatprep.mubr.bf16.mxu0 0
  %472 = vmatmul.mubr.bf16.gmra.mrb[0].mxu0 %v290
  %v473 = vpop.f32.mrb[0].mxu0
  %v474 = vadd.f32 %v87, %v473
  %v475 = vpop.f32.mrb[0].mxu0
  %v476 = vpop.f32.mrb[0].mxu0
  %v477 = vadd.f32 %v87, %v476
  %v478 = vpop.f32.mrb[0].mxu0
  %479 = vmatprep.mubr.bf16.mxu0 0
  %480 = vmatmul.mubr.bf16.gmra.mrb[0].mxu0 %v293
  %v481 = vpop.f32.mrb[0].mxu0
  %v482 = vadd.f32 %v87, %v481
  %v483 = vpop.f32.mrb[0].mxu0
  %v484 = vpop.f32.mrb[0].mxu0
  %v485 = vadd.f32 %v87, %v484
  %v486 = vpop.f32.mrb[0].mxu0
  %487 = vmatprep.mubr.bf16.mxu0 0
  %488 = vmatmul.mubr.bf16.gmra.mrb[0].mxu0 %v296
  %v489 = vpop.f32.mrb[0].mxu0
  %v490 = vadd.f32 %v87, %v489
  %v491 = vpop.f32.mrb[0].mxu0
  %v492 = vpop.f32.mrb[0].mxu0
  %v493 = vadd.f32 %v87, %v492
  %v494 = vpop.f32.mrb[0].mxu0
  %495 = vmatprep.mubr.bf16.mxu0 0
  %496 = vmatmul.mubr.bf16.gmra.mrb[0].mxu0 %v299
  %v497 = vpop.f32.mrb[0].mxu0
  %v498 = vadd.f32 %v87, %v497
  %v499 = vpop.f32.mrb[0].mxu0
  %v500 = vpop.f32.mrb[0].mxu0
  %v501 = vadd.f32 %v87, %v500
  %v502 = vpop.f32.mrb[0].mxu0
  %503 = vmatprep.mubr.bf16.mxu0 0
  %504 = vmatmul.mubr.bf16.gmra.mrb[0].mxu0 %v302
  %v505 = vpop.f32.mrb[0].mxu0
  %v506 = vadd.f32 %v87, %v505
  %v507 = vpop.f32.mrb[0].mxu0
  %v508 = vpop.f32.mrb[0].mxu0
  %v509 = vadd.f32 %v87, %v508
  %v510 = vpop.f32.mrb[0].mxu0
  %511 = vmatprep.mubr.bf16.mxu0 0
  %512 = vmatmul.mubr.bf16.gmra.mrb[0].mxu0 %v305
  %v513 = vpop.f32.mrb[0].mxu0
  %v514 = vadd.f32 %v87, %v513
  %v515 = vpop.f32.mrb[0].mxu0
  %v516 = vpop.f32.mrb[0].mxu0
  %v517 = vadd.f32 %v87, %v516
  %v518 = vpop.f32.mrb[0].mxu0
  %519 = vmatprep.mubr.bf16.mxu0 0
  %520 = vmatmul.mubr.bf16.gmra.mrb[0].mxu0 %v308
  %v521 = vpop.f32.mrb[0].mxu0
  %v522 = vadd.f32 %v87, %v521
  %v523 = vpop.f32.mrb[0].mxu0
  %v524 = vpop.f32.mrb[0].mxu0
  %v525 = vadd.f32 %v87, %v524
  %v526 = vpop.f32.mrb[0].mxu0
  %527 = vmatprep.mubr.bf16.mxu0 0
  %528 = vmatmul.mubr.bf16.gmra.mrb[0].mxu0 %v311
  %v529 = vpop.f32.mrb[0].mxu0
  %v530 = vadd.f32 %v87, %v529
  %v531 = vpop.f32.mrb[0].mxu0
  %v532 = vpop.f32.mrb[0].mxu0
  %v533 = vadd.f32 %v87, %v532
  %v534 = vpop.f32.mrb[0].mxu0
  %535 = vmatprep.mubr.bf16.mxu0 0
  %536 = vmatmul.mubr.bf16.gmra.mrb[0].mxu0 %v314
  %v537 = vpop.f32.mrb[0].mxu0
  %v538 = vadd.f32 %v87, %v537
  %v539 = vpop.f32.mrb[0].mxu0
  %v540 = vpop.f32.mrb[0].mxu0
  %v541 = vadd.f32 %v87, %v540
  %v542 = vpop.f32.mrb[0].mxu0
  %543 = vmatprep.mubr.bf16.mxu0 0
  %544 = vmatmul.mubr.bf16.gmra.mrb[0].mxu0 %v317
  %v545 = vpop.f32.mrb[0].mxu0
  %v546 = vadd.f32 %v87, %v545
  %v547 = vpop.f32.mrb[0].mxu0
  %v548 = vpop.f32.mrb[0].mxu0
  %v549 = vadd.f32 %v87, %v548
  %v550 = vpop.f32.mrb[0].mxu0
  %551 = vmatprep.mubr.bf16.mxu0 0
  %552 = vmatmul.mubr.bf16.gmra.mrb[0].mxu0 %v320
  %v553 = vpop.f32.mrb[0].mxu0
  %v554 = vadd.f32 %v87, %v553
  %v555 = vpop.f32.mrb[0].mxu0
  %v556 = vpop.f32.mrb[0].mxu0
  %v557 = vadd.f32 %v87, %v556
  %v558 = vpop.f32.mrb[0].mxu0
  %559 = vmatprep.mubr.bf16.mxu0 0
  %560 = vmatmul.mubr.bf16.gmra.mrb[0].mxu0 %v323
  %v561 = vpop.f32.mrb[0].mxu0
  %v562 = vadd.f32 %v87, %v561
  %v563 = vpop.f32.mrb[0].mxu0
  %v564 = vpop.f32.mrb[0].mxu0
  %v565 = vadd.f32 %v87, %v564
  %v566 = vpop.f32.mrb[0].mxu0
  %567 = vmatprep.mubr.bf16.mxu0 0
  %568 = vmatmul.mubr.bf16.gmra.mrb[0].mxu0 %v326
  %v569 = vpop.f32.mrb[0].mxu0
  %v570 = vadd.f32 %v87, %v569
  %v571 = vpop.f32.mrb[0].mxu0
  %v572 = vpop.f32.mrb[0].mxu0
  %v573 = vadd.f32 %v87, %v572
  %v574 = vpop.f32.mrb[0].mxu0
  %575 = vmatprep.mubr.bf16.mxu0 0
  %576 = vmatmul.mubr.bf16.gmra.mrb[0].mxu0 %v329
  %v577 = vpop.f32.mrb[0].mxu0
  %v578 = vadd.f32 %v87, %v577
  %v579 = vpop.f32.mrb[0].mxu0
  %v580 = vpop.f32.mrb[0].mxu0
  %v581 = vadd.f32 %v87, %v580
  %v582 = vpop.f32.mrb[0].mxu0
  %583 = vmatprep.mubr.bf16.mxu0 0
  %584 = vmatmul.mubr.bf16.gmra.mrb[0].mxu0 %v332
  %v585 = vpop.f32.mrb[0].mxu0
  %v586 = vadd.f32 %v87, %v585
  %v587 = vpop.f32.mrb[0].mxu0
  %v588 = vpop.f32.mrb[0].mxu0
  %v589 = vadd.f32 %v87, %v588
  %v590 = vpop.f32.mrb[0].mxu0
  %591 = vmatprep.mubr.bf16.mxu0 0
  %592 = vmatmul.mubr.bf16.gmra.mrb[0].mxu0 %v335
  %v593 = vpop.f32.mrb[0].mxu0
  %v594 = vadd.f32 %v87, %v593
  %v595 = vpop.f32.mrb[0].mxu0
  %v596 = vpop.f32.mrb[0].mxu0
  %v597 = vadd.f32 %v87, %v596
  %v598 = vpop.f32.mrb[0].mxu0
  %599 = vmatprep.mubr.bf16.mxu0 0
  %600 = vmatmul.mubr.bf16.gmra.mrb[0].mxu0 %v338
  %v601 = vpop.f32.mrb[0].mxu0
  %v602 = vadd.f32 %v87, %v601
  %v603 = vpop.f32.mrb[0].mxu0
  %v604 = vpop.f32.mrb[0].mxu0
  %v605 = vadd.f32 %v87, %v604
  %v606 = vpop.f32.mrb[0].mxu0
  %607 = vmatprep.mubr.bf16.mxu0 0
  %608 = vmatmul.mubr.bf16.gmra.mrb[0].mxu0 %v341
  %v609 = vpop.f32.mrb[0].mxu0
  %v610 = vadd.f32 %v87, %v609
  %v611 = vpop.f32.mrb[0].mxu0
  %v612 = vpop.f32.mrb[0].mxu0
  %v613 = vadd.f32 %v87, %v612
  %v614 = vpop.f32.mrb[0].mxu0
  %615 = vmatprep.mubr.bf16.mxu0 0
  %616 = vmatmul.mubr.bf16.gmra.mrb[0].mxu0 %v344
  %v617 = vpop.f32.mrb[0].mxu0
  %v618 = vadd.f32 %v87, %v617
  %v619 = vpop.f32.mrb[0].mxu0
  %v620 = vpop.f32.mrb[0].mxu0
  %v621 = vadd.f32 %v87, %v620
  %v622 = vpop.f32.mrb[0].mxu0
  %623 = vmatprep.mubr.bf16.mxu0 0
  %624 = vmatmul.mubr.bf16.gmra.mrb[0].mxu0 %v347
  %v625 = vpop.f32.mrb[0].mxu0
  %v626 = vadd.f32 %v87, %v625
  %v627 = vpop.f32.mrb[0].mxu0
  %v628 = vpop.f32.mrb[0].mxu0
  %v629 = vadd.f32 %v87, %v628
  %v630 = vpop.f32.mrb[0].mxu0
  %631 = vmatprep.mubr.bf16.mxu0 0
  %632 = vmatmul.mubr.bf16.gmra.mrb[0].mxu0 %v350
  %v633 = vpop.f32.mrb[0].mxu0
  %v634 = vadd.f32 %v87, %v633
  %v635 = vpop.f32.mrb[0].mxu0
  %v636 = vpop.f32.mrb[0].mxu0
  %v637 = vadd.f32 %v87, %v636
  %v638 = vpop.f32.mrb[0].mxu0
  %639 = vmatprep.mubr.bf16.mxu0 0
  %640 = vmatmul.mubr.bf16.gmra.mrb[0].mxu0 %v353
  %v641 = vpop.f32.mrb[0].mxu0
  %v642 = vadd.f32 %v87, %v641
  %v643 = vpop.f32.mrb[0].mxu0
  %v644 = vpop.f32.mrb[0].mxu0
  %v645 = vadd.f32 %v87, %v644
  %v646 = vpop.f32.mrb[0].mxu0
  %647 = vdwg.mxu0
  %v648 = vmax.f32 %v394, 0.0
  %v649 = vmax.f32 %v397, 0.0
  %v650 = vmax.f32 %v402, 0.0
  %v651 = vmax.f32 %v405, 0.0
  %v652 = vmax.f32 %v410, 0.0
  %v653 = vmax.f32 %v413, 0.0
  %v654 = vmax.f32 %v418, 0.0
  %v655 = vmax.f32 %v421, 0.0
  %v656 = vmax.f32 %v426, 0.0
  %v657 = vmax.f32 %v429, 0.0
  %v658 = vmax.f32 %v434, 0.0
  %v659 = vmax.f32 %v437, 0.0
  %v660 = vmax.f32 %v442, 0.0
  %v661 = vmax.f32 %v445, 0.0
  %v662 = vmax.f32 %v450, 0.0
  %v663 = vmax.f32 %v453, 0.0
  %v664 = vmax.f32 %v458, 0.0
  %v665 = vmax.f32 %v461, 0.0
  %v666 = vmax.f32 %v466, 0.0
  %v667 = vmax.f32 %v469, 0.0
  %v668 = vmax.f32 %v474, 0.0
  %v669 = vmax.f32 %v477, 0.0
  %v670 = vmax.f32 %v482, 0.0
  %v671 = vmax.f32 %v485, 0.0
  %v672 = vmax.f32 %v490, 0.0
  %v673 = vmax.f32 %v493, 0.0
  %v674 = vmax.f32 %v498, 0.0
  %v675 = vmax.f32 %v501, 0.0
  %v676 = vmax.f32 %v506, 0.0
  %v677 = vmax.f32 %v509, 0.0
  %v678 = vmax.f32 %v514, 0.0
  %v679 = vmax.f32 %v517, 0.0
  %v680 = vmax.f32 %v522, 0.0
  %v681 = vmax.f32 %v525, 0.0
  %v682 = vmax.f32 %v530, 0.0
  %v683 = vmax.f32 %v533, 0.0
  %v684 = vmax.f32 %v538, 0.0
  %v685 = vmax.f32 %v541, 0.0
  %v686 = vmax.f32 %v546, 0.0
  %v687 = vmax.f32 %v549, 0.0
  %v688 = vmax.f32 %v554, 0.0
  %v689 = vmax.f32 %v557, 0.0
  %v690 = vmax.f32 %v562, 0.0
  %v691 = vmax.f32 %v565, 0.0
  %v692 = vmax.f32 %v570, 0.0
  %v693 = vmax.f32 %v573, 0.0
  %v694 = vmax.f32 %v578, 0.0
  %v695 = vmax.f32 %v581, 0.0
  %v696 = vmax.f32 %v586, 0.0
  %v697 = vmax.f32 %v589, 0.0
  %v698 = vmax.f32 %v594, 0.0
  %v699 = vmax.f32 %v597, 0.0
  %v700 = vmax.f32 %v602, 0.0
  %v701 = vmax.f32 %v605, 0.0
  %v702 = vmax.f32 %v610, 0.0
  %v703 = vmax.f32 %v613, 0.0
  %v704 = vmax.f32 %v618, 0.0
  %v705 = vmax.f32 %v621, 0.0
  %v706 = vmax.f32 %v626, 0.0
  %v707 = vmax.f32 %v629, 0.0
  %v708 = vmax.f32 %v634, 0.0
  %v709 = vmax.f32 %v637, 0.0
  %v710 = vmax.f32 %v642, 0.0
  %v711 = vmax.f32 %v645, 0.0
  %v712 = vpack.c.bf16 %v649, %v648
  %v713 = vpack.c.bf16 %v651, %v650
  %v714 = vpack.c.bf16 %v653, %v652
  %v715 = vpack.c.bf16 %v655, %v654
  %v716 = vpack.c.bf16 %v657, %v656
  %v717 = vpack.c.bf16 %v659, %v658
  %v718 = vpack.c.bf16 %v661, %v660
  %v719 = vpack.c.bf16 %v663, %v662
  %v720 = vpack.c.bf16 %v665, %v664
  %v721 = vpack.c.bf16 %v667, %v666
  %v722 = vpack.c.bf16 %v669, %v668
  %v723 = vpack.c.bf16 %v671, %v670
  %v724 = vpack.c.bf16 %v673, %v672
  %v725 = vpack.c.bf16 %v675, %v674
  %v726 = vpack.c.bf16 %v677, %v676
  %v727 = vpack.c.bf16 %v679, %v678
  %v728 = vpack.c.bf16 %v681, %v680
  %v729 = vpack.c.bf16 %v683, %v682
  %v730 = vpack.c.bf16 %v685, %v684
  %v731 = vpack.c.bf16 %v687, %v686
  %v732 = vpack.c.bf16 %v689, %v688
  %v733 = vpack.c.bf16 %v691, %v690
  %v734 = vpack.c.bf16 %v693, %v692
  %v735 = vpack.c.bf16 %v695, %v694
  %v736 = vpack.c.bf16 %v697, %v696
  %v737 = vpack.c.bf16 %v699, %v698
  %v738 = vpack.c.bf16 %v701, %v700
  %v739 = vpack.c.bf16 %v703, %v702
  %v740 = vpack.c.bf16 %v705, %v704
  %v741 = vpack.c.bf16 %v707, %v706
  %v742 = vpack.c.bf16 %v709, %v708
  %v743 = vpack.c.bf16 %v711, %v710
  %v776 = vunpack.c.l.b16 %v712
  %v777 = vunpack.c.h.b16 %v712
  %v778 = vunpack.c.l.b16 %v713
  %v779 = vunpack.c.h.b16 %v713
  %v780 = vunpack.c.l.b16 %v714
  %v781 = vunpack.c.h.b16 %v714
  %v782 = vunpack.c.l.b16 %v715
  %v783 = vunpack.c.h.b16 %v715
  %v784 = vunpack.c.l.b16 %v716
  %v785 = vunpack.c.h.b16 %v716
  %v786 = vunpack.c.l.b16 %v717
  %v787 = vunpack.c.h.b16 %v717
  %v788 = vunpack.c.l.b16 %v718
  %v789 = vunpack.c.h.b16 %v718
  %v790 = vunpack.c.l.b16 %v719
  %v791 = vunpack.c.h.b16 %v719
  %v792 = vunpack.c.l.b16 %v720
  %v793 = vunpack.c.h.b16 %v720
  %v794 = vunpack.c.l.b16 %v721
  %v795 = vunpack.c.h.b16 %v721
  %v796 = vunpack.c.l.b16 %v722
  %v797 = vunpack.c.h.b16 %v722
  %v798 = vunpack.c.l.b16 %v723
  %v799 = vunpack.c.h.b16 %v723
  %v800 = vunpack.c.l.b16 %v724
  %v801 = vunpack.c.h.b16 %v724
  %v802 = vunpack.c.l.b16 %v725
  %v803 = vunpack.c.h.b16 %v725
  %v804 = vunpack.c.l.b16 %v726
  %v805 = vunpack.c.h.b16 %v726
  %v806 = vunpack.c.l.b16 %v727
  %v807 = vunpack.c.h.b16 %v727
  %v808 = vunpack.c.l.b16 %v728
  %v809 = vunpack.c.h.b16 %v728
  %v810 = vunpack.c.l.b16 %v729
  %v811 = vunpack.c.h.b16 %v729
  %v812 = vunpack.c.l.b16 %v730
  %v813 = vunpack.c.h.b16 %v730
  %v814 = vunpack.c.l.b16 %v731
  %v815 = vunpack.c.h.b16 %v731
  %v816 = vunpack.c.l.b16 %v732
  %v817 = vunpack.c.h.b16 %v732
  %v818 = vunpack.c.l.b16 %v733
  %v819 = vunpack.c.h.b16 %v733
  %v820 = vunpack.c.l.b16 %v734
  %v821 = vunpack.c.h.b16 %v734
  %v822 = vunpack.c.l.b16 %v735
  %v823 = vunpack.c.h.b16 %v735
  %v824 = vunpack.c.l.b16 %v736
  %v825 = vunpack.c.h.b16 %v736
  %v826 = vunpack.c.l.b16 %v737
  %v827 = vunpack.c.h.b16 %v737
  %v828 = vunpack.c.l.b16 %v738
  %v829 = vunpack.c.h.b16 %v738
  %v830 = vunpack.c.l.b16 %v739
  %v831 = vunpack.c.h.b16 %v739
  %v832 = vunpack.c.l.b16 %v740
  %v833 = vunpack.c.h.b16 %v740
  %v834 = vunpack.c.l.b16 %v741
  %v835 = vunpack.c.h.b16 %v741
  %v836 = vunpack.c.l.b16 %v742
  %v837 = vunpack.c.h.b16 %v742
  %v838 = vunpack.c.l.b16 %v743
  %v839 = vunpack.c.h.b16 %v743
  %v840 = vpack.c.b16 %v776, %v776
  %v841 = vpack.c.b16 %v777, %v777
  %v842 = vpack.c.b16 %v778, %v778
  %v843 = vpack.c.b16 %v779, %v779
  %v844 = vpack.c.b16 %v780, %v780
  %v845 = vpack.c.b16 %v781, %v781
  %v846 = vpack.c.b16 %v782, %v782
  %v847 = vpack.c.b16 %v783, %v783
  %v848 = vpack.c.b16 %v784, %v784
  %v849 = vpack.c.b16 %v785, %v785
  %v850 = vpack.c.b16 %v786, %v786
  %v851 = vpack.c.b16 %v787, %v787
  %v852 = vpack.c.b16 %v788, %v788
  %v853 = vpack.c.b16 %v789, %v789
  %v854 = vpack.c.b16 %v790, %v790
  %v855 = vpack.c.b16 %v791, %v791
  %v856 = vpack.c.b16 %v792, %v792
  %v857 = vpack.c.b16 %v793, %v793
  %v858 = vpack.c.b16 %v794, %v794
  %v859 = vpack.c.b16 %v795, %v795
  %v860 = vpack.c.b16 %v796, %v796
  %v861 = vpack.c.b16 %v797, %v797
  %v862 = vpack.c.b16 %v798, %v798
  %v863 = vpack.c.b16 %v799, %v799
  %v864 = vpack.c.b16 %v800, %v800
  %v865 = vpack.c.b16 %v801, %v801
  %v866 = vpack.c.b16 %v802, %v802
  %v867 = vpack.c.b16 %v803, %v803
  %v868 = vpack.c.b16 %v804, %v804
  %v869 = vpack.c.b16 %v805, %v805
  %v870 = vpack.c.b16 %v806, %v806
  %v871 = vpack.c.b16 %v807, %v807
  %v872 = vpack.c.b16 %v808, %v808
  %v873 = vpack.c.b16 %v809, %v809
  %v874 = vpack.c.b16 %v810, %v810
  %v875 = vpack.c.b16 %v811, %v811
  %v876 = vpack.c.b16 %v812, %v812
  %v877 = vpack.c.b16 %v813, %v813
  %v878 = vpack.c.b16 %v814, %v814
  %v879 = vpack.c.b16 %v815, %v815
  %v880 = vpack.c.b16 %v816, %v816
  %v881 = vpack.c.b16 %v817, %v817
  %v882 = vpack.c.b16 %v818, %v818
  %v883 = vpack.c.b16 %v819, %v819
  %v884 = vpack.c.b16 %v820, %v820
  %v885 = vpack.c.b16 %v821, %v821
  %v886 = vpack.c.b16 %v822, %v822
  %v887 = vpack.c.b16 %v823, %v823
  %v888 = vpack.c.b16 %v824, %v824
  %v889 = vpack.c.b16 %v825, %v825
  %v890 = vpack.c.b16 %v826, %v826
  %v891 = vpack.c.b16 %v827, %v827
  %v892 = vpack.c.b16 %v828, %v828
  %v893 = vpack.c.b16 %v829, %v829
  %v894 = vpack.c.b16 %v830, %v830
  %v895 = vpack.c.b16 %v831, %v831
  %v896 = vpack.c.b16 %v832, %v832
  %v897 = vpack.c.b16 %v833, %v833
  %v898 = vpack.c.b16 %v834, %v834
  %v899 = vpack.c.b16 %v835, %v835
  %v900 = vpack.c.b16 %v836, %v836
  %v901 = vpack.c.b16 %v837, %v837
  %v902 = vpack.c.b16 %v838, %v838
  %v903 = vpack.c.b16 %v839, %v839
  %vm968 = vcmask 388096
  %969 = vst.msk [vmem:[%s3] sm:$0xf] %vm968, %v840
  %970 = vst.msk [vmem:[%s3 + $0x4] sm:$0xf] %vm968, %v841
  %971 = vst.msk [vmem:[%s3 + $0x8] sm:$0xf] %vm968, %v842
  %972 = vst.msk [vmem:[%s3 + $0xc] sm:$0xf] %vm968, %v843
  %973 = vst.msk [vmem:[%s3 + $0x10] sm:$0xf] %vm968, %v844
  %974 = vst.msk [vmem:[%s3 + $0x14] sm:$0xf] %vm968, %v845
  %975 = vst.msk [vmem:[%s3 + $0x18] sm:$0xf] %vm968, %v846
  %976 = vst.msk [vmem:[%s3 + $0x1c] sm:$0xf] %vm968, %v847
  %977 = vst.msk [vmem:[%s3 + $0x20] sm:$0xf] %vm968, %v848
  %978 = vst.msk [vmem:[%s3 + $0x24] sm:$0xf] %vm968, %v849
  %979 = vst.msk [vmem:[%s3 + $0x28] sm:$0xf] %vm968, %v850
  %980 = vst.msk [vmem:[%s3 + $0x2c] sm:$0xf] %vm968, %v851
  %981 = vst.msk [vmem:[%s3 + $0x30] sm:$0xf] %vm968, %v852
  %982 = vst.msk [vmem:[%s3 + $0x34] sm:$0xf] %vm968, %v853
  %983 = vst.msk [vmem:[%s3 + $0x38] sm:$0xf] %vm968, %v854
  %984 = vst.msk [vmem:[%s3 + $0x3c] sm:$0xf] %vm968, %v855
  %985 = vst.msk [vmem:[%s3 + $0x40] sm:$0xf] %vm968, %v856
  %986 = vst.msk [vmem:[%s3 + $0x44] sm:$0xf] %vm968, %v857
  %987 = vst.msk [vmem:[%s3 + $0x48] sm:$0xf] %vm968, %v858
  %988 = vst.msk [vmem:[%s3 + $0x4c] sm:$0xf] %vm968, %v859
  %989 = vst.msk [vmem:[%s3 + $0x50] sm:$0xf] %vm968, %v860
  %990 = vst.msk [vmem:[%s3 + $0x54] sm:$0xf] %vm968, %v861
  %991 = vst.msk [vmem:[%s3 + $0x58] sm:$0xf] %vm968, %v862
  %992 = vst.msk [vmem:[%s3 + $0x5c] sm:$0xf] %vm968, %v863
  %993 = vst.msk [vmem:[%s3 + $0x60] sm:$0xf] %vm968, %v864
  %994 = vst.msk [vmem:[%s3 + $0x64] sm:$0xf] %vm968, %v865
  %995 = vst.msk [vmem:[%s3 + $0x68] sm:$0xf] %vm968, %v866
  %996 = vst.msk [vmem:[%s3 + $0x6c] sm:$0xf] %vm968, %v867
  %997 = vst.msk [vmem:[%s3 + $0x70] sm:$0xf] %vm968, %v868
  %998 = vst.msk [vmem:[%s3 + $0x74] sm:$0xf] %vm968, %v869
  %999 = vst.msk [vmem:[%s3 + $0x78] sm:$0xf] %vm968, %v870
  %1000 = vst.msk [vmem:[%s3 + $0x7c] sm:$0xf] %vm968, %v871
  %1001 = vst.msk [vmem:[%s3 + $0x80] sm:$0xf] %vm968, %v872
  %1002 = vst.msk [vmem:[%s3 + $0x84] sm:$0xf] %vm968, %v873
  %1003 = vst.msk [vmem:[%s3 + $0x88] sm:$0xf] %vm968, %v874
  %1004 = vst.msk [vmem:[%s3 + $0x8c] sm:$0xf] %vm968, %v875
  %1005 = vst.msk [vmem:[%s3 + $0x90] sm:$0xf] %vm968, %v876
  %1006 = vst.msk [vmem:[%s3 + $0x94] sm:$0xf] %vm968, %v877
  %1007 = vst.msk [vmem:[%s3 + $0x98] sm:$0xf] %vm968, %v878
  %1008 = vst.msk [vmem:[%s3 + $0x9c] sm:$0xf] %vm968, %v879
  %1009 = vst.msk [vmem:[%s3 + $0xa0] sm:$0xf] %vm968, %v880
  %1010 = vst.msk [vmem:[%s3 + $0xa4] sm:$0xf] %vm968, %v881
  %1011 = vst.msk [vmem:[%s3 + $0xa8] sm:$0xf] %vm968, %v882
  %1012 = vst.msk [vmem:[%s3 + $0xac] sm:$0xf] %vm968, %v883
  %1013 = vst.msk [vmem:[%s3 + $0xb0] sm:$0xf] %vm968, %v884
  %1014 = vst.msk [vmem:[%s3 + $0xb4] sm:$0xf] %vm968, %v885
  %1015 = vst.msk [vmem:[%s3 + $0xb8] sm:$0xf] %vm968, %v886
  %1016 = vst.msk [vmem:[%s3 + $0xbc] sm:$0xf] %vm968, %v887
  %1017 = vst.msk [vmem:[%s3 + $0xc0] sm:$0xf] %vm968, %v888
  %1018 = vst.msk [vmem:[%s3 + $0xc4] sm:$0xf] %vm968, %v889
  %1019 = vst.msk [vmem:[%s3 + $0xc8] sm:$0xf] %vm968, %v890
  %1020 = vst.msk [vmem:[%s3 + $0xcc] sm:$0xf] %vm968, %v891
  %1021 = vst.msk [vmem:[%s3 + $0xd0] sm:$0xf] %vm968, %v892
  %1022 = vst.msk [vmem:[%s3 + $0xd4] sm:$0xf] %vm968, %v893
  %1023 = vst.msk [vmem:[%s3 + $0xd8] sm:$0xf] %vm968, %v894
  %1024 = vst.msk [vmem:[%s3 + $0xdc] sm:$0xf] %vm968, %v895
  %1025 = vst.msk [vmem:[%s3 + $0xe0] sm:$0xf] %vm968, %v896
  %1026 = vst.msk [vmem:[%s3 + $0xe4] sm:$0xf] %vm968, %v897
  %1027 = vst.msk [vmem:[%s3 + $0xe8] sm:$0xf] %vm968, %v898
  %1028 = vst.msk [vmem:[%s3 + $0xec] sm:$0xf] %vm968, %v899
  %1029 = vst.msk [vmem:[%s3 + $0xf0] sm:$0xf] %vm968, %v900
  %1030 = vst.msk [vmem:[%s3 + $0xf4] sm:$0xf] %vm968, %v901
  %1031 = vst.msk [vmem:[%s3 + $0xf8] sm:$0xf] %vm968, %v902
  %1032 = vst.msk [vmem:[%s3 + $0xfc] sm:$0xf] %vm968, %v903
  // Predicated region
  $region14: #{decoder_forward.3} parent=0 // pred_check
    _
  $region15: #{decoder_forward.3} parent=0 // pred_check_branch
    %1034 = sbr.rel (0) target = $region17
  $region16: #{decoder_forward.3} parent=0 // pred_region
    _
  $region17: #{decoder_forward.3} parent=0 // pred_fallthru
    _
  // Predicated region
  $region18: #{decoder_forward.3} parent=0 // pred_check
    _
  $region19: #{decoder_forward.3} parent=0 // pred_check_branch
    %1036 = sbr.rel (0) target = $region21
  $region20: #{decoder_forward.3} parent=0 // pred_region
    _
  $region21: #{decoder_forward.3} parent=0 // pred_fallthru
    _

// kernel: decoder_forward.4
$region0: #{decoder_forward.4}
  #allocation0 [shape = 'u32[]', space=smem, size = 0x4, offset = 0x4, fixed_abs, tag = 'smem constant byte address 0x4 - core index']
  #allocation1 [shape = 'u32[144,128]{1,0:T(1,128)}', space=vmem, size = 0x12000, scoped, tag = 'internal scratch']
  %s0 = inlined_call_operand.vmem [shape: bf16[2,18,18,256], index: 0, kind: input, shape index: {}]
  %s1 = inlined_call_operand.vmem [shape: bf16[2,18,18,48], index: 1, kind: input, shape index: {}]
  %s2 = inlined_call_operand.vmem [shape: bf16[9,256,256], index: 2, kind: input, shape index: {}]
  %s3 = inlined_call_operand.vmem [shape: bf16[9,48,256], index: 3, kind: input, shape index: {}]
  %s4 = inlined_call_operand.vmem [shape: f32[1,256], index: 4, kind: input, shape index: {}]
  %s5 = inlined_call_operand.vmem [shape: bf16[2,16,16,256], index: 5, kind: output, shape index: {}]
  %s6 = sld [smem:[#allocation0]]
  $region53: #{decoder_forward.4} parent=0
    _
  %s8 = ssub.s32 1, %s6
  %s9 = scalar_select 0, %s8, %s6
  loop: start=0, step=1, limit=6
  $region2: #{decoder_forward.4} parent=0 // loop_pre_header
    _
  $region3: #{decoder_forward.4} parent=0 // loop_header
    %s11 = sphi 0, %s15
    %p12 = scmp.ge.s32.totalorder %s11, 6
    %s18 = sphi 0, %s30
    %s19 = sphi 0, %s26
    %s20 = sphi 0, %s18
    %s21 = sphi 0, %s19
    %s22 = sphi 0, %s20
    %s23 = sphi 0, %s21
    %s33 = sphi 0, %s35
    %s36 = sphi 0, %s33
    %s37 = sphi 0, %s36
    %s53 = sphi 0, %s37
    %s59 = sphi 0, %s61
    %s62 = sphi 0, %s59
    %s63 = sphi 0, %s62
    %s79 = sphi 0, %s63
    %s83 = sphi 0, %s83
    %s85 = sphi 0, %s83
    %s86 = sphi 0, %s85
    %s100 = sphi 0, %s86
    %s104 = sphi 0, %s104
    %s106 = sphi 0, %s104
    %s107 = sphi 0, %s106
    %s121 = sphi 0, %s107
    %s125 = sphi 0, %s125
    %s127 = sphi 0, %s125
    %s128 = sphi 0, %s127
    %s142 = sphi 0, %s128
    %s150 = sphi 0, %s152
    %s153 = sphi 0, %s150
    %s154 = sphi 0, %s153
    %s170 = sphi 0, %s154
  $region4: #{decoder_forward.4} parent=0 // loop_header_branch
    %14 = sbr.rel (%p12) target = $region8
  $region5: #{decoder_forward.4} parent=0 // loop_body
    %s16 = ssub.s32 %s11, 1
    %s17 = ssub.s32 %s11, 2
    %s24 = sadd.s32 1, %s19
    %p25 = scmp.ge.s32.totalorder %s24, 2
    %s26 = scalar_select %p25, 0, %s24
    %s27 = sadd.s32 1, %s18
    %s28 = scalar_select %p25, %s27, %s18
    %p29 = scmp.ge.s32.totalorder %s28, 2
    %s30 = scalar_select %p29, 0, %s28
    %s31 = ssub.s32 %s18, %s30
    %p32 = scmp.eq.s32.totalorder %s31, 0
    %s34 = sadd.s32 %s33, 1
    %s35 = scalar_select %p32, %s33, %s34
    %p38 = pneg %p32
    %p39 = scmp.eq.s32.totalorder %s11, 3
    %p40 = por %p38, %p39
    %p41 = scmp.ne.s32.totalorder %s33, %s36
    %p42 = scmp.eq.s32.totalorder %s11, 0
    %p43 = por %p41, %p42
    %p44 = scmp.ne.s32.totalorder %s33, %s36
    %p45 = scmp.eq.s32.totalorder %s16, 3
    %p46 = por %p44, %p45
    %p47 = scmp.ne.s32.totalorder %s36, %s37
    %p48 = scmp.eq.s32.totalorder %s16, 0
    %p49 = por %p47, %p48
    %p50 = scmp.ne.s32.totalorder %s36, %s37
    %p51 = scmp.eq.s32.totalorder %s17, 3
    %p52 = por %p50, %p51
    %p54 = scmp.ne.s32.totalorder %s37, %s53
    %p55 = scmp.eq.s32.totalorder %s17, 0
    %p56 = por %p54, %p55
    %s57 = ssub.s32 %s18, %s30
    %p58 = scmp.eq.s32.totalorder %s57, 0
    %s60 = sadd.s32 %s59, 1
    %s61 = scalar_select %p58, %s59, %s60
    %p64 = pneg %p58
    %p65 = scmp.eq.s32.totalorder %s11, 3
    %p66 = por %p64, %p65
    %p67 = scmp.ne.s32.totalorder %s59, %s62
    %p68 = scmp.eq.s32.totalorder %s11, 0
    %p69 = por %p67, %p68
    %p70 = scmp.ne.s32.totalorder %s59, %s62
    %p71 = scmp.eq.s32.totalorder %s16, 3
    %p72 = por %p70, %p71
    %p73 = scmp.ne.s32.totalorder %s62, %s63
    %p74 = scmp.eq.s32.totalorder %s16, 0
    %p75 = por %p73, %p74
    %p76 = scmp.ne.s32.totalorder %s62, %s63
    %p77 = scmp.eq.s32.totalorder %s17, 3
    %p78 = por %p76, %p77
    %p80 = scmp.ne.s32.totalorder %s63, %s79
    %p81 = scmp.eq.s32.totalorder %s17, 0
    %p82 = por %p80, %p81
    %s84 = sadd.s32 %s83, 1
    %p87 = scmp.eq.s32.totalorder %s11, 3
    %p88 = scmp.ne.s32.totalorder %s83, %s85
    %p89 = scmp.eq.s32.totalorder %s11, 0
    %p90 = por %p88, %p89
    %p91 = scmp.ne.s32.totalorder %s83, %s85
    %p92 = scmp.eq.s32.totalorder %s16, 3
    %p93 = por %p91, %p92
    %p94 = scmp.ne.s32.totalorder %s85, %s86
    %p95 = scmp.eq.s32.totalorder %s16, 0
    %p96 = por %p94, %p95
    %p97 = scmp.ne.s32.totalorder %s85, %s86
    %p98 = scmp.eq.s32.totalorder %s17, 3
    %p99 = por %p97, %p98
    %p101 = scmp.ne.s32.totalorder %s86, %s100
    %p102 = scmp.eq.s32.totalorder %s17, 0
    %p103 = por %p101, %p102
    %s105 = sadd.s32 %s104, 1
    %p108 = scmp.eq.s32.totalorder %s11, 3
    %p109 = scmp.ne.s32.totalorder %s104, %s106
    %p110 = scmp.eq.s32.totalorder %s11, 0
    %p111 = por %p109, %p110
    %p112 = scmp.ne.s32.totalorder %s104, %s106
    %p113 = scmp.eq.s32.totalorder %s16, 3
    %p114 = por %p112, %p113
    %p115 = scmp.ne.s32.totalorder %s106, %s107
    %p116 = scmp.eq.s32.totalorder %s16, 0
    %p117 = por %p115, %p116
    %p118 = scmp.ne.s32.totalorder %s106, %s107
    %p119 = scmp.eq.s32.totalorder %s17, 3
    %p120 = por %p118, %p119
    %p122 = scmp.ne.s32.totalorder %s107, %s121
    %p123 = scmp.eq.s32.totalorder %s17, 0
    %p124 = por %p122, %p123
    %s126 = sadd.s32 %s125, 1
    %p129 = scmp.eq.s32.totalorder %s11, 3
    %p130 = scmp.ne.s32.totalorder %s125, %s127
    %p131 = scmp.eq.s32.totalorder %s11, 0
    %p132 = por %p130, %p131
    %p133 = scmp.ne.s32.totalorder %s125, %s127
    %p134 = scmp.eq.s32.totalorder %s16, 3
    %p135 = por %p133, %p134
    %p136 = scmp.ne.s32.totalorder %s127, %s128
    %p137 = scmp.eq.s32.totalorder %s16, 0
    %p138 = por %p136, %p137
    %p139 = scmp.ne.s32.totalorder %s127, %s128
    %p140 = scmp.eq.s32.totalorder %s17, 3
    %p141 = por %p139, %p140
    %p143 = scmp.ne.s32.totalorder %s128, %s142
    %p144 = scmp.eq.s32.totalorder %s17, 0
    %p145 = por %p143, %p144
    %s146 = ssub.s32 %s18, %s30
    %s147 = ssub.s32 %s19, %s26
    %s148 = sor.u32 %s146, %s147
    %p149 = scmp.eq.s32.totalorder %s148, 0
    %s151 = sadd.s32 %s150, 1
    %s152 = scalar_select %p149, %s150, %s151
    %p155 = pneg %p149
    %p156 = scmp.eq.s32.totalorder %s11, 3
    %p157 = por %p155, %p156
    %p158 = scmp.ne.s32.totalorder %s150, %s153
    %p159 = scmp.eq.s32.totalorder %s11, 0
    %p160 = por %p158, %p159
    %p161 = scmp.ne.s32.totalorder %s150, %s153
    %p162 = scmp.eq.s32.totalorder %s16, 3
    %p163 = por %p161, %p162
    %p164 = scmp.ne.s32.totalorder %s153, %s154
    %p165 = scmp.eq.s32.totalorder %s16, 0
    %p166 = por %p164, %p165
    %p167 = scmp.ne.s32.totalorder %s153, %s154
    %p168 = scmp.eq.s32.totalorder %s17, 3
    %p169 = por %p167, %p168
    %p171 = scmp.ne.s32.totalorder %s154, %s170
    %p172 = scmp.eq.s32.totalorder %s17, 0
    %p173 = por %p171, %p172
    %p174 = scmp.le.s32.totalorder 1, %s11
    %p175 = scmp.lt.s32.totalorder %s11, 5
    %p176 = pnand %p174, %p175
    %p177 = pneg %p176
    // Predicated region
    $region9: #{decoder_forward.4} parent=5 // pred_check
      _
    $region10: #{decoder_forward.4} parent=5 // pred_check_branch
      %179 = sbr.rel (%p176) target = $region12
    $region11: #{decoder_forward.4} parent=5 // pred_region
      %s180 = ssub.s32 %s11, 1
      // Predicated region
      $region13: #{decoder_forward.4} parent=11 // pred_check
        %p181 = pneg %p96
      $region14: #{decoder_forward.4} parent=11 // pred_check_branch
        %183 = sbr.rel (%p181) target = $region16
      $region15: #{decoder_forward.4} parent=11 // pred_region
        _
      $region16: #{decoder_forward.4} parent=11 // pred_fallthru
        _
      // Predicated region
      $region17: #{decoder_forward.4} parent=11 // pred_check
        %p184 = pneg %p117
      $region18: #{decoder_forward.4} parent=11 // pred_check_branch
        %186 = sbr.rel (%p184) target = $region20
      $region19: #{decoder_forward.4} parent=11 // pred_region
        _
      $region20: #{decoder_forward.4} parent=11 // pred_fallthru
        _
      // Predicated region
      $region21: #{decoder_forward.4} parent=11 // pred_check
        %p187 = pneg %p138
      $region22: #{decoder_forward.4} parent=11 // pred_check_branch
        %189 = sbr.rel (%p187) target = $region24
      $region23: #{decoder_forward.4} parent=11 // pred_region
        _
      $region24: #{decoder_forward.4} parent=11 // pred_fallthru
        _
    $region12: #{decoder_forward.4} parent=5 // pred_fallthru
      _
    %p190 = scmp.lt.s32.totalorder %s11, 4
    // Predicated region
    $region25: #{decoder_forward.4} parent=5 // pred_check
      %p191 = pneg %p190
    $region26: #{decoder_forward.4} parent=5 // pred_check_branch
      %193 = sbr.rel (%p191) target = $region28
    $region27: #{decoder_forward.4} parent=5 // pred_region
      // Predicated region
      $region29: #{decoder_forward.4} parent=27 // pred_check
        %p194 = pneg %p43
      $region30: #{decoder_forward.4} parent=27 // pred_check_branch
        %196 = sbr.rel (%p194) target = $region32
      $region31: #{decoder_forward.4} parent=27 // pred_region
        %p197 = scmp.lt.s32.totalorder %s18, 1
        %s198 = scalar_select %p197, %s18, 1
        %s199 = smul.addr %s198, 108
        %s200 = smul.addr %s199, 4
        %s201 = scalar_lea.vmem %s0, %s200
      $region32: #{decoder_forward.4} parent=27 // pred_fallthru
        _
      // Predicated region
      $region33: #{decoder_forward.4} parent=27 // pred_check
        %p202 = pneg %p69
      $region34: #{decoder_forward.4} parent=27 // pred_check_branch
        %204 = sbr.rel (%p202) target = $region36
      $region35: #{decoder_forward.4} parent=27 // pred_region
        %p205 = scmp.lt.s32.totalorder %s18, 1
        %s206 = scalar_select %p205, %s18, 1
        %s207 = smul.addr %s206, 54
        %s208 = smul.addr %s207, 4
        %s209 = scalar_lea.vmem %s1, %s208
      $region36: #{decoder_forward.4} parent=27 // pred_fallthru
        _
    $region28: #{decoder_forward.4} parent=5 // pred_fallthru
      _
    %p210 = scmp.le.s32.totalorder 1, %s11
    %p211 = scmp.lt.s32.totalorder %s11, 5
    %p212 = pnand %p210, %p211
    %p213 = pneg %p212
    // Predicated region
    $region37: #{decoder_forward.4} parent=5 // pred_check
      _
    $region38: #{decoder_forward.4} parent=5 // pred_check_branch
      %215 = sbr.rel (%p212) target = $region40
    $region39: #{decoder_forward.4} parent=5 // pred_region
      %s216 = ssub.s32 %s11, 1
      %p217 = scmp.lt.s32.totalorder %s20, 1
      %s218 = scalar_select %p217, %s20, 1
      %s219 = smul.addr %s218, 108
      %s220 = smul.addr %s219, 4
      %s221 = scalar_lea.vmem %s0, %s220
      %p222 = pneg %p49
      %p223 = pneg %p46
      %p224 = scmp.lt.s32.totalorder %s20, 1
      %s225 = scalar_select %p224, %s20, 1
      %s226 = smul.addr %s225, 54
      %s227 = smul.addr %s226, 4
      %s228 = scalar_lea.vmem %s1, %s227
      %p229 = pneg %p75
      %p230 = pneg %p72
      %p231 = pneg %p96
      %p232 = pneg %p93
      %p233 = pneg %p117
      %p234 = pneg %p114
      %p235 = pneg %p138
      %p236 = pneg %p135
      %p237 = pneg %p166
      %p238 = pneg %p163
      %s239 = smul.u32 8, %s21
      %p240 = scmp.lt.s32.totalorder %s20, 1
      %s241 = scalar_select %p240, %s20, 1
      %p242 = scmp.lt.s32.totalorder %s239, 15
      %s243 = scalar_select %p242, %s239, 15
      %s244 = smul.addr %s243, 4
      %s245 = smul.addr %s241, 64
      %s246 = sadd.s32 %s244, %s245
      %s247 = smul.addr %s246, 4
      %s248 = scalar_lea.vmem %s5, %s247
      %p249 = scmp.lt.s32.totalorder %s20, 1
      %s250 = scalar_select %p249, %s20, 1
      %s251 = smul.addr %s250, 108
      %s252 = smul.addr %s251, 4
      %s253 = scalar_lea.vmem %s0, %s252
      %p254 = scmp.lt.s32.totalorder %s20, 1
      %s255 = scalar_select %p254, %s20, 1
      %s256 = smul.addr %s255, 54
      %s257 = smul.addr %s256, 4
      %s258 = scalar_lea.vmem %s1, %s257
      %s259 = smul.u32 8, %s21
      %p260 = scmp.lt.s32.totalorder %s20, 1
      %s261 = scalar_select %p260, %s20, 1
      %p262 = scmp.lt.s32.totalorder %s259, 15
      %s263 = scalar_select %p262, %s259, 15
      %s264 = smul.addr %s263, 4
      %s265 = smul.addr %s261, 64
      %s266 = sadd.s32 %s264, %s265
      %s267 = smul.addr %s266, 4
      %s268 = scalar_lea.vmem %s5, %s267
      %s269 = smul.u32 8, %s21
      %s271 = smul.u32 %s21, 8
      %s272 = smul.u32 %s271, 6
      %s273 = smul.addr %s272, 4
      %s274 = scalar_lea.vmem %s253, %s273
      %v275 = vld [vmem:[%s274] sm:$0xff]
      %v276 = vld [vmem:[%s274 + $0x8] sm:$0xff]
      %v277 = vld [vmem:[%s274 + $0x18] sm:$0xff]
      %v278 = vld [vmem:[%s274 + $0x20] sm:$0xff]
      %v279 = vld [vmem:[%s274 + $0x30] sm:$0xff]
      %v280 = vld [vmem:[%s274 + $0x38] sm:$0xff]
      %v281 = vld [vmem:[%s274 + $0x48] sm:$0xff]
      %v282 = vld [vmem:[%s274 + $0x50] sm:$0xff]
      %v283 = vld [vmem:[%s274 + $0x60] sm:$0xff]
      %v284 = vld [vmem:[%s274 + $0x68] sm:$0xff]
      %v285 = vld [vmem:[%s274 + $0x78] sm:$0xff]
      %v286 = vld [vmem:[%s274 + $0x80] sm:$0xff]
      %v287 = vld [vmem:[%s274 + $0x90] sm:$0xff]
      %v288 = vld [vmem:[%s274 + $0x98] sm:$0xff]
      %v289 = vld [vmem:[%s274 + $0xa8] sm:$0xff]
      %v290 = vld [vmem:[%s274 + $0xb0] sm:$0xff]
      %v291 = vld [vmem:[%s274 + $0xc0] sm:$0xff]
      %v292 = vld [vmem:[%s274 + $0xc8] sm:$0xff]
      %v293 = vld [vmem:[%s274 + $0xd8] sm:$0xff]
      %v294 = vld [vmem:[%s274 + $0xe0] sm:$0xff]
      %s295 = smul.u32 %s271, 3
      %s296 = smul.addr %s295, 4
      %s297 = scalar_lea.vmem %s258, %s296
      %v298 = vld [vmem:[%s297] sm:$0xf]
      %v299 = vld [vmem:[%s297 + $0x4] sm:$0xf]
      %v300 = vld [vmem:[%s297 + $0xc] sm:$0xf]
      %v301 = vld [vmem:[%s297 + $0x10] sm:$0xf]
      %v302 = vld [vmem:[%s297 + $0x18] sm:$0xf]
      %v303 = vld [vmem:[%s297 + $0x1c] sm:$0xf]
      %v304 = vld [vmem:[%s297 + $0x24] sm:$0xf]
      %v305 = vld [vmem:[%s297 + $0x28] sm:$0xf]
      %v306 = vld [vmem:[%s297 + $0x30] sm:$0xf]
      %v307 = vld [vmem:[%s297 + $0x34] sm:$0xf]
      %v308 = vld [vmem:[%s297 + $0x3c] sm:$0xf]
      %v309 = vld [vmem:[%s297 + $0x40] sm:$0xf]
      %v310 = vld [vmem:[%s297 + $0x48] sm:$0xf]
      %v311 = vld [vmem:[%s297 + $0x4c] sm:$0xf]
      %v312 = vld [vmem:[%s297 + $0x54] sm:$0xf]
      %v313 = vld [vmem:[%s297 + $0x58] sm:$0xf]
      %v314 = vld [vmem:[%s297 + $0x60] sm:$0xf]
      %v315 = vld [vmem:[%s297 + $0x64] sm:$0xf]
      %v316 = vld [vmem:[%s297 + $0x6c] sm:$0xf]
      %v317 = vld [vmem:[%s297 + $0x70] sm:$0xf]
      %v318 = vld [vmem:[%s2] sm:$0xff]
      %v319 = vld [vmem:[%s2 + $0x8] sm:$0xff]
      %v320 = vld [vmem:[%s2 + $0x10] sm:$0xff]
      %v321 = vld [vmem:[%s2 + $0x18] sm:$0xff]
      %v322 = vld [vmem:[%s2 + $0x20] sm:$0xff]
      %v323 = vld [vmem:[%s2 + $0x28] sm:$0xff]
      %v324 = vld [vmem:[%s2 + $0x30] sm:$0xff]
      %v325 = vld [vmem:[%s2 + $0x38] sm:$0xff]
      %v326 = vld [vmem:[%s2 + $0x40] sm:$0xff]
      %v327 = vld [vmem:[%s2 + $0x48] sm:$0xff]
      %v328 = vld [vmem:[%s2 + $0x50] sm:$0xff]
      %v329 = vld [vmem:[%s2 + $0x58] sm:$0xff]
      %v330 = vld [vmem:[%s2 + $0x60] sm:$0xff]
      %v331 = vld [vmem:[%s2 + $0x68] sm:$0xff]
      %v332 = vld [vmem:[%s2 + $0x70] sm:$0xff]
      %v333 = vld [vmem:[%s2 + $0x78] sm:$0xff]
      %v334 = vld [vmem:[%s2 + $0x80] sm:$0xff]
      %v335 = vld [vmem:[%s2 + $0x88] sm:$0xff]
      %v336 = vld [vmem:[%s2 + $0x90] sm:$0xff]
      %v337 = vld [vmem:[%s2 + $0x98] sm:$0xff]
      %v338 = vld [vmem:[%s2 + $0xa0] sm:$0xff]
      %v339 = vld [vmem:[%s2 + $0xa8] sm:$0xff]
      %v340 = vld [vmem:[%s2 + $0xb0] sm:$0xff]
      %v341 = vld [vmem:[%s2 + $0xb8] sm:$0xff]
      %v342 = vld [vmem:[%s2 + $0xc0] sm:$0xff]
      %v343 = vld [vmem:[%s2 + $0xc8] sm:$0xff]
      %v344 = vld [vmem:[%s2 + $0xd0] sm:$0xff]
      %v345 = vld [vmem:[%s2 + $0xd8] sm:$0xff]
      %v346 = vld [vmem:[%s2 + $0xe0] sm:$0xff]
      %v347 = vld [vmem:[%s2 + $0xe8] sm:$0xff]
      %v348 = vld [vmem:[%s2 + $0xf0] sm:$0xff]
      %v349 = vld [vmem:[%s2 + $0xf8] sm:$0xff]
      %v350 = vld [vmem:[%s3] sm:$0xff]
      %v351 = vld [vmem:[%s3 + $0x8] sm:$0xff]
      %v352 = vld [vmem:[%s3 + $0x10] sm:$0xff]
      %v353 = vld [vmem:[%s3 + $0x18] sm:$0xff]
      %v354 = vld [vmem:[%s3 + $0x20] sm:$0xff]
      %v355 = vld [vmem:[%s3 + $0x28] sm:$0xff]
      %v372 = vunpack.c.l.b16 %v298
      %v373 = vunpack.c.l.b16 %v299
      %v374 = vunpack.c.l.b16 %v300
      %v375 = vunpack.c.l.b16 %v301
      %v376 = vunpack.c.l.b16 %v302
      %v377 = vunpack.c.l.b16 %v303
      %v378 = vunpack.c.l.b16 %v304
      %v379 = vunpack.c.l.b16 %v305
      %v380 = vunpack.c.l.b16 %v306
      %v381 = vunpack.c.l.b16 %v307
      %v382 = vunpack.c.l.b16 %v308
      %v383 = vunpack.c.l.b16 %v309
      %v384 = vunpack.c.l.b16 %v310
      %v385 = vunpack.c.l.b16 %v311
      %v386 = vunpack.c.l.b16 %v312
      %v387 = vunpack.c.l.b16 %v313
      %v388 = vpack.c.b16 %v373, %v372
      %v389 = vpack.c.b16 %v375, %v374
      %v390 = vpack.c.b16 %v377, %v376
      %v391 = vpack.c.b16 %v379, %v378
      %v392 = vpack.c.b16 %v381, %v380
      %v393 = vpack.c.b16 %v383, %v382
      %v394 = vpack.c.b16 %v385, %v384
      %v395 = vpack.c.b16 %v387, %v386
      %v402 = vunpack.c.l.b16 %v350
      %v403 = vunpack.c.h.b16 %v350
      %v404 = vunpack.c.l.b16 %v351
      %v405 = vunpack.c.h.b16 %v351
      %v406 = vunpack.c.l.b16 %v352
      %v407 = vunpack.c.h.b16 %v352
      %v408 = vunpack.c.l.b16 %v353
      %v409 = vunpack.c.h.b16 %v353
      %v410 = vunpack.c.l.b16 %v354
      %v411 = vunpack.c.h.b16 %v354
      %v412 = vunpack.c.l.b16 %v355
      %v413 = vunpack.c.h.b16 %v355
      %v414 = vpack.c.b16 %v404, %v402
      %v415 = vpack.c.b16 %v405, %v403
      %v416 = vpack.c.b16 %v408, %v406
      %v417 = vpack.c.b16 %v409, %v407
      %v418 = vpack.c.b16 %v412, %v410
      %v419 = vpack.c.b16 %v413, %v411
      %vm426 = vcmask 392192
      %v428 = vsel %vm426, %v388, 0
      %v431 = vsel %vm426, %v389, 0
      %v434 = vsel %vm426, %v390, 0
      %v437 = vsel %vm426, %v391, 0
      %v440 = vsel %vm426, %v392, 0
      %v443 = vsel %vm426, %v393, 0
      %v446 = vsel %vm426, %v394, 0
      %v449 = vsel %vm426, %v395, 0
      %451 = vmatprep.subr.bf16.mxu0 %v415
      %452 = vmatpush1.bf16.msra.mxu0 %v414
      %453 = vmatprep.subr.bf16.mxu0 %v417
      %454 = vmatpush1.bf16.msra.mxu0 %v416
      %455 = vmatprep.subr.bf16.mxu0 %v419
      %456 = vmatpush1.bf16.msra.mxu0 %v418
      %457 = vmatprep.subr.bf16.mxu0 0
      %458 = vmatpush1.bf16.msra.mxu0 0
      %459 = vmatprep.subr.bf16.mxu0 0
      %460 = vmatpush1.bf16.msra.mxu0 0
      %461 = vmatprep.subr.bf16.mxu0 0
      %462 = vmatpush1.bf16.msra.mxu0 0
      %463 = vmatprep.subr.bf16.mxu0 0
      %464 = vmatpush1.bf16.msra.mxu0 0
      %465 = vmatprep.subr.bf16.mxu0 0
      %466 = vmatpush1.bf16.msra.mxu0 0
      %467 = vmatprep.subr.bf16.mxu0 0
      %468 = vmatpush1.bf16.msra.mxu0 0
      %469 = vmatprep.subr.bf16.mxu0 0
      %470 = vmatpush1.bf16.msra.mxu0 0
      %471 = vmatprep.subr.bf16.mxu0 0
      %472 = vmatpush1.bf16.msra.mxu0 0
      %473 = vmatprep.subr.bf16.mxu0 0
      %474 = vmatpush1.bf16.msra.mxu0 0
      %475 = vmatprep.subr.bf16.mxu0 0
      %476 = vmatpush1.bf16.msra.mxu0 0
      %477 = vmatprep.subr.bf16.mxu0 0
      %478 = vmatpush1.bf16.msra.mxu0 0
      %479 = vmatprep.subr.bf16.mxu0 0
      %480 = vmatpush1.bf16.msra.mxu0 0
      %481 = vmatprep.subr.bf16.mxu0 0
      %482 = vmatpush1.bf16.msra.mxu0 0
      %483 = vmatprep.mubr.bf16.mxu0 0
      %484 = vmatmul.mubr.bf16.gmra.mrb[0].mxu0 %v428
      %v485 = vpop.f32.mrb[0].mxu0
      %v486 = vadd.f32 0.0, %v485
      %v487 = vpop.f32.mrb[0].mxu0
      %v488 = vadd.f32 0.0, %v487
      %v489 = vpop.f32.mrb[0].mxu0
      %v490 = vadd.f32 0.0, %v489
      %v491 = vpop.f32.mrb[0].mxu0
      %v492 = vadd.f32 0.0, %v491
      %493 = vmatprep.mubr.bf16.mxu0 0
      %494 = vmatmul.mubr.bf16.gmra.mrb[0].mxu0 %v431
      %v495 = vpop.f32.mrb[0].mxu0
      %v496 = vadd.f32 0.0, %v495
      %v497 = vpop.f32.mrb[0].mxu0
      %v498 = vadd.f32 0.0, %v497
      %v499 = vpop.f32.mrb[0].mxu0
      %v500 = vadd.f32 0.0, %v499
      %v501 = vpop.f32.mrb[0].mxu0
      %v502 = vadd.f32 0.0, %v501
      %503 = vmatprep.mubr.bf16.mxu0 0
      %504 = vmatmul.mubr.bf16.gmra.mrb[0].mxu0 %v434
      %v505 = vpop.f32.mrb[0].mxu0
      %v506 = vadd.f32 0.0, %v505
      %v507 = vpop.f32.mrb[0].mxu0
      %v508 = vadd.f32 0.0, %v507
      %v509 = vpop.f32.mrb[0].mxu0
      %v510 = vadd.f32 0.0, %v509
      %v511 = vpop.f32.mrb[0].mxu0
      %v512 = vadd.f32 0.0, %v511
      %513 = vmatprep.mubr.bf16.mxu0 0
      %514 = vmatmul.mubr.bf16.gmra.mrb[0].mxu0 %v437
      %v515 = vpop.f32.mrb[0].mxu0
      %v516 = vadd.f32 0.0, %v515
      %v517 = vpop.f32.mrb[0].mxu0
      %v518 = vadd.f32 0.0, %v517
      %v519 = vpop.f32.mrb[0].mxu0
      %v520 = vadd.f32 0.0, %v519
      %v521 = vpop.f32.mrb[0].mxu0
      %v522 = vadd.f32 0.0, %v521
      %523 = vmatprep.mubr.bf16.mxu0 0
      %524 = vmatmul.mubr.bf16.gmra.mrb[0].mxu0 %v440
      %v525 = vpop.f32.mrb[0].mxu0
      %v526 = vadd.f32 0.0, %v525
      %v527 = vpop.f32.mrb[0].mxu0
      %v528 = vadd.f32 0.0, %v527
      %v529 = vpop.f32.mrb[0].mxu0
      %v530 = vadd.f32 0.0, %v529
      %v531 = vpop.f32.mrb[0].mxu0
      %v532 = vadd.f32 0.0, %v531
      %533 = vmatprep.mubr.bf16.mxu0 0
      %534 = vmatmul.mubr.bf16.gmra.mrb[0].mxu0 %v443
      %v535 = vpop.f32.mrb[0].mxu0
      %v536 = vadd.f32 0.0, %v535
      %v537 = vpop.f32.mrb[0].mxu0
      %v538 = vadd.f32 0.0, %v537
      %v539 = vpop.f32.mrb[0].mxu0
      %v540 = vadd.f32 0.0, %v539
      %v541 = vpop.f32.mrb[0].mxu0
      %v542 = vadd.f32 0.0, %v541
      %543 = vmatprep.mubr.bf16.mxu0 0
      %544 = vmatmul.mubr.bf16.gmra.mrb[0].mxu0 %v446
      %v545 = vpop.f32.mrb[0].mxu0
      %v546 = vadd.f32 0.0, %v545
      %v547 = vpop.f32.mrb[0].mxu0
      %v548 = vadd.f32 0.0, %v547
      %v549 = vpop.f32.mrb[0].mxu0
      %v550 = vadd.f32 0.0, %v549
      %v551 = vpop.f32.mrb[0].mxu0
      %v552 = vadd.f32 0.0, %v551
      %553 = vmatprep.mubr.bf16.mxu0 0
      %554 = vmatmul.mubr.bf16.gmra.mrb[0].mxu0 %v449
      %v555 = vpop.f32.mrb[0].mxu0
      %v556 = vadd.f32 0.0, %v555
      %v557 = vpop.f32.mrb[0].mxu0
      %v558 = vadd.f32 0.0, %v557
      %v559 = vpop.f32.mrb[0].mxu0
      %v560 = vadd.f32 0.0, %v559
      %v561 = vpop.f32.mrb[0].mxu0
      %v562 = vadd.f32 0.0, %v561
      %563 = vdwg.mxu0
      %v580 = vunpack.c.l.b16 %v275
      %v581 = vunpack.c.h.b16 %v275
      %v582 = vunpack.c.l.b16 %v276
      %v583 = vunpack.c.h.b16 %v276
      %v584 = vunpack.c.l.b16 %v277
      %v585 = vunpack.c.h.b16 %v277
      %v586 = vunpack.c.l.b16 %v278
      %v587 = vunpack.c.h.b16 %v278
      %v588 = vunpack.c.l.b16 %v279
      %v589 = vunpack.c.h.b16 %v279
      %v590 = vunpack.c.l.b16 %v280
      %v591 = vunpack.c.h.b16 %v280
      %v592 = vunpack.c.l.b16 %v281
      %v593 = vunpack.c.h.b16 %v281
      %v594 = vunpack.c.l.b16 %v282
      %v595 = vunpack.c.h.b16 %v282
      %v596 = vunpack.c.l.b16 %v283
      %v597 = vunpack.c.h.b16 %v283
      %v598 = vunpack.c.l.b16 %v284
      %v599 = vunpack.c.h.b16 %v284
      %v600 = vunpack.c.l.b16 %v285
      %v601 = vunpack.c.h.b16 %v285
      %v602 = vunpack.c.l.b16 %v286
      %v603 = vunpack.c.h.b16 %v286
      %v604 = vunpack.c.l.b16 %v287
      %v605 = vunpack.c.h.b16 %v287
      %v606 = vunpack.c.l.b16 %v288
      %v607 = vunpack.c.h.b16 %v288
      %v608 = vunpack.c.l.b16 %v289
      %v609 = vunpack.c.h.b16 %v289
      %v610 = vunpack.c.l.b16 %v290
      %v611 = vunpack.c.h.b16 %v290
      %v612 = vpack.c.b16 %v582, %v580
      %v613 = vpack.c.b16 %v583, %v581
      %v614 = vpack.c.b16 %v586, %v584
      %v615 = vpack.c.b16 %v587, %v585
      %v616 = vpack.c.b16 %v590, %v588
      %v617 = vpack.c.b16 %v591, %v589
      %v618 = vpack.c.b16 %v594, %v592
      %v619 = vpack.c.b16 %v595, %v593
      %v620 = vpack.c.b16 %v598, %v596
      %v621 = vpack.c.b16 %v599, %v597
      %v622 = vpack.c.b16 %v602, %v600
      %v623 = vpack.c.b16 %v603, %v601
      %v624 = vpack.c.b16 %v606, %v604
      %v625 = vpack.c.b16 %v607, %v605
      %v626 = vpack.c.b16 %v610, %v608
      %v627 = vpack.c.b16 %v611, %v609
      %v676 = vunpack.c.l.b16 %v318
      %v677 = vunpack.c.h.b16 %v318
      %v678 = vunpack.c.l.b16 %v319
      %v679 = vunpack.c.h.b16 %v319
      %v680 = vunpack.c.l.b16 %v320
      %v681 = vunpack.c.h.b16 %v320
      %v682 = vunpack.c.l.b16 %v321
      %v683 = vunpack.c.h.b16 %v321
      %v684 = vunpack.c.l.b16 %v322
      %v685 = vunpack.c.h.b16 %v322
      %v686 = vunpack.c.l.b16 %v323
      %v687 = vunpack.c.h.b16 %v323
      %v688 = vunpack.c.l.b16 %v324
      %v689 = vunpack.c.h.b16 %v324
      %v690 = vunpack.c.l.b16 %v325
      %v691 = vunpack.c.h.b16 %v325
      %v692 = vunpack.c.l.b16 %v326
      %v693 = vunpack.c.h.b16 %v326
      %v694 = vunpack.c.l.b16 %v327
      %v695 = vunpack.c.h.b16 %v327
      %v696 = vunpack.c.l.b16 %v328
      %v697 = vunpack.c.h.b16 %v328
      %v698 = vunpack.c.l.b16 %v329
      %v699 = vunpack.c.h.b16 %v329
      %v700 = vunpack.c.l.b16 %v330
      %v701 = vunpack.c.h.b16 %v330
      %v702 = vunpack.c.l.b16 %v331
      %v703 = vunpack.c.h.b16 %v331
      %v704 = vunpack.c.l.b16 %v332
      %v705 = vunpack.c.h.b16 %v332
      %v706 = vunpack.c.l.b16 %v333
      %v707 = vunpack.c.h.b16 %v333
      %v708 = vunpack.c.l.b16 %v334
      %v709 = vunpack.c.h.b16 %v334
      %v710 = vunpack.c.l.b16 %v335
      %v711 = vunpack.c.h.b16 %v335
      %v712 = vunpack.c.l.b16 %v336
      %v713 = vunpack.c.h.b16 %v336
      %v714 = vunpack.c.l.b16 %v337
      %v715 = vunpack.c.h.b16 %v337
      %v716 = vunpack.c.l.b16 %v338
      %v717 = vunpack.c.h.b16 %v338
      %v718 = vunpack.c.l.b16 %v339
      %v719 = vunpack.c.h.b16 %v339
      %v720 = vunpack.c.l.b16 %v340
      %v721 = vunpack.c.h.b16 %v340
      %v722 = vunpack.c.l.b16 %v341
      %v723 = vunpack.c.h.b16 %v341
      %v724 = vunpack.c.l.b16 %v342
      %v725 = vunpack.c.h.b16 %v342
      %v726 = vunpack.c.l.b16 %v343
      %v727 = vunpack.c.h.b16 %v343
      %v728 = vunpack.c.l.b16 %v344
      %v729 = vunpack.c.h.b16 %v344
      %v730 = vunpack.c.l.b16 %v345
      %v731 = vunpack.c.h.b16 %v345
      %v732 = vunpack.c.l.b16 %v346
      %v733 = vunpack.c.h.b16 %v346
      %v734 = vunpack.c.l.b16 %v347
      %v735 = vunpack.c.h.b16 %v347
      %v736 = vunpack.c.l.b16 %v348
      %v737 = vunpack.c.h.b16 %v348
      %v738 = vunpack.c.l.b16 %v349
      %v739 = vunpack.c.h.b16 %v349
      %v740 = vpack.c.b16 %v678, %v676
      %v741 = vpack.c.b16 %v679, %v677
      %v742 = vpack.c.b16 %v682, %v680
      %v743 = vpack.c.b16 %v683, %v681
      %v744 = vpack.c.b16 %v686, %v684
      %v745 = vpack.c.b16 %v687, %v685
      %v746 = vpack.c.b16 %v690, %v688
      %v747 = vpack.c.b16 %v691, %v689
      %v748 = vpack.c.b16 %v694, %v692
      %v749 = vpack.c.b16 %v695, %v693
      %v750 = vpack.c.b16 %v698, %v696
      %v751 = vpack.c.b16 %v699, %v697
      %v752 = vpack.c.b16 %v702, %v700
      %v753 = vpack.c.b16 %v703, %v701
      %v754 = vpack.c.b16 %v706, %v704
      %v755 = vpack.c.b16 %v707, %v705
      %v756 = vpack.c.b16 %v710, %v708
      %v757 = vpack.c.b16 %v711, %v709
      %v758 = vpack.c.b16 %v714, %v712
      %v759 = vpack.c.b16 %v715, %v713
      %v760 = vpack.c.b16 %v718, %v716
      %v761 = vpack.c.b16 %v719, %v717
      %v762 = vpack.c.b16 %v722, %v720
      %v763 = vpack.c.b16 %v723, %v721
      %v764 = vpack.c.b16 %v726, %v724
      %v765 = vpack.c.b16 %v727, %v725
      %v766 = vpack.c.b16 %v730, %v728
      %v767 = vpack.c.b16 %v731, %v729
      %v768 = vpack.c.b16 %v734, %v732
      %v769 = vpack.c.b16 %v735, %v733
      %v770 = vpack.c.b16 %v738, %v736
      %v771 = vpack.c.b16 %v739, %v737
      %804 = vmatprep.subr.bf16.mxu0 %v741
      %805 = vmatpush1.bf16.msra.mxu0 %v740
      %806 = vmatprep.subr.bf16.mxu0 %v743
      %807 = vmatpush1.bf16.msra.mxu0 %v742
      %808 = vmatprep.subr.bf16.mxu0 %v745
      %809 = vmatpush1.bf16.msra.mxu0 %v744
      %810 = vmatprep.subr.bf16.mxu0 %v747
      %811 = vmatpush1.bf16.msra.mxu0 %v746
      %812 = vmatprep.subr.bf16.mxu0 %v749
      %813 = vmatpush1.bf16.msra.mxu0 %v748
      %814 = vmatprep.subr.bf16.mxu0 %v751
      %815 = vmatpush1.bf16.msra.mxu0 %v750
      %816 = vmatprep.subr.bf16.mxu0 %v753
      %817 = vmatpush1.bf16.msra.mxu0 %v752
      %818 = vmatprep.subr.bf16.mxu0 %v755
      %819 = vmatpush1.bf16.msra.mxu0 %v754
      %820 = vmatprep.subr.bf16.mxu0 %v757
      %821 = vmatpush1.bf16.msra.mxu0 %v756
      %822 = vmatprep.subr.bf16.mxu0 %v759
      %823 = vmatpush1.bf16.msra.mxu0 %v758
      %824 = vmatprep.subr.bf16.mxu0 %v761
      %825 = vmatpush1.bf16.msra.mxu0 %v760
      %826 = vmatprep.subr.bf16.mxu0 %v763
      %827 = vmatpush1.bf16.msra.mxu0 %v762
      %828 = vmatprep.subr.bf16.mxu0 %v765
      %829 = vmatpush1.bf16.msra.mxu0 %v764
      %830 = vmatprep.subr.bf16.mxu0 %v767
      %831 = vmatpush1.bf16.msra.mxu0 %v766
      %832 = vmatprep.subr.bf16.mxu0 %v769
      %833 = vmatpush1.bf16.msra.mxu0 %v768
      %834 = vmatprep.subr.bf16.mxu0 %v771
      %835 = vmatpush1.bf16.msra.mxu0 %v770
      %836 = vmatprep.mubr.bf16.mxu0 %v613
      %837 = vmatmul.mubr.bf16.gmra.mrb[0].mxu0 %v612
      %v838 = vpop.f32.mrb[0].mxu0
      %v839 = vadd.f32 %v486, %v838
      %v840 = vpop.f32.mrb[0].mxu0
      %v841 = vadd.f32 %v488, %v840
      %v842 = vpop.f32.mrb[0].mxu0
      %v843 = vadd.f32 %v490, %v842
      %v844 = vpop.f32.mrb[0].mxu0
      %v845 = vadd.f32 %v492, %v844
      %846 = vmatprep.mubr.bf16.mxu0 %v615
      %847 = vmatmul.mubr.bf16.gmra.mrb[0].mxu0 %v614
      %v848 = vpop.f32.mrb[0].mxu0
      %v849 = vadd.f32 %v496, %v848
      %v850 = vpop.f32.mrb[0].mxu0
      %v851 = vadd.f32 %v498, %v850
      %v852 = vpop.f32.mrb[0].mxu0
      %v853 = vadd.f32 %v500, %v852
      %v854 = vpop.f32.mrb[0].mxu0
      %v855 = vadd.f32 %v502, %v854
      %856 = vmatprep.mubr.bf16.mxu0 %v617
      %857 = vmatmul.mubr.bf16.gmra.mrb[0].mxu0 %v616
      %v858 = vpop.f32.mrb[0].mxu0
      %v859 = vadd.f32 %v506, %v858
      %v860 = vpop.f32.mrb[0].mxu0
      %v861 = vadd.f32 %v508, %v860
      %v862 = vpop.f32.mrb[0].mxu0
      %v863 = vadd.f32 %v510, %v862
      %v864 = vpop.f32.mrb[0].mxu0
      %v865 = vadd.f32 %v512, %v864
      %866 = vmatprep.mubr.bf16.mxu0 %v619
      %867 = vmatmul.mubr.bf16.gmra.mrb[0].mxu0 %v618
      %v868 = vpop.f32.mrb[0].mxu0
      %v869 = vadd.f32 %v516, %v868
      %v870 = vpop.f32.mrb[0].mxu0
      %v871 = vadd.f32 %v518, %v870
      %v872 = vpop.f32.mrb[0].mxu0
      %v873 = vadd.f32 %v520, %v872
      %v874 = vpop.f32.mrb[0].mxu0
      %v875 = vadd.f32 %v522, %v874
      %876 = vmatprep.mubr.bf16.mxu0 %v621
      %877 = vmatmul.mubr.bf16.gmra.mrb[0].mxu0 %v620
      %v878 = vpop.f32.mrb[0].mxu0
      %v879 = vadd.f32 %v526, %v878
      %v880 = vpop.f32.mrb[0].mxu0
      %v881 = vadd.f32 %v528, %v880
      %v882 = vpop.f32.mrb[0].mxu0
      %v883 = vadd.f32 %v530, %v882
      %v884 = vpop.f32.mrb[0].mxu0
      %v885 = vadd.f32 %v532, %v884
      %886 = vmatprep.mubr.bf16.mxu0 %v623
      %887 = vmatmul.mubr.bf16.gmra.mrb[0].mxu0 %v622
      %v888 = vpop.f32.mrb[0].mxu0
      %v889 = vadd.f32 %v536, %v888
      %v890 = vpop.f32.mrb[0].mxu0
      %v891 = vadd.f32 %v538, %v890
      %v892 = vpop.f32.mrb[0].mxu0
      %v893 = vadd.f32 %v540, %v892
      %v894 = vpop.f32.mrb[0].mxu0
      %v895 = vadd.f32 %v542, %v894
      %896 = vmatprep.mubr.bf16.mxu0 %v625
      %897 = vmatmul.mubr.bf16.gmra.mrb[0].mxu0 %v624
      %v898 = vpop.f32.mrb[0].mxu0
      %v899 = vadd.f32 %v546, %v898
      %v900 = vpop.f32.mrb[0].mxu0
      %v901 = vadd.f32 %v548, %v900
      %v902 = vpop.f32.mrb[0].mxu0
      %v903 = vadd.f32 %v550, %v902
      %v904 = vpop.f32.mrb[0].mxu0
      %v905 = vadd.f32 %v552, %v904
      %906 = vmatprep.mubr.bf16.mxu0 %v627
      %907 = vmatmul.mubr.bf16.gmra.mrb[0].mxu0 %v626
      %v908 = vpop.f32.mrb[0].mxu0
      %v909 = vadd.f32 %v556, %v908
      %v910 = vpop.f32.mrb[0].mxu0
      %v911 = vadd.f32 %v558, %v910
      %v912 = vpop.f32.mrb[0].mxu0
      %v913 = vadd.f32 %v560, %v912
      %v914 = vpop.f32.mrb[0].mxu0
      %v915 = vadd.f32 %v562, %v914
      %916 = vdwg.mxu0
      %s917 = scalar_lea.vmem %s2, 768
      %v918 = vld [vmem:[%s917] sm:$0xff]
      %v919 = vld [vmem:[%s917 + $0x8] sm:$0xff]
      %v920 = vld [vmem:[%s917 + $0x10] sm:$0xff]
      %v921 = vld [vmem:[%s917 + $0x18] sm:$0xff]
      %v922 = vld [vmem:[%s917 + $0x20] sm:$0xff]
      %v923 = vld [vmem:[%s917 + $0x28] sm:$0xff]
      %v924 = vld [vmem:[%s917 + $0x30] sm:$0xff]
      %v925 = vld [vmem:[%s917 + $0x38] sm:$0xff]
      %v926 = vld [vmem:[%s917 + $0x40] sm:$0xff]
      %v927 = vld [vmem:[%s917 + $0x48] sm:$0xff]
      %v928 = vld [vmem:[%s917 + $0x50] sm:$0xff]
      %v929 = vld [vmem:[%s917 + $0x58] sm:$0xff]
      %v930 = vld [vmem:[%s917 + $0x60] sm:$0xff]
      %v931 = vld [vmem:[%s917 + $0x68] sm:$0xff]
      %v932 = vld [vmem:[%s917 + $0x70] sm:$0xff]
      %v933 = vld [vmem:[%s917 + $0x78] sm:$0xff]
      %v934 = vld [vmem:[%s917 + $0x80] sm:$0xff]
      %v935 = vld [vmem:[%s917 + $0x88] sm:$0xff]
      %v936 = vld [vmem:[%s917 + $0x90] sm:$0xff]
      %v937 = vld [vmem:[%s917 + $0x98] sm:$0xff]
      %v938 = vld [vmem:[%s917 + $0xa0] sm:$0xff]
      %v939 = vld [vmem:[%s917 + $0xa8] sm:$0xff]
      %v940 = vld [vmem:[%s917 + $0xb0] sm:$0xff]
      %v941 = vld [vmem:[%s917 + $0xb8] sm:$0xff]
      %v942 = vld [vmem:[%s917 + $0xc0] sm:$0xff]
      %v943 = vld [vmem:[%s917 + $0xc8] sm:$0xff]
      %v944 = vld [vmem:[%s917 + $0xd0] sm:$0xff]
      %v945 = vld [vmem:[%s917 + $0xd8] sm:$0xff]
      %v946 = vld [vmem:[%s917 + $0xe0] sm:$0xff]
      %v947 = vld [vmem:[%s917 + $0xe8] sm:$0xff]
      %v948 = vld [vmem:[%s917 + $0xf0] sm:$0xff]
      %v949 = vld [vmem:[%s917 + $0xf8] sm:$0xff]
      %v952 = vunpack.c.l.b16 %v291
      %v953 = vunpack.c.h.b16 %v291
      %v954 = vunpack.c.l.b16 %v292
      %v955 = vunpack.c.h.b16 %v292
      %v956 = vpack.c.b16 %v954, %v952
      %v957 = vpack.c.b16 %v955, %v953
      %v992 = vunpack.c.l.b16 %v918
      %v993 = vunpack.c.h.b16 %v918
      %v994 = vunpack.c.l.b16 %v919
      %v995 = vunpack.c.h.b16 %v919
      %v996 = vunpack.c.l.b16 %v920
      %v997 = vunpack.c.h.b16 %v920
      %v998 = vunpack.c.l.b16 %v921
      %v999 = vunpack.c.h.b16 %v921
      %v1000 = vunpack.c.l.b16 %v922
      %v1001 = vunpack.c.h.b16 %v922
      %v1002 = vunpack.c.l.b16 %v923
      %v1003 = vunpack.c.h.b16 %v923
      %v1004 = vunpack.c.l.b16 %v924
      %v1005 = vunpack.c.h.b16 %v924
      %v1006 = vunpack.c.l.b16 %v925
      %v1007 = vunpack.c.h.b16 %v925
      %v1008 = vunpack.c.l.b16 %v926
      %v1009 = vunpack.c.h.b16 %v926
      %v1010 = vunpack.c.l.b16 %v927
      %v1011 = vunpack.c.h.b16 %v927
      %v1012 = vunpack.c.l.b16 %v928
      %v1013 = vunpack.c.h.b16 %v928
      %v1014 = vunpack.c.l.b16 %v929
      %v1015 = vunpack.c.h.b16 %v929
      %v1016 = vunpack.c.l.b16 %v930
      %v1017 = vunpack.c.h.b16 %v930
      %v1018 = vunpack.c.l.b16 %v931
      %v1019 = vunpack.c.h.b16 %v931
      %v1020 = vunpack.c.l.b16 %v932
      %v1021 = vunpack.c.h.b16 %v932
      %v1022 = vunpack.c.l.b16 %v933
      %v1023 = vunpack.c.h.b16 %v933
      %v1024 = vunpack.c.l.b16 %v934
      %v1025 = vunpack.c.h.b16 %v934
      %v1026 = vunpack.c.l.b16 %v935
      %v1027 = vunpack.c.h.b16 %v935
      %v1028 = vunpack.c.l.b16 %v936
      %v1029 = vunpack.c.h.b16 %v936
      %v1030 = vunpack.c.l.b16 %v937
      %v1031 = vunpack.c.h.b16 %v937
      %v1032 = vunpack.c.l.b16 %v938
      %v1033 = vunpack.c.h.b16 %v938
      %v1034 = vunpack.c.l.b16 %v939
      %v1035 = vunpack.c.h.b16 %v939
      %v1036 = vunpack.c.l.b16 %v940
      %v1037 = vunpack.c.h.b16 %v940
      %v1038 = vunpack.c.l.b16 %v941
      %v1039 = vunpack.c.h.b16 %v941
      %v1040 = vunpack.c.l.b16 %v942
      %v1041 = vunpack.c.h.b16 %v942
      %v1042 = vunpack.c.l.b16 %v943
      %v1043 = vunpack.c.h.b16 %v943
      %v1044 = vunpack.c.l.b16 %v944
      %v1045 = vunpack.c.h.b16 %v944
      %v1046 = vunpack.c.l.b16 %v945
      %v1047 = vunpack.c.h.b16 %v945
      %v1048 = vunpack.c.l.b16 %v946
      %v1049 = vunpack.c.h.b16 %v946
      %v1050 = vunpack.c.l.b16 %v947
      %v1051 = vunpack.c.h.b16 %v947
      %v1052 = vunpack.c.l.b16 %v948
      %v1053 = vunpack.c.h.b16 %v948
      %v1054 = vunpack.c.l.b16 %v949
      %v1055 = vunpack.c.h.b16 %v949
      %v1056 = vpack.c.b16 %v994, %v992
      %v1057 = vpack.c.b16 %v995, %v993
      %v1058 = vpack.c.b16 %v998, %v996
      %v1059 = vpack.c.b16 %v999, %v997
      %v1060 = vpack.c.b16 %v1002, %v1000
      %v1061 = vpack.c.b16 %v1003, %v1001
      %v1062 = vpack.c.b16 %v1006, %v1004
      %v1063 = vpack.c.b16 %v1007, %v1005
      %v1064 = vpack.c.b16 %v1010, %v1008
      %v1065 = vpack.c.b16 %v1011, %v1009
      %v1066 = vpack.c.b16 %v1014, %v1012
      %v1067 = vpack.c.b16 %v1015, %v1013
      %v1068 = vpack.c.b16 %v1018, %v1016
      %v1069 = vpack.c.b16 %v1019, %v1017
      %v1070 = vpack.c.b16 %v1022, %v1020
      %v1071 = vpack.c.b16 %v1023, %v1021
      %v1072 = vpack.c.b16 %v1026, %v1024
      %v1073 = vpack.c.b16 %v1027, %v1025
      %v1074 = vpack.c.b16 %v1030, %v1028
      %v1075 = vpack.c.b16 %v1031, %v1029
      %v1076 = vpack.c.b16 %v1034, %v1032
      %v1077 = vpack.c.b16 %v1035, %v1033
      %v1078 = vpack.c.b16 %v1038, %v1036
      %v1079 = vpack.c.b16 %v1039, %v1037
      %v1080 = vpack.c.b16 %v1042, %v1040
      %v1081 = vpack.c.b16 %v1043, %v1041
      %v1082 = vpack.c.b16 %v1046, %v1044
      %v1083 = vpack.c.b16 %v1047, %v1045
      %v1084 = vpack.c.b16 %v1050, %v1048
      %v1085 = vpack.c.b16 %v1051, %v1049
      %v1086 = vpack.c.b16 %v1054, %v1052
      %v1087 = vpack.c.b16 %v1055, %v1053
      %1120 = vmatprep.subr.bf16.mxu0 %v1057
      %1121 = vmatpush1.bf16.msra.mxu0 %v1056
      %1122 = vmatprep.subr.bf16.mxu0 %v1059
      %1123 = vmatpush1.bf16.msra.mxu0 %v1058
      %1124 = vmatprep.subr.bf16.mxu0 %v1061
      %1125 = vmatpush1.bf16.msra.mxu0 %v1060
      %1126 = vmatprep.subr.bf16.mxu0 %v1063
      %1127 = vmatpush1.bf16.msra.mxu0 %v1062
      %1128 = vmatprep.subr.bf16.mxu0 %v1065
      %1129 = vmatpush1.bf16.msra.mxu0 %v1064
      %1130 = vmatprep.subr.bf16.mxu0 %v1067
      %1131 = vmatpush1.bf16.msra.mxu0 %v1066
      %1132 = vmatprep.subr.bf16.mxu0 %v1069
      %1133 = vmatpush1.bf16.msra.mxu0 %v1068
      %1134 = vmatprep.subr.bf16.mxu0 %v1071
      %1135 = vmatpush1.bf16.msra.mxu0 %v1070
      %1136 = vmatprep.subr.bf16.mxu0 %v1073
      %1137 = vmatpush1.bf16.msra.mxu0 %v1072
      %1138 = vmatprep.subr.bf16.mxu0 %v1075
      %1139 = vmatpush1.bf16.msra.mxu0 %v1074
      %1140 = vmatprep.subr.bf16.mxu0 %v1077
      %1141 = vmatpush1.bf16.msra.mxu0 %v1076
      %1142 = vmatprep.subr.bf16.mxu0 %v1079
      %1143 = vmatpush1.bf16.msra.mxu0 %v1078
      %1144 = vmatprep.subr.bf16.mxu0 %v1081
      %1145 = vmatpush1.bf16.msra.mxu0 %v1080
      %1146 = vmatprep.subr.bf16.mxu0 %v1083
      %1147 = vmatpush1.bf16.msra.mxu0 %v1082
      %1148 = vmatprep.subr.bf16.mxu0 %v1085
      %1149 = vmatpush1.bf16.msra.mxu0 %v1084
      %1150 = vmatprep.subr.bf16.mxu0 %v1087
      %1151 = vmatpush1.bf16.msra.mxu0 %v1086
      %1152 = vmatprep.mubr.bf16.mxu0 %v615
      %1153 = vmatmul.mubr.bf16.gmra.mrb[0].mxu0 %v614
      %v1154 = vpop.f32.mrb[0].mxu0
      %v1155 = vadd.f32 0.0, %v1154
      %v1156 = vpop.f32.mrb[0].mxu0
      %v1157 = vadd.f32 0.0, %v1156
      %v1158 = vpop.f32.mrb[0].mxu0
      %v1159 = vadd.f32 0.0, %v1158
      %v1160 = vpop.f32.mrb[0].mxu0
      %v1161 = vadd.f32 0.0, %v1160
      %1162 = vmatprep.mubr.bf16.mxu0 %v617
      %1163 = vmatmul.mubr.bf16.gmra.mrb[0].mxu0 %v616
      %v1164 = vpop.f32.mrb[0].mxu0
      %v1165 = vadd.f32 0.0, %v1164
      %v1166 = vpop.f32.mrb[0].mxu0
      %v1167 = vadd.f32 0.0, %v1166
      %v1168 = vpop.f32.mrb[0].mxu0
      %v1169 = vadd.f32 0.0, %v1168
      %v1170 = vpop.f32.mrb[0].mxu0
      %v1171 = vadd.f32 0.0, %v1170
      %1172 = vmatprep.mubr.bf16.mxu0 %v619
      %1173 = vmatmul.mubr.bf16.gmra.mrb[0].mxu0 %v618
      %v1174 = vpop.f32.mrb[0].mxu0
      %v1175 = vadd.f32 0.0, %v1174
      %v1176 = vpop.f32.mrb[0].mxu0
      %v1177 = vadd.f32 0.0, %v1176
      %v1178 = vpop.f32.mrb[0].mxu0
      %v1179 = vadd.f32 0.0, %v1178
      %v1180 = vpop.f32.mrb[0].mxu0
      %v1181 = vadd.f32 0.0, %v1180
      %1182 = vmatprep.mubr.bf16.mxu0 %v621
      %1183 = vmatmul.mubr.bf16.gmra.mrb[0].mxu0 %v620
      %v1184 = vpop.f32.mrb[0].mxu0
      %v1185 = vadd.f32 0.0, %v1184
      %v1186 = vpop.f32.mrb[0].mxu0
      %v1187 = vadd.f32 0.0, %v1186
      %v1188 = vpop.f32.mrb[0].mxu0
      %v1189 = vadd.f32 0.0, %v1188
      %v1190 = vpop.f32.mrb[0].mxu0
      %v1191 = vadd.f32 0.0, %v1190
      %1192 = vmatprep.mubr.bf16.mxu0 %v623
      %1193 = vmatmul.mubr.bf16.gmra.mrb[0].mxu0 %v622
      %v1194 = vpop.f32.mrb[0].mxu0
      %v1195 = vadd.f32 0.0, %v1194
      %v1196 = vpop.f32.mrb[0].mxu0
      %v1197 = vadd.f32 0.0, %v1196
      %v1198 = vpop.f32.mrb[0].mxu0
      %v1199 = vadd.f32 0.0, %v1198
      %v1200 = vpop.f32.mrb[0].mxu0
      %v1201 = vadd.f32 0.0, %v1200
      %1202 = vmatprep.mubr.bf16.mxu0 %v625
      %1203 = vmatmul.mubr.bf16.gmra.mrb[0].mxu0 %v624
      %v1204 = vpop.f32.mrb[0].mxu0
      %v1205 = vadd.f32 0.0, %v1204
      %v1206 = vpop.f32.mrb[0].mxu0
      %v1207 = vadd.f32 0.0, %v1206
      %v1208 = vpop.f32.mrb[0].mxu0
      %v1209 = vadd.f32 0.0, %v1208
      %v1210 = vpop.f32.mrb[0].mxu0
      %v1211 = vadd.f32 0.0, %v1210
      %1212 = vmatprep.mubr.bf16.mxu0 %v627
      %1213 = vmatmul.mubr.bf16.gmra.mrb[0].mxu0 %v626
      %v1214 = vpop.f32.mrb[0].mxu0
      %v1215 = vadd.f32 0.0, %v1214
      %v1216 = vpop.f32.mrb[0].mxu0
      %v1217 = vadd.f32 0.0, %v1216
      %v1218 = vpop.f32.mrb[0].mxu0
      %v1219 = vadd.f32 0.0, %v1218
      %v1220 = vpop.f32.mrb[0].mxu0
      %v1221 = vadd.f32 0.0, %v1220
      %1222 = vmatprep.mubr.bf16.mxu0 %v957
      %1223 = vmatmul.mubr.bf16.gmra.mrb[0].mxu0 %v956
      %v1224 = vpop.f32.mrb[0].mxu0
      %v1225 = vadd.f32 0.0, %v1224
      %v1226 = vpop.f32.mrb[0].mxu0
      %v1227 = vadd.f32 0.0, %v1226
      %v1228 = vpop.f32.mrb[0].mxu0
      %v1229 = vadd.f32 0.0, %v1228
      %v1230 = vpop.f32.mrb[0].mxu0
      %v1231 = vadd.f32 0.0, %v1230
      %1232 = vdwg.mxu0
      %v1233 = vadd.f32 %v839, %v1155
      %v1234 = vadd.f32 %v841, %v1157
      %v1235 = vadd.f32 %v843, %v1159
      %v1236 = vadd.f32 %v845, %v1161
      %v1237 = vadd.f32 %v849, %v1165
      %v1238 = vadd.f32 %v851, %v1167
      %v1239 = vadd.f32 %v853, %v1169
      %v1240 = vadd.f32 %v855, %v1171
      %v1241 = vadd.f32 %v859, %v1175
      %v1242 = vadd.f32 %v861, %v1177
      %v1243 = vadd.f32 %v863, %v1179
      %v1244 = vadd.f32 %v865, %v1181
      %v1245 = vadd.f32 %v869, %v1185
      %v1246 = vadd.f32 %v871, %v1187
      %v1247 = vadd.f32 %v873, %v1189
      %v1248 = vadd.f32 %v875, %v1191
      %v1249 = vadd.f32 %v879, %v1195
      %v1250 = vadd.f32 %v881, %v1197
      %v1251 = vadd.f32 %v883, %v1199
      %v1252 = vadd.f32 %v885, %v1201
      %v1253 = vadd.f32 %v889, %v1205
      %v1254 = vadd.f32 %v891, %v1207
      %v1255 = vadd.f32 %v893, %v1209
      %v1256 = vadd.f32 %v895, %v1211
      %v1257 = vadd.f32 %v899, %v1215
      %v1258 = vadd.f32 %v901, %v1217
      %v1259 = vadd.f32 %v903, %v1219
      %v1260 = vadd.f32 %v905, %v1221
      %v1261 = vadd.f32 %v909, %v1225
      %v1262 = vadd.f32 %v911, %v1227
      %v1263 = vadd.f32 %v913, %v1229
      %v1264 = vadd.f32 %v915, %v1231
      %s1265 = scalar_lea.vmem %s3, 144
      %v1266 = vld [vmem:[%s1265] sm:$0xff]
      %v1267 = vld [vmem:[%s1265 + $0x8] sm:$0xff]
      %v1268 = vld [vmem:[%s1265 + $0x10] sm:$0xff]
      %v1269 = vld [vmem:[%s1265 + $0x18] sm:$0xff]
      %v1270 = vld [vmem:[%s1265 + $0x20] sm:$0xff]
      %v1271 = vld [vmem:[%s1265 + $0x28] sm:$0xff]
      %v1274 = vunpack.c.l.b16 %v314
      %v1275 = vunpack.c.l.b16 %v315
      %v1276 = vpack.c.b16 %v1275, %v1274
      %v1283 = vunpack.c.l.b16 %v1266
      %v1284 = vunpack.c.h.b16 %v1266
      %v1285 = vunpack.c.l.b16 %v1267
      %v1286 = vunpack.c.h.b16 %v1267
      %v1287 = vunpack.c.l.b16 %v1268
      %v1288 = vunpack.c.h.b16 %v1268
      %v1289 = vunpack.c.l.b16 %v1269
      %v1290 = vunpack.c.h.b16 %v1269
      %v1291 = vunpack.c.l.b16 %v1270
      %v1292 = vunpack.c.h.b16 %v1270
      %v1293 = vunpack.c.l.b16 %v1271
      %v1294 = vunpack.c.h.b16 %v1271
      %v1295 = vpack.c.b16 %v1285, %v1283
      %v1296 = vpack.c.b16 %v1286, %v1284
      %v1297 = vpack.c.b16 %v1289, %v1287
      %v1298 = vpack.c.b16 %v1290, %v1288
      %v1299 = vpack.c.b16 %v1293, %v1291
      %v1300 = vpack.c.b16 %v1294, %v1292
      %v1308 = vsel %vm426, %v1276, 0
      %1310 = vmatprep.subr.bf16.mxu0 %v1296
      %1311 = vmatpush1.bf16.msra.mxu0 %v1295
      %1312 = vmatprep.subr.bf16.mxu0 %v1298
      %1313 = vmatpush1.bf16.msra.mxu0 %v1297
      %1314 = vmatprep.subr.bf16.mxu0 %v1300
      %1315 = vmatpush1.bf16.msra.mxu0 %v1299
      %1316 = vmatprep.subr.bf16.mxu0 0
      %1317 = vmatpush1.bf16.msra.mxu0 0
      %1318 = vmatprep.subr.bf16.mxu0 0
      %1319 = vmatpush1.bf16.msra.mxu0 0
      %1320 = vmatprep.subr.bf16.mxu0 0
      %1321 = vmatpush1.bf16.msra.mxu0 0
      %1322 = vmatprep.subr.bf16.mxu0 0
      %1323 = vmatpush1.bf16.msra.mxu0 0
      %1324 = vmatprep.subr.bf16.mxu0 0
      %1325 = vmatpush1.bf16.msra.mxu0 0
      %1326 = vmatprep.subr.bf16.mxu0 0
      %1327 = vmatpush1.bf16.msra.mxu0 0
      %1328 = vmatprep.subr.bf16.mxu0 0
      %1329 = vmatpush1.bf16.msra.mxu0 0
      %1330 = vmatprep.subr.bf16.mxu0 0
      %1331 = vmatpush1.bf16.msra.mxu0 0
      %1332 = vmatprep.subr.bf16.mxu0 0
      %1333 = vmatpush1.bf16.msra.mxu0 0
      %1334 = vmatprep.subr.bf16.mxu0 0
      %1335 = vmatpush1.bf16.msra.mxu0 0
      %1336 = vmatprep.subr.bf16.mxu0 0
      %1337 = vmatpush1.bf16.msra.mxu0 0
      %1338 = vmatprep.subr.bf16.mxu0 0
      %1339 = vmatpush1.bf16.msra.mxu0 0
      %1340 = vmatprep.subr.bf16.mxu0 0
      %1341 = vmatpush1.bf16.msra.mxu0 0
      %1342 = vmatprep.mubr.bf16.mxu0 0
      %1343 = vmatmul.mubr.bf16.gmra.mrb[0].mxu0 %v431
      %v1344 = vpop.f32.mrb[0].mxu0
      %v1345 = vadd.f32 0.0, %v1344
      %v1346 = vpop.f32.mrb[0].mxu0
      %v1347 = vadd.f32 0.0, %v1346
      %v1348 = vpop.f32.mrb[0].mxu0
      %v1349 = vadd.f32 0.0, %v1348
      %v1350 = vpop.f32.mrb[0].mxu0
      %v1351 = vadd.f32 0.0, %v1350
      %1352 = vmatprep.mubr.bf16.mxu0 0
      %1353 = vmatmul.mubr.bf16.gmra.mrb[0].mxu0 %v434
      %v1354 = vpop.f32.mrb[0].mxu0
      %v1355 = vadd.f32 0.0, %v1354
      %v1356 = vpop.f32.mrb[0].mxu0
      %v1357 = vadd.f32 0.0, %v1356
      %v1358 = vpop.f32.mrb[0].mxu0
      %v1359 = vadd.f32 0.0, %v1358
      %v1360 = vpop.f32.mrb[0].mxu0
      %v1361 = vadd.f32 0.0, %v1360
      %1362 = vmatprep.mubr.bf16.mxu0 0
      %1363 = vmatmul.mubr.bf16.gmra.mrb[0].mxu0 %v437
      %v1364 = vpop.f32.mrb[0].mxu0
      %v1365 = vadd.f32 0.0, %v1364
      %v1366 = vpop.f32.mrb[0].mxu0
      %v1367 = vadd.f32 0.0, %v1366
      %v1368 = vpop.f32.mrb[0].mxu0
      %v1369 = vadd.f32 0.0, %v1368
      %v1370 = vpop.f32.mrb[0].mxu0
      %v1371 = vadd.f32 0.0, %v1370
      %1372 = vmatprep.mubr.bf16.mxu0 0
      %1373 = vmatmul.mubr.bf16.gmra.mrb[0].mxu0 %v440
      %v1374 = vpop.f32.mrb[0].mxu0
      %v1375 = vadd.f32 0.0, %v1374
      %v1376 = vpop.f32.mrb[0].mxu0
      %v1377 = vadd.f32 0.0, %v1376
      %v1378 = vpop.f32.mrb[0].mxu0
      %v1379 = vadd.f32 0.0, %v1378
      %v1380 = vpop.f32.mrb[0].mxu0
      %v1381 = vadd.f32 0.0, %v1380
      %1382 = vmatprep.mubr.bf16.mxu0 0
      %1383 = vmatmul.mubr.bf16.gmra.mrb[0].mxu0 %v443
      %v1384 = vpop.f32.mrb[0].mxu0
      %v1385 = vadd.f32 0.0, %v1384
      %v1386 = vpop.f32.mrb[0].mxu0
      %v1387 = vadd.f32 0.0, %v1386
      %v1388 = vpop.f32.mrb[0].mxu0
      %v1389 = vadd.f32 0.0, %v1388
      %v1390 = vpop.f32.mrb[0].mxu0
      %v1391 = vadd.f32 0.0, %v1390
      %1392 = vmatprep.mubr.bf16.mxu0 0
      %1393 = vmatmul.mubr.bf16.gmra.mrb[0].mxu0 %v446
      %v1394 = vpop.f32.mrb[0].mxu0
      %v1395 = vadd.f32 0.0, %v1394
      %v1396 = vpop.f32.mrb[0].mxu0
      %v1397 = vadd.f32 0.0, %v1396
      %v1398 = vpop.f32.mrb[0].mxu0
      %v1399 = vadd.f32 0.0, %v1398
      %v1400 = vpop.f32.mrb[0].mxu0
      %v1401 = vadd.f32 0.0, %v1400
      %1402 = vmatprep.mubr.bf16.mxu0 0
      %1403 = vmatmul.mubr.bf16.gmra.mrb[0].mxu0 %v449
      %v1404 = vpop.f32.mrb[0].mxu0
      %v1405 = vadd.f32 0.0, %v1404
      %v1406 = vpop.f32.mrb[0].mxu0
      %v1407 = vadd.f32 0.0, %v1406
      %v1408 = vpop.f32.mrb[0].mxu0
      %v1409 = vadd.f32 0.0, %v1408
      %v1410 = vpop.f32.mrb[0].mxu0
      %v1411 = vadd.f32 0.0, %v1410
      %1412 = vmatprep.mubr.bf16.mxu0 0
      %1413 = vmatmul.mubr.bf16.gmra.mrb[0].mxu0 %v1308
      %v1414 = vpop.f32.mrb[0].mxu0
      %v1415 = vadd.f32 0.0, %v1414
      %v1416 = vpop.f32.mrb[0].mxu0
      %v1417 = vadd.f32 0.0, %v1416
      %v1418 = vpop.f32.mrb[0].mxu0
      %v1419 = vadd.f32 0.0, %v1418
      %v1420 = vpop.f32.mrb[0].mxu0
      %v1421 = vadd.f32 0.0, %v1420
      %1422 = vdwg.mxu0
      %v1423 = vadd.f32 %v1233, %v1345
      %v1424 = vadd.f32 %v1234, %v1347
      %v1425 = vadd.f32 %v1235, %v1349
      %v1426 = vadd.f32 %v1236, %v1351
      %v1427 = vadd.f32 %v1237, %v1355
      %v1428 = vadd.f32 %v1238, %v1357
      %v1429 = vadd.f32 %v1239, %v1359
      %v1430 = vadd.f32 %v1240, %v1361
      %v1431 = vadd.f32 %v1241, %v1365
      %v1432 = vadd.f32 %v1242, %v1367
      %v1433 = vadd.f32 %v1243, %v1369
      %v1434 = vadd.f32 %v1244, %v1371
      %v1435 = vadd.f32 %v1245, %v1375
      %v1436 = vadd.f32 %v1246, %v1377
      %v1437 = vadd.f32 %v1247, %v1379
      %v1438 = vadd.f32 %v1248, %v1381
      %v1439 = vadd.f32 %v1249, %v1385
      %v1440 = vadd.f32 %v1250, %v1387
      %v1441 = vadd.f32 %v1251, %v1389
      %v1442 = vadd.f32 %v1252, %v1391
      %v1443 = vadd.f32 %v1253, %v1395
      %v1444 = vadd.f32 %v1254, %v1397
      %v1445 = vadd.f32 %v1255, %v1399
      %v1446 = vadd.f32 %v1256, %v1401
      %v1447 = vadd.f32 %v1257, %v1405
      %v1448 = vadd.f32 %v1258, %v1407
      %v1449 = vadd.f32 %v1259, %v1409
      %v1450 = vadd.f32 %v1260, %v1411
      %v1451 = vadd.f32 %v1261, %v1415
      %v1452 = vadd.f32 %v1262, %v1417
      %v1453 = vadd.f32 %v1263, %v1419
      %v1454 = vadd.f32 %v1264, %v1421
      %s1455 = scalar_lea.vmem %s2, 1536
      %v1456 = vld [vmem:[%s1455] sm:$0xff]
      %v1457 = vld [vmem:[%s1455 + $0x8] sm:$0xff]
      %v1458 = vld [vmem:[%s1455 + $0x10] sm:$0xff]
      %v1459 = vld [vmem:[%s1455 + $0x18] sm:$0xff]
      %v1460 = vld [vmem:[%s1455 + $0x20] sm:$0xff]
      %v1461 = vld [vmem:[%s1455 + $0x28] sm:$0xff]
      %v1462 = vld [vmem:[%s1455 + $0x30] sm:$0xff]
      %v1463 = vld [vmem:[%s1455 + $0x38] sm:$0xff]
      %v1464 = vld [vmem:[%s1455 + $0x40] sm:$0xff]
      %v1465 = vld [vmem:[%s1455 + $0x48] sm:$0xff]
      %v1466 = vld [vmem:[%s1455 + $0x50] sm:$0xff]
      %v1467 = vld [vmem:[%s1455 + $0x58] sm:$0xff]
      %v1468 = vld [vmem:[%s1455 + $0x60] sm:$0xff]
      %v1469 = vld [vmem:[%s1455 + $0x68] sm:$0xff]
      %v1470 = vld [vmem:[%s1455 + $0x70] sm:$0xff]
      %v1471 = vld [vmem:[%s1455 + $0x78] sm:$0xff]
      %v1472 = vld [vmem:[%s1455 + $0x80] sm:$0xff]
      %v1473 = vld [vmem:[%s1455 + $0x88] sm:$0xff]
      %v1474 = vld [vmem:[%s1455 + $0x90] sm:$0xff]
      %v1475 = vld [vmem:[%s1455 + $0x98] sm:$0xff]
      %v1476 = vld [vmem:[%s1455 + $0xa0] sm:$0xff]
      %v1477 = vld [vmem:[%s1455 + $0xa8] sm:$0xff]
      %v1478 = vld [vmem:[%s1455 + $0xb0] sm:$0xff]
      %v1479 = vld [vmem:[%s1455 + $0xb8] sm:$0xff]
      %v1480 = vld [vmem:[%s1455 + $0xc0] sm:$0xff]
      %v1481 = vld [vmem:[%s1455 + $0xc8] sm:$0xff]
      %v1482 = vld [vmem:[%s1455 + $0xd0] sm:$0xff]
      %v1483 = vld [vmem:[%s1455 + $0xd8] sm:$0xff]
      %v1484 = vld [vmem:[%s1455 + $0xe0] sm:$0xff]
      %v1485 = vld [vmem:[%s1455 + $0xe8] sm:$0xff]
      %v1486 = vld [vmem:[%s1455 + $0xf0] sm:$0xff]
      %v1487 = vld [vmem:[%s1455 + $0xf8] sm:$0xff]
      %v1490 = vunpack.c.l.b16 %v293
      %v1491 = vunpack.c.h.b16 %v293
      %v1492 = vunpack.c.l.b16 %v294
      %v1493 = vunpack.c.h.b16 %v294
      %v1494 = vpack.c.b16 %v1492, %v1490
      %v1495 = vpack.c.b16 %v1493, %v1491
      %v1530 = vunpack.c.l.b16 %v1456
      %v1531 = vunpack.c.h.b16 %v1456
      %v1532 = vunpack.c.l.b16 %v1457
      %v1533 = vunpack.c.h.b16 %v1457
      %v1534 = vunpack.c.l.b16 %v1458
      %v1535 = vunpack.c.h.b16 %v1458
      %v1536 = vunpack.c.l.b16 %v1459
      %v1537 = vunpack.c.h.b16 %v1459
      %v1538 = vunpack.c.l.b16 %v1460
      %v1539 = vunpack.c.h.b16 %v1460
      %v1540 = vunpack.c.l.b16 %v1461
      %v1541 = vunpack.c.h.b16 %v1461
      %v1542 = vunpack.c.l.b16 %v1462
      %v1543 = vunpack.c.h.b16 %v1462
      %v1544 = vunpack.c.l.b16 %v1463
      %v1545 = vunpack.c.h.b16 %v1463
      %v1546 = vunpack.c.l.b16 %v1464
      %v1547 = vunpack.c.h.b16 %v1464
      %v1548 = vunpack.c.l.b16 %v1465
      %v1549 = vunpack.c.h.b16 %v1465
      %v1550 = vunpack.c.l.b16 %v1466
      %v1551 = vunpack.c.h.b16 %v1466
      %v1552 = vunpack.c.l.b16 %v1467
      %v1553 = vunpack.c.h.b16 %v1467
      %v1554 = vunpack.c.l.b16 %v1468
      %v1555 = vunpack.c.h.b16 %v1468
      %v1556 = vunpack.c.l.b16 %v1469
      %v1557 = vunpack.c.h.b16 %v1469
      %v1558 = vunpack.c.l.b16 %v1470
      %v1559 = vunpack.c.h.b16 %v1470
      %v1560 = vunpack.c.l.b16 %v1471
      %v1561 = vunpack.c.h.b16 %v1471
      %v1562 = vunpack.c.l.b16 %v1472
      %v1563 = vunpack.c.h.b16 %v1472
      %v1564 = vunpack.c.l.b16 %v1473
      %v1565 = vunpack.c.h.b16 %v1473
      %v1566 = vunpack.c.l.b16 %v1474
      %v1567 = vunpack.c.h.b16 %v1474
      %v1568 = vunpack.c.l.b16 %v1475
      %v1569 = vunpack.c.h.b16 %v1475
      %v1570 = vunpack.c.l.b16 %v1476
      %v1571 = vunpack.c.h.b16 %v1476
      %v1572 = vunpack.c.l.b16 %v1477
      %v1573 = vunpack.c.h.b16 %v1477
      %v1574 = vunpack.c.l.b16 %v1478
      %v1575 = vunpack.c.h.b16 %v1478
      %v1576 = vunpack.c.l.b16 %v1479
      %v1577 = vunpack.c.h.b16 %v1479
      %v1578 = vunpack.c.l.b16 %v1480
      %v1579 = vunpack.c.h.b16 %v1480
      %v1580 = vunpack.c.l.b16 %v1481
      %v1581 = vunpack.c.h.b16 %v1481
      %v1582 = vunpack.c.l.b16 %v1482
      %v1583 = vunpack.c.h.b16 %v1482
      %v1584 = vunpack.c.l.b16 %v1483
      %v1585 = vunpack.c.h.b16 %v1483
      %v1586 = vunpack.c.l.b16 %v1484
      %v1587 = vunpack.c.h.b16 %v1484
      %v1588 = vunpack.c.l.b16 %v1485
      %v1589 = vunpack.c.h.b16 %v1485
      %v1590 = vunpack.c.l.b16 %v1486
      %v1591 = vunpack.c.h.b16 %v1486
      %v1592 = vunpack.c.l.b16 %v1487
      %v1593 = vunpack.c.h.b16 %v1487
      %v1594 = vpack.c.b16 %v1532, %v1530
      %v1595 = vpack.c.b16 %v1533, %v1531
      %v1596 = vpack.c.b16 %v1536, %v1534
      %v1597 = vpack.c.b16 %v1537, %v1535
      %v1598 = vpack.c.b16 %v1540, %v1538
      %v1599 = vpack.c.b16 %v1541, %v1539
      %v1600 = vpack.c.b16 %v1544, %v1542
      %v1601 = vpack.c.b16 %v1545, %v1543
      %v1602 = vpack.c.b16 %v1548, %v1546
      %v1603 = vpack.c.b16 %v1549, %v1547
      %v1604 = vpack.c.b16 %v1552, %v1550
      %v1605 = vpack.c.b16 %v1553, %v1551
      %v1606 = vpack.c.b16 %v1556, %v1554
      %v1607 = vpack.c.b16 %v1557, %v1555
      %v1608 = vpack.c.b16 %v1560, %v1558
      %v1609 = vpack.c.b16 %v1561, %v1559
      %v1610 = vpack.c.b16 %v1564, %v1562
      %v1611 = vpack.c.b16 %v1565, %v1563
      %v1612 = vpack.c.b16 %v1568, %v1566
      %v1613 = vpack.c.b16 %v1569, %v1567
      %v1614 = vpack.c.b16 %v1572, %v1570
      %v1615 = vpack.c.b16 %v1573, %v1571
      %v1616 = vpack.c.b16 %v1576, %v1574
      %v1617 = vpack.c.b16 %v1577, %v1575
      %v1618 = vpack.c.b16 %v1580, %v1578
      %v1619 = vpack.c.b16 %v1581, %v1579
      %v1620 = vpack.c.b16 %v1584, %v1582
      %v1621 = vpack.c.b16 %v1585, %v1583
      %v1622 = vpack.c.b16 %v1588, %v1586
      %v1623 = vpack.c.b16 %v1589, %v1587
      %v1624 = vpack.c.b16 %v1592, %v1590
      %v1625 = vpack.c.b16 %v1593, %v1591
      %1658 = vmatprep.subr.bf16.mxu0 %v1595
      %1659 = vmatpush1.bf16.msra.mxu0 %v1594
      %1660 = vmatprep.subr.bf16.mxu0 %v1597
      %1661 = vmatpush1.bf16.msra.mxu0 %v1596
      %1662 = vmatprep.subr.bf16.mxu0 %v1599
      %1663 = vmatpush1.bf16.msra.mxu0 %v1598
      %1664 = vmatprep.subr.bf16.mxu0 %v1601
      %1665 = vmatpush1.bf16.msra.mxu0 %v1600
      %1666 = vmatprep.subr.bf16.mxu0 %v1603
      %1667 = vmatpush1.bf16.msra.mxu0 %v1602
      %1668 = vmatprep.subr.bf16.mxu0 %v1605
      %1669 = vmatpush1.bf16.msra.mxu0 %v1604
      %1670 = vmatprep.subr.bf16.mxu0 %v1607
      %1671 = vmatpush1.bf16.msra.mxu0 %v1606
      %1672 = vmatprep.subr.bf16.mxu0 %v1609
      %1673 = vmatpush1.bf16.msra.mxu0 %v1608
      %1674 = vmatprep.subr.bf16.mxu0 %v1611
      %1675 = vmatpush1.bf16.msra.mxu0 %v1610
      %1676 = vmatprep.subr.bf16.mxu0 %v1613
      %1677 = vmatpush1.bf16.msra.mxu0 %v1612
      %1678 = vmatprep.subr.bf16.mxu0 %v1615
      %1679 = vmatpush1.bf16.msra.mxu0 %v1614
      %1680 = vmatprep.subr.bf16.mxu0 %v1617
      %1681 = vmatpush1.bf16.msra.mxu0 %v1616
      %1682 = vmatprep.subr.bf16.mxu0 %v1619
      %1683 = vmatpush1.bf16.msra.mxu0 %v1618
      %1684 = vmatprep.subr.bf16.mxu0 %v1621
      %1685 = vmatpush1.bf16.msra.mxu0 %v1620
      %1686 = vmatprep.subr.bf16.mxu0 %v1623
      %1687 = vmatpush1.bf16.msra.mxu0 %v1622
      %1688 = vmatprep.subr.bf16.mxu0 %v1625
      %1689 = vmatpush1.bf16.msra.mxu0 %v1624
      %1690 = vmatprep.mubr.bf16.mxu0 %v617
      %1691 = vmatmul.mubr.bf16.gmra.mrb[0].mxu0 %v616
      %v1692 = vpop.f32.mrb[0].mxu0
      %v1693 = vadd.f32 0.0, %v1692
      %v1694 = vpop.f32.mrb[0].mxu0
      %v1695 = vadd.f32 0.0, %v1694
      %v1696 = vpop.f32.mrb[0].mxu0
      %v1697 = vadd.f32 0.0, %v1696
      %v1698 = vpop.f32.mrb[0].mxu0
      %v1699 = vadd.f32 0.0, %v1698
      %1700 = vmatprep.mubr.bf16.mxu0 %v619
      %1701 = vmatmul.mubr.bf16.gmra.mrb[0].mxu0 %v618
      %v1702 = vpop.f32.mrb[0].mxu0
      %v1703 = vadd.f32 0.0, %v1702
      %v1704 = vpop.f32.mrb[0].mxu0
      %v1705 = vadd.f32 0.0, %v1704
      %v1706 = vpop.f32.mrb[0].mxu0
      %v1707 = vadd.f32 0.0, %v1706
      %v1708 = vpop.f32.mrb[0].mxu0
      %v1709 = vadd.f32 0.0, %v1708
      %1710 = vmatprep.mubr.bf16.mxu0 %v621
      %1711 = vmatmul.mubr.bf16.gmra.mrb[0].mxu0 %v620
      %v1712 = vpop.f32.mrb[0].mxu0
      %v1713 = vadd.f32 0.0, %v1712
      %v1714 = vpop.f32.mrb[0].mxu0
      %v1715 = vadd.f32 0.0, %v1714
      %v1716 = vpop.f32.mrb[0].mxu0
      %v1717 = vadd.f32 0.0, %v1716
      %v1718 = vpop.f32.mrb[0].mxu0
      %v1719 = vadd.f32 0.0, %v1718
      %1720 = vmatprep.mubr.bf16.mxu0 %v623
      %1721 = vmatmul.mubr.bf16.gmra.mrb[0].mxu0 %v622
      %v1722 = vpop.f32.mrb[0].mxu0
      %v1723 = vadd.f32 0.0, %v1722
      %v1724 = vpop.f32.mrb[0].mxu0
      %v1725 = vadd.f32 0.0, %v1724
      %v1726 = vpop.f32.mrb[0].mxu0
      %v1727 = vadd.f32 0.0, %v1726
      %v1728 = vpop.f32.mrb[0].mxu0
      %v1729 = vadd.f32 0.0, %v1728
      %1730 = vmatprep.mubr.bf16.mxu0 %v625
      %1731 = vmatmul.mubr.bf16.gmra.mrb[0].mxu0 %v624
      %v1732 = vpop.f32.mrb[0].mxu0
      %v1733 = vadd.f32 0.0, %v1732
      %v1734 = vpop.f32.mrb[0].mxu0
      %v1735 = vadd.f32 0.0, %v1734
      %v1736 = vpop.f32.mrb[0].mxu0
      %v1737 = vadd.f32 0.0, %v1736
      %v1738 = vpop.f32.mrb[0].mxu0
      %v1739 = vadd.f32 0.0, %v1738
      %1740 = vmatprep.mubr.bf16.mxu0 %v627
      %1741 = vmatmul.mubr.bf16.gmra.mrb[0].mxu0 %v626
      %v1742 = vpop.f32.mrb[0].mxu0
      %v1743 = vadd.f32 0.0, %v1742
      %v1744 = vpop.f32.mrb[0].mxu0
      %v1745 = vadd.f32 0.0, %v1744
      %v1746 = vpop.f32.mrb[0].mxu0
      %v1747 = vadd.f32 0.0, %v1746
      %v1748 = vpop.f32.mrb[0].mxu0
      %v1749 = vadd.f32 0.0, %v1748
      %1750 = vmatprep.mubr.bf16.mxu0 %v957
      %1751 = vmatmul.mubr.bf16.gmra.mrb[0].mxu0 %v956
      %v1752 = vpop.f32.mrb[0].mxu0
      %v1753 = vadd.f32 0.0, %v1752
      %v1754 = vpop.f32.mrb[0].mxu0
      %v1755 = vadd.f32 0.0, %v1754
      %v1756 = vpop.f32.mrb[0].mxu0
      %v1757 = vadd.f32 0.0, %v1756
      %v1758 = vpop.f32.mrb[0].mxu0
      %v1759 = vadd.f32 0.0, %v1758
      %1760 = vmatprep.mubr.bf16.mxu0 %v1495
      %1761 = vmatmul.mubr.bf16.gmra.mrb[0].mxu0 %v1494
      %v1762 = vpop.f32.mrb[0].mxu0
      %v1763 = vadd.f32 0.0, %v1762
      %v1764 = vpop.f32.mrb[0].mxu0
      %v1765 = vadd.f32 0.0, %v1764
      %v1766 = vpop.f32.mrb[0].mxu0
      %v1767 = vadd.f32 0.0, %v1766
      %v1768 = vpop.f32.mrb[0].mxu0
      %v1769 = vadd.f32 0.0, %v1768
      %1770 = vdwg.mxu0
      %v1771 = vadd.f32 %v1423, %v1693
      %v1772 = vadd.f32 %v1424, %v1695
      %v1773 = vadd.f32 %v1425, %v1697
      %v1774 = vadd.f32 %v1426, %v1699
      %v1775 = vadd.f32 %v1427, %v1703
      %v1776 = vadd.f32 %v1428, %v1705
      %v1777 = vadd.f32 %v1429, %v1707
      %v1778 = vadd.f32 %v1430, %v1709
      %v1779 = vadd.f32 %v1431, %v1713
      %v1780 = vadd.f32 %v1432, %v1715
      %v1781 = vadd.f32 %v1433, %v1717
      %v1782 = vadd.f32 %v1434, %v1719
      %v1783 = vadd.f32 %v1435, %v1723
      %v1784 = vadd.f32 %v1436, %v1725
      %v1785 = vadd.f32 %v1437, %v1727
      %v1786 = vadd.f32 %v1438, %v1729
      %v1787 = vadd.f32 %v1439, %v1733
      %v1788 = vadd.f32 %v1440, %v1735
      %v1789 = vadd.f32 %v1441, %v1737
      %v1790 = vadd.f32 %v1442, %v1739
      %v1791 = vadd.f32 %v1443, %v1743
      %v1792 = vadd.f32 %v1444, %v1745
      %v1793 = vadd.f32 %v1445, %v1747
      %v1794 = vadd.f32 %v1446, %v1749
      %v1795 = vadd.f32 %v1447, %v1753
      %v1796 = vadd.f32 %v1448, %v1755
      %v1797 = vadd.f32 %v1449, %v1757
      %v1798 = vadd.f32 %v1450, %v1759
      %v1799 = vadd.f32 %v1451, %v1763
      %v1800 = vadd.f32 %v1452, %v1765
      %v1801 = vadd.f32 %v1453, %v1767
      %v1802 = vadd.f32 %v1454, %v1769
      %s1803 = scalar_lea.vmem %s3, 288
      %v1804 = vld [vmem:[%s1803] sm:$0xff]
      %v1805 = vld [vmem:[%s1803 + $0x8] sm:$0xff]
      %v1806 = vld [vmem:[%s1803 + $0x10] sm:$0xff]
      %v1807 = vld [vmem:[%s1803 + $0x18] sm:$0xff]
      %v1808 = vld [vmem:[%s1803 + $0x20] sm:$0xff]
      %v1809 = vld [vmem:[%s1803 + $0x28] sm:$0xff]
      %v1812 = vunpack.c.l.b16 %v316
      %v1813 = vunpack.c.l.b16 %v317
      %v1814 = vpack.c.b16 %v1813, %v1812
      %v1821 = vunpack.c.l.b16 %v1804
      %v1822 = vunpack.c.h.b16 %v1804
      %v1823 = vunpack.c.l.b16 %v1805
      %v1824 = vunpack.c.h.b16 %v1805
      %v1825 = vunpack.c.l.b16 %v1806
      %v1826 = vunpack.c.h.b16 %v1806
      %v1827 = vunpack.c.l.b16 %v1807
      %v1828 = vunpack.c.h.b16 %v1807
      %v1829 = vunpack.c.l.b16 %v1808
      %v1830 = vunpack.c.h.b16 %v1808
      %v1831 = vunpack.c.l.b16 %v1809
      %v1832 = vunpack.c.h.b16 %v1809
      %v1833 = vpack.c.b16 %v1823, %v1821
      %v1834 = vpack.c.b16 %v1824, %v1822
      %v1835 = vpack.c.b16 %v1827, %v1825
      %v1836 = vpack.c.b16 %v1828, %v1826
      %v1837 = vpack.c.b16 %v1831, %v1829
      %v1838 = vpack.c.b16 %v1832, %v1830
      %v1846 = vsel %vm426, %v1814, 0
      %1848 = vmatprep.subr.bf16.mxu0 %v1834
      %1849 = vmatpush1.bf16.msra.mxu0 %v1833
      %1850 = vmatprep.subr.bf16.mxu0 %v1836
      %1851 = vmatpush1.bf16.msra.mxu0 %v1835
      %1852 = vmatprep.subr.bf16.mxu0 %v1838
      %1853 = vmatpush1.bf16.msra.mxu0 %v1837
      %1854 = vmatprep.subr.bf16.mxu0 0
      %1855 = vmatpush1.bf16.msra.mxu0 0
      %1856 = vmatprep.subr.bf16.mxu0 0
      %1857 = vmatpush1.bf16.msra.mxu0 0
      %1858 = vmatprep.subr.bf16.mxu0 0
      %1859 = vmatpush1.bf16.msra.mxu0 0
      %1860 = vmatprep.subr.bf16.mxu0 0
      %1861 = vmatpush1.bf16.msra.mxu0 0
      %1862 = vmatprep.subr.bf16.mxu0 0
      %1863 = vmatpush1.bf16.msra.mxu0 0
      %1864 = vmatprep.subr.bf16.mxu0 0
      %1865 = vmatpush1.bf16.msra.mxu0 0
      %1866 = vmatprep.subr.bf16.mxu0 0
      %1867 = vmatpush1.bf16.msra.mxu0 0
      %1868 = vmatprep.subr.bf16.mxu0 0
      %1869 = vmatpush1.bf16.msra.mxu0 0
      %1870 = vmatprep.subr.bf16.mxu0 0
      %1871 = vmatpush1.bf16.msra.mxu0 0
      %1872 = vmatprep.subr.bf16.mxu0 0
      %1873 = vmatpush1.bf16.msra.mxu0 0
      %1874 = vmatprep.subr.bf16.mxu0 0
      %1875 = vmatpush1.bf16.msra.mxu0 0
      %1876 = vmatprep.subr.bf16.mxu0 0
      %1877 = vmatpush1.bf16.msra.mxu0 0
      %1878 = vmatprep.subr.bf16.mxu0 0
      %1879 = vmatpush1.bf16.msra.mxu0 0
      %1880 = vmatprep.mubr.bf16.mxu0 0
      %1881 = vmatmul.mubr.bf16.gmra.mrb[0].mxu0 %v434
      %v1882 = vpop.f32.mrb[0].mxu0
      %v1883 = vadd.f32 0.0, %v1882
      %v1884 = vpop.f32.mrb[0].mxu0
      %v1885 = vadd.f32 0.0, %v1884
      %v1886 = vpop.f32.mrb[0].mxu0
      %v1887 = vadd.f32 0.0, %v1886
      %v1888 = vpop.f32.mrb[0].mxu0
      %v1889 = vadd.f32 0.0, %v1888
      %1890 = vmatprep.mubr.bf16.mxu0 0
      %1891 = vmatmul.mubr.bf16.gmra.mrb[0].mxu0 %v437
      %v1892 = vpop.f32.mrb[0].mxu0
      %v1893 = vadd.f32 0.0, %v1892
      %v1894 = vpop.f32.mrb[0].mxu0
      %v1895 = vadd.f32 0.0, %v1894
      %v1896 = vpop.f32.mrb[0].mxu0
      %v1897 = vadd.f32 0.0, %v1896
      %v1898 = vpop.f32.mrb[0].mxu0
      %v1899 = vadd.f32 0.0, %v1898
      %1900 = vmatprep.mubr.bf16.mxu0 0
      %1901 = vmatmul.mubr.bf16.gmra.mrb[0].mxu0 %v440
      %v1902 = vpop.f32.mrb[0].mxu0
      %v1903 = vadd.f32 0.0, %v1902
      %v1904 = vpop.f32.mrb[0].mxu0
      %v1905 = vadd.f32 0.0, %v1904
      %v1906 = vpop.f32.mrb[0].mxu0
      %v1907 = vadd.f32 0.0, %v1906
      %v1908 = vpop.f32.mrb[0].mxu0
      %v1909 = vadd.f32 0.0, %v1908
      %1910 = vmatprep.mubr.bf16.mxu0 0
      %1911 = vmatmul.mubr.bf16.gmra.mrb[0].mxu0 %v443
      %v1912 = vpop.f32.mrb[0].mxu0
      %v1913 = vadd.f32 0.0, %v1912
      %v1914 = vpop.f32.mrb[0].mxu0
      %v1915 = vadd.f32 0.0, %v1914
      %v1916 = vpop.f32.mrb[0].mxu0
      %v1917 = vadd.f32 0.0, %v1916
      %v1918 = vpop.f32.mrb[0].mxu0
      %v1919 = vadd.f32 0.0, %v1918
      %1920 = vmatprep.mubr.bf16.mxu0 0
      %1921 = vmatmul.mubr.bf16.gmra.mrb[0].mxu0 %v446
      %v1922 = vpop.f32.mrb[0].mxu0
      %v1923 = vadd.f32 0.0, %v1922
      %v1924 = vpop.f32.mrb[0].mxu0
      %v1925 = vadd.f32 0.0, %v1924
      %v1926 = vpop.f32.mrb[0].mxu0
      %v1927 = vadd.f32 0.0, %v1926
      %v1928 = vpop.f32.mrb[0].mxu0
      %v1929 = vadd.f32 0.0, %v1928
      %1930 = vmatprep.mubr.bf16.mxu0 0
      %1931 = vmatmul.mubr.bf16.gmra.mrb[0].mxu0 %v449
      %v1932 = vpop.f32.mrb[0].mxu0
      %v1933 = vadd.f32 0.0, %v1932
      %v1934 = vpop.f32.mrb[0].mxu0
      %v1935 = vadd.f32 0.0, %v1934
      %v1936 = vpop.f32.mrb[0].mxu0
      %v1937 = vadd.f32 0.0, %v1936
      %v1938 = vpop.f32.mrb[0].mxu0
      %v1939 = vadd.f32 0.0, %v1938
      %1940 = vmatprep.mubr.bf16.mxu0 0
      %1941 = vmatmul.mubr.bf16.gmra.mrb[0].mxu0 %v1308
      %v1942 = vpop.f32.mrb[0].mxu0
      %v1943 = vadd.f32 0.0, %v1942
      %v1944 = vpop.f32.mrb[0].mxu0
      %v1945 = vadd.f32 0.0, %v1944
      %v1946 = vpop.f32.mrb[0].mxu0
      %v1947 = vadd.f32 0.0, %v1946
      %v1948 = vpop.f32.mrb[0].mxu0
      %v1949 = vadd.f32 0.0, %v1948
      %1950 = vmatprep.mubr.bf16.mxu0 0
      %1951 = vmatmul.mubr.bf16.gmra.mrb[0].mxu0 %v1846
      %v1952 = vpop.f32.mrb[0].mxu0
      %v1953 = vadd.f32 0.0, %v1952
      %v1954 = vpop.f32.mrb[0].mxu0
      %v1955 = vadd.f32 0.0, %v1954
      %v1956 = vpop.f32.mrb[0].mxu0
      %v1957 = vadd.f32 0.0, %v1956
      %v1958 = vpop.f32.mrb[0].mxu0
      %v1959 = vadd.f32 0.0, %v1958
      %1960 = vdwg.mxu0
      %v1961 = vadd.f32 %v1771, %v1883
      %v1962 = vadd.f32 %v1772, %v1885
      %v1963 = vadd.f32 %v1773, %v1887
      %v1964 = vadd.f32 %v1774, %v1889
      %v1965 = vadd.f32 %v1775, %v1893
      %v1966 = vadd.f32 %v1776, %v1895
      %v1967 = vadd.f32 %v1777, %v1897
      %v1968 = vadd.f32 %v1778, %v1899
      %v1969 = vadd.f32 %v1779, %v1903
      %v1970 = vadd.f32 %v1780, %v1905
      %v1971 = vadd.f32 %v1781, %v1907
      %v1972 = vadd.f32 %v1782, %v1909
      %v1973 = vadd.f32 %v1783, %v1913
      %v1974 = vadd.f32 %v1784, %v1915
      %v1975 = vadd.f32 %v1785, %v1917
      %v1976 = vadd.f32 %v1786, %v1919
      %v1977 = vadd.f32 %v1787, %v1923
      %v1978 = vadd.f32 %v1788, %v1925
      %v1979 = vadd.f32 %v1789, %v1927
      %v1980 = vadd.f32 %v1790, %v1929
      %v1981 = vadd.f32 %v1791, %v1933
      %v1982 = vadd.f32 %v1792, %v1935
      %v1983 = vadd.f32 %v1793, %v1937
      %v1984 = vadd.f32 %v1794, %v1939
      %v1985 = vadd.f32 %v1795, %v1943
      %v1986 = vadd.f32 %v1796, %v1945
      %v1987 = vadd.f32 %v1797, %v1947
      %v1988 = vadd.f32 %v1798, %v1949
      %v1989 = vadd.f32 %v1799, %v1953
      %v1990 = vadd.f32 %v1800, %v1955
      %v1991 = vadd.f32 %v1801, %v1957
      %v1992 = vadd.f32 %v1802, %v1959
      %v1993 = vld [vmem:[%s274] sm:$0xff]
      %v1994 = vld [vmem:[%s274 + $0x8] sm:$0xff]
      %v1995 = vld [vmem:[%s274 + $0x10] sm:$0x11]
      %v1996 = vld [vmem:[%s274 + $0x18] sm:$0xff]
      %v1997 = vld [vmem:[%s274 + $0x20] sm:$0xff]
      %v1998 = vld [vmem:[%s274 + $0x28] sm:$0x11]
      %v1999 = vld [vmem:[%s274 + $0x30] sm:$0xff]
      %v2000 = vld [vmem:[%s274 + $0x38] sm:$0xff]
      %v2001 = vld [vmem:[%s274 + $0x40] sm:$0x11]
      %v2002 = vld [vmem:[%s274 + $0x48] sm:$0xff]
      %v2003 = vld [vmem:[%s274 + $0x50] sm:$0xff]
      %v2004 = vld [vmem:[%s274 + $0x58] sm:$0x11]
      %v2005 = vld [vmem:[%s274 + $0x60] sm:$0xff]
      %v2006 = vld [vmem:[%s274 + $0x68] sm:$0xff]
      %v2007 = vld [vmem:[%s274 + $0x70] sm:$0x11]
      %v2008 = vld [vmem:[%s274 + $0x78] sm:$0xff]
      %v2009 = vld [vmem:[%s274 + $0x80] sm:$0xff]
      %v2010 = vld [vmem:[%s274 + $0x88] sm:$0x11]
      %v2011 = vld [vmem:[%s274 + $0x90] sm:$0xff]
      %v2012 = vld [vmem:[%s274 + $0x98] sm:$0xff]
      %v2013 = vld [vmem:[%s274 + $0xa0] sm:$0x11]
      %v2014 = vld [vmem:[%s274 + $0xa8] sm:$0xff]
      %v2015 = vld [vmem:[%s274 + $0xb0] sm:$0xff]
      %v2016 = vld [vmem:[%s274 + $0xb8] sm:$0x11]
      %v2017 = vld [vmem:[%s274 + $0xc0] sm:$0xff]
      %v2018 = vld [vmem:[%s274 + $0xc8] sm:$0xff]
      %v2019 = vld [vmem:[%s274 + $0xd0] sm:$0x11]
      %v2020 = vld [vmem:[%s274 + $0xd8] sm:$0xff]
      %v2021 = vld [vmem:[%s274 + $0xe0] sm:$0xff]
      %v2022 = vld [vmem:[%s274 + $0xe8] sm:$0x11]
      %v2023 = vld [vmem:[%s297] sm:$0xf]
      %v2024 = vld [vmem:[%s297 + $0x4] sm:$0xf]
      %v2025 = vld [vmem:[%s297 + $0x8] sm:$0x1]
      %v2026 = vld [vmem:[%s297 + $0xc] sm:$0xf]
      %v2027 = vld [vmem:[%s297 + $0x10] sm:$0xf]
      %v2028 = vld [vmem:[%s297 + $0x14] sm:$0x1]
      %v2029 = vld [vmem:[%s297 + $0x18] sm:$0xf]
      %v2030 = vld [vmem:[%s297 + $0x1c] sm:$0xf]
      %v2031 = vld [vmem:[%s297 + $0x20] sm:$0x1]
      %v2032 = vld [vmem:[%s297 + $0x24] sm:$0xf]
      %v2033 = vld [vmem:[%s297 + $0x28] sm:$0xf]
      %v2034 = vld [vmem:[%s297 + $0x2c] sm:$0x1]
      %v2035 = vld [vmem:[%s297 + $0x30] sm:$0xf]
      %v2036 = vld [vmem:[%s297 + $0x34] sm:$0xf]
      %v2037 = vld [vmem:[%s297 + $0x38] sm:$0x1]
      %v2038 = vld [vmem:[%s297 + $0x3c] sm:$0xf]
      %v2039 = vld [vmem:[%s297 + $0x40] sm:$0xf]
      %v2040 = vld [vmem:[%s297 + $0x44] sm:$0x1]
      %v2041 = vld [vmem:[%s297 + $0x48] sm:$0xf]
      %v2042 = vld [vmem:[%s297 + $0x4c] sm:$0xf]
      %v2043 = vld [vmem:[%s297 + $0x50] sm:$0x1]
      %v2044 = vld [vmem:[%s297 + $0x54] sm:$0xf]
      %v2045 = vld [vmem:[%s297 + $0x58] sm:$0xf]
      %v2046 = vld [vmem:[%s297 + $0x5c] sm:$0x1]
      %v2047 = vld [vmem:[%s297 + $0x60] sm:$0xf]
      %v2048 = vld [vmem:[%s297 + $0x64] sm:$0xf]
      %v2049 = vld [vmem:[%s297 + $0x68] sm:$0x1]
      %v2050 = vld [vmem:[%s297 + $0x6c] sm:$0xf]
      %v2051 = vld [vmem:[%s297 + $0x70] sm:$0xf]
      %v2052 = vld [vmem:[%s297 + $0x74] sm:$0x1]
      %vm2053 = vsmask.f32 3328
      %vm2054 = vsmask.f32 7440
      %vm2055 = vmor %vm2053, %vm2054
      %v2057 = vshrl.u32 %v1993, 16
      %v2059 = vrot.slane %v2057, 4
      %v2060 = vshll.u32 %v1993, 16
      %v2062 = vrot.slane %v2060, 5
      %v2063 = vor.u32 %v2059, %v2062
      %v2064 = vrot.slane %v2063, 4
      %v2066 = vshll.u32 %v1994, 16
      %v2068 = vrot.slane %v2066, 5
      %v2069 = vsel %vm2055, %v2064, %v2068
      %v2070 = vshrl.u32 %v1994, 16
      %v2072 = vrot.slane %v2070, 4
      %v2073 = vor.u32 %v2072, %v2068
      %v2074 = vrot.slane %v2073, 4
      %v2076 = vshll.u32 %v1995, 16
      %v2078 = vrot.slane %v2076, 5
      %v2079 = vsel %vm2055, %v2074, %v2078
      %v2081 = vshrl.u32 %v1996, 16
      %v2083 = vrot.slane %v2081, 4
      %v2084 = vshll.u32 %v1996, 16
      %v2086 = vrot.slane %v2084, 5
      %v2087 = vor.u32 %v2083, %v2086
      %v2088 = vrot.slane %v2087, 4
      %v2090 = vshll.u32 %v1997, 16
      %v2092 = vrot.slane %v2090, 5
      %v2093 = vsel %vm2055, %v2088, %v2092
      %v2094 = vshrl.u32 %v1997, 16
      %v2096 = vrot.slane %v2094, 4
      %v2097 = vor.u32 %v2096, %v2092
      %v2098 = vrot.slane %v2097, 4
      %v2100 = vshll.u32 %v1998, 16
      %v2102 = vrot.slane %v2100, 5
      %v2103 = vsel %vm2055, %v2098, %v2102
      %v2105 = vshrl.u32 %v1999, 16
      %v2107 = vrot.slane %v2105, 4
      %v2108 = vshll.u32 %v1999, 16
      %v2110 = vrot.slane %v2108, 5
      %v2111 = vor.u32 %v2107, %v2110
      %v2112 = vrot.slane %v2111, 4
      %v2114 = vshll.u32 %v2000, 16
      %v2116 = vrot.slane %v2114, 5
      %v2117 = vsel %vm2055, %v2112, %v2116
      %v2118 = vshrl.u32 %v2000, 16
      %v2120 = vrot.slane %v2118, 4
      %v2121 = vor.u32 %v2120, %v2116
      %v2122 = vrot.slane %v2121, 4
      %v2124 = vshll.u32 %v2001, 16
      %v2126 = vrot.slane %v2124, 5
      %v2127 = vsel %vm2055, %v2122, %v2126
      %v2129 = vshrl.u32 %v2002, 16
      %v2131 = vrot.slane %v2129, 4
      %v2132 = vshll.u32 %v2002, 16
      %v2134 = vrot.slane %v2132, 5
      %v2135 = vor.u32 %v2131, %v2134
      %v2136 = vrot.slane %v2135, 4
      %v2138 = vshll.u32 %v2003, 16
      %v2140 = vrot.slane %v2138, 5
      %v2141 = vsel %vm2055, %v2136, %v2140
      %v2142 = vshrl.u32 %v2003, 16
      %v2144 = vrot.slane %v2142, 4
      %v2145 = vor.u32 %v2144, %v2140
      %v2146 = vrot.slane %v2145, 4
      %v2148 = vshll.u32 %v2004, 16
      %v2150 = vrot.slane %v2148, 5
      %v2151 = vsel %vm2055, %v2146, %v2150
      %v2153 = vshrl.u32 %v2005, 16
      %v2155 = vrot.slane %v2153, 4
      %v2156 = vshll.u32 %v2005, 16
      %v2158 = vrot.slane %v2156, 5
      %v2159 = vor.u32 %v2155, %v2158
      %v2160 = vrot.slane %v2159, 4
      %v2162 = vshll.u32 %v2006, 16
      %v2164 = vrot.slane %v2162, 5
      %v2165 = vsel %vm2055, %v2160, %v2164
      %v2166 = vshrl.u32 %v2006, 16
      %v2168 = vrot.slane %v2166, 4
      %v2169 = vor.u32 %v2168, %v2164
      %v2170 = vrot.slane %v2169, 4
      %v2172 = vshll.u32 %v2007, 16
      %v2174 = vrot.slane %v2172, 5
      %v2175 = vsel %vm2055, %v2170, %v2174
      %v2177 = vshrl.u32 %v2008, 16
      %v2179 = vrot.slane %v2177, 4
      %v2180 = vshll.u32 %v2008, 16
      %v2182 = vrot.slane %v2180, 5
      %v2183 = vor.u32 %v2179, %v2182
      %v2184 = vrot.slane %v2183, 4
      %v2186 = vshll.u32 %v2009, 16
      %v2188 = vrot.slane %v2186, 5
      %v2189 = vsel %vm2055, %v2184, %v2188
      %v2190 = vshrl.u32 %v2009, 16
      %v2192 = vrot.slane %v2190, 4
      %v2193 = vor.u32 %v2192, %v2188
      %v2194 = vrot.slane %v2193, 4
      %v2196 = vshll.u32 %v2010, 16
      %v2198 = vrot.slane %v2196, 5
      %v2199 = vsel %vm2055, %v2194, %v2198
      %v2201 = vshrl.u32 %v2011, 16
      %v2203 = vrot.slane %v2201, 4
      %v2204 = vshll.u32 %v2011, 16
      %v2206 = vrot.slane %v2204, 5
      %v2207 = vor.u32 %v2203, %v2206
      %v2208 = vrot.slane %v2207, 4
      %v2210 = vshll.u32 %v2012, 16
      %v2212 = vrot.slane %v2210, 5
      %v2213 = vsel %vm2055, %v2208, %v2212
      %v2214 = vshrl.u32 %v2012, 16
      %v2216 = vrot.slane %v2214, 4
      %v2217 = vor.u32 %v2216, %v2212
      %v2218 = vrot.slane %v2217, 4
      %v2220 = vshll.u32 %v2013, 16
      %v2222 = vrot.slane %v2220, 5
      %v2223 = vsel %vm2055, %v2218, %v2222
      %v2225 = vshrl.u32 %v2014, 16
      %v2227 = vrot.slane %v2225, 4
      %v2228 = vshll.u32 %v2014, 16
      %v2230 = vrot.slane %v2228, 5
      %v2231 = vor.u32 %v2227, %v2230
      %v2232 = vrot.slane %v2231, 4
      %v2234 = vshll.u32 %v2015, 16
      %v2236 = vrot.slane %v2234, 5
      %v2237 = vsel %vm2055, %v2232, %v2236
      %v2238 = vshrl.u32 %v2015, 16
      %v2240 = vrot.slane %v2238, 4
      %v2241 = vor.u32 %v2240, %v2236
      %v2242 = vrot.slane %v2241, 4
      %v2244 = vshll.u32 %v2016, 16
      %v2246 = vrot.slane %v2244, 5
      %v2247 = vsel %vm2055, %v2242, %v2246
      %s2248 = scalar_lea.vmem %s2, 256
      %v2249 = vld [vmem:[%s2248] sm:$0xff]
      %v2250 = vld [vmem:[%s2248 + $0x8] sm:$0xff]
      %v2251 = vld [vmem:[%s2248 + $0x10] sm:$0xff]
      %v2252 = vld [vmem:[%s2248 + $0x18] sm:$0xff]
      %v2253 = vld [vmem:[%s2248 + $0x20] sm:$0xff]
      %v2254 = vld [vmem:[%s2248 + $0x28] sm:$0xff]
      %v2255 = vld [vmem:[%s2248 + $0x30] sm:$0xff]
      %v2256 = vld [vmem:[%s2248 + $0x38] sm:$0xff]
      %v2257 = vld [vmem:[%s2248 + $0x40] sm:$0xff]
      %v2258 = vld [vmem:[%s2248 + $0x48] sm:$0xff]
      %v2259 = vld [vmem:[%s2248 + $0x50] sm:$0xff]
      %v2260 = vld [vmem:[%s2248 + $0x58] sm:$0xff]
      %v2261 = vld [vmem:[%s2248 + $0x60] sm:$0xff]
      %v2262 = vld [vmem:[%s2248 + $0x68] sm:$0xff]
      %v2263 = vld [vmem:[%s2248 + $0x70] sm:$0xff]
      %v2264 = vld [vmem:[%s2248 + $0x78] sm:$0xff]
      %v2265 = vld [vmem:[%s2248 + $0x80] sm:$0xff]
      %v2266 = vld [vmem:[%s2248 + $0x88] sm:$0xff]
      %v2267 = vld [vmem:[%s2248 + $0x90] sm:$0xff]
      %v2268 = vld [vmem:[%s2248 + $0x98] sm:$0xff]
      %v2269 = vld [vmem:[%s2248 + $0xa0] sm:$0xff]
      %v2270 = vld [vmem:[%s2248 + $0xa8] sm:$0xff]
      %v2271 = vld [vmem:[%s2248 + $0xb0] sm:$0xff]
      %v2272 = vld [vmem:[%s2248 + $0xb8] sm:$0xff]
      %v2273 = vld [vmem:[%s2248 + $0xc0] sm:$0xff]
      %v2274 = vld [vmem:[%s2248 + $0xc8] sm:$0xff]
      %v2275 = vld [vmem:[%s2248 + $0xd0] sm:$0xff]
      %v2276 = vld [vmem:[%s2248 + $0xd8] sm:$0xff]
      %v2277 = vld [vmem:[%s2248 + $0xe0] sm:$0xff]
      %v2278 = vld [vmem:[%s2248 + $0xe8] sm:$0xff]
      %v2279 = vld [vmem:[%s2248 + $0xf0] sm:$0xff]
      %v2280 = vld [vmem:[%s2248 + $0xf8] sm:$0xff]
      %v2281 = vunpack.c.l.b16 %v2069
      %v2282 = vunpack.c.h.b16 %v2069
      %v2283 = vunpack.c.l.b16 %v2079
      %v2284 = vunpack.c.h.b16 %v2079
      %v2285 = vunpack.c.l.b16 %v2093
      %v2286 = vunpack.c.h.b16 %v2093
      %v2287 = vunpack.c.l.b16 %v2103
      %v2288 = vunpack.c.h.b16 %v2103
      %v2289 = vunpack.c.l.b16 %v2117
      %v2290 = vunpack.c.h.b16 %v2117
      %v2291 = vunpack.c.l.b16 %v2127
      %v2292 = vunpack.c.h.b16 %v2127
      %v2293 = vunpack.c.l.b16 %v2141
      %v2294 = vunpack.c.h.b16 %v2141
      %v2295 = vunpack.c.l.b16 %v2151
      %v2296 = vunpack.c.h.b16 %v2151
      %v2297 = vunpack.c.l.b16 %v2165
      %v2298 = vunpack.c.h.b16 %v2165
      %v2299 = vunpack.c.l.b16 %v2175
      %v2300 = vunpack.c.h.b16 %v2175
      %v2301 = vunpack.c.l.b16 %v2189
      %v2302 = vunpack.c.h.b16 %v2189
      %v2303 = vunpack.c.l.b16 %v2199
      %v2304 = vunpack.c.h.b16 %v2199
      %v2305 = vunpack.c.l.b16 %v2213
      %v2306 = vunpack.c.h.b16 %v2213
      %v2307 = vunpack.c.l.b16 %v2223
      %v2308 = vunpack.c.h.b16 %v2223
      %v2309 = vunpack.c.l.b16 %v2237
      %v2310 = vunpack.c.h.b16 %v2237
      %v2311 = vunpack.c.l.b16 %v2247
      %v2312 = vunpack.c.h.b16 %v2247
      %v2313 = vpack.c.b16 %v2283, %v2281
      %v2314 = vpack.c.b16 %v2284, %v2282
      %v2315 = vpack.c.b16 %v2287, %v2285
      %v2316 = vpack.c.b16 %v2288, %v2286
      %v2317 = vpack.c.b16 %v2291, %v2289
      %v2318 = vpack.c.b16 %v2292, %v2290
      %v2319 = vpack.c.b16 %v2295, %v2293
      %v2320 = vpack.c.b16 %v2296, %v2294
      %v2321 = vpack.c.b16 %v2299, %v2297
      %v2322 = vpack.c.b16 %v2300, %v2298
      %v2323 = vpack.c.b16 %v2303, %v2301
      %v2324 = vpack.c.b16 %v2304, %v2302
      %v2325 = vpack.c.b16 %v2307, %v2305
      %v2326 = vpack.c.b16 %v2308, %v2306
      %v2327 = vpack.c.b16 %v2311, %v2309
      %v2328 = vpack.c.b16 %v2312, %v2310
      %v2377 = vunpack.c.l.b16 %v2249
      %v2378 = vunpack.c.h.b16 %v2249
      %v2379 = vunpack.c.l.b16 %v2250
      %v2380 = vunpack.c.h.b16 %v2250
      %v2381 = vunpack.c.l.b16 %v2251
      %v2382 = vunpack.c.h.b16 %v2251
      %v2383 = vunpack.c.l.b16 %v2252
      %v2384 = vunpack.c.h.b16 %v2252
      %v2385 = vunpack.c.l.b16 %v2253
      %v2386 = vunpack.c.h.b16 %v2253
      %v2387 = vunpack.c.l.b16 %v2254
      %v2388 = vunpack.c.h.b16 %v2254
      %v2389 = vunpack.c.l.b16 %v2255
      %v2390 = vunpack.c.h.b16 %v2255
      %v2391 = vunpack.c.l.b16 %v2256
      %v2392 = vunpack.c.h.b16 %v2256
      %v2393 = vunpack.c.l.b16 %v2257
      %v2394 = vunpack.c.h.b16 %v2257
      %v2395 = vunpack.c.l.b16 %v2258
      %v2396 = vunpack.c.h.b16 %v2258
      %v2397 = vunpack.c.l.b16 %v2259
      %v2398 = vunpack.c.h.b16 %v2259
      %v2399 = vunpack.c.l.b16 %v2260
      %v2400 = vunpack.c.h.b16 %v2260
      %v2401 = vunpack.c.l.b16 %v2261
      %v2402 = vunpack.c.h.b16 %v2261
      %v2403 = vunpack.c.l.b16 %v2262
      %v2404 = vunpack.c.h.b16 %v2262
      %v2405 = vunpack.c.l.b16 %v2263
      %v2406 = vunpack.c.h.b16 %v2263
      %v2407 = vunpack.c.l.b16 %v2264
      %v2408 = vunpack.c.h.b16 %v2264
      %v2409 = vunpack.c.l.b16 %v2265
      %v2410 = vunpack.c.h.b16 %v2265
      %v2411 = vunpack.c.l.b16 %v2266
      %v2412 = vunpack.c.h.b16 %v2266
      %v2413 = vunpack.c.l.b16 %v2267
      %v2414 = vunpack.c.h.b16 %v2267
      %v2415 = vunpack.c.l.b16 %v2268
      %v2416 = vunpack.c.h.b16 %v2268
      %v2417 = vunpack.c.l.b16 %v2269
      %v2418 = vunpack.c.h.b16 %v2269
      %v2419 = vunpack.c.l.b16 %v2270
      %v2420 = vunpack.c.h.b16 %v2270
      %v2421 = vunpack.c.l.b16 %v2271
      %v2422 = vunpack.c.h.b16 %v2271
      %v2423 = vunpack.c.l.b16 %v2272
      %v2424 = vunpack.c.h.b16 %v2272
      %v2425 = vunpack.c.l.b16 %v2273
      %v2426 = vunpack.c.h.b16 %v2273
      %v2427 = vunpack.c.l.b16 %v2274
      %v2428 = vunpack.c.h.b16 %v2274
      %v2429 = vunpack.c.l.b16 %v2275
      %v2430 = vunpack.c.h.b16 %v2275
      %v2431 = vunpack.c.l.b16 %v2276
      %v2432 = vunpack.c.h.b16 %v2276
      %v2433 = vunpack.c.l.b16 %v2277
      %v2434 = vunpack.c.h.b16 %v2277
      %v2435 = vunpack.c.l.b16 %v2278
      %v2436 = vunpack.c.h.b16 %v2278
      %v2437 = vunpack.c.l.b16 %v2279
      %v2438 = vunpack.c.h.b16 %v2279
      %v2439 = vunpack.c.l.b16 %v2280
      %v2440 = vunpack.c.h.b16 %v2280
      %v2441 = vpack.c.b16 %v2379, %v2377
      %v2442 = vpack.c.b16 %v2380, %v2378
      %v2443 = vpack.c.b16 %v2383, %v2381
      %v2444 = vpack.c.b16 %v2384, %v2382
      %v2445 = vpack.c.b16 %v2387, %v2385
      %v2446 = vpack.c.b16 %v2388, %v2386
      %v2447 = vpack.c.b16 %v2391, %v2389
      %v2448 = vpack.c.b16 %v2392, %v2390
      %v2449 = vpack.c.b16 %v2395, %v2393
      %v2450 = vpack.c.b16 %v2396, %v2394
      %v2451 = vpack.c.b16 %v2399, %v2397
      %v2452 = vpack.c.b16 %v2400, %v2398
      %v2453 = vpack.c.b16 %v2403, %v2401
      %v2454 = vpack.c.b16 %v2404, %v2402
      %v2455 = vpack.c.b16 %v2407, %v2405
      %v2456 = vpack.c.b16 %v2408, %v2406
      %v2457 = vpack.c.b16 %v2411, %v2409
      %v2458 = vpack.c.b16 %v2412, %v2410
      %v2459 = vpack.c.b16 %v2415, %v2413
      %v2460 = vpack.c.b16 %v2416, %v2414
      %v2461 = vpack.c.b16 %v2419, %v2417
      %v2462 = vpack.c.b16 %v2420, %v2418
      %v2463 = vpack.c.b16 %v2423, %v2421
      %v2464 = vpack.c.b16 %v2424, %v2422
      %v2465 = vpack.c.b16 %v2427, %v2425
      %v2466 = vpack.c.b16 %v2428, %v2426
      %v2467 = vpack.c.b16 %v2431, %v2429
      %v2468 = vpack.c.b16 %v2432, %v2430
      %v2469 = vpack.c.b16 %v2435, %v2433
      %v2470 = vpack.c.b16 %v2436, %v2434
      %v2471 = vpack.c.b16 %v2439, %v2437
      %v2472 = vpack.c.b16 %v2440, %v2438
      %2505 = vmatprep.subr.bf16.mxu0 %v2442
      %2506 = vmatpush1.bf16.msra.mxu0 %v2441
      %2507 = vmatprep.subr.bf16.mxu0 %v2444
      %2508 = vmatpush1.bf16.msra.mxu0 %v2443
      %2509 = vmatprep.subr.bf16.mxu0 %v2446
      %2510 = vmatpush1.bf16.msra.mxu0 %v2445
      %2511 = vmatprep.subr.bf16.mxu0 %v2448
      %2512 = vmatpush1.bf16.msra.mxu0 %v2447
      %2513 = vmatprep.subr.bf16.mxu0 %v2450
      %2514 = vmatpush1.bf16.msra.mxu0 %v2449
      %2515 = vmatprep.subr.bf16.mxu0 %v2452
      %2516 = vmatpush1.bf16.msra.mxu0 %v2451
      %2517 = vmatprep.subr.bf16.mxu0 %v2454
      %2518 = vmatpush1.bf16.msra.mxu0 %v2453
      %2519 = vmatprep.subr.bf16.mxu0 %v2456
      %2520 = vmatpush1.bf16.msra.mxu0 %v2455
      %2521 = vmatprep.subr.bf16.mxu0 %v2458
      %2522 = vmatpush1.bf16.msra.mxu0 %v2457
      %2523 = vmatprep.subr.bf16.mxu0 %v2460
      %2524 = vmatpush1.bf16.msra.mxu0 %v2459
      %2525 = vmatprep.subr.bf16.mxu0 %v2462
      %2526 = vmatpush1.bf16.msra.mxu0 %v2461
      %2527 = vmatprep.subr.bf16.mxu0 %v2464
      %2528 = vmatpush1.bf16.msra.mxu0 %v2463
      %2529 = vmatprep.subr.bf16.mxu0 %v2466
      %2530 = vmatpush1.bf16.msra.mxu0 %v2465
      %2531 = vmatprep.subr.bf16.mxu0 %v2468
      %2532 = vmatpush1.bf16.msra.mxu0 %v2467
      %2533 = vmatprep.subr.bf16.mxu0 %v2470
      %2534 = vmatpush1.bf16.msra.mxu0 %v2469
      %2535 = vmatprep.subr.bf16.mxu0 %v2472
      %2536 = vmatpush1.bf16.msra.mxu0 %v2471
      %2537 = vmatprep.mubr.bf16.mxu0 %v2314
      %2538 = vmatmul.mubr.bf16.gmra.mrb[0].mxu0 %v2313
      %v2539 = vpop.f32.mrb[0].mxu0
      %v2540 = vadd.f32 0.0, %v2539
      %v2541 = vpop.f32.mrb[0].mxu0
      %v2542 = vadd.f32 0.0, %v2541
      %v2543 = vpop.f32.mrb[0].mxu0
      %v2544 = vadd.f32 0.0, %v2543
      %v2545 = vpop.f32.mrb[0].mxu0
      %v2546 = vadd.f32 0.0, %v2545
      %2547 = vmatprep.mubr.bf16.mxu0 %v2316
      %2548 = vmatmul.mubr.bf16.gmra.mrb[0].mxu0 %v2315
      %v2549 = vpop.f32.mrb[0].mxu0
      %v2550 = vadd.f32 0.0, %v2549
      %v2551 = vpop.f32.mrb[0].mxu0
      %v2552 = vadd.f32 0.0, %v2551
      %v2553 = vpop.f32.mrb[0].mxu0
      %v2554 = vadd.f32 0.0, %v2553
      %v2555 = vpop.f32.mrb[0].mxu0
      %v2556 = vadd.f32 0.0, %v2555
      %2557 = vmatprep.mubr.bf16.mxu0 %v2318
      %2558 = vmatmul.mubr.bf16.gmra.mrb[0].mxu0 %v2317
      %v2559 = vpop.f32.mrb[0].mxu0
      %v2560 = vadd.f32 0.0, %v2559
      %v2561 = vpop.f32.mrb[0].mxu0
      %v2562 = vadd.f32 0.0, %v2561
      %v2563 = vpop.f32.mrb[0].mxu0
      %v2564 = vadd.f32 0.0, %v2563
      %v2565 = vpop.f32.mrb[0].mxu0
      %v2566 = vadd.f32 0.0, %v2565
      %2567 = vmatprep.mubr.bf16.mxu0 %v2320
      %2568 = vmatmul.mubr.bf16.gmra.mrb[0].mxu0 %v2319
      %v2569 = vpop.f32.mrb[0].mxu0
      %v2570 = vadd.f32 0.0, %v2569
      %v2571 = vpop.f32.mrb[0].mxu0
      %v2572 = vadd.f32 0.0, %v2571
      %v2573 = vpop.f32.mrb[0].mxu0
      %v2574 = vadd.f32 0.0, %v2573
      %v2575 = vpop.f32.mrb[0].mxu0
      %v2576 = vadd.f32 0.0, %v2575
      %2577 = vmatprep.mubr.bf16.mxu0 %v2322
      %2578 = vmatmul.mubr.bf16.gmra.mrb[0].mxu0 %v2321
      %v2579 = vpop.f32.mrb[0].mxu0
      %v2580 = vadd.f32 0.0, %v2579
      %v2581 = vpop.f32.mrb[0].mxu0
      %v2582 = vadd.f32 0.0, %v2581
      %v2583 = vpop.f32.mrb[0].mxu0
      %v2584 = vadd.f32 0.0, %v2583
      %v2585 = vpop.f32.mrb[0].mxu0
      %v2586 = vadd.f32 0.0, %v2585
      %2587 = vmatprep.mubr.bf16.mxu0 %v2324
      %2588 = vmatmul.mubr.bf16.gmra.mrb[0].mxu0 %v2323
      %v2589 = vpop.f32.mrb[0].mxu0
      %v2590 = vadd.f32 0.0, %v2589
      %v2591 = vpop.f32.mrb[0].mxu0
      %v2592 = vadd.f32 0.0, %v2591
      %v2593 = vpop.f32.mrb[0].mxu0
      %v2594 = vadd.f32 0.0, %v2593
      %v2595 = vpop.f32.mrb[0].mxu0
      %v2596 = vadd.f32 0.0, %v2595
      %2597 = vmatprep.mubr.bf16.mxu0 %v2326
      %2598 = vmatmul.mubr.bf16.gmra.mrb[0].mxu0 %v2325
      %v2599 = vpop.f32.mrb[0].mxu0
      %v2600 = vadd.f32 0.0, %v2599
      %v2601 = vpop.f32.mrb[0].mxu0
      %v2602 = vadd.f32 0.0, %v2601
      %v2603 = vpop.f32.mrb[0].mxu0
      %v2604 = vadd.f32 0.0, %v2603
      %v2605 = vpop.f32.mrb[0].mxu0
      %v2606 = vadd.f32 0.0, %v2605
      %2607 = vmatprep.mubr.bf16.mxu0 %v2328
      %2608 = vmatmul.mubr.bf16.gmra.mrb[0].mxu0 %v2327
      %v2609 = vpop.f32.mrb[0].mxu0
      %v2610 = vadd.f32 0.0, %v2609
      %v2611 = vpop.f32.mrb[0].mxu0
      %v2612 = vadd.f32 0.0, %v2611
      %v2613 = vpop.f32.mrb[0].mxu0
      %v2614 = vadd.f32 0.0, %v2613
      %v2615 = vpop.f32.mrb[0].mxu0
      %v2616 = vadd.f32 0.0, %v2615
      %2617 = vdwg.mxu0
      %v2618 = vadd.f32 %v1961, %v2540
      %v2619 = vadd.f32 %v1962, %v2542
      %v2620 = vadd.f32 %v1963, %v2544
      %v2621 = vadd.f32 %v1964, %v2546
      %v2622 = vadd.f32 %v1965, %v2550
      %v2623 = vadd.f32 %v1966, %v2552
      %v2624 = vadd.f32 %v1967, %v2554
      %v2625 = vadd.f32 %v1968, %v2556
      %v2626 = vadd.f32 %v1969, %v2560
      %v2627 = vadd.f32 %v1970, %v2562
      %v2628 = vadd.f32 %v1971, %v2564
      %v2629 = vadd.f32 %v1972, %v2566
      %v2630 = vadd.f32 %v1973, %v2570
      %v2631 = vadd.f32 %v1974, %v2572
      %v2632 = vadd.f32 %v1975, %v2574
      %v2633 = vadd.f32 %v1976, %v2576
      %v2634 = vadd.f32 %v1977, %v2580
      %v2635 = vadd.f32 %v1978, %v2582
      %v2636 = vadd.f32 %v1979, %v2584
      %v2637 = vadd.f32 %v1980, %v2586
      %v2638 = vadd.f32 %v1981, %v2590
      %v2639 = vadd.f32 %v1982, %v2592
      %v2640 = vadd.f32 %v1983, %v2594
      %v2641 = vadd.f32 %v1984, %v2596
      %v2642 = vadd.f32 %v1985, %v2600
      %v2643 = vadd.f32 %v1986, %v2602
      %v2644 = vadd.f32 %v1987, %v2604
      %v2645 = vadd.f32 %v1988, %v2606
      %v2646 = vadd.f32 %v1989, %v2610
      %v2647 = vadd.f32 %v1990, %v2612
      %v2648 = vadd.f32 %v1991, %v2614
      %v2649 = vadd.f32 %v1992, %v2616
      %v2651 = vshrl.u32 %v2023, 16
      %v2653 = vrot.slane %v2651, 4
      %v2654 = vshll.u32 %v2023, 16
      %v2656 = vrot.slane %v2654, 5
      %v2657 = vor.u32 %v2653, %v2656
      %v2658 = vrot.slane %v2657, 4
      %v2660 = vshll.u32 %v2024, 16
      %v2662 = vrot.slane %v2660, 5
      %v2663 = vsel %vm2055, %v2658, %v2662
      %v2664 = vshrl.u32 %v2024, 16
      %v2666 = vrot.slane %v2664, 4
      %v2667 = vor.u32 %v2666, %v2662
      %v2668 = vrot.slane %v2667, 4
      %v2670 = vshll.u32 %v2025, 16
      %v2672 = vrot.slane %v2670, 5
      %v2673 = vsel %vm2055, %v2668, %v2672
      %v2675 = vshrl.u32 %v2026, 16
      %v2677 = vrot.slane %v2675, 4
      %v2678 = vshll.u32 %v2026, 16
      %v2680 = vrot.slane %v2678, 5
      %v2681 = vor.u32 %v2677, %v2680
      %v2682 = vrot.slane %v2681, 4
      %v2684 = vshll.u32 %v2027, 16
      %v2686 = vrot.slane %v2684, 5
      %v2687 = vsel %vm2055, %v2682, %v2686
      %v2688 = vshrl.u32 %v2027, 16
      %v2690 = vrot.slane %v2688, 4
      %v2691 = vor.u32 %v2690, %v2686
      %v2692 = vrot.slane %v2691, 4
      %v2694 = vshll.u32 %v2028, 16
      %v2696 = vrot.slane %v2694, 5
      %v2697 = vsel %vm2055, %v2692, %v2696
      %v2699 = vshrl.u32 %v2029, 16
      %v2701 = vrot.slane %v2699, 4
      %v2702 = vshll.u32 %v2029, 16
      %v2704 = vrot.slane %v2702, 5
      %v2705 = vor.u32 %v2701, %v2704
      %v2706 = vrot.slane %v2705, 4
      %v2708 = vshll.u32 %v2030, 16
      %v2710 = vrot.slane %v2708, 5
      %v2711 = vsel %vm2055, %v2706, %v2710
      %v2712 = vshrl.u32 %v2030, 16
      %v2714 = vrot.slane %v2712, 4
      %v2715 = vor.u32 %v2714, %v2710
      %v2716 = vrot.slane %v2715, 4
      %v2718 = vshll.u32 %v2031, 16
      %v2720 = vrot.slane %v2718, 5
      %v2721 = vsel %vm2055, %v2716, %v2720
      %v2723 = vshrl.u32 %v2032, 16
      %v2725 = vrot.slane %v2723, 4
      %v2726 = vshll.u32 %v2032, 16
      %v2728 = vrot.slane %v2726, 5
      %v2729 = vor.u32 %v2725, %v2728
      %v2730 = vrot.slane %v2729, 4
      %v2732 = vshll.u32 %v2033, 16
      %v2734 = vrot.slane %v2732, 5
      %v2735 = vsel %vm2055, %v2730, %v2734
      %v2736 = vshrl.u32 %v2033, 16
      %v2738 = vrot.slane %v2736, 4
      %v2739 = vor.u32 %v2738, %v2734
      %v2740 = vrot.slane %v2739, 4
      %v2742 = vshll.u32 %v2034, 16
      %v2744 = vrot.slane %v2742, 5
      %v2745 = vsel %vm2055, %v2740, %v2744
      %v2747 = vshrl.u32 %v2035, 16
      %v2749 = vrot.slane %v2747, 4
      %v2750 = vshll.u32 %v2035, 16
      %v2752 = vrot.slane %v2750, 5
      %v2753 = vor.u32 %v2749, %v2752
      %v2754 = vrot.slane %v2753, 4
      %v2756 = vshll.u32 %v2036, 16
      %v2758 = vrot.slane %v2756, 5
      %v2759 = vsel %vm2055, %v2754, %v2758
      %v2760 = vshrl.u32 %v2036, 16
      %v2762 = vrot.slane %v2760, 4
      %v2763 = vor.u32 %v2762, %v2758
      %v2764 = vrot.slane %v2763, 4
      %v2766 = vshll.u32 %v2037, 16
      %v2768 = vrot.slane %v2766, 5
      %v2769 = vsel %vm2055, %v2764, %v2768
      %v2771 = vshrl.u32 %v2038, 16
      %v2773 = vrot.slane %v2771, 4
      %v2774 = vshll.u32 %v2038, 16
      %v2776 = vrot.slane %v2774, 5
      %v2777 = vor.u32 %v2773, %v2776
      %v2778 = vrot.slane %v2777, 4
      %v2780 = vshll.u32 %v2039, 16
      %v2782 = vrot.slane %v2780, 5
      %v2783 = vsel %vm2055, %v2778, %v2782
      %v2784 = vshrl.u32 %v2039, 16
      %v2786 = vrot.slane %v2784, 4
      %v2787 = vor.u32 %v2786, %v2782
      %v2788 = vrot.slane %v2787, 4
      %v2790 = vshll.u32 %v2040, 16
      %v2792 = vrot.slane %v2790, 5
      %v2793 = vsel %vm2055, %v2788, %v2792
      %v2795 = vshrl.u32 %v2041, 16
      %v2797 = vrot.slane %v2795, 4
      %v2798 = vshll.u32 %v2041, 16
      %v2800 = vrot.slane %v2798, 5
      %v2801 = vor.u32 %v2797, %v2800
      %v2802 = vrot.slane %v2801, 4
      %v2804 = vshll.u32 %v2042, 16
      %v2806 = vrot.slane %v2804, 5
      %v2807 = vsel %vm2055, %v2802, %v2806
      %v2808 = vshrl.u32 %v2042, 16
      %v2810 = vrot.slane %v2808, 4
      %v2811 = vor.u32 %v2810, %v2806
      %v2812 = vrot.slane %v2811, 4
      %v2814 = vshll.u32 %v2043, 16
      %v2816 = vrot.slane %v2814, 5
      %v2817 = vsel %vm2055, %v2812, %v2816
      %v2819 = vshrl.u32 %v2044, 16
      %v2821 = vrot.slane %v2819, 4
      %v2822 = vshll.u32 %v2044, 16
      %v2824 = vrot.slane %v2822, 5
      %v2825 = vor.u32 %v2821, %v2824
      %v2826 = vrot.slane %v2825, 4
      %v2828 = vshll.u32 %v2045, 16
      %v2830 = vrot.slane %v2828, 5
      %v2831 = vsel %vm2055, %v2826, %v2830
      %v2832 = vshrl.u32 %v2045, 16
      %v2834 = vrot.slane %v2832, 4
      %v2835 = vor.u32 %v2834, %v2830
      %v2836 = vrot.slane %v2835, 4
      %v2838 = vshll.u32 %v2046, 16
      %v2840 = vrot.slane %v2838, 5
      %v2841 = vsel %vm2055, %v2836, %v2840
      %s2842 = scalar_lea.vmem %s3, 48
      %v2843 = vld [vmem:[%s2842] sm:$0xff]
      %v2844 = vld [vmem:[%s2842 + $0x8] sm:$0xff]
      %v2845 = vld [vmem:[%s2842 + $0x10] sm:$0xff]
      %v2846 = vld [vmem:[%s2842 + $0x18] sm:$0xff]
      %v2847 = vld [vmem:[%s2842 + $0x20] sm:$0xff]
      %v2848 = vld [vmem:[%s2842 + $0x28] sm:$0xff]
      %v2849 = vunpack.c.l.b16 %v2663
      %v2850 = vunpack.c.l.b16 %v2673
      %v2851 = vunpack.c.l.b16 %v2687
      %v2852 = vunpack.c.l.b16 %v2697
      %v2853 = vunpack.c.l.b16 %v2711
      %v2854 = vunpack.c.l.b16 %v2721
      %v2855 = vunpack.c.l.b16 %v2735
      %v2856 = vunpack.c.l.b16 %v2745
      %v2857 = vunpack.c.l.b16 %v2759
      %v2858 = vunpack.c.l.b16 %v2769
      %v2859 = vunpack.c.l.b16 %v2783
      %v2860 = vunpack.c.l.b16 %v2793
      %v2861 = vunpack.c.l.b16 %v2807
      %v2862 = vunpack.c.l.b16 %v2817
      %v2863 = vunpack.c.l.b16 %v2831
      %v2864 = vunpack.c.l.b16 %v2841
      %v2865 = vpack.c.b16 %v2850, %v2849
      %v2866 = vpack.c.b16 %v2852, %v2851
      %v2867 = vpack.c.b16 %v2854, %v2853
      %v2868 = vpack.c.b16 %v2856, %v2855
      %v2869 = vpack.c.b16 %v2858, %v2857
      %v2870 = vpack.c.b16 %v2860, %v2859
      %v2871 = vpack.c.b16 %v2862, %v2861
      %v2872 = vpack.c.b16 %v2864, %v2863
      %v2879 = vunpack.c.l.b16 %v2843
      %v2880 = vunpack.c.h.b16 %v2843
      %v2881 = vunpack.c.l.b16 %v2844
      %v2882 = vunpack.c.h.b16 %v2844
      %v2883 = vunpack.c.l.b16 %v2845
      %v2884 = vunpack.c.h.b16 %v2845
      %v2885 = vunpack.c.l.b16 %v2846
      %v2886 = vunpack.c.h.b16 %v2846
      %v2887 = vunpack.c.l.b16 %v2847
      %v2888 = vunpack.c.h.b16 %v2847
      %v2889 = vunpack.c.l.b16 %v2848
      %v2890 = vunpack.c.h.b16 %v2848
      %v2891 = vpack.c.b16 %v2881, %v2879
      %v2892 = vpack.c.b16 %v2882, %v2880
      %v2893 = vpack.c.b16 %v2885, %v2883
      %v2894 = vpack.c.b16 %v2886, %v2884
      %v2895 = vpack.c.b16 %v2889, %v2887
      %v2896 = vpack.c.b16 %v2890, %v2888
      %v2904 = vsel %vm426, %v2865, 0
      %v2907 = vsel %vm426, %v2866, 0
      %v2910 = vsel %vm426, %v2867, 0
      %v2913 = vsel %vm426, %v2868, 0
      %v2916 = vsel %vm426, %v2869, 0
      %v2919 = vsel %vm426, %v2870, 0
      %v2922 = vsel %vm426, %v2871, 0
      %v2925 = vsel %vm426, %v2872, 0
      %2927 = vmatprep.subr.bf16.mxu0 %v2892
      %2928 = vmatpush1.bf16.msra.mxu0 %v2891
      %2929 = vmatprep.subr.bf16.mxu0 %v2894
      %2930 = vmatpush1.bf16.msra.mxu0 %v2893
      %2931 = vmatprep.subr.bf16.mxu0 %v2896
      %2932 = vmatpush1.bf16.msra.mxu0 %v2895
      %2933 = vmatprep.subr.bf16.mxu0 0
      %2934 = vmatpush1.bf16.msra.mxu0 0
      %2935 = vmatprep.subr.bf16.mxu0 0
      %2936 = vmatpush1.bf16.msra.mxu0 0
      %2937 = vmatprep.subr.bf16.mxu0 0
      %2938 = vmatpush1.bf16.msra.mxu0 0
      %2939 = vmatprep.subr.bf16.mxu0 0
      %2940 = vmatpush1.bf16.msra.mxu0 0
      %2941 = vmatprep.subr.bf16.mxu0 0
      %2942 = vmatpush1.bf16.msra.mxu0 0
      %2943 = vmatprep.subr.bf16.mxu0 0
      %2944 = vmatpush1.bf16.msra.mxu0 0
      %2945 = vmatprep.subr.bf16.mxu0 0
      %2946 = vmatpush1.bf16.msra.mxu0 0
      %2947 = vmatprep.subr.bf16.mxu0 0
      %2948 = vmatpush1.bf16.msra.mxu0 0
      %2949 = vmatprep.subr.bf16.mxu0 0
      %2950 = vmatpush1.bf16.msra.mxu0 0
      %2951 = vmatprep.subr.bf16.mxu0 0
      %2952 = vmatpush1.bf16.msra.mxu0 0
      %2953 = vmatprep.subr.bf16.mxu0 0
      %2954 = vmatpush1.bf16.msra.mxu0 0
      %2955 = vmatprep.subr.bf16.mxu0 0
      %2956 = vmatpush1.bf16.msra.mxu0 0
      %2957 = vmatprep.subr.bf16.mxu0 0
      %2958 = vmatpush1.bf16.msra.mxu0 0
      %2959 = vmatprep.mubr.bf16.mxu0 0
      %2960 = vmatmul.mubr.bf16.gmra.mrb[0].mxu0 %v2904
      %v2961 = vpop.f32.mrb[0].mxu0
      %v2962 = vadd.f32 0.0, %v2961
      %v2963 = vpop.f32.mrb[0].mxu0
      %v2964 = vadd.f32 0.0, %v2963
      %v2965 = vpop.f32.mrb[0].mxu0
      %v2966 = vadd.f32 0.0, %v2965
      %v2967 = vpop.f32.mrb[0].mxu0
      %v2968 = vadd.f32 0.0, %v2967
      %2969 = vmatprep.mubr.bf16.mxu0 0
      %2970 = vmatmul.mubr.bf16.gmra.mrb[0].mxu0 %v2907
      %v2971 = vpop.f32.mrb[0].mxu0
      %v2972 = vadd.f32 0.0, %v2971
      %v2973 = vpop.f32.mrb[0].mxu0
      %v2974 = vadd.f32 0.0, %v2973
      %v2975 = vpop.f32.mrb[0].mxu0
      %v2976 = vadd.f32 0.0, %v2975
      %v2977 = vpop.f32.mrb[0].mxu0
      %v2978 = vadd.f32 0.0, %v2977
      %2979 = vmatprep.mubr.bf16.mxu0 0
      %2980 = vmatmul.mubr.bf16.gmra.mrb[0].mxu0 %v2910
      %v2981 = vpop.f32.mrb[0].mxu0
      %v2982 = vadd.f32 0.0, %v2981
      %v2983 = vpop.f32.mrb[0].mxu0
      %v2984 = vadd.f32 0.0, %v2983
      %v2985 = vpop.f32.mrb[0].mxu0
      %v2986 = vadd.f32 0.0, %v2985
      %v2987 = vpop.f32.mrb[0].mxu0
      %v2988 = vadd.f32 0.0, %v2987
      %2989 = vmatprep.mubr.bf16.mxu0 0
      %2990 = vmatmul.mubr.bf16.gmra.mrb[0].mxu0 %v2913
      %v2991 = vpop.f32.mrb[0].mxu0
      %v2992 = vadd.f32 0.0, %v2991
      %v2993 = vpop.f32.mrb[0].mxu0
      %v2994 = vadd.f32 0.0, %v2993
      %v2995 = vpop.f32.mrb[0].mxu0
      %v2996 = vadd.f32 0.0, %v2995
      %v2997 = vpop.f32.mrb[0].mxu0
      %v2998 = vadd.f32 0.0, %v2997
      %2999 = vmatprep.mubr.bf16.mxu0 0
      %3000 = vmatmul.mubr.bf16.gmra.mrb[0].mxu0 %v2916
      %v3001 = vpop.f32.mrb[0].mxu0
      %v3002 = vadd.f32 0.0, %v3001
      %v3003 = vpop.f32.mrb[0].mxu0
      %v3004 = vadd.f32 0.0, %v3003
      %v3005 = vpop.f32.mrb[0].mxu0
      %v3006 = vadd.f32 0.0, %v3005
      %v3007 = vpop.f32.mrb[0].mxu0
      %v3008 = vadd.f32 0.0, %v3007
      %3009 = vmatprep.mubr.bf16.mxu0 0
      %3010 = vmatmul.mubr.bf16.gmra.mrb[0].mxu0 %v2919
      %v3011 = vpop.f32.mrb[0].mxu0
      %v3012 = vadd.f32 0.0, %v3011
      %v3013 = vpop.f32.mrb[0].mxu0
      %v3014 = vadd.f32 0.0, %v3013
      %v3015 = vpop.f32.mrb[0].mxu0
      %v3016 = vadd.f32 0.0, %v3015
      %v3017 = vpop.f32.mrb[0].mxu0
      %v3018 = vadd.f32 0.0, %v3017
      %3019 = vmatprep.mubr.bf16.mxu0 0
      %3020 = vmatmul.mubr.bf16.gmra.mrb[0].mxu0 %v2922
      %v3021 = vpop.f32.mrb[0].mxu0
      %v3022 = vadd.f32 0.0, %v3021
      %v3023 = vpop.f32.mrb[0].mxu0
      %v3024 = vadd.f32 0.0, %v3023
      %v3025 = vpop.f32.mrb[0].mxu0
      %v3026 = vadd.f32 0.0, %v3025
      %v3027 = vpop.f32.mrb[0].mxu0
      %v3028 = vadd.f32 0.0, %v3027
      %3029 = vmatprep.mubr.bf16.mxu0 0
      %3030 = vmatmul.mubr.bf16.gmra.mrb[0].mxu0 %v2925
      %v3031 = vpop.f32.mrb[0].mxu0
      %v3032 = vadd.f32 0.0, %v3031
      %v3033 = vpop.f32.mrb[0].mxu0
      %v3034 = vadd.f32 0.0, %v3033
      %v3035 = vpop.f32.mrb[0].mxu0
      %v3036 = vadd.f32 0.0, %v3035
      %v3037 = vpop.f32.mrb[0].mxu0
      %v3038 = vadd.f32 0.0, %v3037
      %3039 = vdwg.mxu0
      %v3040 = vadd.f32 %v2618, %v2962
      %v3041 = vadd.f32 %v2619, %v2964
      %v3042 = vadd.f32 %v2620, %v2966
      %v3043 = vadd.f32 %v2621, %v2968
      %v3044 = vadd.f32 %v2622, %v2972
      %v3045 = vadd.f32 %v2623, %v2974
      %v3046 = vadd.f32 %v2624, %v2976
      %v3047 = vadd.f32 %v2625, %v2978
      %v3048 = vadd.f32 %v2626, %v2982
      %v3049 = vadd.f32 %v2627, %v2984
      %v3050 = vadd.f32 %v2628, %v2986
      %v3051 = vadd.f32 %v2629, %v2988
      %v3052 = vadd.f32 %v2630, %v2992
      %v3053 = vadd.f32 %v2631, %v2994
      %v3054 = vadd.f32 %v2632, %v2996
      %v3055 = vadd.f32 %v2633, %v2998
      %v3056 = vadd.f32 %v2634, %v3002
      %v3057 = vadd.f32 %v2635, %v3004
      %v3058 = vadd.f32 %v2636, %v3006
      %v3059 = vadd.f32 %v2637, %v3008
      %v3060 = vadd.f32 %v2638, %v3012
      %v3061 = vadd.f32 %v2639, %v3014
      %v3062 = vadd.f32 %v2640, %v3016
      %v3063 = vadd.f32 %v2641, %v3018
      %v3064 = vadd.f32 %v2642, %v3022
      %v3065 = vadd.f32 %v2643, %v3024
      %v3066 = vadd.f32 %v2644, %v3026
      %v3067 = vadd.f32 %v2645, %v3028
      %v3068 = vadd.f32 %v2646, %v3032
      %v3069 = vadd.f32 %v2647, %v3034
      %v3070 = vadd.f32 %v2648, %v3036
      %v3071 = vadd.f32 %v2649, %v3038
      %v3073 = vshrl.u32 %v2017, 16
      %v3075 = vrot.slane %v3073, 4
      %v3076 = vshll.u32 %v2017, 16
      %v3078 = vrot.slane %v3076, 5
      %v3079 = vor.u32 %v3075, %v3078
      %v3080 = vrot.slane %v3079, 4
      %v3082 = vshll.u32 %v2018, 16
      %v3084 = vrot.slane %v3082, 5
      %v3085 = vsel %vm2055, %v3080, %v3084
      %v3086 = vshrl.u32 %v2018, 16
      %v3088 = vrot.slane %v3086, 4
      %v3089 = vor.u32 %v3088, %v3084
      %v3090 = vrot.slane %v3089, 4
      %v3092 = vshll.u32 %v2019, 16
      %v3094 = vrot.slane %v3092, 5
      %v3095 = vsel %vm2055, %v3090, %v3094
      %s3096 = scalar_lea.vmem %s2, 1024
      %v3097 = vld [vmem:[%s3096] sm:$0xff]
      %v3098 = vld [vmem:[%s3096 + $0x8] sm:$0xff]
      %v3099 = vld [vmem:[%s3096 + $0x10] sm:$0xff]
      %v3100 = vld [vmem:[%s3096 + $0x18] sm:$0xff]
      %v3101 = vld [vmem:[%s3096 + $0x20] sm:$0xff]
      %v3102 = vld [vmem:[%s3096 + $0x28] sm:$0xff]
      %v3103 = vld [vmem:[%s3096 + $0x30] sm:$0xff]
      %v3104 = vld [vmem:[%s3096 + $0x38] sm:$0xff]
      %v3105 = vld [vmem:[%s3096 + $0x40] sm:$0xff]
      %v3106 = vld [vmem:[%s3096 + $0x48] sm:$0xff]
      %v3107 = vld [vmem:[%s3096 + $0x50] sm:$0xff]
      %v3108 = vld [vmem:[%s3096 + $0x58] sm:$0xff]
      %v3109 = vld [vmem:[%s3096 + $0x60] sm:$0xff]
      %v3110 = vld [vmem:[%s3096 + $0x68] sm:$0xff]
      %v3111 = vld [vmem:[%s3096 + $0x70] sm:$0xff]
      %v3112 = vld [vmem:[%s3096 + $0x78] sm:$0xff]
      %v3113 = vld [vmem:[%s3096 + $0x80] sm:$0xff]
      %v3114 = vld [vmem:[%s3096 + $0x88] sm:$0xff]
      %v3115 = vld [vmem:[%s3096 + $0x90] sm:$0xff]
      %v3116 = vld [vmem:[%s3096 + $0x98] sm:$0xff]
      %v3117 = vld [vmem:[%s3096 + $0xa0] sm:$0xff]
      %v3118 = vld [vmem:[%s3096 + $0xa8] sm:$0xff]
      %v3119 = vld [vmem:[%s3096 + $0xb0] sm:$0xff]
      %v3120 = vld [vmem:[%s3096 + $0xb8] sm:$0xff]
      %v3121 = vld [vmem:[%s3096 + $0xc0] sm:$0xff]
      %v3122 = vld [vmem:[%s3096 + $0xc8] sm:$0xff]
      %v3123 = vld [vmem:[%s3096 + $0xd0] sm:$0xff]
      %v3124 = vld [vmem:[%s3096 + $0xd8] sm:$0xff]
      %v3125 = vld [vmem:[%s3096 + $0xe0] sm:$0xff]
      %v3126 = vld [vmem:[%s3096 + $0xe8] sm:$0xff]
      %v3127 = vld [vmem:[%s3096 + $0xf0] sm:$0xff]
      %v3128 = vld [vmem:[%s3096 + $0xf8] sm:$0xff]
      %v3129 = vunpack.c.l.b16 %v3085
      %v3130 = vunpack.c.h.b16 %v3085
      %v3131 = vunpack.c.l.b16 %v3095
      %v3132 = vunpack.c.h.b16 %v3095
      %v3133 = vpack.c.b16 %v3131, %v3129
      %v3134 = vpack.c.b16 %v3132, %v3130
      %v3169 = vunpack.c.l.b16 %v3097
      %v3170 = vunpack.c.h.b16 %v3097
      %v3171 = vunpack.c.l.b16 %v3098
      %v3172 = vunpack.c.h.b16 %v3098
      %v3173 = vunpack.c.l.b16 %v3099
      %v3174 = vunpack.c.h.b16 %v3099
      %v3175 = vunpack.c.l.b16 %v3100
      %v3176 = vunpack.c.h.b16 %v3100
      %v3177 = vunpack.c.l.b16 %v3101
      %v3178 = vunpack.c.h.b16 %v3101
      %v3179 = vunpack.c.l.b16 %v3102
      %v3180 = vunpack.c.h.b16 %v3102
      %v3181 = vunpack.c.l.b16 %v3103
      %v3182 = vunpack.c.h.b16 %v3103
      %v3183 = vunpack.c.l.b16 %v3104
      %v3184 = vunpack.c.h.b16 %v3104
      %v3185 = vunpack.c.l.b16 %v3105
      %v3186 = vunpack.c.h.b16 %v3105
      %v3187 = vunpack.c.l.b16 %v3106
      %v3188 = vunpack.c.h.b16 %v3106
      %v3189 = vunpack.c.l.b16 %v3107
      %v3190 = vunpack.c.h.b16 %v3107
      %v3191 = vunpack.c.l.b16 %v3108
      %v3192 = vunpack.c.h.b16 %v3108
      %v3193 = vunpack.c.l.b16 %v3109
      %v3194 = vunpack.c.h.b16 %v3109
      %v3195 = vunpack.c.l.b16 %v3110
      %v3196 = vunpack.c.h.b16 %v3110
      %v3197 = vunpack.c.l.b16 %v3111
      %v3198 = vunpack.c.h.b16 %v3111
      %v3199 = vunpack.c.l.b16 %v3112
      %v3200 = vunpack.c.h.b16 %v3112
      %v3201 = vunpack.c.l.b16 %v3113
      %v3202 = vunpack.c.h.b16 %v3113
      %v3203 = vunpack.c.l.b16 %v3114
      %v3204 = vunpack.c.h.b16 %v3114
      %v3205 = vunpack.c.l.b16 %v3115
      %v3206 = vunpack.c.h.b16 %v3115
      %v3207 = vunpack.c.l.b16 %v3116
      %v3208 = vunpack.c.h.b16 %v3116
      %v3209 = vunpack.c.l.b16 %v3117
      %v3210 = vunpack.c.h.b16 %v3117
      %v3211 = vunpack.c.l.b16 %v3118
      %v3212 = vunpack.c.h.b16 %v3118
      %v3213 = vunpack.c.l.b16 %v3119
      %v3214 = vunpack.c.h.b16 %v3119
      %v3215 = vunpack.c.l.b16 %v3120
      %v3216 = vunpack.c.h.b16 %v3120
      %v3217 = vunpack.c.l.b16 %v3121
      %v3218 = vunpack.c.h.b16 %v3121
      %v3219 = vunpack.c.l.b16 %v3122
      %v3220 = vunpack.c.h.b16 %v3122
      %v3221 = vunpack.c.l.b16 %v3123
      %v3222 = vunpack.c.h.b16 %v3123
      %v3223 = vunpack.c.l.b16 %v3124
      %v3224 = vunpack.c.h.b16 %v3124
      %v3225 = vunpack.c.l.b16 %v3125
      %v3226 = vunpack.c.h.b16 %v3125
      %v3227 = vunpack.c.l.b16 %v3126
      %v3228 = vunpack.c.h.b16 %v3126
      %v3229 = vunpack.c.l.b16 %v3127
      %v3230 = vunpack.c.h.b16 %v3127
      %v3231 = vunpack.c.l.b16 %v3128
      %v3232 = vunpack.c.h.b16 %v3128
      %v3233 = vpack.c.b16 %v3171, %v3169
      %v3234 = vpack.c.b16 %v3172, %v3170
      %v3235 = vpack.c.b16 %v3175, %v3173
      %v3236 = vpack.c.b16 %v3176, %v3174
      %v3237 = vpack.c.b16 %v3179, %v3177
      %v3238 = vpack.c.b16 %v3180, %v3178
      %v3239 = vpack.c.b16 %v3183, %v3181
      %v3240 = vpack.c.b16 %v3184, %v3182
      %v3241 = vpack.c.b16 %v3187, %v3185
      %v3242 = vpack.c.b16 %v3188, %v3186
      %v3243 = vpack.c.b16 %v3191, %v3189
      %v3244 = vpack.c.b16 %v3192, %v3190
      %v3245 = vpack.c.b16 %v3195, %v3193
      %v3246 = vpack.c.b16 %v3196, %v3194
      %v3247 = vpack.c.b16 %v3199, %v3197
      %v3248 = vpack.c.b16 %v3200, %v3198
      %v3249 = vpack.c.b16 %v3203, %v3201
      %v3250 = vpack.c.b16 %v3204, %v3202
      %v3251 = vpack.c.b16 %v3207, %v3205
      %v3252 = vpack.c.b16 %v3208, %v3206
      %v3253 = vpack.c.b16 %v3211, %v3209
      %v3254 = vpack.c.b16 %v3212, %v3210
      %v3255 = vpack.c.b16 %v3215, %v3213
      %v3256 = vpack.c.b16 %v3216, %v3214
      %v3257 = vpack.c.b16 %v3219, %v3217
      %v3258 = vpack.c.b16 %v3220, %v3218
      %v3259 = vpack.c.b16 %v3223, %v3221
      %v3260 = vpack.c.b16 %v3224, %v3222
      %v3261 = vpack.c.b16 %v3227, %v3225
      %v3262 = vpack.c.b16 %v3228, %v3226
      %v3263 = vpack.c.b16 %v3231, %v3229
      %v3264 = vpack.c.b16 %v3232, %v3230
      %3297 = vmatprep.subr.bf16.mxu0 %v3234
      %3298 = vmatpush1.bf16.msra.mxu0 %v3233
      %3299 = vmatprep.subr.bf16.mxu0 %v3236
      %3300 = vmatpush1.bf16.msra.mxu0 %v3235
      %3301 = vmatprep.subr.bf16.mxu0 %v3238
      %3302 = vmatpush1.bf16.msra.mxu0 %v3237
      %3303 = vmatprep.subr.bf16.mxu0 %v3240
      %3304 = vmatpush1.bf16.msra.mxu0 %v3239
      %3305 = vmatprep.subr.bf16.mxu0 %v3242
      %3306 = vmatpush1.bf16.msra.mxu0 %v3241
      %3307 = vmatprep.subr.bf16.mxu0 %v3244
      %3308 = vmatpush1.bf16.msra.mxu0 %v3243
      %3309 = vmatprep.subr.bf16.mxu0 %v3246
      %3310 = vmatpush1.bf16.msra.mxu0 %v3245
      %3311 = vmatprep.subr.bf16.mxu0 %v3248
      %3312 = vmatpush1.bf16.msra.mxu0 %v3247
      %3313 = vmatprep.subr.bf16.mxu0 %v3250
      %3314 = vmatpush1.bf16.msra.mxu0 %v3249
      %3315 = vmatprep.subr.bf16.mxu0 %v3252
      %3316 = vmatpush1.bf16.msra.mxu0 %v3251
      %3317 = vmatprep.subr.bf16.mxu0 %v3254
      %3318 = vmatpush1.bf16.msra.mxu0 %v3253
      %3319 = vmatprep.subr.bf16.mxu0 %v3256
      %3320 = vmatpush1.bf16.msra.mxu0 %v3255
      %3321 = vmatprep.subr.bf16.mxu0 %v3258
      %3322 = vmatpush1.bf16.msra.mxu0 %v3257
      %3323 = vmatprep.subr.bf16.mxu0 %v3260
      %3324 = vmatpush1.bf16.msra.mxu0 %v3259
      %3325 = vmatprep.subr.bf16.mxu0 %v3262
      %3326 = vmatpush1.bf16.msra.mxu0 %v3261
      %3327 = vmatprep.subr.bf16.mxu0 %v3264
      %3328 = vmatpush1.bf16.msra.mxu0 %v3263
      %3329 = vmatprep.mubr.bf16.mxu0 %v2316
      %3330 = vmatmul.mubr.bf16.gmra.mrb[0].mxu0 %v2315
      %v3331 = vpop.f32.mrb[0].mxu0
      %v3332 = vadd.f32 0.0, %v3331
      %v3333 = vpop.f32.mrb[0].mxu0
      %v3334 = vadd.f32 0.0, %v3333
      %v3335 = vpop.f32.mrb[0].mxu0
      %v3336 = vadd.f32 0.0, %v3335
      %v3337 = vpop.f32.mrb[0].mxu0
      %v3338 = vadd.f32 0.0, %v3337
      %3339 = vmatprep.mubr.bf16.mxu0 %v2318
      %3340 = vmatmul.mubr.bf16.gmra.mrb[0].mxu0 %v2317
      %v3341 = vpop.f32.mrb[0].mxu0
      %v3342 = vadd.f32 0.0, %v3341
      %v3343 = vpop.f32.mrb[0].mxu0
      %v3344 = vadd.f32 0.0, %v3343
      %v3345 = vpop.f32.mrb[0].mxu0
      %v3346 = vadd.f32 0.0, %v3345
      %v3347 = vpop.f32.mrb[0].mxu0
      %v3348 = vadd.f32 0.0, %v3347
      %3349 = vmatprep.mubr.bf16.mxu0 %v2320
      %3350 = vmatmul.mubr.bf16.gmra.mrb[0].mxu0 %v2319
      %v3351 = vpop.f32.mrb[0].mxu0
      %v3352 = vadd.f32 0.0, %v3351
      %v3353 = vpop.f32.mrb[0].mxu0
      %v3354 = vadd.f32 0.0, %v3353
      %v3355 = vpop.f32.mrb[0].mxu0
      %v3356 = vadd.f32 0.0, %v3355
      %v3357 = vpop.f32.mrb[0].mxu0
      %v3358 = vadd.f32 0.0, %v3357
      %3359 = vmatprep.mubr.bf16.mxu0 %v2322
      %3360 = vmatmul.mubr.bf16.gmra.mrb[0].mxu0 %v2321
      %v3361 = vpop.f32.mrb[0].mxu0
      %v3362 = vadd.f32 0.0, %v3361
      %v3363 = vpop.f32.mrb[0].mxu0
      %v3364 = vadd.f32 0.0, %v3363
      %v3365 = vpop.f32.mrb[0].mxu0
      %v3366 = vadd.f32 0.0, %v3365
      %v3367 = vpop.f32.mrb[0].mxu0
      %v3368 = vadd.f32 0.0, %v3367
      %3369 = vmatprep.mubr.bf16.mxu0 %v2324
      %3370 = vmatmul.mubr.bf16.gmra.mrb[0].mxu0 %v2323
      %v3371 = vpop.f32.mrb[0].mxu0
      %v3372 = vadd.f32 0.0, %v3371
      %v3373 = vpop.f32.mrb[0].mxu0
      %v3374 = vadd.f32 0.0, %v3373
      %v3375 = vpop.f32.mrb[0].mxu0
      %v3376 = vadd.f32 0.0, %v3375
      %v3377 = vpop.f32.mrb[0].mxu0
      %v3378 = vadd.f32 0.0, %v3377
      %3379 = vmatprep.mubr.bf16.mxu0 %v2326
      %3380 = vmatmul.mubr.bf16.gmra.mrb[0].mxu0 %v2325
      %v3381 = vpop.f32.mrb[0].mxu0
      %v3382 = vadd.f32 0.0, %v3381
      %v3383 = vpop.f32.mrb[0].mxu0
      %v3384 = vadd.f32 0.0, %v3383
      %v3385 = vpop.f32.mrb[0].mxu0
      %v3386 = vadd.f32 0.0, %v3385
      %v3387 = vpop.f32.mrb[0].mxu0
      %v3388 = vadd.f32 0.0, %v3387
      %3389 = vmatprep.mubr.bf16.mxu0 %v2328
      %3390 = vmatmul.mubr.bf16.gmra.mrb[0].mxu0 %v2327
      %v3391 = vpop.f32.mrb[0].mxu0
      %v3392 = vadd.f32 0.0, %v3391
      %v3393 = vpop.f32.mrb[0].mxu0
      %v3394 = vadd.f32 0.0, %v3393
      %v3395 = vpop.f32.mrb[0].mxu0
      %v3396 = vadd.f32 0.0, %v3395
      %v3397 = vpop.f32.mrb[0].mxu0
      %v3398 = vadd.f32 0.0, %v3397
      %3399 = vmatprep.mubr.bf16.mxu0 %v3134
      %3400 = vmatmul.mubr.bf16.gmra.mrb[0].mxu0 %v3133
      %v3401 = vpop.f32.mrb[0].mxu0
      %v3402 = vadd.f32 0.0, %v3401
      %v3403 = vpop.f32.mrb[0].mxu0
      %v3404 = vadd.f32 0.0, %v3403
      %v3405 = vpop.f32.mrb[0].mxu0
      %v3406 = vadd.f32 0.0, %v3405
      %v3407 = vpop.f32.mrb[0].mxu0
      %v3408 = vadd.f32 0.0, %v3407
      %3409 = vdwg.mxu0
      %v3410 = vadd.f32 %v3040, %v3332
      %v3411 = vadd.f32 %v3041, %v3334
      %v3412 = vadd.f32 %v3042, %v3336
      %v3413 = vadd.f32 %v3043, %v3338
      %v3414 = vadd.f32 %v3044, %v3342
      %v3415 = vadd.f32 %v3045, %v3344
      %v3416 = vadd.f32 %v3046, %v3346
      %v3417 = vadd.f32 %v3047, %v3348
      %v3418 = vadd.f32 %v3048, %v3352
      %v3419 = vadd.f32 %v3049, %v3354
      %v3420 = vadd.f32 %v3050, %v3356
      %v3421 = vadd.f32 %v3051, %v3358
      %v3422 = vadd.f32 %v3052, %v3362
      %v3423 = vadd.f32 %v3053, %v3364
      %v3424 = vadd.f32 %v3054, %v3366
      %v3425 = vadd.f32 %v3055, %v3368
      %v3426 = vadd.f32 %v3056, %v3372
      %v3427 = vadd.f32 %v3057, %v3374
      %v3428 = vadd.f32 %v3058, %v3376
      %v3429 = vadd.f32 %v3059, %v3378
      %v3430 = vadd.f32 %v3060, %v3382
      %v3431 = vadd.f32 %v3061, %v3384
      %v3432 = vadd.f32 %v3062, %v3386
      %v3433 = vadd.f32 %v3063, %v3388
      %v3434 = vadd.f32 %v3064, %v3392
      %v3435 = vadd.f32 %v3065, %v3394
      %v3436 = vadd.f32 %v3066, %v3396
      %v3437 = vadd.f32 %v3067, %v3398
      %v3438 = vadd.f32 %v3068, %v3402
      %v3439 = vadd.f32 %v3069, %v3404
      %v3440 = vadd.f32 %v3070, %v3406
      %v3441 = vadd.f32 %v3071, %v3408
      %v3443 = vshrl.u32 %v2047, 16
      %v3445 = vrot.slane %v3443, 4
      %v3446 = vshll.u32 %v2047, 16
      %v3448 = vrot.slane %v3446, 5
      %v3449 = vor.u32 %v3445, %v3448
      %v3450 = vrot.slane %v3449, 4
      %v3452 = vshll.u32 %v2048, 16
      %v3454 = vrot.slane %v3452, 5
      %v3455 = vsel %vm2055, %v3450, %v3454
      %v3456 = vshrl.u32 %v2048, 16
      %v3458 = vrot.slane %v3456, 4
      %v3459 = vor.u32 %v3458, %v3454
      %v3460 = vrot.slane %v3459, 4
      %v3462 = vshll.u32 %v2049, 16
      %v3464 = vrot.slane %v3462, 5
      %v3465 = vsel %vm2055, %v3460, %v3464
      %s3466 = scalar_lea.vmem %s3, 192
      %v3467 = vld [vmem:[%s3466] sm:$0xff]
      %v3468 = vld [vmem:[%s3466 + $0x8] sm:$0xff]
      %v3469 = vld [vmem:[%s3466 + $0x10] sm:$0xff]
      %v3470 = vld [vmem:[%s3466 + $0x18] sm:$0xff]
      %v3471 = vld [vmem:[%s3466 + $0x20] sm:$0xff]
      %v3472 = vld [vmem:[%s3466 + $0x28] sm:$0xff]
      %v3473 = vunpack.c.l.b16 %v3455
      %v3474 = vunpack.c.l.b16 %v3465
      %v3475 = vpack.c.b16 %v3474, %v3473
      %v3482 = vunpack.c.l.b16 %v3467
      %v3483 = vunpack.c.h.b16 %v3467
      %v3484 = vunpack.c.l.b16 %v3468
      %v3485 = vunpack.c.h.b16 %v3468
      %v3486 = vunpack.c.l.b16 %v3469
      %v3487 = vunpack.c.h.b16 %v3469
      %v3488 = vunpack.c.l.b16 %v3470
      %v3489 = vunpack.c.h.b16 %v3470
      %v3490 = vunpack.c.l.b16 %v3471
      %v3491 = vunpack.c.h.b16 %v3471
      %v3492 = vunpack.c.l.b16 %v3472
      %v3493 = vunpack.c.h.b16 %v3472
      %v3494 = vpack.c.b16 %v3484, %v3482
      %v3495 = vpack.c.b16 %v3485, %v3483
      %v3496 = vpack.c.b16 %v3488, %v3486
      %v3497 = vpack.c.b16 %v3489, %v3487
      %v3498 = vpack.c.b16 %v3492, %v3490
      %v3499 = vpack.c.b16 %v3493, %v3491
      %v3507 = vsel %vm426, %v3475, 0
      %3509 = vmatprep.subr.bf16.mxu0 %v3495
      %3510 = vmatpush1.bf16.msra.mxu0 %v3494
      %3511 = vmatprep.subr.bf16.mxu0 %v3497
      %3512 = vmatpush1.bf16.msra.mxu0 %v3496
      %3513 = vmatprep.subr.bf16.mxu0 %v3499
      %3514 = vmatpush1.bf16.msra.mxu0 %v3498
      %3515 = vmatprep.subr.bf16.mxu0 0
      %3516 = vmatpush1.bf16.msra.mxu0 0
      %3517 = vmatprep.subr.bf16.mxu0 0
      %3518 = vmatpush1.bf16.msra.mxu0 0
      %3519 = vmatprep.subr.bf16.mxu0 0
      %3520 = vmatpush1.bf16.msra.mxu0 0
      %3521 = vmatprep.subr.bf16.mxu0 0
      %3522 = vmatpush1.bf16.msra.mxu0 0
      %3523 = vmatprep.subr.bf16.mxu0 0
      %3524 = vmatpush1.bf16.msra.mxu0 0
      %3525 = vmatprep.subr.bf16.mxu0 0
      %3526 = vmatpush1.bf16.msra.mxu0 0
      %3527 = vmatprep.subr.bf16.mxu0 0
      %3528 = vmatpush1.bf16.msra.mxu0 0
      %3529 = vmatprep.subr.bf16.mxu0 0
      %3530 = vmatpush1.bf16.msra.mxu0 0
      %3531 = vmatprep.subr.bf16.mxu0 0
      %3532 = vmatpush1.bf16.msra.mxu0 0
      %3533 = vmatprep.subr.bf16.mxu0 0
      %3534 = vmatpush1.bf16.msra.mxu0 0
      %3535 = vmatprep.subr.bf16.mxu0 0
      %3536 = vmatpush1.bf16.msra.mxu0 0
      %3537 = vmatprep.subr.bf16.mxu0 0
      %3538 = vmatpush1.bf16.msra.mxu0 0
      %3539 = vmatprep.subr.bf16.mxu0 0
      %3540 = vmatpush1.bf16.msra.mxu0 0
      %3541 = vmatprep.mubr.bf16.mxu0 0
      %3542 = vmatmul.mubr.bf16.gmra.mrb[0].mxu0 %v2907
      %v3543 = vpop.f32.mrb[0].mxu0
      %v3544 = vadd.f32 0.0, %v3543
      %v3545 = vpop.f32.mrb[0].mxu0
      %v3546 = vadd.f32 0.0, %v3545
      %v3547 = vpop.f32.mrb[0].mxu0
      %v3548 = vadd.f32 0.0, %v3547
      %v3549 = vpop.f32.mrb[0].mxu0
      %v3550 = vadd.f32 0.0, %v3549
      %3551 = vmatprep.mubr.bf16.mxu0 0
      %3552 = vmatmul.mubr.bf16.gmra.mrb[0].mxu0 %v2910
      %v3553 = vpop.f32.mrb[0].mxu0
      %v3554 = vadd.f32 0.0, %v3553
      %v3555 = vpop.f32.mrb[0].mxu0
      %v3556 = vadd.f32 0.0, %v3555
      %v3557 = vpop.f32.mrb[0].mxu0
      %v3558 = vadd.f32 0.0, %v3557
      %v3559 = vpop.f32.mrb[0].mxu0
      %v3560 = vadd.f32 0.0, %v3559
      %3561 = vmatprep.mubr.bf16.mxu0 0
      %3562 = vmatmul.mubr.bf16.gmra.mrb[0].mxu0 %v2913
      %v3563 = vpop.f32.mrb[0].mxu0
      %v3564 = vadd.f32 0.0, %v3563
      %v3565 = vpop.f32.mrb[0].mxu0
      %v3566 = vadd.f32 0.0, %v3565
      %v3567 = vpop.f32.mrb[0].mxu0
      %v3568 = vadd.f32 0.0, %v3567
      %v3569 = vpop.f32.mrb[0].mxu0
      %v3570 = vadd.f32 0.0, %v3569
      %3571 = vmatprep.mubr.bf16.mxu0 0
      %3572 = vmatmul.mubr.bf16.gmra.mrb[0].mxu0 %v2916
      %v3573 = vpop.f32.mrb[0].mxu0
      %v3574 = vadd.f32 0.0, %v3573
      %v3575 = vpop.f32.mrb[0].mxu0
      %v3576 = vadd.f32 0.0, %v3575
      %v3577 = vpop.f32.mrb[0].mxu0
      %v3578 = vadd.f32 0.0, %v3577
      %v3579 = vpop.f32.mrb[0].mxu0
      %v3580 = vadd.f32 0.0, %v3579
      %3581 = vmatprep.mubr.bf16.mxu0 0
      %3582 = vmatmul.mubr.bf16.gmra.mrb[0].mxu0 %v2919
      %v3583 = vpop.f32.mrb[0].mxu0
      %v3584 = vadd.f32 0.0, %v3583
      %v3585 = vpop.f32.mrb[0].mxu0
      %v3586 = vadd.f32 0.0, %v3585
      %v3587 = vpop.f32.mrb[0].mxu0
      %v3588 = vadd.f32 0.0, %v3587
      %v3589 = vpop.f32.mrb[0].mxu0
      %v3590 = vadd.f32 0.0, %v3589
      %3591 = vmatprep.mubr.bf16.mxu0 0
      %3592 = vmatmul.mubr.bf16.gmra.mrb[0].mxu0 %v2922
      %v3593 = vpop.f32.mrb[0].mxu0
      %v3594 = vadd.f32 0.0, %v3593
      %v3595 = vpop.f32.mrb[0].mxu0
      %v3596 = vadd.f32 0.0, %v3595
      %v3597 = vpop.f32.mrb[0].mxu0
      %v3598 = vadd.f32 0.0, %v3597
      %v3599 = vpop.f32.mrb[0].mxu0
      %v3600 = vadd.f32 0.0, %v3599
      %3601 = vmatprep.mubr.bf16.mxu0 0
      %3602 = vmatmul.mubr.bf16.gmra.mrb[0].mxu0 %v2925
      %v3603 = vpop.f32.mrb[0].mxu0
      %v3604 = vadd.f32 0.0, %v3603
      %v3605 = vpop.f32.mrb[0].mxu0
      %v3606 = vadd.f32 0.0, %v3605
      %v3607 = vpop.f32.mrb[0].mxu0
      %v3608 = vadd.f32 0.0, %v3607
      %v3609 = vpop.f32.mrb[0].mxu0
      %v3610 = vadd.f32 0.0, %v3609
      %3611 = vmatprep.mubr.bf16.mxu0 0
      %3612 = vmatmul.mubr.bf16.gmra.mrb[0].mxu0 %v3507
      %v3613 = vpop.f32.mrb[0].mxu0
      %v3614 = vadd.f32 0.0, %v3613
      %v3615 = vpop.f32.mrb[0].mxu0
      %v3616 = vadd.f32 0.0, %v3615
      %v3617 = vpop.f32.mrb[0].mxu0
      %v3618 = vadd.f32 0.0, %v3617
      %v3619 = vpop.f32.mrb[0].mxu0
      %v3620 = vadd.f32 0.0, %v3619
      %3621 = vdwg.mxu0
      %v3622 = vadd.f32 %v3410, %v3544
      %v3623 = vadd.f32 %v3411, %v3546
      %v3624 = vadd.f32 %v3412, %v3548
      %v3625 = vadd.f32 %v3413, %v3550
      %v3626 = vadd.f32 %v3414, %v3554
      %v3627 = vadd.f32 %v3415, %v3556
      %v3628 = vadd.f32 %v3416, %v3558
      %v3629 = vadd.f32 %v3417, %v3560
      %v3630 = vadd.f32 %v3418, %v3564
      %v3631 = vadd.f32 %v3419, %v3566
      %v3632 = vadd.f32 %v3420, %v3568
      %v3633 = vadd.f32 %v3421, %v3570
      %v3634 = vadd.f32 %v3422, %v3574
      %v3635 = vadd.f32 %v3423, %v3576
      %v3636 = vadd.f32 %v3424, %v3578
      %v3637 = vadd.f32 %v3425, %v3580
      %v3638 = vadd.f32 %v3426, %v3584
      %v3639 = vadd.f32 %v3427, %v3586
      %v3640 = vadd.f32 %v3428, %v3588
      %v3641 = vadd.f32 %v3429, %v3590
      %v3642 = vadd.f32 %v3430, %v3594
      %v3643 = vadd.f32 %v3431, %v3596
      %v3644 = vadd.f32 %v3432, %v3598
      %v3645 = vadd.f32 %v3433, %v3600
      %v3646 = vadd.f32 %v3434, %v3604
      %v3647 = vadd.f32 %v3435, %v3606
      %v3648 = vadd.f32 %v3436, %v3608
      %v3649 = vadd.f32 %v3437, %v3610
      %v3650 = vadd.f32 %v3438, %v3614
      %v3651 = vadd.f32 %v3439, %v3616
      %v3652 = vadd.f32 %v3440, %v3618
      %v3653 = vadd.f32 %v3441, %v3620
      %v3655 = vshrl.u32 %v2020, 16
      %v3657 = vrot.slane %v3655, 4
      %v3658 = vshll.u32 %v2020, 16
      %v3660 = vrot.slane %v3658, 5
      %v3661 = vor.u32 %v3657, %v3660
      %v3662 = vrot.slane %v3661, 4
      %v3664 = vshll.u32 %v2021, 16
      %v3666 = vrot.slane %v3664, 5
      %v3667 = vsel %vm2055, %v3662, %v3666
      %v3668 = vshrl.u32 %v2021, 16
      %v3670 = vrot.slane %v3668, 4
      %v3671 = vor.u32 %v3670, %v3666
      %v3672 = vrot.slane %v3671, 4
      %v3674 = vshll.u32 %v2022, 16
      %v3676 = vrot.slane %v3674, 5
      %v3677 = vsel %vm2055, %v3672, %v3676
      %s3678 = scalar_lea.vmem %s2, 1792
      %v3679 = vld [vmem:[%s3678] sm:$0xff]
      %v3680 = vld [vmem:[%s3678 + $0x8] sm:$0xff]
      %v3681 = vld [vmem:[%s3678 + $0x10] sm:$0xff]
      %v3682 = vld [vmem:[%s3678 + $0x18] sm:$0xff]
      %v3683 = vld [vmem:[%s3678 + $0x20] sm:$0xff]
      %v3684 = vld [vmem:[%s3678 + $0x28] sm:$0xff]
      %v3685 = vld [vmem:[%s3678 + $0x30] sm:$0xff]
      %v3686 = vld [vmem:[%s3678 + $0x38] sm:$0xff]
      %v3687 = vld [vmem:[%s3678 + $0x40] sm:$0xff]
      %v3688 = vld [vmem:[%s3678 + $0x48] sm:$0xff]
      %v3689 = vld [vmem:[%s3678 + $0x50] sm:$0xff]
      %v3690 = vld [vmem:[%s3678 + $0x58] sm:$0xff]
      %v3691 = vld [vmem:[%s3678 + $0x60] sm:$0xff]
      %v3692 = vld [vmem:[%s3678 + $0x68] sm:$0xff]
      %v3693 = vld [vmem:[%s3678 + $0x70] sm:$0xff]
      %v3694 = vld [vmem:[%s3678 + $0x78] sm:$0xff]
      %v3695 = vld [vmem:[%s3678 + $0x80] sm:$0xff]
      %v3696 = vld [vmem:[%s3678 + $0x88] sm:$0xff]
      %v3697 = vld [vmem:[%s3678 + $0x90] sm:$0xff]
      %v3698 = vld [vmem:[%s3678 + $0x98] sm:$0xff]
      %v3699 = vld [vmem:[%s3678 + $0xa0] sm:$0xff]
      %v3700 = vld [vmem:[%s3678 + $0xa8] sm:$0xff]
      %v3701 = vld [vmem:[%s3678 + $0xb0] sm:$0xff]
      %v3702 = vld [vmem:[%s3678 + $0xb8] sm:$0xff]
      %v3703 = vld [vmem:[%s3678 + $0xc0] sm:$0xff]
      %v3704 = vld [vmem:[%s3678 + $0xc8] sm:$0xff]
      %v3705 = vld [vmem:[%s3678 + $0xd0] sm:$0xff]
      %v3706 = vld [vmem:[%s3678 + $0xd8] sm:$0xff]
      %v3707 = vld [vmem:[%s3678 + $0xe0] sm:$0xff]
      %v3708 = vld [vmem:[%s3678 + $0xe8] sm:$0xff]
      %v3709 = vld [vmem:[%s3678 + $0xf0] sm:$0xff]
      %v3710 = vld [vmem:[%s3678 + $0xf8] sm:$0xff]
      %v3711 = vunpack.c.l.b16 %v3667
      %v3712 = vunpack.c.h.b16 %v3667
      %v3713 = vunpack.c.l.b16 %v3677
      %v3714 = vunpack.c.h.b16 %v3677
      %v3715 = vpack.c.b16 %v3713, %v3711
      %v3716 = vpack.c.b16 %v3714, %v3712
      %v3751 = vunpack.c.l.b16 %v3679
      %v3752 = vunpack.c.h.b16 %v3679
      %v3753 = vunpack.c.l.b16 %v3680
      %v3754 = vunpack.c.h.b16 %v3680
      %v3755 = vunpack.c.l.b16 %v3681
      %v3756 = vunpack.c.h.b16 %v3681
      %v3757 = vunpack.c.l.b16 %v3682
      %v3758 = vunpack.c.h.b16 %v3682
      %v3759 = vunpack.c.l.b16 %v3683
      %v3760 = vunpack.c.h.b16 %v3683
      %v3761 = vunpack.c.l.b16 %v3684
      %v3762 = vunpack.c.h.b16 %v3684
      %v3763 = vunpack.c.l.b16 %v3685
      %v3764 = vunpack.c.h.b16 %v3685
      %v3765 = vunpack.c.l.b16 %v3686
      %v3766 = vunpack.c.h.b16 %v3686
      %v3767 = vunpack.c.l.b16 %v3687
      %v3768 = vunpack.c.h.b16 %v3687
      %v3769 = vunpack.c.l.b16 %v3688
      %v3770 = vunpack.c.h.b16 %v3688
      %v3771 = vunpack.c.l.b16 %v3689
      %v3772 = vunpack.c.h.b16 %v3689
      %v3773 = vunpack.c.l.b16 %v3690
      %v3774 = vunpack.c.h.b16 %v3690
      %v3775 = vunpack.c.l.b16 %v3691
      %v3776 = vunpack.c.h.b16 %v3691
      %v3777 = vunpack.c.l.b16 %v3692
      %v3778 = vunpack.c.h.b16 %v3692
      %v3779 = vunpack.c.l.b16 %v3693
      %v3780 = vunpack.c.h.b16 %v3693
      %v3781 = vunpack.c.l.b16 %v3694
      %v3782 = vunpack.c.h.b16 %v3694
      %v3783 = vunpack.c.l.b16 %v3695
      %v3784 = vunpack.c.h.b16 %v3695
      %v3785 = vunpack.c.l.b16 %v3696
      %v3786 = vunpack.c.h.b16 %v3696
      %v3787 = vunpack.c.l.b16 %v3697
      %v3788 = vunpack.c.h.b16 %v3697
      %v3789 = vunpack.c.l.b16 %v3698
      %v3790 = vunpack.c.h.b16 %v3698
      %v3791 = vunpack.c.l.b16 %v3699
      %v3792 = vunpack.c.h.b16 %v3699
      %v3793 = vunpack.c.l.b16 %v3700
      %v3794 = vunpack.c.h.b16 %v3700
      %v3795 = vunpack.c.l.b16 %v3701
      %v3796 = vunpack.c.h.b16 %v3701
      %v3797 = vunpack.c.l.b16 %v3702
      %v3798 = vunpack.c.h.b16 %v3702
      %v3799 = vunpack.c.l.b16 %v3703
      %v3800 = vunpack.c.h.b16 %v3703
      %v3801 = vunpack.c.l.b16 %v3704
      %v3802 = vunpack.c.h.b16 %v3704
      %v3803 = vunpack.c.l.b16 %v3705
      %v3804 = vunpack.c.h.b16 %v3705
      %v3805 = vunpack.c.l.b16 %v3706
      %v3806 = vunpack.c.h.b16 %v3706
      %v3807 = vunpack.c.l.b16 %v3707
      %v3808 = vunpack.c.h.b16 %v3707
      %v3809 = vunpack.c.l.b16 %v3708
      %v3810 = vunpack.c.h.b16 %v3708
      %v3811 = vunpack.c.l.b16 %v3709
      %v3812 = vunpack.c.h.b16 %v3709
      %v3813 = vunpack.c.l.b16 %v3710
      %v3814 = vunpack.c.h.b16 %v3710
      %v3815 = vpack.c.b16 %v3753, %v3751
      %v3816 = vpack.c.b16 %v3754, %v3752
      %v3817 = vpack.c.b16 %v3757, %v3755
      %v3818 = vpack.c.b16 %v3758, %v3756
      %v3819 = vpack.c.b16 %v3761, %v3759
      %v3820 = vpack.c.b16 %v3762, %v3760
      %v3821 = vpack.c.b16 %v3765, %v3763
      %v3822 = vpack.c.b16 %v3766, %v3764
      %v3823 = vpack.c.b16 %v3769, %v3767
      %v3824 = vpack.c.b16 %v3770, %v3768
      %v3825 = vpack.c.b16 %v3773, %v3771
      %v3826 = vpack.c.b16 %v3774, %v3772
      %v3827 = vpack.c.b16 %v3777, %v3775
      %v3828 = vpack.c.b16 %v3778, %v3776
      %v3829 = vpack.c.b16 %v3781, %v3779
      %v3830 = vpack.c.b16 %v3782, %v3780
      %v3831 = vpack.c.b16 %v3785, %v3783
      %v3832 = vpack.c.b16 %v3786, %v3784
      %v3833 = vpack.c.b16 %v3789, %v3787
      %v3834 = vpack.c.b16 %v3790, %v3788
      %v3835 = vpack.c.b16 %v3793, %v3791
      %v3836 = vpack.c.b16 %v3794, %v3792
      %v3837 = vpack.c.b16 %v3797, %v3795
      %v3838 = vpack.c.b16 %v3798, %v3796
      %v3839 = vpack.c.b16 %v3801, %v3799
      %v3840 = vpack.c.b16 %v3802, %v3800
      %v3841 = vpack.c.b16 %v3805, %v3803
      %v3842 = vpack.c.b16 %v3806, %v3804
      %v3843 = vpack.c.b16 %v3809, %v3807
      %v3844 = vpack.c.b16 %v3810, %v3808
      %v3845 = vpack.c.b16 %v3813, %v3811
      %v3846 = vpack.c.b16 %v3814, %v3812
      %3879 = vmatprep.subr.bf16.mxu0 %v3816
      %3880 = vmatpush1.bf16.msra.mxu0 %v3815
      %3881 = vmatprep.subr.bf16.mxu0 %v3818
      %3882 = vmatpush1.bf16.msra.mxu0 %v3817
      %3883 = vmatprep.subr.bf16.mxu0 %v3820
      %3884 = vmatpush1.bf16.msra.mxu0 %v3819
      %3885 = vmatprep.subr.bf16.mxu0 %v3822
      %3886 = vmatpush1.bf16.msra.mxu0 %v3821
      %3887 = vmatprep.subr.bf16.mxu0 %v3824
      %3888 = vmatpush1.bf16.msra.mxu0 %v3823
      %3889 = vmatprep.subr.bf16.mxu0 %v3826
      %3890 = vmatpush1.bf16.msra.mxu0 %v3825
      %3891 = vmatprep.subr.bf16.mxu0 %v3828
      %3892 = vmatpush1.bf16.msra.mxu0 %v3827
      %3893 = vmatprep.subr.bf16.mxu0 %v3830
      %3894 = vmatpush1.bf16.msra.mxu0 %v3829
      %3895 = vmatprep.subr.bf16.mxu0 %v3832
      %3896 = vmatpush1.bf16.msra.mxu0 %v3831
      %3897 = vmatprep.subr.bf16.mxu0 %v3834
      %3898 = vmatpush1.bf16.msra.mxu0 %v3833
      %3899 = vmatprep.subr.bf16.mxu0 %v3836
      %3900 = vmatpush1.bf16.msra.mxu0 %v3835
      %3901 = vmatprep.subr.bf16.mxu0 %v3838
      %3902 = vmatpush1.bf16.msra.mxu0 %v3837
      %3903 = vmatprep.subr.bf16.mxu0 %v3840
      %3904 = vmatpush1.bf16.msra.mxu0 %v3839
      %3905 = vmatprep.subr.bf16.mxu0 %v3842
      %3906 = vmatpush1.bf16.msra.mxu0 %v3841
      %3907 = vmatprep.subr.bf16.mxu0 %v3844
      %3908 = vmatpush1.bf16.msra.mxu0 %v3843
      %3909 = vmatprep.subr.bf16.mxu0 %v3846
      %3910 = vmatpush1.bf16.msra.mxu0 %v3845
      %3911 = vmatprep.mubr.bf16.mxu0 %v2318
      %3912 = vmatmul.mubr.bf16.gmra.mrb[0].mxu0 %v2317
      %v3913 = vpop.f32.mrb[0].mxu0
      %v3914 = vadd.f32 0.0, %v3913
      %v3915 = vpop.f32.mrb[0].mxu0
      %v3916 = vadd.f32 0.0, %v3915
      %v3917 = vpop.f32.mrb[0].mxu0
      %v3918 = vadd.f32 0.0, %v3917
      %v3919 = vpop.f32.mrb[0].mxu0
      %v3920 = vadd.f32 0.0, %v3919
      %3921 = vmatprep.mubr.bf16.mxu0 %v2320
      %3922 = vmatmul.mubr.bf16.gmra.mrb[0].mxu0 %v2319
      %v3923 = vpop.f32.mrb[0].mxu0
      %v3924 = vadd.f32 0.0, %v3923
      %v3925 = vpop.f32.mrb[0].mxu0
      %v3926 = vadd.f32 0.0, %v3925
      %v3927 = vpop.f32.mrb[0].mxu0
      %v3928 = vadd.f32 0.0, %v3927
      %v3929 = vpop.f32.mrb[0].mxu0
      %v3930 = vadd.f32 0.0, %v3929
      %3931 = vmatprep.mubr.bf16.mxu0 %v2322
      %3932 = vmatmul.mubr.bf16.gmra.mrb[0].mxu0 %v2321
      %v3933 = vpop.f32.mrb[0].mxu0
      %v3934 = vadd.f32 0.0, %v3933
      %v3935 = vpop.f32.mrb[0].mxu0
      %v3936 = vadd.f32 0.0, %v3935
      %v3937 = vpop.f32.mrb[0].mxu0
      %v3938 = vadd.f32 0.0, %v3937
      %v3939 = vpop.f32.mrb[0].mxu0
      %v3940 = vadd.f32 0.0, %v3939
      %3941 = vmatprep.mubr.bf16.mxu0 %v2324
      %3942 = vmatmul.mubr.bf16.gmra.mrb[0].mxu0 %v2323
      %v3943 = vpop.f32.mrb[0].mxu0
      %v3944 = vadd.f32 0.0, %v3943
      %v3945 = vpop.f32.mrb[0].mxu0
      %v3946 = vadd.f32 0.0, %v3945
      %v3947 = vpop.f32.mrb[0].mxu0
      %v3948 = vadd.f32 0.0, %v3947
      %v3949 = vpop.f32.mrb[0].mxu0
      %v3950 = vadd.f32 0.0, %v3949
      %3951 = vmatprep.mubr.bf16.mxu0 %v2326
      %3952 = vmatmul.mubr.bf16.gmra.mrb[0].mxu0 %v2325
      %v3953 = vpop.f32.mrb[0].mxu0
      %v3954 = vadd.f32 0.0, %v3953
      %v3955 = vpop.f32.mrb[0].mxu0
      %v3956 = vadd.f32 0.0, %v3955
      %v3957 = vpop.f32.mrb[0].mxu0
      %v3958 = vadd.f32 0.0, %v3957
      %v3959 = vpop.f32.mrb[0].mxu0
      %v3960 = vadd.f32 0.0, %v3959
      %3961 = vmatprep.mubr.bf16.mxu0 %v2328
      %3962 = vmatmul.mubr.bf16.gmra.mrb[0].mxu0 %v2327
      %v3963 = vpop.f32.mrb[0].mxu0
      %v3964 = vadd.f32 0.0, %v3963
      %v3965 = vpop.f32.mrb[0].mxu0
      %v3966 = vadd.f32 0.0, %v3965
      %v3967 = vpop.f32.mrb[0].mxu0
      %v3968 = vadd.f32 0.0, %v3967
      %v3969 = vpop.f32.mrb[0].mxu0
      %v3970 = vadd.f32 0.0, %v3969
      %3971 = vmatprep.mubr.bf16.mxu0 %v3134
      %3972 = vmatmul.mubr.bf16.gmra.mrb[0].mxu0 %v3133
      %v3973 = vpop.f32.mrb[0].mxu0
      %v3974 = vadd.f32 0.0, %v3973
      %v3975 = vpop.f32.mrb[0].mxu0
      %v3976 = vadd.f32 0.0, %v3975
      %v3977 = vpop.f32.mrb[0].mxu0
      %v3978 = vadd.f32 0.0, %v3977
      %v3979 = vpop.f32.mrb[0].mxu0
      %v3980 = vadd.f32 0.0, %v3979
      %3981 = vmatprep.mubr.bf16.mxu0 %v3716
      %3982 = vmatmul.mubr.bf16.gmra.mrb[0].mxu0 %v3715
      %v3983 = vpop.f32.mrb[0].mxu0
      %v3984 = vadd.f32 0.0, %v3983
      %v3985 = vpop.f32.mrb[0].mxu0
      %v3986 = vadd.f32 0.0, %v3985
      %v3987 = vpop.f32.mrb[0].mxu0
      %v3988 = vadd.f32 0.0, %v3987
      %v3989 = vpop.f32.mrb[0].mxu0
      %v3990 = vadd.f32 0.0, %v3989
      %3991 = vdwg.mxu0
      %v3992 = vadd.f32 %v3622, %v3914
      %v3993 = vadd.f32 %v3623, %v3916
      %v3994 = vadd.f32 %v3624, %v3918
      %v3995 = vadd.f32 %v3625, %v3920
      %v3996 = vadd.f32 %v3626, %v3924
      %v3997 = vadd.f32 %v3627, %v3926
      %v3998 = vadd.f32 %v3628, %v3928
      %v3999 = vadd.f32 %v3629, %v3930
      %v4000 = vadd.f32 %v3630, %v3934
      %v4001 = vadd.f32 %v3631, %v3936
      %v4002 = vadd.f32 %v3632, %v3938
      %v4003 = vadd.f32 %v3633, %v3940
      %v4004 = vadd.f32 %v3634, %v3944
      %v4005 = vadd.f32 %v3635, %v3946
      %v4006 = vadd.f32 %v3636, %v3948
      %v4007 = vadd.f32 %v3637, %v3950
      %v4008 = vadd.f32 %v3638, %v3954
      %v4009 = vadd.f32 %v3639, %v3956
      %v4010 = vadd.f32 %v3640, %v3958
      %v4011 = vadd.f32 %v3641, %v3960
      %v4012 = vadd.f32 %v3642, %v3964
      %v4013 = vadd.f32 %v3643, %v3966
      %v4014 = vadd.f32 %v3644, %v3968
      %v4015 = vadd.f32 %v3645, %v3970
      %v4016 = vadd.f32 %v3646, %v3974
      %v4017 = vadd.f32 %v3647, %v3976
      %v4018 = vadd.f32 %v3648, %v3978
      %v4019 = vadd.f32 %v3649, %v3980
      %v4020 = vadd.f32 %v3650, %v3984
      %v4021 = vadd.f32 %v3651, %v3986
      %v4022 = vadd.f32 %v3652, %v3988
      %v4023 = vadd.f32 %v3653, %v3990
      %v4025 = vshrl.u32 %v2050, 16
      %v4027 = vrot.slane %v4025, 4
      %v4028 = vshll.u32 %v2050, 16
      %v4030 = vrot.slane %v4028, 5
      %v4031 = vor.u32 %v4027, %v4030
      %v4032 = vrot.slane %v4031, 4
      %v4034 = vshll.u32 %v2051, 16
      %v4036 = vrot.slane %v4034, 5
      %v4037 = vsel %vm2055, %v4032, %v4036
      %v4038 = vshrl.u32 %v2051, 16
      %v4040 = vrot.slane %v4038, 4
      %v4041 = vor.u32 %v4040, %v4036
      %v4042 = vrot.slane %v4041, 4
      %v4044 = vshll.u32 %v2052, 16
      %v4046 = vrot.slane %v4044, 5
      %v4047 = vsel %vm2055, %v4042, %v4046
      %s4048 = scalar_lea.vmem %s3, 336
      %v4049 = vld [vmem:[%s4048] sm:$0xff]
      %v4050 = vld [vmem:[%s4048 + $0x8] sm:$0xff]
      %v4051 = vld [vmem:[%s4048 + $0x10] sm:$0xff]
      %v4052 = vld [vmem:[%s4048 + $0x18] sm:$0xff]
      %v4053 = vld [vmem:[%s4048 + $0x20] sm:$0xff]
      %v4054 = vld [vmem:[%s4048 + $0x28] sm:$0xff]
      %v4055 = vunpack.c.l.b16 %v4037
      %v4056 = vunpack.c.l.b16 %v4047
      %v4057 = vpack.c.b16 %v4056, %v4055
      %v4064 = vunpack.c.l.b16 %v4049
      %v4065 = vunpack.c.h.b16 %v4049
      %v4066 = vunpack.c.l.b16 %v4050
      %v4067 = vunpack.c.h.b16 %v4050
      %v4068 = vunpack.c.l.b16 %v4051
      %v4069 = vunpack.c.h.b16 %v4051
      %v4070 = vunpack.c.l.b16 %v4052
      %v4071 = vunpack.c.h.b16 %v4052
      %v4072 = vunpack.c.l.b16 %v4053
      %v4073 = vunpack.c.h.b16 %v4053
      %v4074 = vunpack.c.l.b16 %v4054
      %v4075 = vunpack.c.h.b16 %v4054
      %v4076 = vpack.c.b16 %v4066, %v4064
      %v4077 = vpack.c.b16 %v4067, %v4065
      %v4078 = vpack.c.b16 %v4070, %v4068
      %v4079 = vpack.c.b16 %v4071, %v4069
      %v4080 = vpack.c.b16 %v4074, %v4072
      %v4081 = vpack.c.b16 %v4075, %v4073
      %v4089 = vsel %vm426, %v4057, 0
      %4091 = vmatprep.subr.bf16.mxu0 %v4077
      %4092 = vmatpush1.bf16.msra.mxu0 %v4076
      %4093 = vmatprep.subr.bf16.mxu0 %v4079
      %4094 = vmatpush1.bf16.msra.mxu0 %v4078
      %4095 = vmatprep.subr.bf16.mxu0 %v4081
      %4096 = vmatpush1.bf16.msra.mxu0 %v4080
      %4097 = vmatprep.subr.bf16.mxu0 0
      %4098 = vmatpush1.bf16.msra.mxu0 0
      %4099 = vmatprep.subr.bf16.mxu0 0
      %4100 = vmatpush1.bf16.msra.mxu0 0
      %4101 = vmatprep.subr.bf16.mxu0 0
      %4102 = vmatpush1.bf16.msra.mxu0 0
      %4103 = vmatprep.subr.bf16.mxu0 0
      %4104 = vmatpush1.bf16.msra.mxu0 0
      %4105 = vmatprep.subr.bf16.mxu0 0
      %4106 = vmatpush1.bf16.msra.mxu0 0
      %4107 = vmatprep.subr.bf16.mxu0 0
      %4108 = vmatpush1.bf16.msra.mxu0 0
      %4109 = vmatprep.subr.bf16.mxu0 0
      %4110 = vmatpush1.bf16.msra.mxu0 0
      %4111 = vmatprep.subr.bf16.mxu0 0
      %4112 = vmatpush1.bf16.msra.mxu0 0
      %4113 = vmatprep.subr.bf16.mxu0 0
      %4114 = vmatpush1.bf16.msra.mxu0 0
      %4115 = vmatprep.subr.bf16.mxu0 0
      %4116 = vmatpush1.bf16.msra.mxu0 0
      %4117 = vmatprep.subr.bf16.mxu0 0
      %4118 = vmatpush1.bf16.msra.mxu0 0
      %4119 = vmatprep.subr.bf16.mxu0 0
      %4120 = vmatpush1.bf16.msra.mxu0 0
      %4121 = vmatprep.subr.bf16.mxu0 0
      %4122 = vmatpush1.bf16.msra.mxu0 0
      %4123 = vmatprep.mubr.bf16.mxu0 0
      %4124 = vmatmul.mubr.bf16.gmra.mrb[0].mxu0 %v2910
      %v4125 = vpop.f32.mrb[0].mxu0
      %v4126 = vadd.f32 0.0, %v4125
      %v4127 = vpop.f32.mrb[0].mxu0
      %v4128 = vadd.f32 0.0, %v4127
      %v4129 = vpop.f32.mrb[0].mxu0
      %v4130 = vadd.f32 0.0, %v4129
      %v4131 = vpop.f32.mrb[0].mxu0
      %v4132 = vadd.f32 0.0, %v4131
      %4133 = vmatprep.mubr.bf16.mxu0 0
      %4134 = vmatmul.mubr.bf16.gmra.mrb[0].mxu0 %v2913
      %v4135 = vpop.f32.mrb[0].mxu0
      %v4136 = vadd.f32 0.0, %v4135
      %v4137 = vpop.f32.mrb[0].mxu0
      %v4138 = vadd.f32 0.0, %v4137
      %v4139 = vpop.f32.mrb[0].mxu0
      %v4140 = vadd.f32 0.0, %v4139
      %v4141 = vpop.f32.mrb[0].mxu0
      %v4142 = vadd.f32 0.0, %v4141
      %4143 = vmatprep.mubr.bf16.mxu0 0
      %4144 = vmatmul.mubr.bf16.gmra.mrb[0].mxu0 %v2916
      %v4145 = vpop.f32.mrb[0].mxu0
      %v4146 = vadd.f32 0.0, %v4145
      %v4147 = vpop.f32.mrb[0].mxu0
      %v4148 = vadd.f32 0.0, %v4147
      %v4149 = vpop.f32.mrb[0].mxu0
      %v4150 = vadd.f32 0.0, %v4149
      %v4151 = vpop.f32.mrb[0].mxu0
      %v4152 = vadd.f32 0.0, %v4151
      %4153 = vmatprep.mubr.bf16.mxu0 0
      %4154 = vmatmul.mubr.bf16.gmra.mrb[0].mxu0 %v2919
      %v4155 = vpop.f32.mrb[0].mxu0
      %v4156 = vadd.f32 0.0, %v4155
      %v4157 = vpop.f32.mrb[0].mxu0
      %v4158 = vadd.f32 0.0, %v4157
      %v4159 = vpop.f32.mrb[0].mxu0
      %v4160 = vadd.f32 0.0, %v4159
      %v4161 = vpop.f32.mrb[0].mxu0
      %v4162 = vadd.f32 0.0, %v4161
      %4163 = vmatprep.mubr.bf16.mxu0 0
      %4164 = vmatmul.mubr.bf16.gmra.mrb[0].mxu0 %v2922
      %v4165 = vpop.f32.mrb[0].mxu0
      %v4166 = vadd.f32 0.0, %v4165
      %v4167 = vpop.f32.mrb[0].mxu0
      %v4168 = vadd.f32 0.0, %v4167
      %v4169 = vpop.f32.mrb[0].mxu0
      %v4170 = vadd.f32 0.0, %v4169
      %v4171 = vpop.f32.mrb[0].mxu0
      %v4172 = vadd.f32 0.0, %v4171
      %4173 = vmatprep.mubr.bf16.mxu0 0
      %4174 = vmatmul.mubr.bf16.gmra.mrb[0].mxu0 %v2925
      %v4175 = vpop.f32.mrb[0].mxu0
      %v4176 = vadd.f32 0.0, %v4175
      %v4177 = vpop.f32.mrb[0].mxu0
      %v4178 = vadd.f32 0.0, %v4177
      %v4179 = vpop.f32.mrb[0].mxu0
      %v4180 = vadd.f32 0.0, %v4179
      %v4181 = vpop.f32.mrb[0].mxu0
      %v4182 = vadd.f32 0.0, %v4181
      %4183 = vmatprep.mubr.bf16.mxu0 0
      %4184 = vmatmul.mubr.bf16.gmra.mrb[0].mxu0 %v3507
      %v4185 = vpop.f32.mrb[0].mxu0
      %v4186 = vadd.f32 0.0, %v4185
      %v4187 = vpop.f32.mrb[0].mxu0
      %v4188 = vadd.f32 0.0, %v4187
      %v4189 = vpop.f32.mrb[0].mxu0
      %v4190 = vadd.f32 0.0, %v4189
      %v4191 = vpop.f32.mrb[0].mxu0
      %v4192 = vadd.f32 0.0, %v4191
      %4193 = vmatprep.mubr.bf16.mxu0 0
      %4194 = vmatmul.mubr.bf16.gmra.mrb[0].mxu0 %v4089
      %v4195 = vpop.f32.mrb[0].mxu0
      %v4196 = vadd.f32 0.0, %v4195
      %v4197 = vpop.f32.mrb[0].mxu0
      %v4198 = vadd.f32 0.0, %v4197
      %v4199 = vpop.f32.mrb[0].mxu0
      %v4200 = vadd.f32 0.0, %v4199
      %v4201 = vpop.f32.mrb[0].mxu0
      %v4202 = vadd.f32 0.0, %v4201
      %4203 = vdwg.mxu0
      %v4204 = vadd.f32 %v3992, %v4126
      %v4205 = vadd.f32 %v3993, %v4128
      %v4206 = vadd.f32 %v3994, %v4130
      %v4207 = vadd.f32 %v3995, %v4132
      %v4208 = vadd.f32 %v3996, %v4136
      %v4209 = vadd.f32 %v3997, %v4138
      %v4210 = vadd.f32 %v3998, %v4140
      %v4211 = vadd.f32 %v3999, %v4142
      %v4212 = vadd.f32 %v4000, %v4146
      %v4213 = vadd.f32 %v4001, %v4148
      %v4214 = vadd.f32 %v4002, %v4150
      %v4215 = vadd.f32 %v4003, %v4152
      %v4216 = vadd.f32 %v4004, %v4156
      %v4217 = vadd.f32 %v4005, %v4158
      %v4218 = vadd.f32 %v4006, %v4160
      %v4219 = vadd.f32 %v4007, %v4162
      %v4220 = vadd.f32 %v4008, %v4166
      %v4221 = vadd.f32 %v4009, %v4168
      %v4222 = vadd.f32 %v4010, %v4170
      %v4223 = vadd.f32 %v4011, %v4172
      %v4224 = vadd.f32 %v4012, %v4176
      %v4225 = vadd.f32 %v4013, %v4178
      %v4226 = vadd.f32 %v4014, %v4180
      %v4227 = vadd.f32 %v4015, %v4182
      %v4228 = vadd.f32 %v4016, %v4186
      %v4229 = vadd.f32 %v4017, %v4188
      %v4230 = vadd.f32 %v4018, %v4190
      %v4231 = vadd.f32 %v4019, %v4192
      %v4232 = vadd.f32 %v4020, %v4196
      %v4233 = vadd.f32 %v4021, %v4198
      %v4234 = vadd.f32 %v4022, %v4200
      %v4235 = vadd.f32 %v4023, %v4202
      %v4236 = vld [vmem:[%s274] sm:$0xee]
      %v4237 = vld [vmem:[%s274 + $0x18] sm:$0xee]
      %v4238 = vld [vmem:[%s274 + $0x30] sm:$0xee]
      %v4239 = vld [vmem:[%s274 + $0x48] sm:$0xee]
      %v4240 = vld [vmem:[%s274 + $0x60] sm:$0xee]
      %v4241 = vld [vmem:[%s274 + $0x78] sm:$0xee]
      %v4242 = vld [vmem:[%s274 + $0x90] sm:$0xee]
      %v4243 = vld [vmem:[%s274 + $0xa8] sm:$0xee]
      %v4244 = vld [vmem:[%s274 + $0xc0] sm:$0xee]
      %v4245 = vld [vmem:[%s274 + $0xd8] sm:$0xee]
      %v4246 = vld [vmem:[%s297] sm:$0xe]
      %v4247 = vld [vmem:[%s297 + $0xc] sm:$0xe]
      %v4248 = vld [vmem:[%s297 + $0x18] sm:$0xe]
      %v4249 = vld [vmem:[%s297 + $0x24] sm:$0xe]
      %v4250 = vld [vmem:[%s297 + $0x30] sm:$0xe]
      %v4251 = vld [vmem:[%s297 + $0x3c] sm:$0xe]
      %v4252 = vld [vmem:[%s297 + $0x48] sm:$0xe]
      %v4253 = vld [vmem:[%s297 + $0x54] sm:$0xe]
      %v4254 = vld [vmem:[%s297 + $0x60] sm:$0xe]
      %v4255 = vld [vmem:[%s297 + $0x6c] sm:$0xe]
      %vm4280 = vcmask 1042432
      %vm4281 = vcmask 1046532
      %vm4282 = vmor %vm4280, %vm4281
      %v4283 = vrot.slane %v4236, 5
      %v4284 = vrot.slane %v4283, 4
      %v4285 = vrot.slane %v1994, 5
      %v4286 = vsel %vm4282, %v4284, %v4285
      %v4287 = vrot.slane %v4285, 4
      %v4288 = vrot.slane %v1995, 5
      %v4289 = vsel %vm4282, %v4287, %v4288
      %v4290 = vrot.slane %v4237, 5
      %v4291 = vrot.slane %v4290, 4
      %v4292 = vrot.slane %v1997, 5
      %v4293 = vsel %vm4282, %v4291, %v4292
      %v4294 = vrot.slane %v4292, 4
      %v4295 = vrot.slane %v1998, 5
      %v4296 = vsel %vm4282, %v4294, %v4295
      %v4297 = vrot.slane %v4238, 5
      %v4298 = vrot.slane %v4297, 4
      %v4299 = vrot.slane %v2000, 5
      %v4300 = vsel %vm4282, %v4298, %v4299
      %v4301 = vrot.slane %v4299, 4
      %v4302 = vrot.slane %v2001, 5
      %v4303 = vsel %vm4282, %v4301, %v4302
      %v4304 = vrot.slane %v4239, 5
      %v4305 = vrot.slane %v4304, 4
      %v4306 = vrot.slane %v2003, 5
      %v4307 = vsel %vm4282, %v4305, %v4306
      %v4308 = vrot.slane %v4306, 4
      %v4309 = vrot.slane %v2004, 5
      %v4310 = vsel %vm4282, %v4308, %v4309
      %v4311 = vrot.slane %v4240, 5
      %v4312 = vrot.slane %v4311, 4
      %v4313 = vrot.slane %v2006, 5
      %v4314 = vsel %vm4282, %v4312, %v4313
      %v4315 = vrot.slane %v4313, 4
      %v4316 = vrot.slane %v2007, 5
      %v4317 = vsel %vm4282, %v4315, %v4316
      %v4318 = vrot.slane %v4241, 5
      %v4319 = vrot.slane %v4318, 4
      %v4320 = vrot.slane %v2009, 5
      %v4321 = vsel %vm4282, %v4319, %v4320
      %v4322 = vrot.slane %v4320, 4
      %v4323 = vrot.slane %v2010, 5
      %v4324 = vsel %vm4282, %v4322, %v4323
      %v4325 = vrot.slane %v4242, 5
      %v4326 = vrot.slane %v4325, 4
      %v4327 = vrot.slane %v2012, 5
      %v4328 = vsel %vm4282, %v4326, %v4327
      %v4329 = vrot.slane %v4327, 4
      %v4330 = vrot.slane %v2013, 5
      %v4331 = vsel %vm4282, %v4329, %v4330
      %v4332 = vrot.slane %v4243, 5
      %v4333 = vrot.slane %v4332, 4
      %v4334 = vrot.slane %v2015, 5
      %v4335 = vsel %vm4282, %v4333, %v4334
      %v4336 = vrot.slane %v4334, 4
      %v4337 = vrot.slane %v2016, 5
      %v4338 = vsel %vm4282, %v4336, %v4337
      %s4339 = scalar_lea.vmem %s2, 512
      %v4340 = vld [vmem:[%s4339] sm:$0xff]
      %v4341 = vld [vmem:[%s4339 + $0x8] sm:$0xff]
      %v4342 = vld [vmem:[%s4339 + $0x10] sm:$0xff]
      %v4343 = vld [vmem:[%s4339 + $0x18] sm:$0xff]
      %v4344 = vld [vmem:[%s4339 + $0x20] sm:$0xff]
      %v4345 = vld [vmem:[%s4339 + $0x28] sm:$0xff]
      %v4346 = vld [vmem:[%s4339 + $0x30] sm:$0xff]
      %v4347 = vld [vmem:[%s4339 + $0x38] sm:$0xff]
      %v4348 = vld [vmem:[%s4339 + $0x40] sm:$0xff]
      %v4349 = vld [vmem:[%s4339 + $0x48] sm:$0xff]
      %v4350 = vld [vmem:[%s4339 + $0x50] sm:$0xff]
      %v4351 = vld [vmem:[%s4339 + $0x58] sm:$0xff]
      %v4352 = vld [vmem:[%s4339 + $0x60] sm:$0xff]
      %v4353 = vld [vmem:[%s4339 + $0x68] sm:$0xff]
      %v4354 = vld [vmem:[%s4339 + $0x70] sm:$0xff]
      %v4355 = vld [vmem:[%s4339 + $0x78] sm:$0xff]
      %v4356 = vld [vmem:[%s4339 + $0x80] sm:$0xff]
      %v4357 = vld [vmem:[%s4339 + $0x88] sm:$0xff]
      %v4358 = vld [vmem:[%s4339 + $0x90] sm:$0xff]
      %v4359 = vld [vmem:[%s4339 + $0x98] sm:$0xff]
      %v4360 = vld [vmem:[%s4339 + $0xa0] sm:$0xff]
      %v4361 = vld [vmem:[%s4339 + $0xa8] sm:$0xff]
      %v4362 = vld [vmem:[%s4339 + $0xb0] sm:$0xff]
      %v4363 = vld [vmem:[%s4339 + $0xb8] sm:$0xff]
      %v4364 = vld [vmem:[%s4339 + $0xc0] sm:$0xff]
      %v4365 = vld [vmem:[%s4339 + $0xc8] sm:$0xff]
      %v4366 = vld [vmem:[%s4339 + $0xd0] sm:$0xff]
      %v4367 = vld [vmem:[%s4339 + $0xd8] sm:$0xff]
      %v4368 = vld [vmem:[%s4339 + $0xe0] sm:$0xff]
      %v4369 = vld [vmem:[%s4339 + $0xe8] sm:$0xff]
      %v4370 = vld [vmem:[%s4339 + $0xf0] sm:$0xff]
      %v4371 = vld [vmem:[%s4339 + $0xf8] sm:$0xff]
      %v4372 = vunpack.c.l.b16 %v4286
      %v4373 = vunpack.c.h.b16 %v4286
      %v4374 = vunpack.c.l.b16 %v4289
      %v4375 = vunpack.c.h.b16 %v4289
      %v4376 = vunpack.c.l.b16 %v4293
      %v4377 = vunpack.c.h.b16 %v4293
      %v4378 = vunpack.c.l.b16 %v4296
      %v4379 = vunpack.c.h.b16 %v4296
      %v4380 = vunpack.c.l.b16 %v4300
      %v4381 = vunpack.c.h.b16 %v4300
      %v4382 = vunpack.c.l.b16 %v4303
      %v4383 = vunpack.c.h.b16 %v4303
      %v4384 = vunpack.c.l.b16 %v4307
      %v4385 = vunpack.c.h.b16 %v4307
      %v4386 = vunpack.c.l.b16 %v4310
      %v4387 = vunpack.c.h.b16 %v4310
      %v4388 = vunpack.c.l.b16 %v4314
      %v4389 = vunpack.c.h.b16 %v4314
      %v4390 = vunpack.c.l.b16 %v4317
      %v4391 = vunpack.c.h.b16 %v4317
      %v4392 = vunpack.c.l.b16 %v4321
      %v4393 = vunpack.c.h.b16 %v4321
      %v4394 = vunpack.c.l.b16 %v4324
      %v4395 = vunpack.c.h.b16 %v4324
      %v4396 = vunpack.c.l.b16 %v4328
      %v4397 = vunpack.c.h.b16 %v4328
      %v4398 = vunpack.c.l.b16 %v4331
      %v4399 = vunpack.c.h.b16 %v4331
      %v4400 = vunpack.c.l.b16 %v4335
      %v4401 = vunpack.c.h.b16 %v4335
      %v4402 = vunpack.c.l.b16 %v4338
      %v4403 = vunpack.c.h.b16 %v4338
      %v4404 = vpack.c.b16 %v4374, %v4372
      %v4405 = vpack.c.b16 %v4375, %v4373
      %v4406 = vpack.c.b16 %v4378, %v4376
      %v4407 = vpack.c.b16 %v4379, %v4377
      %v4408 = vpack.c.b16 %v4382, %v4380
      %v4409 = vpack.c.b16 %v4383, %v4381
      %v4410 = vpack.c.b16 %v4386, %v4384
      %v4411 = vpack.c.b16 %v4387, %v4385
      %v4412 = vpack.c.b16 %v4390, %v4388
      %v4413 = vpack.c.b16 %v4391, %v4389
      %v4414 = vpack.c.b16 %v4394, %v4392
      %v4415 = vpack.c.b16 %v4395, %v4393
      %v4416 = vpack.c.b16 %v4398, %v4396
      %v4417 = vpack.c.b16 %v4399, %v4397
      %v4418 = vpack.c.b16 %v4402, %v4400
      %v4419 = vpack.c.b16 %v4403, %v4401
      %v4468 = vunpack.c.l.b16 %v4340
      %v4469 = vunpack.c.h.b16 %v4340
      %v4470 = vunpack.c.l.b16 %v4341
      %v4471 = vunpack.c.h.b16 %v4341
      %v4472 = vunpack.c.l.b16 %v4342
      %v4473 = vunpack.c.h.b16 %v4342
      %v4474 = vunpack.c.l.b16 %v4343
      %v4475 = vunpack.c.h.b16 %v4343
      %v4476 = vunpack.c.l.b16 %v4344
      %v4477 = vunpack.c.h.b16 %v4344
      %v4478 = vunpack.c.l.b16 %v4345
      %v4479 = vunpack.c.h.b16 %v4345
      %v4480 = vunpack.c.l.b16 %v4346
      %v4481 = vunpack.c.h.b16 %v4346
      %v4482 = vunpack.c.l.b16 %v4347
      %v4483 = vunpack.c.h.b16 %v4347
      %v4484 = vunpack.c.l.b16 %v4348
      %v4485 = vunpack.c.h.b16 %v4348
      %v4486 = vunpack.c.l.b16 %v4349
      %v4487 = vunpack.c.h.b16 %v4349
      %v4488 = vunpack.c.l.b16 %v4350
      %v4489 = vunpack.c.h.b16 %v4350
      %v4490 = vunpack.c.l.b16 %v4351
      %v4491 = vunpack.c.h.b16 %v4351
      %v4492 = vunpack.c.l.b16 %v4352
      %v4493 = vunpack.c.h.b16 %v4352
      %v4494 = vunpack.c.l.b16 %v4353
      %v4495 = vunpack.c.h.b16 %v4353
      %v4496 = vunpack.c.l.b16 %v4354
      %v4497 = vunpack.c.h.b16 %v4354
      %v4498 = vunpack.c.l.b16 %v4355
      %v4499 = vunpack.c.h.b16 %v4355
      %v4500 = vunpack.c.l.b16 %v4356
      %v4501 = vunpack.c.h.b16 %v4356
      %v4502 = vunpack.c.l.b16 %v4357
      %v4503 = vunpack.c.h.b16 %v4357
      %v4504 = vunpack.c.l.b16 %v4358
      %v4505 = vunpack.c.h.b16 %v4358
      %v4506 = vunpack.c.l.b16 %v4359
      %v4507 = vunpack.c.h.b16 %v4359
      %v4508 = vunpack.c.l.b16 %v4360
      %v4509 = vunpack.c.h.b16 %v4360
      %v4510 = vunpack.c.l.b16 %v4361
      %v4511 = vunpack.c.h.b16 %v4361
      %v4512 = vunpack.c.l.b16 %v4362
      %v4513 = vunpack.c.h.b16 %v4362
      %v4514 = vunpack.c.l.b16 %v4363
      %v4515 = vunpack.c.h.b16 %v4363
      %v4516 = vunpack.c.l.b16 %v4364
      %v4517 = vunpack.c.h.b16 %v4364
      %v4518 = vunpack.c.l.b16 %v4365
      %v4519 = vunpack.c.h.b16 %v4365
      %v4520 = vunpack.c.l.b16 %v4366
      %v4521 = vunpack.c.h.b16 %v4366
      %v4522 = vunpack.c.l.b16 %v4367
      %v4523 = vunpack.c.h.b16 %v4367
      %v4524 = vunpack.c.l.b16 %v4368
      %v4525 = vunpack.c.h.b16 %v4368
      %v4526 = vunpack.c.l.b16 %v4369
      %v4527 = vunpack.c.h.b16 %v4369
      %v4528 = vunpack.c.l.b16 %v4370
      %v4529 = vunpack.c.h.b16 %v4370
      %v4530 = vunpack.c.l.b16 %v4371
      %v4531 = vunpack.c.h.b16 %v4371
      %v4532 = vpack.c.b16 %v4470, %v4468
      %v4533 = vpack.c.b16 %v4471, %v4469
      %v4534 = vpack.c.b16 %v4474, %v4472
      %v4535 = vpack.c.b16 %v4475, %v4473
      %v4536 = vpack.c.b16 %v4478, %v4476
      %v4537 = vpack.c.b16 %v4479, %v4477
      %v4538 = vpack.c.b16 %v4482, %v4480
      %v4539 = vpack.c.b16 %v4483, %v4481
      %v4540 = vpack.c.b16 %v4486, %v4484
      %v4541 = vpack.c.b16 %v4487, %v4485
      %v4542 = vpack.c.b16 %v4490, %v4488
      %v4543 = vpack.c.b16 %v4491, %v4489
      %v4544 = vpack.c.b16 %v4494, %v4492
      %v4545 = vpack.c.b16 %v4495, %v4493
      %v4546 = vpack.c.b16 %v4498, %v4496
      %v4547 = vpack.c.b16 %v4499, %v4497
      %v4548 = vpack.c.b16 %v4502, %v4500
      %v4549 = vpack.c.b16 %v4503, %v4501
      %v4550 = vpack.c.b16 %v4506, %v4504
      %v4551 = vpack.c.b16 %v4507, %v4505
      %v4552 = vpack.c.b16 %v4510, %v4508
      %v4553 = vpack.c.b16 %v4511, %v4509
      %v4554 = vpack.c.b16 %v4514, %v4512
      %v4555 = vpack.c.b16 %v4515, %v4513
      %v4556 = vpack.c.b16 %v4518, %v4516
      %v4557 = vpack.c.b16 %v4519, %v4517
      %v4558 = vpack.c.b16 %v4522, %v4520
      %v4559 = vpack.c.b16 %v4523, %v4521
      %v4560 = vpack.c.b16 %v4526, %v4524
      %v4561 = vpack.c.b16 %v4527, %v4525
      %v4562 = vpack.c.b16 %v4530, %v4528
      %v4563 = vpack.c.b16 %v4531, %v4529
      %4596 = vmatprep.subr.bf16.mxu0 %v4533
      %4597 = vmatpush1.bf16.msra.mxu0 %v4532
      %4598 = vmatprep.subr.bf16.mxu0 %v4535
      %4599 = vmatpush1.bf16.msra.mxu0 %v4534
      %4600 = vmatprep.subr.bf16.mxu0 %v4537
      %4601 = vmatpush1.bf16.msra.mxu0 %v4536
      %4602 = vmatprep.subr.bf16.mxu0 %v4539
      %4603 = vmatpush1.bf16.msra.mxu0 %v4538
      %4604 = vmatprep.subr.bf16.mxu0 %v4541
      %4605 = vmatpush1.bf16.msra.mxu0 %v4540
      %4606 = vmatprep.subr.bf16.mxu0 %v4543
      %4607 = vmatpush1.bf16.msra.mxu0 %v4542
      %4608 = vmatprep.subr.bf16.mxu0 %v4545
      %4609 = vmatpush1.bf16.msra.mxu0 %v4544
      %4610 = vmatprep.subr.bf16.mxu0 %v4547
      %4611 = vmatpush1.bf16.msra.mxu0 %v4546
      %4612 = vmatprep.subr.bf16.mxu0 %v4549
      %4613 = vmatpush1.bf16.msra.mxu0 %v4548
      %4614 = vmatprep.subr.bf16.mxu0 %v4551
      %4615 = vmatpush1.bf16.msra.mxu0 %v4550
      %4616 = vmatprep.subr.bf16.mxu0 %v4553
      %4617 = vmatpush1.bf16.msra.mxu0 %v4552
      %4618 = vmatprep.subr.bf16.mxu0 %v4555
      %4619 = vmatpush1.bf16.msra.mxu0 %v4554
      %4620 = vmatprep.subr.bf16.mxu0 %v4557
      %4621 = vmatpush1.bf16.msra.mxu0 %v4556
      %4622 = vmatprep.subr.bf16.mxu0 %v4559
      %4623 = vmatpush1.bf16.msra.mxu0 %v4558
      %4624 = vmatprep.subr.bf16.mxu0 %v4561
      %4625 = vmatpush1.bf16.msra.mxu0 %v4560
      %4626 = vmatprep.subr.bf16.mxu0 %v4563
      %4627 = vmatpush1.bf16.msra.mxu0 %v4562
      %4628 = vmatprep.mubr.bf16.mxu0 %v4405
      %4629 = vmatmul.mubr.bf16.gmra.mrb[0].mxu0 %v4404
      %v4630 = vpop.f32.mrb[0].mxu0
      %v4631 = vadd.f32 0.0, %v4630
      %v4632 = vpop.f32.mrb[0].mxu0
      %v4633 = vadd.f32 0.0, %v4632
      %v4634 = vpop.f32.mrb[0].mxu0
      %v4635 = vadd.f32 0.0, %v4634
      %v4636 = vpop.f32.mrb[0].mxu0
      %v4637 = vadd.f32 0.0, %v4636
      %4638 = vmatprep.mubr.bf16.mxu0 %v4407
      %4639 = vmatmul.mubr.bf16.gmra.mrb[0].mxu0 %v4406
      %v4640 = vpop.f32.mrb[0].mxu0
      %v4641 = vadd.f32 0.0, %v4640
      %v4642 = vpop.f32.mrb[0].mxu0
      %v4643 = vadd.f32 0.0, %v4642
      %v4644 = vpop.f32.mrb[0].mxu0
      %v4645 = vadd.f32 0.0, %v4644
      %v4646 = vpop.f32.mrb[0].mxu0
      %v4647 = vadd.f32 0.0, %v4646
      %4648 = vmatprep.mubr.bf16.mxu0 %v4409
      %4649 = vmatmul.mubr.bf16.gmra.mrb[0].mxu0 %v4408
      %v4650 = vpop.f32.mrb[0].mxu0
      %v4651 = vadd.f32 0.0, %v4650
      %v4652 = vpop.f32.mrb[0].mxu0
      %v4653 = vadd.f32 0.0, %v4652
      %v4654 = vpop.f32.mrb[0].mxu0
      %v4655 = vadd.f32 0.0, %v4654
      %v4656 = vpop.f32.mrb[0].mxu0
      %v4657 = vadd.f32 0.0, %v4656
      %4658 = vmatprep.mubr.bf16.mxu0 %v4411
      %4659 = vmatmul.mubr.bf16.gmra.mrb[0].mxu0 %v4410
      %v4660 = vpop.f32.mrb[0].mxu0
      %v4661 = vadd.f32 0.0, %v4660
      %v4662 = vpop.f32.mrb[0].mxu0
      %v4663 = vadd.f32 0.0, %v4662
      %v4664 = vpop.f32.mrb[0].mxu0
      %v4665 = vadd.f32 0.0, %v4664
      %v4666 = vpop.f32.mrb[0].mxu0
      %v4667 = vadd.f32 0.0, %v4666
      %4668 = vmatprep.mubr.bf16.mxu0 %v4413
      %4669 = vmatmul.mubr.bf16.gmra.mrb[0].mxu0 %v4412
      %v4670 = vpop.f32.mrb[0].mxu0
      %v4671 = vadd.f32 0.0, %v4670
      %v4672 = vpop.f32.mrb[0].mxu0
      %v4673 = vadd.f32 0.0, %v4672
      %v4674 = vpop.f32.mrb[0].mxu0
      %v4675 = vadd.f32 0.0, %v4674
      %v4676 = vpop.f32.mrb[0].mxu0
      %v4677 = vadd.f32 0.0, %v4676
      %4678 = vmatprep.mubr.bf16.mxu0 %v4415
      %4679 = vmatmul.mubr.bf16.gmra.mrb[0].mxu0 %v4414
      %v4680 = vpop.f32.mrb[0].mxu0
      %v4681 = vadd.f32 0.0, %v4680
      %v4682 = vpop.f32.mrb[0].mxu0
      %v4683 = vadd.f32 0.0, %v4682
      %v4684 = vpop.f32.mrb[0].mxu0
      %v4685 = vadd.f32 0.0, %v4684
      %v4686 = vpop.f32.mrb[0].mxu0
      %v4687 = vadd.f32 0.0, %v4686
      %4688 = vmatprep.mubr.bf16.mxu0 %v4417
      %4689 = vmatmul.mubr.bf16.gmra.mrb[0].mxu0 %v4416
      %v4690 = vpop.f32.mrb[0].mxu0
      %v4691 = vadd.f32 0.0, %v4690
      %v4692 = vpop.f32.mrb[0].mxu0
      %v4693 = vadd.f32 0.0, %v4692
      %v4694 = vpop.f32.mrb[0].mxu0
      %v4695 = vadd.f32 0.0, %v4694
      %v4696 = vpop.f32.mrb[0].mxu0
      %v4697 = vadd.f32 0.0, %v4696
      %4698 = vmatprep.mubr.bf16.mxu0 %v4419
      %4699 = vmatmul.mubr.bf16.gmra.mrb[0].mxu0 %v4418
      %v4700 = vpop.f32.mrb[0].mxu0
      %v4701 = vadd.f32 0.0, %v4700
      %v4702 = vpop.f32.mrb[0].mxu0
      %v4703 = vadd.f32 0.0, %v4702
      %v4704 = vpop.f32.mrb[0].mxu0
      %v4705 = vadd.f32 0.0, %v4704
      %v4706 = vpop.f32.mrb[0].mxu0
      %v4707 = vadd.f32 0.0, %v4706
      %4708 = vdwg.mxu0
      %v4709 = vadd.f32 %v4204, %v4631
      %v4710 = vadd.f32 %v4205, %v4633
      %v4711 = vadd.f32 %v4206, %v4635
      %v4712 = vadd.f32 %v4207, %v4637
      %v4713 = vadd.f32 %v4208, %v4641
      %v4714 = vadd.f32 %v4209, %v4643
      %v4715 = vadd.f32 %v4210, %v4645
      %v4716 = vadd.f32 %v4211, %v4647
      %v4717 = vadd.f32 %v4212, %v4651
      %v4718 = vadd.f32 %v4213, %v4653
      %v4719 = vadd.f32 %v4214, %v4655
      %v4720 = vadd.f32 %v4215, %v4657
      %v4721 = vadd.f32 %v4216, %v4661
      %v4722 = vadd.f32 %v4217, %v4663
      %v4723 = vadd.f32 %v4218, %v4665
      %v4724 = vadd.f32 %v4219, %v4667
      %v4725 = vadd.f32 %v4220, %v4671
      %v4726 = vadd.f32 %v4221, %v4673
      %v4727 = vadd.f32 %v4222, %v4675
      %v4728 = vadd.f32 %v4223, %v4677
      %v4729 = vadd.f32 %v4224, %v4681
      %v4730 = vadd.f32 %v4225, %v4683
      %v4731 = vadd.f32 %v4226, %v4685
      %v4732 = vadd.f32 %v4227, %v4687
      %v4733 = vadd.f32 %v4228, %v4691
      %v4734 = vadd.f32 %v4229, %v4693
      %v4735 = vadd.f32 %v4230, %v4695
      %v4736 = vadd.f32 %v4231, %v4697
      %v4737 = vadd.f32 %v4232, %v4701
      %v4738 = vadd.f32 %v4233, %v4703
      %v4739 = vadd.f32 %v4234, %v4705
      %v4740 = vadd.f32 %v4235, %v4707
      %v4765 = vrot.slane %v4246, 5
      %v4766 = vrot.slane %v4765, 4
      %v4767 = vrot.slane %v2024, 5
      %v4768 = vsel %vm4282, %v4766, %v4767
      %v4769 = vrot.slane %v4767, 4
      %v4770 = vrot.slane %v2025, 5
      %v4771 = vsel %vm4282, %v4769, %v4770
      %v4772 = vrot.slane %v4247, 5
      %v4773 = vrot.slane %v4772, 4
      %v4774 = vrot.slane %v2027, 5
      %v4775 = vsel %vm4282, %v4773, %v4774
      %v4776 = vrot.slane %v4774, 4
      %v4777 = vrot.slane %v2028, 5
      %v4778 = vsel %vm4282, %v4776, %v4777
      %v4779 = vrot.slane %v4248, 5
      %v4780 = vrot.slane %v4779, 4
      %v4781 = vrot.slane %v2030, 5
      %v4782 = vsel %vm4282, %v4780, %v4781
      %v4783 = vrot.slane %v4781, 4
      %v4784 = vrot.slane %v2031, 5
      %v4785 = vsel %vm4282, %v4783, %v4784
      %v4786 = vrot.slane %v4249, 5
      %v4787 = vrot.slane %v4786, 4
      %v4788 = vrot.slane %v2033, 5
      %v4789 = vsel %vm4282, %v4787, %v4788
      %v4790 = vrot.slane %v4788, 4
      %v4791 = vrot.slane %v2034, 5
      %v4792 = vsel %vm4282, %v4790, %v4791
      %v4793 = vrot.slane %v4250, 5
      %v4794 = vrot.slane %v4793, 4
      %v4795 = vrot.slane %v2036, 5
      %v4796 = vsel %vm4282, %v4794, %v4795
      %v4797 = vrot.slane %v4795, 4
      %v4798 = vrot.slane %v2037, 5
      %v4799 = vsel %vm4282, %v4797, %v4798
      %v4800 = vrot.slane %v4251, 5
      %v4801 = vrot.slane %v4800, 4
      %v4802 = vrot.slane %v2039, 5
      %v4803 = vsel %vm4282, %v4801, %v4802
      %v4804 = vrot.slane %v4802, 4
      %v4805 = vrot.slane %v2040, 5
      %v4806 = vsel %vm4282, %v4804, %v4805
      %v4807 = vrot.slane %v4252, 5
      %v4808 = vrot.slane %v4807, 4
      %v4809 = vrot.slane %v2042, 5
      %v4810 = vsel %vm4282, %v4808, %v4809
      %v4811 = vrot.slane %v4809, 4
      %v4812 = vrot.slane %v2043, 5
      %v4813 = vsel %vm4282, %v4811, %v4812
      %v4814 = vrot.slane %v4253, 5
      %v4815 = vrot.slane %v4814, 4
      %v4816 = vrot.slane %v2045, 5
      %v4817 = vsel %vm4282, %v4815, %v4816
      %v4818 = vrot.slane %v4816, 4
      %v4819 = vrot.slane %v2046, 5
      %v4820 = vsel %vm4282, %v4818, %v4819
      %s4821 = scalar_lea.vmem %s3, 96
      %v4822 = vld [vmem:[%s4821] sm:$0xff]
      %v4823 = vld [vmem:[%s4821 + $0x8] sm:$0xff]
      %v4824 = vld [vmem:[%s4821 + $0x10] sm:$0xff]
      %v4825 = vld [vmem:[%s4821 + $0x18] sm:$0xff]
      %v4826 = vld [vmem:[%s4821 + $0x20] sm:$0xff]
      %v4827 = vld [vmem:[%s4821 + $0x28] sm:$0xff]
      %v4828 = vunpack.c.l.b16 %v4768
      %v4829 = vunpack.c.l.b16 %v4771
      %v4830 = vunpack.c.l.b16 %v4775
      %v4831 = vunpack.c.l.b16 %v4778
      %v4832 = vunpack.c.l.b16 %v4782
      %v4833 = vunpack.c.l.b16 %v4785
      %v4834 = vunpack.c.l.b16 %v4789
      %v4835 = vunpack.c.l.b16 %v4792
      %v4836 = vunpack.c.l.b16 %v4796
      %v4837 = vunpack.c.l.b16 %v4799
      %v4838 = vunpack.c.l.b16 %v4803
      %v4839 = vunpack.c.l.b16 %v4806
      %v4840 = vunpack.c.l.b16 %v4810
      %v4841 = vunpack.c.l.b16 %v4813
      %v4842 = vunpack.c.l.b16 %v4817
      %v4843 = vunpack.c.l.b16 %v4820
      %v4844 = vpack.c.b16 %v4829, %v4828
      %v4845 = vpack.c.b16 %v4831, %v4830
      %v4846 = vpack.c.b16 %v4833, %v4832
      %v4847 = vpack.c.b16 %v4835, %v4834
      %v4848 = vpack.c.b16 %v4837, %v4836
      %v4849 = vpack.c.b16 %v4839, %v4838
      %v4850 = vpack.c.b16 %v4841, %v4840
      %v4851 = vpack.c.b16 %v4843, %v4842
      %v4858 = vunpack.c.l.b16 %v4822
      %v4859 = vunpack.c.h.b16 %v4822
      %v4860 = vunpack.c.l.b16 %v4823
      %v4861 = vunpack.c.h.b16 %v4823
      %v4862 = vunpack.c.l.b16 %v4824
      %v4863 = vunpack.c.h.b16 %v4824
      %v4864 = vunpack.c.l.b16 %v4825
      %v4865 = vunpack.c.h.b16 %v4825
      %v4866 = vunpack.c.l.b16 %v4826
      %v4867 = vunpack.c.h.b16 %v4826
      %v4868 = vunpack.c.l.b16 %v4827
      %v4869 = vunpack.c.h.b16 %v4827
      %v4870 = vpack.c.b16 %v4860, %v4858
      %v4871 = vpack.c.b16 %v4861, %v4859
      %v4872 = vpack.c.b16 %v4864, %v4862
      %v4873 = vpack.c.b16 %v4865, %v4863
      %v4874 = vpack.c.b16 %v4868, %v4866
      %v4875 = vpack.c.b16 %v4869, %v4867
      %v4883 = vsel %vm426, %v4844, 0
      %v4886 = vsel %vm426, %v4845, 0
      %v4889 = vsel %vm426, %v4846, 0
      %v4892 = vsel %vm426, %v4847, 0
      %v4895 = vsel %vm426, %v4848, 0
      %v4898 = vsel %vm426, %v4849, 0
      %v4901 = vsel %vm426, %v4850, 0
      %v4904 = vsel %vm426, %v4851, 0
      %4906 = vmatprep.subr.bf16.mxu0 %v4871
      %4907 = vmatpush1.bf16.msra.mxu0 %v4870
      %4908 = vmatprep.subr.bf16.mxu0 %v4873
      %4909 = vmatpush1.bf16.msra.mxu0 %v4872
      %4910 = vmatprep.subr.bf16.mxu0 %v4875
      %4911 = vmatpush1.bf16.msra.mxu0 %v4874
      %4912 = vmatprep.subr.bf16.mxu0 0
      %4913 = vmatpush1.bf16.msra.mxu0 0
      %4914 = vmatprep.subr.bf16.mxu0 0
      %4915 = vmatpush1.bf16.msra.mxu0 0
      %4916 = vmatprep.subr.bf16.mxu0 0
      %4917 = vmatpush1.bf16.msra.mxu0 0
      %4918 = vmatprep.subr.bf16.mxu0 0
      %4919 = vmatpush1.bf16.msra.mxu0 0
      %4920 = vmatprep.subr.bf16.mxu0 0
      %4921 = vmatpush1.bf16.msra.mxu0 0
      %4922 = vmatprep.subr.bf16.mxu0 0
      %4923 = vmatpush1.bf16.msra.mxu0 0
      %4924 = vmatprep.subr.bf16.mxu0 0
      %4925 = vmatpush1.bf16.msra.mxu0 0
      %4926 = vmatprep.subr.bf16.mxu0 0
      %4927 = vmatpush1.bf16.msra.mxu0 0
      %4928 = vmatprep.subr.bf16.mxu0 0
      %4929 = vmatpush1.bf16.msra.mxu0 0
      %4930 = vmatprep.subr.bf16.mxu0 0
      %4931 = vmatpush1.bf16.msra.mxu0 0
      %4932 = vmatprep.subr.bf16.mxu0 0
      %4933 = vmatpush1.bf16.msra.mxu0 0
      %4934 = vmatprep.subr.bf16.mxu0 0
      %4935 = vmatpush1.bf16.msra.mxu0 0
      %4936 = vmatprep.subr.bf16.mxu0 0
      %4937 = vmatpush1.bf16.msra.mxu0 0
      %4938 = vmatprep.mubr.bf16.mxu0 0
      %4939 = vmatmul.mubr.bf16.gmra.mrb[0].mxu0 %v4883
      %v4940 = vpop.f32.mrb[0].mxu0
      %v4941 = vadd.f32 0.0, %v4940
      %v4942 = vpop.f32.mrb[0].mxu0
      %v4943 = vadd.f32 0.0, %v4942
      %v4944 = vpop.f32.mrb[0].mxu0
      %v4945 = vadd.f32 0.0, %v4944
      %v4946 = vpop.f32.mrb[0].mxu0
      %v4947 = vadd.f32 0.0, %v4946
      %4948 = vmatprep.mubr.bf16.mxu0 0
      %4949 = vmatmul.mubr.bf16.gmra.mrb[0].mxu0 %v4886
      %v4950 = vpop.f32.mrb[0].mxu0
      %v4951 = vadd.f32 0.0, %v4950
      %v4952 = vpop.f32.mrb[0].mxu0
      %v4953 = vadd.f32 0.0, %v4952
      %v4954 = vpop.f32.mrb[0].mxu0
      %v4955 = vadd.f32 0.0, %v4954
      %v4956 = vpop.f32.mrb[0].mxu0
      %v4957 = vadd.f32 0.0, %v4956
      %4958 = vmatprep.mubr.bf16.mxu0 0
      %4959 = vmatmul.mubr.bf16.gmra.mrb[0].mxu0 %v4889
      %v4960 = vpop.f32.mrb[0].mxu0
      %v4961 = vadd.f32 0.0, %v4960
      %v4962 = vpop.f32.mrb[0].mxu0
      %v4963 = vadd.f32 0.0, %v4962
      %v4964 = vpop.f32.mrb[0].mxu0
      %v4965 = vadd.f32 0.0, %v4964
      %v4966 = vpop.f32.mrb[0].mxu0
      %v4967 = vadd.f32 0.0, %v4966
      %4968 = vmatprep.mubr.bf16.mxu0 0
      %4969 = vmatmul.mubr.bf16.gmra.mrb[0].mxu0 %v4892
      %v4970 = vpop.f32.mrb[0].mxu0
      %v4971 = vadd.f32 0.0, %v4970
      %v4972 = vpop.f32.mrb[0].mxu0
      %v4973 = vadd.f32 0.0, %v4972
      %v4974 = vpop.f32.mrb[0].mxu0
      %v4975 = vadd.f32 0.0, %v4974
      %v4976 = vpop.f32.mrb[0].mxu0
      %v4977 = vadd.f32 0.0, %v4976
      %4978 = vmatprep.mubr.bf16.mxu0 0
      %4979 = vmatmul.mubr.bf16.gmra.mrb[0].mxu0 %v4895
      %v4980 = vpop.f32.mrb[0].mxu0
      %v4981 = vadd.f32 0.0, %v4980
      %v4982 = vpop.f32.mrb[0].mxu0
      %v4983 = vadd.f32 0.0, %v4982
      %v4984 = vpop.f32.mrb[0].mxu0
      %v4985 = vadd.f32 0.0, %v4984
      %v4986 = vpop.f32.mrb[0].mxu0
      %v4987 = vadd.f32 0.0, %v4986
      %4988 = vmatprep.mubr.bf16.mxu0 0
      %4989 = vmatmul.mubr.bf16.gmra.mrb[0].mxu0 %v4898
      %v4990 = vpop.f32.mrb[0].mxu0
      %v4991 = vadd.f32 0.0, %v4990
      %v4992 = vpop.f32.mrb[0].mxu0
      %v4993 = vadd.f32 0.0, %v4992
      %v4994 = vpop.f32.mrb[0].mxu0
      %v4995 = vadd.f32 0.0, %v4994
      %v4996 = vpop.f32.mrb[0].mxu0
      %v4997 = vadd.f32 0.0, %v4996
      %4998 = vmatprep.mubr.bf16.mxu0 0
      %4999 = vmatmul.mubr.bf16.gmra.mrb[0].mxu0 %v4901
      %v5000 = vpop.f32.mrb[0].mxu0
      %v5001 = vadd.f32 0.0, %v5000
      %v5002 = vpop.f32.mrb[0].mxu0
      %v5003 = vadd.f32 0.0, %v5002
      %v5004 = vpop.f32.mrb[0].mxu0
      %v5005 = vadd.f32 0.0, %v5004
      %v5006 = vpop.f32.mrb[0].mxu0
      %v5007 = vadd.f32 0.0, %v5006
      %5008 = vmatprep.mubr.bf16.mxu0 0
      %5009 = vmatmul.mubr.bf16.gmra.mrb[0].mxu0 %v4904
      %v5010 = vpop.f32.mrb[0].mxu0
      %v5011 = vadd.f32 0.0, %v5010
      %v5012 = vpop.f32.mrb[0].mxu0
      %v5013 = vadd.f32 0.0, %v5012
      %v5014 = vpop.f32.mrb[0].mxu0
      %v5015 = vadd.f32 0.0, %v5014
      %v5016 = vpop.f32.mrb[0].mxu0
      %v5017 = vadd.f32 0.0, %v5016
      %5018 = vdwg.mxu0
      %v5019 = vadd.f32 %v4709, %v4941
      %v5020 = vadd.f32 %v4710, %v4943
      %v5021 = vadd.f32 %v4711, %v4945
      %v5022 = vadd.f32 %v4712, %v4947
      %v5023 = vadd.f32 %v4713, %v4951
      %v5024 = vadd.f32 %v4714, %v4953
      %v5025 = vadd.f32 %v4715, %v4955
      %v5026 = vadd.f32 %v4716, %v4957
      %v5027 = vadd.f32 %v4717, %v4961
      %v5028 = vadd.f32 %v4718, %v4963
      %v5029 = vadd.f32 %v4719, %v4965
      %v5030 = vadd.f32 %v4720, %v4967
      %v5031 = vadd.f32 %v4721, %v4971
      %v5032 = vadd.f32 %v4722, %v4973
      %v5033 = vadd.f32 %v4723, %v4975
      %v5034 = vadd.f32 %v4724, %v4977
      %v5035 = vadd.f32 %v4725, %v4981
      %v5036 = vadd.f32 %v4726, %v4983
      %v5037 = vadd.f32 %v4727, %v4985
      %v5038 = vadd.f32 %v4728, %v4987
      %v5039 = vadd.f32 %v4729, %v4991
      %v5040 = vadd.f32 %v4730, %v4993
      %v5041 = vadd.f32 %v4731, %v4995
      %v5042 = vadd.f32 %v4732, %v4997
      %v5043 = vadd.f32 %v4733, %v5001
      %v5044 = vadd.f32 %v4734, %v5003
      %v5045 = vadd.f32 %v4735, %v5005
      %v5046 = vadd.f32 %v4736, %v5007
      %v5047 = vadd.f32 %v4737, %v5011
      %v5048 = vadd.f32 %v4738, %v5013
      %v5049 = vadd.f32 %v4739, %v5015
      %v5050 = vadd.f32 %v4740, %v5017
      %v5054 = vrot.slane %v4244, 5
      %v5055 = vrot.slane %v5054, 4
      %v5056 = vrot.slane %v2018, 5
      %v5057 = vsel %vm4282, %v5055, %v5056
      %v5058 = vrot.slane %v5056, 4
      %v5059 = vrot.slane %v2019, 5
      %v5060 = vsel %vm4282, %v5058, %v5059
      %s5061 = scalar_lea.vmem %s2, 1280
      %v5062 = vld [vmem:[%s5061] sm:$0xff]
      %v5063 = vld [vmem:[%s5061 + $0x8] sm:$0xff]
      %v5064 = vld [vmem:[%s5061 + $0x10] sm:$0xff]
      %v5065 = vld [vmem:[%s5061 + $0x18] sm:$0xff]
      %v5066 = vld [vmem:[%s5061 + $0x20] sm:$0xff]
      %v5067 = vld [vmem:[%s5061 + $0x28] sm:$0xff]
      %v5068 = vld [vmem:[%s5061 + $0x30] sm:$0xff]
      %v5069 = vld [vmem:[%s5061 + $0x38] sm:$0xff]
      %v5070 = vld [vmem:[%s5061 + $0x40] sm:$0xff]
      %v5071 = vld [vmem:[%s5061 + $0x48] sm:$0xff]
      %v5072 = vld [vmem:[%s5061 + $0x50] sm:$0xff]
      %v5073 = vld [vmem:[%s5061 + $0x58] sm:$0xff]
      %v5074 = vld [vmem:[%s5061 + $0x60] sm:$0xff]
      %v5075 = vld [vmem:[%s5061 + $0x68] sm:$0xff]
      %v5076 = vld [vmem:[%s5061 + $0x70] sm:$0xff]
      %v5077 = vld [vmem:[%s5061 + $0x78] sm:$0xff]
      %v5078 = vld [vmem:[%s5061 + $0x80] sm:$0xff]
      %v5079 = vld [vmem:[%s5061 + $0x88] sm:$0xff]
      %v5080 = vld [vmem:[%s5061 + $0x90] sm:$0xff]
      %v5081 = vld [vmem:[%s5061 + $0x98] sm:$0xff]
      %v5082 = vld [vmem:[%s5061 + $0xa0] sm:$0xff]
      %v5083 = vld [vmem:[%s5061 + $0xa8] sm:$0xff]
      %v5084 = vld [vmem:[%s5061 + $0xb0] sm:$0xff]
      %v5085 = vld [vmem:[%s5061 + $0xb8] sm:$0xff]
      %v5086 = vld [vmem:[%s5061 + $0xc0] sm:$0xff]
      %v5087 = vld [vmem:[%s5061 + $0xc8] sm:$0xff]
      %v5088 = vld [vmem:[%s5061 + $0xd0] sm:$0xff]
      %v5089 = vld [vmem:[%s5061 + $0xd8] sm:$0xff]
      %v5090 = vld [vmem:[%s5061 + $0xe0] sm:$0xff]
      %v5091 = vld [vmem:[%s5061 + $0xe8] sm:$0xff]
      %v5092 = vld [vmem:[%s5061 + $0xf0] sm:$0xff]
      %v5093 = vld [vmem:[%s5061 + $0xf8] sm:$0xff]
      %v5094 = vunpack.c.l.b16 %v5057
      %v5095 = vunpack.c.h.b16 %v5057
      %v5096 = vunpack.c.l.b16 %v5060
      %v5097 = vunpack.c.h.b16 %v5060
      %v5098 = vpack.c.b16 %v5096, %v5094
      %v5099 = vpack.c.b16 %v5097, %v5095
      %v5134 = vunpack.c.l.b16 %v5062
      %v5135 = vunpack.c.h.b16 %v5062
      %v5136 = vunpack.c.l.b16 %v5063
      %v5137 = vunpack.c.h.b16 %v5063
      %v5138 = vunpack.c.l.b16 %v5064
      %v5139 = vunpack.c.h.b16 %v5064
      %v5140 = vunpack.c.l.b16 %v5065
      %v5141 = vunpack.c.h.b16 %v5065
      %v5142 = vunpack.c.l.b16 %v5066
      %v5143 = vunpack.c.h.b16 %v5066
      %v5144 = vunpack.c.l.b16 %v5067
      %v5145 = vunpack.c.h.b16 %v5067
      %v5146 = vunpack.c.l.b16 %v5068
      %v5147 = vunpack.c.h.b16 %v5068
      %v5148 = vunpack.c.l.b16 %v5069
      %v5149 = vunpack.c.h.b16 %v5069
      %v5150 = vunpack.c.l.b16 %v5070
      %v5151 = vunpack.c.h.b16 %v5070
      %v5152 = vunpack.c.l.b16 %v5071
      %v5153 = vunpack.c.h.b16 %v5071
      %v5154 = vunpack.c.l.b16 %v5072
      %v5155 = vunpack.c.h.b16 %v5072
      %v5156 = vunpack.c.l.b16 %v5073
      %v5157 = vunpack.c.h.b16 %v5073
      %v5158 = vunpack.c.l.b16 %v5074
      %v5159 = vunpack.c.h.b16 %v5074
      %v5160 = vunpack.c.l.b16 %v5075
      %v5161 = vunpack.c.h.b16 %v5075
      %v5162 = vunpack.c.l.b16 %v5076
      %v5163 = vunpack.c.h.b16 %v5076
      %v5164 = vunpack.c.l.b16 %v5077
      %v5165 = vunpack.c.h.b16 %v5077
      %v5166 = vunpack.c.l.b16 %v5078
      %v5167 = vunpack.c.h.b16 %v5078
      %v5168 = vunpack.c.l.b16 %v5079
      %v5169 = vunpack.c.h.b16 %v5079
      %v5170 = vunpack.c.l.b16 %v5080
      %v5171 = vunpack.c.h.b16 %v5080
      %v5172 = vunpack.c.l.b16 %v5081
      %v5173 = vunpack.c.h.b16 %v5081
      %v5174 = vunpack.c.l.b16 %v5082
      %v5175 = vunpack.c.h.b16 %v5082
      %v5176 = vunpack.c.l.b16 %v5083
      %v5177 = vunpack.c.h.b16 %v5083
      %v5178 = vunpack.c.l.b16 %v5084
      %v5179 = vunpack.c.h.b16 %v5084
      %v5180 = vunpack.c.l.b16 %v5085
      %v5181 = vunpack.c.h.b16 %v5085
      %v5182 = vunpack.c.l.b16 %v5086
      %v5183 = vunpack.c.h.b16 %v5086
      %v5184 = vunpack.c.l.b16 %v5087
      %v5185 = vunpack.c.h.b16 %v5087
      %v5186 = vunpack.c.l.b16 %v5088
      %v5187 = vunpack.c.h.b16 %v5088
      %v5188 = vunpack.c.l.b16 %v5089
      %v5189 = vunpack.c.h.b16 %v5089
      %v5190 = vunpack.c.l.b16 %v5090
      %v5191 = vunpack.c.h.b16 %v5090
      %v5192 = vunpack.c.l.b16 %v5091
      %v5193 = vunpack.c.h.b16 %v5091
      %v5194 = vunpack.c.l.b16 %v5092
      %v5195 = vunpack.c.h.b16 %v5092
      %v5196 = vunpack.c.l.b16 %v5093
      %v5197 = vunpack.c.h.b16 %v5093
      %v5198 = vpack.c.b16 %v5136, %v5134
      %v5199 = vpack.c.b16 %v5137, %v5135
      %v5200 = vpack.c.b16 %v5140, %v5138
      %v5201 = vpack.c.b16 %v5141, %v5139
      %v5202 = vpack.c.b16 %v5144, %v5142
      %v5203 = vpack.c.b16 %v5145, %v5143
      %v5204 = vpack.c.b16 %v5148, %v5146
      %v5205 = vpack.c.b16 %v5149, %v5147
      %v5206 = vpack.c.b16 %v5152, %v5150
      %v5207 = vpack.c.b16 %v5153, %v5151
      %v5208 = vpack.c.b16 %v5156, %v5154
      %v5209 = vpack.c.b16 %v5157, %v5155
      %v5210 = vpack.c.b16 %v5160, %v5158
      %v5211 = vpack.c.b16 %v5161, %v5159
      %v5212 = vpack.c.b16 %v5164, %v5162
      %v5213 = vpack.c.b16 %v5165, %v5163
      %v5214 = vpack.c.b16 %v5168, %v5166
      %v5215 = vpack.c.b16 %v5169, %v5167
      %v5216 = vpack.c.b16 %v5172, %v5170
      %v5217 = vpack.c.b16 %v5173, %v5171
      %v5218 = vpack.c.b16 %v5176, %v5174
      %v5219 = vpack.c.b16 %v5177, %v5175
      %v5220 = vpack.c.b16 %v5180, %v5178
      %v5221 = vpack.c.b16 %v5181, %v5179
      %v5222 = vpack.c.b16 %v5184, %v5182
      %v5223 = vpack.c.b16 %v5185, %v5183
      %v5224 = vpack.c.b16 %v5188, %v5186
      %v5225 = vpack.c.b16 %v5189, %v5187
      %v5226 = vpack.c.b16 %v5192, %v5190
      %v5227 = vpack.c.b16 %v5193, %v5191
      %v5228 = vpack.c.b16 %v5196, %v5194
      %v5229 = vpack.c.b16 %v5197, %v5195
      %5262 = vmatprep.subr.bf16.mxu0 %v5199
      %5263 = vmatpush1.bf16.msra.mxu0 %v5198
      %5264 = vmatprep.subr.bf16.mxu0 %v5201
      %5265 = vmatpush1.bf16.msra.mxu0 %v5200
      %5266 = vmatprep.subr.bf16.mxu0 %v5203
      %5267 = vmatpush1.bf16.msra.mxu0 %v5202
      %5268 = vmatprep.subr.bf16.mxu0 %v5205
      %5269 = vmatpush1.bf16.msra.mxu0 %v5204
      %5270 = vmatprep.subr.bf16.mxu0 %v5207
      %5271 = vmatpush1.bf16.msra.mxu0 %v5206
      %5272 = vmatprep.subr.bf16.mxu0 %v5209
      %5273 = vmatpush1.bf16.msra.mxu0 %v5208
      %5274 = vmatprep.subr.bf16.mxu0 %v5211
      %5275 = vmatpush1.bf16.msra.mxu0 %v5210
      %5276 = vmatprep.subr.bf16.mxu0 %v5213
      %5277 = vmatpush1.bf16.msra.mxu0 %v5212
      %5278 = vmatprep.subr.bf16.mxu0 %v5215
      %5279 = vmatpush1.bf16.msra.mxu0 %v5214
      %5280 = vmatprep.subr.bf16.mxu0 %v5217
      %5281 = vmatpush1.bf16.msra.mxu0 %v5216
      %5282 = vmatprep.subr.bf16.mxu0 %v5219
      %5283 = vmatpush1.bf16.msra.mxu0 %v5218
      %5284 = vmatprep.subr.bf16.mxu0 %v5221
      %5285 = vmatpush1.bf16.msra.mxu0 %v5220
      %5286 = vmatprep.subr.bf16.mxu0 %v5223
      %5287 = vmatpush1.bf16.msra.mxu0 %v5222
      %5288 = vmatprep.subr.bf16.mxu0 %v5225
      %5289 = vmatpush1.bf16.msra.mxu0 %v5224
      %5290 = vmatprep.subr.bf16.mxu0 %v5227
      %5291 = vmatpush1.bf16.msra.mxu0 %v5226
      %5292 = vmatprep.subr.bf16.mxu0 %v5229
      %5293 = vmatpush1.bf16.msra.mxu0 %v5228
      %5294 = vmatprep.mubr.bf16.mxu0 %v4407
      %5295 = vmatmul.mubr.bf16.gmra.mrb[0].mxu0 %v4406
      %v5296 = vpop.f32.mrb[0].mxu0
      %v5297 = vadd.f32 0.0, %v5296
      %v5298 = vpop.f32.mrb[0].mxu0
      %v5299 = vadd.f32 0.0, %v5298
      %v5300 = vpop.f32.mrb[0].mxu0
      %v5301 = vadd.f32 0.0, %v5300
      %v5302 = vpop.f32.mrb[0].mxu0
      %v5303 = vadd.f32 0.0, %v5302
      %5304 = vmatprep.mubr.bf16.mxu0 %v4409
      %5305 = vmatmul.mubr.bf16.gmra.mrb[0].mxu0 %v4408
      %v5306 = vpop.f32.mrb[0].mxu0
      %v5307 = vadd.f32 0.0, %v5306
      %v5308 = vpop.f32.mrb[0].mxu0
      %v5309 = vadd.f32 0.0, %v5308
      %v5310 = vpop.f32.mrb[0].mxu0
      %v5311 = vadd.f32 0.0, %v5310
      %v5312 = vpop.f32.mrb[0].mxu0
      %v5313 = vadd.f32 0.0, %v5312
      %5314 = vmatprep.mubr.bf16.mxu0 %v4411
      %5315 = vmatmul.mubr.bf16.gmra.mrb[0].mxu0 %v4410
      %v5316 = vpop.f32.mrb[0].mxu0
      %v5317 = vadd.f32 0.0, %v5316
      %v5318 = vpop.f32.mrb[0].mxu0
      %v5319 = vadd.f32 0.0, %v5318
      %v5320 = vpop.f32.mrb[0].mxu0
      %v5321 = vadd.f32 0.0, %v5320
      %v5322 = vpop.f32.mrb[0].mxu0
      %v5323 = vadd.f32 0.0, %v5322
      %5324 = vmatprep.mubr.bf16.mxu0 %v4413
      %5325 = vmatmul.mubr.bf16.gmra.mrb[0].mxu0 %v4412
      %v5326 = vpop.f32.mrb[0].mxu0
      %v5327 = vadd.f32 0.0, %v5326
      %v5328 = vpop.f32.mrb[0].mxu0
      %v5329 = vadd.f32 0.0, %v5328
      %v5330 = vpop.f32.mrb[0].mxu0
      %v5331 = vadd.f32 0.0, %v5330
      %v5332 = vpop.f32.mrb[0].mxu0
      %v5333 = vadd.f32 0.0, %v5332
      %5334 = vmatprep.mubr.bf16.mxu0 %v4415
      %5335 = vmatmul.mubr.bf16.gmra.mrb[0].mxu0 %v4414
      %v5336 = vpop.f32.mrb[0].mxu0
      %v5337 = vadd.f32 0.0, %v5336
      %v5338 = vpop.f32.mrb[0].mxu0
      %v5339 = vadd.f32 0.0, %v5338
      %v5340 = vpop.f32.mrb[0].mxu0
      %v5341 = vadd.f32 0.0, %v5340
      %v5342 = vpop.f32.mrb[0].mxu0
      %v5343 = vadd.f32 0.0, %v5342
      %5344 = vmatprep.mubr.bf16.mxu0 %v4417
      %5345 = vmatmul.mubr.bf16.gmra.mrb[0].mxu0 %v4416
      %v5346 = vpop.f32.mrb[0].mxu0
      %v5347 = vadd.f32 0.0, %v5346
      %v5348 = vpop.f32.mrb[0].mxu0
      %v5349 = vadd.f32 0.0, %v5348
      %v5350 = vpop.f32.mrb[0].mxu0
      %v5351 = vadd.f32 0.0, %v5350
      %v5352 = vpop.f32.mrb[0].mxu0
      %v5353 = vadd.f32 0.0, %v5352
      %5354 = vmatprep.mubr.bf16.mxu0 %v4419
      %5355 = vmatmul.mubr.bf16.gmra.mrb[0].mxu0 %v4418
      %v5356 = vpop.f32.mrb[0].mxu0
      %v5357 = vadd.f32 0.0, %v5356
      %v5358 = vpop.f32.mrb[0].mxu0
      %v5359 = vadd.f32 0.0, %v5358
      %v5360 = vpop.f32.mrb[0].mxu0
      %v5361 = vadd.f32 0.0, %v5360
      %v5362 = vpop.f32.mrb[0].mxu0
      %v5363 = vadd.f32 0.0, %v5362
      %5364 = vmatprep.mubr.bf16.mxu0 %v5099
      %5365 = vmatmul.mubr.bf16.gmra.mrb[0].mxu0 %v5098
      %v5366 = vpop.f32.mrb[0].mxu0
      %v5367 = vadd.f32 0.0, %v5366
      %v5368 = vpop.f32.mrb[0].mxu0
      %v5369 = vadd.f32 0.0, %v5368
      %v5370 = vpop.f32.mrb[0].mxu0
      %v5371 = vadd.f32 0.0, %v5370
      %v5372 = vpop.f32.mrb[0].mxu0
      %v5373 = vadd.f32 0.0, %v5372
      %5374 = vdwg.mxu0
      %v5375 = vadd.f32 %v5019, %v5297
      %v5376 = vadd.f32 %v5020, %v5299
      %v5377 = vadd.f32 %v5021, %v5301
      %v5378 = vadd.f32 %v5022, %v5303
      %v5379 = vadd.f32 %v5023, %v5307
      %v5380 = vadd.f32 %v5024, %v5309
      %v5381 = vadd.f32 %v5025, %v5311
      %v5382 = vadd.f32 %v5026, %v5313
      %v5383 = vadd.f32 %v5027, %v5317
      %v5384 = vadd.f32 %v5028, %v5319
      %v5385 = vadd.f32 %v5029, %v5321
      %v5386 = vadd.f32 %v5030, %v5323
      %v5387 = vadd.f32 %v5031, %v5327
      %v5388 = vadd.f32 %v5032, %v5329
      %v5389 = vadd.f32 %v5033, %v5331
      %v5390 = vadd.f32 %v5034, %v5333
      %v5391 = vadd.f32 %v5035, %v5337
      %v5392 = vadd.f32 %v5036, %v5339
      %v5393 = vadd.f32 %v5037, %v5341
      %v5394 = vadd.f32 %v5038, %v5343
      %v5395 = vadd.f32 %v5039, %v5347
      %v5396 = vadd.f32 %v5040, %v5349
      %v5397 = vadd.f32 %v5041, %v5351
      %v5398 = vadd.f32 %v5042, %v5353
      %v5399 = vadd.f32 %v5043, %v5357
      %v5400 = vadd.f32 %v5044, %v5359
      %v5401 = vadd.f32 %v5045, %v5361
      %v5402 = vadd.f32 %v5046, %v5363
      %v5403 = vadd.f32 %v5047, %v5367
      %v5404 = vadd.f32 %v5048, %v5369
      %v5405 = vadd.f32 %v5049, %v5371
      %v5406 = vadd.f32 %v5050, %v5373
      %v5410 = vrot.slane %v4254, 5
      %v5411 = vrot.slane %v5410, 4
      %v5412 = vrot.slane %v2048, 5
      %v5413 = vsel %vm4282, %v5411, %v5412
      %v5414 = vrot.slane %v5412, 4
      %v5415 = vrot.slane %v2049, 5
      %v5416 = vsel %vm4282, %v5414, %v5415
      %s5417 = scalar_lea.vmem %s3, 240
      %v5418 = vld [vmem:[%s5417] sm:$0xff]
      %v5419 = vld [vmem:[%s5417 + $0x8] sm:$0xff]
      %v5420 = vld [vmem:[%s5417 + $0x10] sm:$0xff]
      %v5421 = vld [vmem:[%s5417 + $0x18] sm:$0xff]
      %v5422 = vld [vmem:[%s5417 + $0x20] sm:$0xff]
      %v5423 = vld [vmem:[%s5417 + $0x28] sm:$0xff]
      %v5424 = vunpack.c.l.b16 %v5413
      %v5425 = vunpack.c.l.b16 %v5416
      %v5426 = vpack.c.b16 %v5425, %v5424
      %v5433 = vunpack.c.l.b16 %v5418
      %v5434 = vunpack.c.h.b16 %v5418
      %v5435 = vunpack.c.l.b16 %v5419
      %v5436 = vunpack.c.h.b16 %v5419
      %v5437 = vunpack.c.l.b16 %v5420
      %v5438 = vunpack.c.h.b16 %v5420
      %v5439 = vunpack.c.l.b16 %v5421
      %v5440 = vunpack.c.h.b16 %v5421
      %v5441 = vunpack.c.l.b16 %v5422
      %v5442 = vunpack.c.h.b16 %v5422
      %v5443 = vunpack.c.l.b16 %v5423
      %v5444 = vunpack.c.h.b16 %v5423
      %v5445 = vpack.c.b16 %v5435, %v5433
      %v5446 = vpack.c.b16 %v5436, %v5434
      %v5447 = vpack.c.b16 %v5439, %v5437
      %v5448 = vpack.c.b16 %v5440, %v5438
      %v5449 = vpack.c.b16 %v5443, %v5441
      %v5450 = vpack.c.b16 %v5444, %v5442
      %v5458 = vsel %vm426, %v5426, 0
      %5460 = vmatprep.subr.bf16.mxu0 %v5446
      %5461 = vmatpush1.bf16.msra.mxu0 %v5445
      %5462 = vmatprep.subr.bf16.mxu0 %v5448
      %5463 = vmatpush1.bf16.msra.mxu0 %v5447
      %5464 = vmatprep.subr.bf16.mxu0 %v5450
      %5465 = vmatpush1.bf16.msra.mxu0 %v5449
      %5466 = vmatprep.subr.bf16.mxu0 0
      %5467 = vmatpush1.bf16.msra.mxu0 0
      %5468 = vmatprep.subr.bf16.mxu0 0
      %5469 = vmatpush1.bf16.msra.mxu0 0
      %5470 = vmatprep.subr.bf16.mxu0 0
      %5471 = vmatpush1.bf16.msra.mxu0 0
      %5472 = vmatprep.subr.bf16.mxu0 0
      %5473 = vmatpush1.bf16.msra.mxu0 0
      %5474 = vmatprep.subr.bf16.mxu0 0
      %5475 = vmatpush1.bf16.msra.mxu0 0
      %5476 = vmatprep.subr.bf16.mxu0 0
      %5477 = vmatpush1.bf16.msra.mxu0 0
      %5478 = vmatprep.subr.bf16.mxu0 0
      %5479 = vmatpush1.bf16.msra.mxu0 0
      %5480 = vmatprep.subr.bf16.mxu0 0
      %5481 = vmatpush1.bf16.msra.mxu0 0
      %5482 = vmatprep.subr.bf16.mxu0 0
      %5483 = vmatpush1.bf16.msra.mxu0 0
      %5484 = vmatprep.subr.bf16.mxu0 0
      %5485 = vmatpush1.bf16.msra.mxu0 0
      %5486 = vmatprep.subr.bf16.mxu0 0
      %5487 = vmatpush1.bf16.msra.mxu0 0
      %5488 = vmatprep.subr.bf16.mxu0 0
      %5489 = vmatpush1.bf16.msra.mxu0 0
      %5490 = vmatprep.subr.bf16.mxu0 0
      %5491 = vmatpush1.bf16.msra.mxu0 0
      %5492 = vmatprep.mubr.bf16.mxu0 0
      %5493 = vmatmul.mubr.bf16.gmra.mrb[0].mxu0 %v4886
      %v5494 = vpop.f32.mrb[0].mxu0
      %v5495 = vadd.f32 0.0, %v5494
      %v5496 = vpop.f32.mrb[0].mxu0
      %v5497 = vadd.f32 0.0, %v5496
      %v5498 = vpop.f32.mrb[0].mxu0
      %v5499 = vadd.f32 0.0, %v5498
      %v5500 = vpop.f32.mrb[0].mxu0
      %v5501 = vadd.f32 0.0, %v5500
      %5502 = vmatprep.mubr.bf16.mxu0 0
      %5503 = vmatmul.mubr.bf16.gmra.mrb[0].mxu0 %v4889
      %v5504 = vpop.f32.mrb[0].mxu0
      %v5505 = vadd.f32 0.0, %v5504
      %v5506 = vpop.f32.mrb[0].mxu0
      %v5507 = vadd.f32 0.0, %v5506
      %v5508 = vpop.f32.mrb[0].mxu0
      %v5509 = vadd.f32 0.0, %v5508
      %v5510 = vpop.f32.mrb[0].mxu0
      %v5511 = vadd.f32 0.0, %v5510
      %5512 = vmatprep.mubr.bf16.mxu0 0
      %5513 = vmatmul.mubr.bf16.gmra.mrb[0].mxu0 %v4892
      %v5514 = vpop.f32.mrb[0].mxu0
      %v5515 = vadd.f32 0.0, %v5514
      %v5516 = vpop.f32.mrb[0].mxu0
      %v5517 = vadd.f32 0.0, %v5516
      %v5518 = vpop.f32.mrb[0].mxu0
      %v5519 = vadd.f32 0.0, %v5518
      %v5520 = vpop.f32.mrb[0].mxu0
      %v5521 = vadd.f32 0.0, %v5520
      %5522 = vmatprep.mubr.bf16.mxu0 0
      %5523 = vmatmul.mubr.bf16.gmra.mrb[0].mxu0 %v4895
      %v5524 = vpop.f32.mrb[0].mxu0
      %v5525 = vadd.f32 0.0, %v5524
      %v5526 = vpop.f32.mrb[0].mxu0
      %v5527 = vadd.f32 0.0, %v5526
      %v5528 = vpop.f32.mrb[0].mxu0
      %v5529 = vadd.f32 0.0, %v5528
      %v5530 = vpop.f32.mrb[0].mxu0
      %v5531 = vadd.f32 0.0, %v5530
      %5532 = vmatprep.mubr.bf16.mxu0 0
      %5533 = vmatmul.mubr.bf16.gmra.mrb[0].mxu0 %v4898
      %v5534 = vpop.f32.mrb[0].mxu0
      %v5535 = vadd.f32 0.0, %v5534
      %v5536 = vpop.f32.mrb[0].mxu0
      %v5537 = vadd.f32 0.0, %v5536
      %v5538 = vpop.f32.mrb[0].mxu0
      %v5539 = vadd.f32 0.0, %v5538
      %v5540 = vpop.f32.mrb[0].mxu0
      %v5541 = vadd.f32 0.0, %v5540
      %5542 = vmatprep.mubr.bf16.mxu0 0
      %5543 = vmatmul.mubr.bf16.gmra.mrb[0].mxu0 %v4901
      %v5544 = vpop.f32.mrb[0].mxu0
      %v5545 = vadd.f32 0.0, %v5544
      %v5546 = vpop.f32.mrb[0].mxu0
      %v5547 = vadd.f32 0.0, %v5546
      %v5548 = vpop.f32.mrb[0].mxu0
      %v5549 = vadd.f32 0.0, %v5548
      %v5550 = vpop.f32.mrb[0].mxu0
      %v5551 = vadd.f32 0.0, %v5550
      %5552 = vmatprep.mubr.bf16.mxu0 0
      %5553 = vmatmul.mubr.bf16.gmra.mrb[0].mxu0 %v4904
      %v5554 = vpop.f32.mrb[0].mxu0
      %v5555 = vadd.f32 0.0, %v5554
      %v5556 = vpop.f32.mrb[0].mxu0
      %v5557 = vadd.f32 0.0, %v5556
      %v5558 = vpop.f32.mrb[0].mxu0
      %v5559 = vadd.f32 0.0, %v5558
      %v5560 = vpop.f32.mrb[0].mxu0
      %v5561 = vadd.f32 0.0, %v5560
      %5562 = vmatprep.mubr.bf16.mxu0 0
      %5563 = vmatmul.mubr.bf16.gmra.mrb[0].mxu0 %v5458
      %v5564 = vpop.f32.mrb[0].mxu0
      %v5565 = vadd.f32 0.0, %v5564
      %v5566 = vpop.f32.mrb[0].mxu0
      %v5567 = vadd.f32 0.0, %v5566
      %v5568 = vpop.f32.mrb[0].mxu0
      %v5569 = vadd.f32 0.0, %v5568
      %v5570 = vpop.f32.mrb[0].mxu0
      %v5571 = vadd.f32 0.0, %v5570
      %5572 = vdwg.mxu0
      %v5573 = vadd.f32 %v5375, %v5495
      %v5574 = vadd.f32 %v5376, %v5497
      %v5575 = vadd.f32 %v5377, %v5499
      %v5576 = vadd.f32 %v5378, %v5501
      %v5577 = vadd.f32 %v5379, %v5505
      %v5578 = vadd.f32 %v5380, %v5507
      %v5579 = vadd.f32 %v5381, %v5509
      %v5580 = vadd.f32 %v5382, %v5511
      %v5581 = vadd.f32 %v5383, %v5515
      %v5582 = vadd.f32 %v5384, %v5517
      %v5583 = vadd.f32 %v5385, %v5519
      %v5584 = vadd.f32 %v5386, %v5521
      %v5585 = vadd.f32 %v5387, %v5525
      %v5586 = vadd.f32 %v5388, %v5527
      %v5587 = vadd.f32 %v5389, %v5529
      %v5588 = vadd.f32 %v5390, %v5531
      %v5589 = vadd.f32 %v5391, %v5535
      %v5590 = vadd.f32 %v5392, %v5537
      %v5591 = vadd.f32 %v5393, %v5539
      %v5592 = vadd.f32 %v5394, %v5541
      %v5593 = vadd.f32 %v5395, %v5545
      %v5594 = vadd.f32 %v5396, %v5547
      %v5595 = vadd.f32 %v5397, %v5549
      %v5596 = vadd.f32 %v5398, %v5551
      %v5597 = vadd.f32 %v5399, %v5555
      %v5598 = vadd.f32 %v5400, %v5557
      %v5599 = vadd.f32 %v5401, %v5559
      %v5600 = vadd.f32 %v5402, %v5561
      %v5601 = vadd.f32 %v5403, %v5565
      %v5602 = vadd.f32 %v5404, %v5567
      %v5603 = vadd.f32 %v5405, %v5569
      %v5604 = vadd.f32 %v5406, %v5571
      %v5608 = vrot.slane %v4245, 5
      %v5609 = vrot.slane %v5608, 4
      %v5610 = vrot.slane %v2021, 5
      %v5611 = vsel %vm4282, %v5609, %v5610
      %v5612 = vrot.slane %v5610, 4
      %v5613 = vrot.slane %v2022, 5
      %v5614 = vsel %vm4282, %v5612, %v5613
      %s5615 = scalar_lea.vmem %s2, 2048
      %v5616 = vld [vmem:[%s5615] sm:$0xff]
      %v5617 = vld [vmem:[%s5615 + $0x8] sm:$0xff]
      %v5618 = vld [vmem:[%s5615 + $0x10] sm:$0xff]
      %v5619 = vld [vmem:[%s5615 + $0x18] sm:$0xff]
      %v5620 = vld [vmem:[%s5615 + $0x20] sm:$0xff]
      %v5621 = vld [vmem:[%s5615 + $0x28] sm:$0xff]
      %v5622 = vld [vmem:[%s5615 + $0x30] sm:$0xff]
      %v5623 = vld [vmem:[%s5615 + $0x38] sm:$0xff]
      %v5624 = vld [vmem:[%s5615 + $0x40] sm:$0xff]
      %v5625 = vld [vmem:[%s5615 + $0x48] sm:$0xff]
      %v5626 = vld [vmem:[%s5615 + $0x50] sm:$0xff]
      %v5627 = vld [vmem:[%s5615 + $0x58] sm:$0xff]
      %v5628 = vld [vmem:[%s5615 + $0x60] sm:$0xff]
      %v5629 = vld [vmem:[%s5615 + $0x68] sm:$0xff]
      %v5630 = vld [vmem:[%s5615 + $0x70] sm:$0xff]
      %v5631 = vld [vmem:[%s5615 + $0x78] sm:$0xff]
      %v5632 = vld [vmem:[%s5615 + $0x80] sm:$0xff]
      %v5633 = vld [vmem:[%s5615 + $0x88] sm:$0xff]
      %v5634 = vld [vmem:[%s5615 + $0x90] sm:$0xff]
      %v5635 = vld [vmem:[%s5615 + $0x98] sm:$0xff]
      %v5636 = vld [vmem:[%s5615 + $0xa0] sm:$0xff]
      %v5637 = vld [vmem:[%s5615 + $0xa8] sm:$0xff]
      %v5638 = vld [vmem:[%s5615 + $0xb0] sm:$0xff]
      %v5639 = vld [vmem:[%s5615 + $0xb8] sm:$0xff]
      %v5640 = vld [vmem:[%s5615 + $0xc0] sm:$0xff]
      %v5641 = vld [vmem:[%s5615 + $0xc8] sm:$0xff]
      %v5642 = vld [vmem:[%s5615 + $0xd0] sm:$0xff]
      %v5643 = vld [vmem:[%s5615 + $0xd8] sm:$0xff]
      %v5644 = vld [vmem:[%s5615 + $0xe0] sm:$0xff]
      %v5645 = vld [vmem:[%s5615 + $0xe8] sm:$0xff]
      %v5646 = vld [vmem:[%s5615 + $0xf0] sm:$0xff]
      %v5647 = vld [vmem:[%s5615 + $0xf8] sm:$0xff]
      %v5648 = vunpack.c.l.b16 %v5611
      %v5649 = vunpack.c.h.b16 %v5611
      %v5650 = vunpack.c.l.b16 %v5614
      %v5651 = vunpack.c.h.b16 %v5614
      %v5652 = vpack.c.b16 %v5650, %v5648
      %v5653 = vpack.c.b16 %v5651, %v5649
      %v5688 = vunpack.c.l.b16 %v5616
      %v5689 = vunpack.c.h.b16 %v5616
      %v5690 = vunpack.c.l.b16 %v5617
      %v5691 = vunpack.c.h.b16 %v5617
      %v5692 = vunpack.c.l.b16 %v5618
      %v5693 = vunpack.c.h.b16 %v5618
      %v5694 = vunpack.c.l.b16 %v5619
      %v5695 = vunpack.c.h.b16 %v5619
      %v5696 = vunpack.c.l.b16 %v5620
      %v5697 = vunpack.c.h.b16 %v5620
      %v5698 = vunpack.c.l.b16 %v5621
      %v5699 = vunpack.c.h.b16 %v5621
      %v5700 = vunpack.c.l.b16 %v5622
      %v5701 = vunpack.c.h.b16 %v5622
      %v5702 = vunpack.c.l.b16 %v5623
      %v5703 = vunpack.c.h.b16 %v5623
      %v5704 = vunpack.c.l.b16 %v5624
      %v5705 = vunpack.c.h.b16 %v5624
      %v5706 = vunpack.c.l.b16 %v5625
      %v5707 = vunpack.c.h.b16 %v5625
      %v5708 = vunpack.c.l.b16 %v5626
      %v5709 = vunpack.c.h.b16 %v5626
      %v5710 = vunpack.c.l.b16 %v5627
      %v5711 = vunpack.c.h.b16 %v5627
      %v5712 = vunpack.c.l.b16 %v5628
      %v5713 = vunpack.c.h.b16 %v5628
      %v5714 = vunpack.c.l.b16 %v5629
      %v5715 = vunpack.c.h.b16 %v5629
      %v5716 = vunpack.c.l.b16 %v5630
      %v5717 = vunpack.c.h.b16 %v5630
      %v5718 = vunpack.c.l.b16 %v5631
      %v5719 = vunpack.c.h.b16 %v5631
      %v5720 = vunpack.c.l.b16 %v5632
      %v5721 = vunpack.c.h.b16 %v5632
      %v5722 = vunpack.c.l.b16 %v5633
      %v5723 = vunpack.c.h.b16 %v5633
      %v5724 = vunpack.c.l.b16 %v5634
      %v5725 = vunpack.c.h.b16 %v5634
      %v5726 = vunpack.c.l.b16 %v5635
      %v5727 = vunpack.c.h.b16 %v5635
      %v5728 = vunpack.c.l.b16 %v5636
      %v5729 = vunpack.c.h.b16 %v5636
      %v5730 = vunpack.c.l.b16 %v5637
      %v5731 = vunpack.c.h.b16 %v5637
      %v5732 = vunpack.c.l.b16 %v5638
      %v5733 = vunpack.c.h.b16 %v5638
      %v5734 = vunpack.c.l.b16 %v5639
      %v5735 = vunpack.c.h.b16 %v5639
      %v5736 = vunpack.c.l.b16 %v5640
      %v5737 = vunpack.c.h.b16 %v5640
      %v5738 = vunpack.c.l.b16 %v5641
      %v5739 = vunpack.c.h.b16 %v5641
      %v5740 = vunpack.c.l.b16 %v5642
      %v5741 = vunpack.c.h.b16 %v5642
      %v5742 = vunpack.c.l.b16 %v5643
      %v5743 = vunpack.c.h.b16 %v5643
      %v5744 = vunpack.c.l.b16 %v5644
      %v5745 = vunpack.c.h.b16 %v5644
      %v5746 = vunpack.c.l.b16 %v5645
      %v5747 = vunpack.c.h.b16 %v5645
      %v5748 = vunpack.c.l.b16 %v5646
      %v5749 = vunpack.c.h.b16 %v5646
      %v5750 = vunpack.c.l.b16 %v5647
      %v5751 = vunpack.c.h.b16 %v5647
      %v5752 = vpack.c.b16 %v5690, %v5688
      %v5753 = vpack.c.b16 %v5691, %v5689
      %v5754 = vpack.c.b16 %v5694, %v5692
      %v5755 = vpack.c.b16 %v5695, %v5693
      %v5756 = vpack.c.b16 %v5698, %v5696
      %v5757 = vpack.c.b16 %v5699, %v5697
      %v5758 = vpack.c.b16 %v5702, %v5700
      %v5759 = vpack.c.b16 %v5703, %v5701
      %v5760 = vpack.c.b16 %v5706, %v5704
      %v5761 = vpack.c.b16 %v5707, %v5705
      %v5762 = vpack.c.b16 %v5710, %v5708
      %v5763 = vpack.c.b16 %v5711, %v5709
      %v5764 = vpack.c.b16 %v5714, %v5712
      %v5765 = vpack.c.b16 %v5715, %v5713
      %v5766 = vpack.c.b16 %v5718, %v5716
      %v5767 = vpack.c.b16 %v5719, %v5717
      %v5768 = vpack.c.b16 %v5722, %v5720
      %v5769 = vpack.c.b16 %v5723, %v5721
      %v5770 = vpack.c.b16 %v5726, %v5724
      %v5771 = vpack.c.b16 %v5727, %v5725
      %v5772 = vpack.c.b16 %v5730, %v5728
      %v5773 = vpack.c.b16 %v5731, %v5729
      %v5774 = vpack.c.b16 %v5734, %v5732
      %v5775 = vpack.c.b16 %v5735, %v5733
      %v5776 = vpack.c.b16 %v5738, %v5736
      %v5777 = vpack.c.b16 %v5739, %v5737
      %v5778 = vpack.c.b16 %v5742, %v5740
      %v5779 = vpack.c.b16 %v5743, %v5741
      %v5780 = vpack.c.b16 %v5746, %v5744
      %v5781 = vpack.c.b16 %v5747, %v5745
      %v5782 = vpack.c.b16 %v5750, %v5748
      %v5783 = vpack.c.b16 %v5751, %v5749
      %5816 = vmatprep.subr.bf16.mxu0 %v5753
      %5817 = vmatpush1.bf16.msra.mxu0 %v5752
      %5818 = vmatprep.subr.bf16.mxu0 %v5755
      %5819 = vmatpush1.bf16.msra.mxu0 %v5754
      %5820 = vmatprep.subr.bf16.mxu0 %v5757
      %5821 = vmatpush1.bf16.msra.mxu0 %v5756
      %5822 = vmatprep.subr.bf16.mxu0 %v5759
      %5823 = vmatpush1.bf16.msra.mxu0 %v5758
      %5824 = vmatprep.subr.bf16.mxu0 %v5761
      %5825 = vmatpush1.bf16.msra.mxu0 %v5760
      %5826 = vmatprep.subr.bf16.mxu0 %v5763
      %5827 = vmatpush1.bf16.msra.mxu0 %v5762
      %5828 = vmatprep.subr.bf16.mxu0 %v5765
      %5829 = vmatpush1.bf16.msra.mxu0 %v5764
      %5830 = vmatprep.subr.bf16.mxu0 %v5767
      %5831 = vmatpush1.bf16.msra.mxu0 %v5766
      %5832 = vmatprep.subr.bf16.mxu0 %v5769
      %5833 = vmatpush1.bf16.msra.mxu0 %v5768
      %5834 = vmatprep.subr.bf16.mxu0 %v5771
      %5835 = vmatpush1.bf16.msra.mxu0 %v5770
      %5836 = vmatprep.subr.bf16.mxu0 %v5773
      %5837 = vmatpush1.bf16.msra.mxu0 %v5772
      %5838 = vmatprep.subr.bf16.mxu0 %v5775
      %5839 = vmatpush1.bf16.msra.mxu0 %v5774
      %5840 = vmatprep.subr.bf16.mxu0 %v5777
      %5841 = vmatpush1.bf16.msra.mxu0 %v5776
      %5842 = vmatprep.subr.bf16.mxu0 %v5779
      %5843 = vmatpush1.bf16.msra.mxu0 %v5778
      %5844 = vmatprep.subr.bf16.mxu0 %v5781
      %5845 = vmatpush1.bf16.msra.mxu0 %v5780
      %5846 = vmatprep.subr.bf16.mxu0 %v5783
      %5847 = vmatpush1.bf16.msra.mxu0 %v5782
      %5848 = vmatprep.mubr.bf16.mxu0 %v4409
      %5849 = vmatmul.mubr.bf16.gmra.mrb[0].mxu0 %v4408
      %v5850 = vpop.f32.mrb[0].mxu0
      %v5851 = vadd.f32 0.0, %v5850
      %v5852 = vpop.f32.mrb[0].mxu0
      %v5853 = vadd.f32 0.0, %v5852
      %v5854 = vpop.f32.mrb[0].mxu0
      %v5855 = vadd.f32 0.0, %v5854
      %v5856 = vpop.f32.mrb[0].mxu0
      %v5857 = vadd.f32 0.0, %v5856
      %5858 = vmatprep.mubr.bf16.mxu0 %v4411
      %5859 = vmatmul.mubr.bf16.gmra.mrb[0].mxu0 %v4410
      %v5860 = vpop.f32.mrb[0].mxu0
      %v5861 = vadd.f32 0.0, %v5860
      %v5862 = vpop.f32.mrb[0].mxu0
      %v5863 = vadd.f32 0.0, %v5862
      %v5864 = vpop.f32.mrb[0].mxu0
      %v5865 = vadd.f32 0.0, %v5864
      %v5866 = vpop.f32.mrb[0].mxu0
      %v5867 = vadd.f32 0.0, %v5866
      %5868 = vmatprep.mubr.bf16.mxu0 %v4413
      %5869 = vmatmul.mubr.bf16.gmra.mrb[0].mxu0 %v4412
      %v5870 = vpop.f32.mrb[0].mxu0
      %v5871 = vadd.f32 0.0, %v5870
      %v5872 = vpop.f32.mrb[0].mxu0
      %v5873 = vadd.f32 0.0, %v5872
      %v5874 = vpop.f32.mrb[0].mxu0
      %v5875 = vadd.f32 0.0, %v5874
      %v5876 = vpop.f32.mrb[0].mxu0
      %v5877 = vadd.f32 0.0, %v5876
      %5878 = vmatprep.mubr.bf16.mxu0 %v4415
      %5879 = vmatmul.mubr.bf16.gmra.mrb[0].mxu0 %v4414
      %v5880 = vpop.f32.mrb[0].mxu0
      %v5881 = vadd.f32 0.0, %v5880
      %v5882 = vpop.f32.mrb[0].mxu0
      %v5883 = vadd.f32 0.0, %v5882
      %v5884 = vpop.f32.mrb[0].mxu0
      %v5885 = vadd.f32 0.0, %v5884
      %v5886 = vpop.f32.mrb[0].mxu0
      %v5887 = vadd.f32 0.0, %v5886
      %5888 = vmatprep.mubr.bf16.mxu0 %v4417
      %5889 = vmatmul.mubr.bf16.gmra.mrb[0].mxu0 %v4416
      %v5890 = vpop.f32.mrb[0].mxu0
      %v5891 = vadd.f32 0.0, %v5890
      %v5892 = vpop.f32.mrb[0].mxu0
      %v5893 = vadd.f32 0.0, %v5892
      %v5894 = vpop.f32.mrb[0].mxu0
      %v5895 = vadd.f32 0.0, %v5894
      %v5896 = vpop.f32.mrb[0].mxu0
      %v5897 = vadd.f32 0.0, %v5896
      %5898 = vmatprep.mubr.bf16.mxu0 %v4419
      %5899 = vmatmul.mubr.bf16.gmra.mrb[0].mxu0 %v4418
      %v5900 = vpop.f32.mrb[0].mxu0
      %v5901 = vadd.f32 0.0, %v5900
      %v5902 = vpop.f32.mrb[0].mxu0
      %v5903 = vadd.f32 0.0, %v5902
      %v5904 = vpop.f32.mrb[0].mxu0
      %v5905 = vadd.f32 0.0, %v5904
      %v5906 = vpop.f32.mrb[0].mxu0
      %v5907 = vadd.f32 0.0, %v5906
      %5908 = vmatprep.mubr.bf16.mxu0 %v5099
      %5909 = vmatmul.mubr.bf16.gmra.mrb[0].mxu0 %v5098
      %v5910 = vpop.f32.mrb[0].mxu0
      %v5911 = vadd.f32 0.0, %v5910
      %v5912 = vpop.f32.mrb[0].mxu0
      %v5913 = vadd.f32 0.0, %v5912
      %v5914 = vpop.f32.mrb[0].mxu0
      %v5915 = vadd.f32 0.0, %v5914
      %v5916 = vpop.f32.mrb[0].mxu0
      %v5917 = vadd.f32 0.0, %v5916
      %5918 = vmatprep.mubr.bf16.mxu0 %v5653
      %5919 = vmatmul.mubr.bf16.gmra.mrb[0].mxu0 %v5652
      %v5920 = vpop.f32.mrb[0].mxu0
      %v5921 = vadd.f32 0.0, %v5920
      %v5922 = vpop.f32.mrb[0].mxu0
      %v5923 = vadd.f32 0.0, %v5922
      %v5924 = vpop.f32.mrb[0].mxu0
      %v5925 = vadd.f32 0.0, %v5924
      %v5926 = vpop.f32.mrb[0].mxu0
      %v5927 = vadd.f32 0.0, %v5926
      %5928 = vdwg.mxu0
      %v5929 = vadd.f32 %v5573, %v5851
      %v5930 = vadd.f32 %v5574, %v5853
      %v5931 = vadd.f32 %v5575, %v5855
      %v5932 = vadd.f32 %v5576, %v5857
      %v5933 = vadd.f32 %v5577, %v5861
      %v5934 = vadd.f32 %v5578, %v5863
      %v5935 = vadd.f32 %v5579, %v5865
      %v5936 = vadd.f32 %v5580, %v5867
      %v5937 = vadd.f32 %v5581, %v5871
      %v5938 = vadd.f32 %v5582, %v5873
      %v5939 = vadd.f32 %v5583, %v5875
      %v5940 = vadd.f32 %v5584, %v5877
      %v5941 = vadd.f32 %v5585, %v5881
      %v5942 = vadd.f32 %v5586, %v5883
      %v5943 = vadd.f32 %v5587, %v5885
      %v5944 = vadd.f32 %v5588, %v5887
      %v5945 = vadd.f32 %v5589, %v5891
      %v5946 = vadd.f32 %v5590, %v5893
      %v5947 = vadd.f32 %v5591, %v5895
      %v5948 = vadd.f32 %v5592, %v5897
      %v5949 = vadd.f32 %v5593, %v5901
      %v5950 = vadd.f32 %v5594, %v5903
      %v5951 = vadd.f32 %v5595, %v5905
      %v5952 = vadd.f32 %v5596, %v5907
      %v5953 = vadd.f32 %v5597, %v5911
      %v5954 = vadd.f32 %v5598, %v5913
      %v5955 = vadd.f32 %v5599, %v5915
      %v5956 = vadd.f32 %v5600, %v5917
      %v5957 = vadd.f32 %v5601, %v5921
      %v5958 = vadd.f32 %v5602, %v5923
      %v5959 = vadd.f32 %v5603, %v5925
      %v5960 = vadd.f32 %v5604, %v5927
      %v5964 = vrot.slane %v4255, 5
      %v5965 = vrot.slane %v5964, 4
      %v5966 = vrot.slane %v2051, 5
      %v5967 = vsel %vm4282, %v5965, %v5966
      %v5968 = vrot.slane %v5966, 4
      %v5969 = vrot.slane %v2052, 5
      %v5970 = vsel %vm4282, %v5968, %v5969
      %s5971 = scalar_lea.vmem %s3, 384
      %v5972 = vld [vmem:[%s5971] sm:$0xff]
      %v5973 = vld [vmem:[%s5971 + $0x8] sm:$0xff]
      %v5974 = vld [vmem:[%s5971 + $0x10] sm:$0xff]
      %v5975 = vld [vmem:[%s5971 + $0x18] sm:$0xff]
      %v5976 = vld [vmem:[%s5971 + $0x20] sm:$0xff]
      %v5977 = vld [vmem:[%s5971 + $0x28] sm:$0xff]
      %v5978 = vunpack.c.l.b16 %v5967
      %v5979 = vunpack.c.l.b16 %v5970
      %v5980 = vpack.c.b16 %v5979, %v5978
      %v5987 = vunpack.c.l.b16 %v5972
      %v5988 = vunpack.c.h.b16 %v5972
      %v5989 = vunpack.c.l.b16 %v5973
      %v5990 = vunpack.c.h.b16 %v5973
      %v5991 = vunpack.c.l.b16 %v5974
      %v5992 = vunpack.c.h.b16 %v5974
      %v5993 = vunpack.c.l.b16 %v5975
      %v5994 = vunpack.c.h.b16 %v5975
      %v5995 = vunpack.c.l.b16 %v5976
      %v5996 = vunpack.c.h.b16 %v5976
      %v5997 = vunpack.c.l.b16 %v5977
      %v5998 = vunpack.c.h.b16 %v5977
      %v5999 = vpack.c.b16 %v5989, %v5987
      %v6000 = vpack.c.b16 %v5990, %v5988
      %v6001 = vpack.c.b16 %v5993, %v5991
      %v6002 = vpack.c.b16 %v5994, %v5992
      %v6003 = vpack.c.b16 %v5997, %v5995
      %v6004 = vpack.c.b16 %v5998, %v5996
      %v6012 = vsel %vm426, %v5980, 0
      %6014 = vmatprep.subr.bf16.mxu0 %v6000
      %6015 = vmatpush1.bf16.msra.mxu0 %v5999
      %6016 = vmatprep.subr.bf16.mxu0 %v6002
      %6017 = vmatpush1.bf16.msra.mxu0 %v6001
      %6018 = vmatprep.subr.bf16.mxu0 %v6004
      %6019 = vmatpush1.bf16.msra.mxu0 %v6003
      %6020 = vmatprep.subr.bf16.mxu0 0
      %6021 = vmatpush1.bf16.msra.mxu0 0
      %6022 = vmatprep.subr.bf16.mxu0 0
      %6023 = vmatpush1.bf16.msra.mxu0 0
      %6024 = vmatprep.subr.bf16.mxu0 0
      %6025 = vmatpush1.bf16.msra.mxu0 0
      %6026 = vmatprep.subr.bf16.mxu0 0
      %6027 = vmatpush1.bf16.msra.mxu0 0
      %6028 = vmatprep.subr.bf16.mxu0 0
      %6029 = vmatpush1.bf16.msra.mxu0 0
      %6030 = vmatprep.subr.bf16.mxu0 0
      %6031 = vmatpush1.bf16.msra.mxu0 0
      %6032 = vmatprep.subr.bf16.mxu0 0
      %6033 = vmatpush1.bf16.msra.mxu0 0
      %6034 = vmatprep.subr.bf16.mxu0 0
      %6035 = vmatpush1.bf16.msra.mxu0 0
      %6036 = vmatprep.subr.bf16.mxu0 0
      %6037 = vmatpush1.bf16.msra.mxu0 0
      %6038 = vmatprep.subr.bf16.mxu0 0
      %6039 = vmatpush1.bf16.msra.mxu0 0
      %6040 = vmatprep.subr.bf16.mxu0 0
      %6041 = vmatpush1.bf16.msra.mxu0 0
      %6042 = vmatprep.subr.bf16.mxu0 0
      %6043 = vmatpush1.bf16.msra.mxu0 0
      %6044 = vmatprep.subr.bf16.mxu0 0
      %6045 = vmatpush1.bf16.msra.mxu0 0
      %6046 = vmatprep.mubr.bf16.mxu0 0
      %6047 = vmatmul.mubr.bf16.gmra.mrb[0].mxu0 %v4889
      %v6048 = vpop.f32.mrb[0].mxu0
      %v6049 = vadd.f32 0.0, %v6048
      %v6050 = vpop.f32.mrb[0].mxu0
      %v6051 = vadd.f32 0.0, %v6050
      %v6052 = vpop.f32.mrb[0].mxu0
      %v6053 = vadd.f32 0.0, %v6052
      %v6054 = vpop.f32.mrb[0].mxu0
      %v6055 = vadd.f32 0.0, %v6054
      %6056 = vmatprep.mubr.bf16.mxu0 0
      %6057 = vmatmul.mubr.bf16.gmra.mrb[0].mxu0 %v4892
      %v6058 = vpop.f32.mrb[0].mxu0
      %v6059 = vadd.f32 0.0, %v6058
      %v6060 = vpop.f32.mrb[0].mxu0
      %v6061 = vadd.f32 0.0, %v6060
      %v6062 = vpop.f32.mrb[0].mxu0
      %v6063 = vadd.f32 0.0, %v6062
      %v6064 = vpop.f32.mrb[0].mxu0
      %v6065 = vadd.f32 0.0, %v6064
      %6066 = vmatprep.mubr.bf16.mxu0 0
      %6067 = vmatmul.mubr.bf16.gmra.mrb[0].mxu0 %v4895
      %v6068 = vpop.f32.mrb[0].mxu0
      %v6069 = vadd.f32 0.0, %v6068
      %v6070 = vpop.f32.mrb[0].mxu0
      %v6071 = vadd.f32 0.0, %v6070
      %v6072 = vpop.f32.mrb[0].mxu0
      %v6073 = vadd.f32 0.0, %v6072
      %v6074 = vpop.f32.mrb[0].mxu0
      %v6075 = vadd.f32 0.0, %v6074
      %6076 = vmatprep.mubr.bf16.mxu0 0
      %6077 = vmatmul.mubr.bf16.gmra.mrb[0].mxu0 %v4898
      %v6078 = vpop.f32.mrb[0].mxu0
      %v6079 = vadd.f32 0.0, %v6078
      %v6080 = vpop.f32.mrb[0].mxu0
      %v6081 = vadd.f32 0.0, %v6080
      %v6082 = vpop.f32.mrb[0].mxu0
      %v6083 = vadd.f32 0.0, %v6082
      %v6084 = vpop.f32.mrb[0].mxu0
      %v6085 = vadd.f32 0.0, %v6084
      %6086 = vmatprep.mubr.bf16.mxu0 0
      %6087 = vmatmul.mubr.bf16.gmra.mrb[0].mxu0 %v4901
      %v6088 = vpop.f32.mrb[0].mxu0
      %v6089 = vadd.f32 0.0, %v6088
      %v6090 = vpop.f32.mrb[0].mxu0
      %v6091 = vadd.f32 0.0, %v6090
      %v6092 = vpop.f32.mrb[0].mxu0
      %v6093 = vadd.f32 0.0, %v6092
      %v6094 = vpop.f32.mrb[0].mxu0
      %v6095 = vadd.f32 0.0, %v6094
      %6096 = vmatprep.mubr.bf16.mxu0 0
      %6097 = vmatmul.mubr.bf16.gmra.mrb[0].mxu0 %v4904
      %v6098 = vpop.f32.mrb[0].mxu0
      %v6099 = vadd.f32 0.0, %v6098
      %v6100 = vpop.f32.mrb[0].mxu0
      %v6101 = vadd.f32 0.0, %v6100
      %v6102 = vpop.f32.mrb[0].mxu0
      %v6103 = vadd.f32 0.0, %v6102
      %v6104 = vpop.f32.mrb[0].mxu0
      %v6105 = vadd.f32 0.0, %v6104
      %6106 = vmatprep.mubr.bf16.mxu0 0
      %6107 = vmatmul.mubr.bf16.gmra.mrb[0].mxu0 %v5458
      %v6108 = vpop.f32.mrb[0].mxu0
      %v6109 = vadd.f32 0.0, %v6108
      %v6110 = vpop.f32.mrb[0].mxu0
      %v6111 = vadd.f32 0.0, %v6110
      %v6112 = vpop.f32.mrb[0].mxu0
      %v6113 = vadd.f32 0.0, %v6112
      %v6114 = vpop.f32.mrb[0].mxu0
      %v6115 = vadd.f32 0.0, %v6114
      %6116 = vmatprep.mubr.bf16.mxu0 0
      %6117 = vmatmul.mubr.bf16.gmra.mrb[0].mxu0 %v6012
      %v6118 = vpop.f32.mrb[0].mxu0
      %v6119 = vadd.f32 0.0, %v6118
      %v6120 = vpop.f32.mrb[0].mxu0
      %v6121 = vadd.f32 0.0, %v6120
      %v6122 = vpop.f32.mrb[0].mxu0
      %v6123 = vadd.f32 0.0, %v6122
      %v6124 = vpop.f32.mrb[0].mxu0
      %v6125 = vadd.f32 0.0, %v6124
      %6126 = vdwg.mxu0
      %v6127 = vadd.f32 %v5929, %v6049
      %v6128 = vadd.f32 %v5930, %v6051
      %v6129 = vadd.f32 %v5931, %v6053
      %v6130 = vadd.f32 %v5932, %v6055
      %v6131 = vadd.f32 %v5933, %v6059
      %v6132 = vadd.f32 %v5934, %v6061
      %v6133 = vadd.f32 %v5935, %v6063
      %v6134 = vadd.f32 %v5936, %v6065
      %v6135 = vadd.f32 %v5937, %v6069
      %v6136 = vadd.f32 %v5938, %v6071
      %v6137 = vadd.f32 %v5939, %v6073
      %v6138 = vadd.f32 %v5940, %v6075
      %v6139 = vadd.f32 %v5941, %v6079
      %v6140 = vadd.f32 %v5942, %v6081
      %v6141 = vadd.f32 %v5943, %v6083
      %v6142 = vadd.f32 %v5944, %v6085
      %v6143 = vadd.f32 %v5945, %v6089
      %v6144 = vadd.f32 %v5946, %v6091
      %v6145 = vadd.f32 %v5947, %v6093
      %v6146 = vadd.f32 %v5948, %v6095
      %v6147 = vadd.f32 %v5949, %v6099
      %v6148 = vadd.f32 %v5950, %v6101
      %v6149 = vadd.f32 %v5951, %v6103
      %v6150 = vadd.f32 %v5952, %v6105
      %v6151 = vadd.f32 %v5953, %v6109
      %v6152 = vadd.f32 %v5954, %v6111
      %v6153 = vadd.f32 %v5955, %v6113
      %v6154 = vadd.f32 %v5956, %v6115
      %v6155 = vadd.f32 %v5957, %v6119
      %v6156 = vadd.f32 %v5958, %v6121
      %v6157 = vadd.f32 %v5959, %v6123
      %v6158 = vadd.f32 %v5960, %v6125
      %v6159 = vld [vmem:[%s4] sm:$0x3]
      %v6161 = vlaneseq
      %v6162 = vshrl.u32 %v6161, 7
      %v6163 = vsub.s32 0, %v6162
      %v6164 = vrot.slane %v6159, %v6163
      %v6165 = vlaneseq
      %v6166 = vshrl.u32 %v6165, 7
      %v6167 = vsub.s32 1, %v6166
      %v6168 = vrot.slane %v6159, %v6167
      %v6171 = vadd.f32 %v6127, %v6164
      %v6172 = vadd.f32 %v6128, %v6168
      %v6173 = vadd.f32 %v6129, %v6164
      %v6174 = vadd.f32 %v6130, %v6168
      %v6175 = vadd.f32 %v6131, %v6164
      %v6176 = vadd.f32 %v6132, %v6168
      %v6177 = vadd.f32 %v6133, %v6164
      %v6178 = vadd.f32 %v6134, %v6168
      %v6179 = vadd.f32 %v6135, %v6164
      %v6180 = vadd.f32 %v6136, %v6168
      %v6181 = vadd.f32 %v6137, %v6164
      %v6182 = vadd.f32 %v6138, %v6168
      %v6183 = vadd.f32 %v6139, %v6164
      %v6184 = vadd.f32 %v6140, %v6168
      %v6185 = vadd.f32 %v6141, %v6164
      %v6186 = vadd.f32 %v6142, %v6168
      %v6187 = vadd.f32 %v6143, %v6164
      %v6188 = vadd.f32 %v6144, %v6168
      %v6189 = vadd.f32 %v6145, %v6164
      %v6190 = vadd.f32 %v6146, %v6168
      %v6191 = vadd.f32 %v6147, %v6164
      %v6192 = vadd.f32 %v6148, %v6168
      %v6193 = vadd.f32 %v6149, %v6164
      %v6194 = vadd.f32 %v6150, %v6168
      %v6195 = vadd.f32 %v6151, %v6164
      %v6196 = vadd.f32 %v6152, %v6168
      %v6197 = vadd.f32 %v6153, %v6164
      %v6198 = vadd.f32 %v6154, %v6168
      %v6199 = vadd.f32 %v6155, %v6164
      %v6200 = vadd.f32 %v6156, %v6168
      %v6201 = vadd.f32 %v6157, %v6164
      %v6202 = vadd.f32 %v6158, %v6168
      %v6203 = vmax.f32 %v6171, 0.0
      %v6204 = vmax.f32 %v6172, 0.0
      %v6205 = vmax.f32 %v6173, 0.0
      %v6206 = vmax.f32 %v6174, 0.0
      %v6207 = vmax.f32 %v6175, 0.0
      %v6208 = vmax.f32 %v6176, 0.0
      %v6209 = vmax.f32 %v6177, 0.0
      %v6210 = vmax.f32 %v6178, 0.0
      %v6211 = vmax.f32 %v6179, 0.0
      %v6212 = vmax.f32 %v6180, 0.0
      %v6213 = vmax.f32 %v6181, 0.0
      %v6214 = vmax.f32 %v6182, 0.0
      %v6215 = vmax.f32 %v6183, 0.0
      %v6216 = vmax.f32 %v6184, 0.0
      %v6217 = vmax.f32 %v6185, 0.0
      %v6218 = vmax.f32 %v6186, 0.0
      %v6219 = vmax.f32 %v6187, 0.0
      %v6220 = vmax.f32 %v6188, 0.0
      %v6221 = vmax.f32 %v6189, 0.0
      %v6222 = vmax.f32 %v6190, 0.0
      %v6223 = vmax.f32 %v6191, 0.0
      %v6224 = vmax.f32 %v6192, 0.0
      %v6225 = vmax.f32 %v6193, 0.0
      %v6226 = vmax.f32 %v6194, 0.0
      %v6227 = vmax.f32 %v6195, 0.0
      %v6228 = vmax.f32 %v6196, 0.0
      %v6229 = vmax.f32 %v6197, 0.0
      %v6230 = vmax.f32 %v6198, 0.0
      %v6231 = vmax.f32 %v6199, 0.0
      %v6232 = vmax.f32 %v6200, 0.0
      %v6233 = vmax.f32 %v6201, 0.0
      %v6234 = vmax.f32 %v6202, 0.0
      %v6235 = vpack.c.bf16 %v6205, %v6203
      %v6236 = vpack.c.bf16 %v6206, %v6204
      %v6237 = vpack.c.bf16 %v6209, %v6207
      %v6238 = vpack.c.bf16 %v6210, %v6208
      %v6239 = vpack.c.bf16 %v6213, %v6211
      %v6240 = vpack.c.bf16 %v6214, %v6212
      %v6241 = vpack.c.bf16 %v6217, %v6215
      %v6242 = vpack.c.bf16 %v6218, %v6216
      %v6243 = vpack.c.bf16 %v6221, %v6219
      %v6244 = vpack.c.bf16 %v6222, %v6220
      %v6245 = vpack.c.bf16 %v6225, %v6223
      %v6246 = vpack.c.bf16 %v6226, %v6224
      %v6247 = vpack.c.bf16 %v6229, %v6227
      %v6248 = vpack.c.bf16 %v6230, %v6228
      %v6249 = vpack.c.bf16 %v6233, %v6231
      %v6250 = vpack.c.bf16 %v6234, %v6232
      %v6267 = vunpack.c.l.b16 %v6235
      %v6268 = vunpack.c.l.b16 %v6236
      %v6269 = vunpack.c.h.b16 %v6235
      %v6270 = vunpack.c.h.b16 %v6236
      %v6271 = vunpack.c.l.b16 %v6237
      %v6272 = vunpack.c.l.b16 %v6238
      %v6273 = vunpack.c.h.b16 %v6237
      %v6274 = vunpack.c.h.b16 %v6238
      %v6275 = vunpack.c.l.b16 %v6239
      %v6276 = vunpack.c.l.b16 %v6240
      %v6277 = vunpack.c.h.b16 %v6239
      %v6278 = vunpack.c.h.b16 %v6240
      %v6279 = vunpack.c.l.b16 %v6241
      %v6280 = vunpack.c.l.b16 %v6242
      %v6281 = vunpack.c.h.b16 %v6241
      %v6282 = vunpack.c.h.b16 %v6242
      %v6283 = vunpack.c.l.b16 %v6243
      %v6284 = vunpack.c.l.b16 %v6244
      %v6285 = vunpack.c.h.b16 %v6243
      %v6286 = vunpack.c.h.b16 %v6244
      %v6287 = vunpack.c.l.b16 %v6245
      %v6288 = vunpack.c.l.b16 %v6246
      %v6289 = vunpack.c.h.b16 %v6245
      %v6290 = vunpack.c.h.b16 %v6246
      %v6291 = vunpack.c.l.b16 %v6247
      %v6292 = vunpack.c.l.b16 %v6248
      %v6293 = vunpack.c.h.b16 %v6247
      %v6294 = vunpack.c.h.b16 %v6248
      %v6295 = vunpack.c.l.b16 %v6249
      %v6296 = vunpack.c.l.b16 %v6250
      %v6297 = vunpack.c.h.b16 %v6249
      %v6298 = vunpack.c.h.b16 %v6250
      %v6299 = vpack.c.b16 %v6268, %v6267
      %v6300 = vpack.c.b16 %v6270, %v6269
      %v6301 = vpack.c.b16 %v6272, %v6271
      %v6302 = vpack.c.b16 %v6274, %v6273
      %v6303 = vpack.c.b16 %v6276, %v6275
      %v6304 = vpack.c.b16 %v6278, %v6277
      %v6305 = vpack.c.b16 %v6280, %v6279
      %v6306 = vpack.c.b16 %v6282, %v6281
      %v6307 = vpack.c.b16 %v6284, %v6283
      %v6308 = vpack.c.b16 %v6286, %v6285
      %v6309 = vpack.c.b16 %v6288, %v6287
      %v6310 = vpack.c.b16 %v6290, %v6289
      %v6311 = vpack.c.b16 %v6292, %v6291
      %v6312 = vpack.c.b16 %v6294, %v6293
      %v6313 = vpack.c.b16 %v6296, %v6295
      %v6314 = vpack.c.b16 %v6298, %v6297
      %6331 = vst [vmem:[%s268] sm:$0xff] %v6299
      %6332 = vst [vmem:[%s268 + $0x8] sm:$0xff] %v6300
      %6333 = vst [vmem:[%s268 + $0x10] sm:$0xff] %v6301
      %6334 = vst [vmem:[%s268 + $0x18] sm:$0xff] %v6302
      %6335 = vst [vmem:[%s268 + $0x20] sm:$0xff] %v6303
      %6336 = vst [vmem:[%s268 + $0x28] sm:$0xff] %v6304
      %6337 = vst [vmem:[%s268 + $0x30] sm:$0xff] %v6305
      %6338 = vst [vmem:[%s268 + $0x38] sm:$0xff] %v6306
      %6339 = vst [vmem:[%s268 + $0x40] sm:$0xff] %v6307
      %6340 = vst [vmem:[%s268 + $0x48] sm:$0xff] %v6308
      %6341 = vst [vmem:[%s268 + $0x50] sm:$0xff] %v6309
      %6342 = vst [vmem:[%s268 + $0x58] sm:$0xff] %v6310
      %6343 = vst [vmem:[%s268 + $0x60] sm:$0xff] %v6311
      %6344 = vst [vmem:[%s268 + $0x68] sm:$0xff] %v6312
      %6345 = vst [vmem:[%s268 + $0x70] sm:$0xff] %v6313
      %6346 = vst [vmem:[%s268 + $0x78] sm:$0xff] %v6314
      %s6347 = smul.u32 8, %s21
      %p6348 = scmp.lt.s32.totalorder %s20, 1
      %s6349 = scalar_select %p6348, %s20, 1
      %p6350 = scmp.lt.s32.totalorder %s6347, 15
      %s6351 = scalar_select %p6350, %s6347, 15
      %s6352 = smul.addr %s6351, 4
      %s6353 = smul.addr %s6349, 64
      %s6354 = sadd.s32 %s6352, %s6353
      %s6355 = smul.addr %s6354, 4
      %s6356 = scalar_lea.vmem %s5, %s6355
      // Predicated region
      $region41: #{decoder_forward.4} parent=39 // pred_check
        %p6357 = pneg %p163
      $region42: #{decoder_forward.4} parent=39 // pred_check_branch
        %6359 = sbr.rel (%p6357) target = $region44
      $region43: #{decoder_forward.4} parent=39 // pred_region
        %s6360 = smul.u32 8, %s21
      $region44: #{decoder_forward.4} parent=39 // pred_fallthru
        _
    $region40: #{decoder_forward.4} parent=5 // pred_fallthru
      _
    %p6361 = scmp.le.s32.totalorder 2, %s11
    // Predicated region
    $region45: #{decoder_forward.4} parent=5 // pred_check
      %p6362 = pneg %p6361
    $region46: #{decoder_forward.4} parent=5 // pred_check_branch
      %6364 = sbr.rel (%p6362) target = $region48
    $region47: #{decoder_forward.4} parent=5 // pred_region
      %s6365 = ssub.s32 %s11, 2
      // Predicated region
      $region49: #{decoder_forward.4} parent=47 // pred_check
        %p6366 = pneg %p169
      $region50: #{decoder_forward.4} parent=47 // pred_check_branch
        %6368 = sbr.rel (%p6366) target = $region52
      $region51: #{decoder_forward.4} parent=47 // pred_region
        %s6369 = smul.u32 8, %s23
        %p6370 = scmp.lt.s32.totalorder %s22, 1
        %s6371 = scalar_select %p6370, %s22, 1
        %p6372 = scmp.lt.s32.totalorder %s6369, 15
        %s6373 = scalar_select %p6372, %s6369, 15
        %s6374 = smul.addr %s6373, 4
        %s6375 = smul.addr %s6371, 64
        %s6376 = sadd.s32 %s6374, %s6375
        %s6377 = smul.addr %s6376, 4
        %s6378 = scalar_lea.vmem %s5, %s6377
      $region52: #{decoder_forward.4} parent=47 // pred_fallthru
        _
    $region48: #{decoder_forward.4} parent=5 // pred_fallthru
      _
  $region6: #{decoder_forward.4} parent=0 // loop_footer
    %s15 = sadd.s32 1, %s11
  $region7: #{decoder_forward.4} parent=0 // loop_footer_branch
    %10 = sbr.rel target = $region3
  $region8: #{decoder_forward.4} parent=0 // loop_exit
    _

// kernel: decoder_forward.5
$region0: #{decoder_forward.5}
  #allocation0 [shape = 'u32[]', space=smem, size = 0x4, offset = 0x4, fixed_abs, tag = 'smem constant byte address 0x4 - core index']
  #allocation1 [shape = 'u32[144,128]{1,0:T(1,128)}', space=vmem, size = 0x12000, scoped, tag = 'internal scratch']
  %s0 = inlined_call_operand.vmem [shape: bf16[2,18,18,256], index: 0, kind: input, shape index: {}]
  %s1 = inlined_call_operand.vmem [shape: bf16[9,256,256], index: 1, kind: input, shape index: {}]
  %s2 = inlined_call_operand.vmem [shape: f32[1,256], index: 2, kind: input, shape index: {}]
  %s3 = inlined_call_operand.vmem [shape: bf16[8,256], index: 3, kind: input, shape index: {}]
  %s4 = inlined_call_operand.vmem [shape: f32[8,1], index: 4, kind: input, shape index: {}]
  %s5 = inlined_call_operand.vmem [shape: f32[2,8,256], index: 5, kind: output, shape index: {}]
  %s6 = sld [smem:[#allocation0]]
  $region53: #{decoder_forward.5} parent=0
    _
  %s8 = ssub.s32 1, %s6
  %s9 = scalar_select 0, %s8, %s6
  loop: start=0, step=1, limit=6
  $region2: #{decoder_forward.5} parent=0 // loop_pre_header
    _
  $region3: #{decoder_forward.5} parent=0 // loop_header
    %s11 = sphi 0, %s15
    %p12 = scmp.ge.s32.totalorder %s11, 6
    %s18 = sphi 0, %s30
    %s19 = sphi 0, %s26
    %s20 = sphi 0, %s18
    %s21 = sphi 0, %s19
    %s22 = sphi 0, %s20
    %s23 = sphi 0, %s21
    %s33 = sphi 0, %s35
    %s36 = sphi 0, %s33
    %s37 = sphi 0, %s36
    %s53 = sphi 0, %s37
    %s57 = sphi 0, %s57
    %s59 = sphi 0, %s57
    %s60 = sphi 0, %s59
    %s74 = sphi 0, %s60
    %s78 = sphi 0, %s78
    %s80 = sphi 0, %s78
    %s81 = sphi 0, %s80
    %s95 = sphi 0, %s81
    %s99 = sphi 0, %s99
    %s101 = sphi 0, %s99
    %s102 = sphi 0, %s101
    %s116 = sphi 0, %s102
    %s120 = sphi 0, %s120
    %s122 = sphi 0, %s120
    %s123 = sphi 0, %s122
    %s137 = sphi 0, %s123
    %s145 = sphi 0, %s147
    %s148 = sphi 0, %s145
    %s149 = sphi 0, %s148
    %s165 = sphi 0, %s149
  $region4: #{decoder_forward.5} parent=0 // loop_header_branch
    %14 = sbr.rel (%p12) target = $region8
  $region5: #{decoder_forward.5} parent=0 // loop_body
    %s16 = ssub.s32 %s11, 1
    %s17 = ssub.s32 %s11, 2
    %s24 = sadd.s32 1, %s19
    %p25 = scmp.ge.s32.totalorder %s24, 2
    %s26 = scalar_select %p25, 0, %s24
    %s27 = sadd.s32 1, %s18
    %s28 = scalar_select %p25, %s27, %s18
    %p29 = scmp.ge.s32.totalorder %s28, 2
    %s30 = scalar_select %p29, 0, %s28
    %s31 = ssub.s32 %s18, %s30
    %p32 = scmp.eq.s32.totalorder %s31, 0
    %s34 = sadd.s32 %s33, 1
    %s35 = scalar_select %p32, %s33, %s34
    %p38 = pneg %p32
    %p39 = scmp.eq.s32.totalorder %s11, 3
    %p40 = por %p38, %p39
    %p41 = scmp.ne.s32.totalorder %s33, %s36
    %p42 = scmp.eq.s32.totalorder %s11, 0
    %p43 = por %p41, %p42
    %p44 = scmp.ne.s32.totalorder %s33, %s36
    %p45 = scmp.eq.s32.totalorder %s16, 3
    %p46 = por %p44, %p45
    %p47 = scmp.ne.s32.totalorder %s36, %s37
    %p48 = scmp.eq.s32.totalorder %s16, 0
    %p49 = por %p47, %p48
    %p50 = scmp.ne.s32.totalorder %s36, %s37
    %p51 = scmp.eq.s32.totalorder %s17, 3
    %p52 = por %p50, %p51
    %p54 = scmp.ne.s32.totalorder %s37, %s53
    %p55 = scmp.eq.s32.totalorder %s17, 0
    %p56 = por %p54, %p55
    %s58 = sadd.s32 %s57, 1
    %p61 = scmp.eq.s32.totalorder %s11, 3
    %p62 = scmp.ne.s32.totalorder %s57, %s59
    %p63 = scmp.eq.s32.totalorder %s11, 0
    %p64 = por %p62, %p63
    %p65 = scmp.ne.s32.totalorder %s57, %s59
    %p66 = scmp.eq.s32.totalorder %s16, 3
    %p67 = por %p65, %p66
    %p68 = scmp.ne.s32.totalorder %s59, %s60
    %p69 = scmp.eq.s32.totalorder %s16, 0
    %p70 = por %p68, %p69
    %p71 = scmp.ne.s32.totalorder %s59, %s60
    %p72 = scmp.eq.s32.totalorder %s17, 3
    %p73 = por %p71, %p72
    %p75 = scmp.ne.s32.totalorder %s60, %s74
    %p76 = scmp.eq.s32.totalorder %s17, 0
    %p77 = por %p75, %p76
    %s79 = sadd.s32 %s78, 1
    %p82 = scmp.eq.s32.totalorder %s11, 3
    %p83 = scmp.ne.s32.totalorder %s78, %s80
    %p84 = scmp.eq.s32.totalorder %s11, 0
    %p85 = por %p83, %p84
    %p86 = scmp.ne.s32.totalorder %s78, %s80
    %p87 = scmp.eq.s32.totalorder %s16, 3
    %p88 = por %p86, %p87
    %p89 = scmp.ne.s32.totalorder %s80, %s81
    %p90 = scmp.eq.s32.totalorder %s16, 0
    %p91 = por %p89, %p90
    %p92 = scmp.ne.s32.totalorder %s80, %s81
    %p93 = scmp.eq.s32.totalorder %s17, 3
    %p94 = por %p92, %p93
    %p96 = scmp.ne.s32.totalorder %s81, %s95
    %p97 = scmp.eq.s32.totalorder %s17, 0
    %p98 = por %p96, %p97
    %s100 = sadd.s32 %s99, 1
    %p103 = scmp.eq.s32.totalorder %s11, 3
    %p104 = scmp.ne.s32.totalorder %s99, %s101
    %p105 = scmp.eq.s32.totalorder %s11, 0
    %p106 = por %p104, %p105
    %p107 = scmp.ne.s32.totalorder %s99, %s101
    %p108 = scmp.eq.s32.totalorder %s16, 3
    %p109 = por %p107, %p108
    %p110 = scmp.ne.s32.totalorder %s101, %s102
    %p111 = scmp.eq.s32.totalorder %s16, 0
    %p112 = por %p110, %p111
    %p113 = scmp.ne.s32.totalorder %s101, %s102
    %p114 = scmp.eq.s32.totalorder %s17, 3
    %p115 = por %p113, %p114
    %p117 = scmp.ne.s32.totalorder %s102, %s116
    %p118 = scmp.eq.s32.totalorder %s17, 0
    %p119 = por %p117, %p118
    %s121 = sadd.s32 %s120, 1
    %p124 = scmp.eq.s32.totalorder %s11, 3
    %p125 = scmp.ne.s32.totalorder %s120, %s122
    %p126 = scmp.eq.s32.totalorder %s11, 0
    %p127 = por %p125, %p126
    %p128 = scmp.ne.s32.totalorder %s120, %s122
    %p129 = scmp.eq.s32.totalorder %s16, 3
    %p130 = por %p128, %p129
    %p131 = scmp.ne.s32.totalorder %s122, %s123
    %p132 = scmp.eq.s32.totalorder %s16, 0
    %p133 = por %p131, %p132
    %p134 = scmp.ne.s32.totalorder %s122, %s123
    %p135 = scmp.eq.s32.totalorder %s17, 3
    %p136 = por %p134, %p135
    %p138 = scmp.ne.s32.totalorder %s123, %s137
    %p139 = scmp.eq.s32.totalorder %s17, 0
    %p140 = por %p138, %p139
    %s141 = ssub.s32 %s18, %s30
    %s142 = ssub.s32 %s19, %s26
    %s143 = sor.u32 %s141, %s142
    %p144 = scmp.eq.s32.totalorder %s143, 0
    %s146 = sadd.s32 %s145, 1
    %s147 = scalar_select %p144, %s145, %s146
    %p150 = pneg %p144
    %p151 = scmp.eq.s32.totalorder %s11, 3
    %p152 = por %p150, %p151
    %p153 = scmp.ne.s32.totalorder %s145, %s148
    %p154 = scmp.eq.s32.totalorder %s11, 0
    %p155 = por %p153, %p154
    %p156 = scmp.ne.s32.totalorder %s145, %s148
    %p157 = scmp.eq.s32.totalorder %s16, 3
    %p158 = por %p156, %p157
    %p159 = scmp.ne.s32.totalorder %s148, %s149
    %p160 = scmp.eq.s32.totalorder %s16, 0
    %p161 = por %p159, %p160
    %p162 = scmp.ne.s32.totalorder %s148, %s149
    %p163 = scmp.eq.s32.totalorder %s17, 3
    %p164 = por %p162, %p163
    %p166 = scmp.ne.s32.totalorder %s149, %s165
    %p167 = scmp.eq.s32.totalorder %s17, 0
    %p168 = por %p166, %p167
    %p169 = scmp.le.s32.totalorder 1, %s11
    %p170 = scmp.lt.s32.totalorder %s11, 5
    %p171 = pnand %p169, %p170
    %p172 = pneg %p171
    // Predicated region
    $region9: #{decoder_forward.5} parent=5 // pred_check
      _
    $region10: #{decoder_forward.5} parent=5 // pred_check_branch
      %174 = sbr.rel (%p171) target = $region12
    $region11: #{decoder_forward.5} parent=5 // pred_region
      %s175 = ssub.s32 %s11, 1
      // Predicated region
      $region13: #{decoder_forward.5} parent=11 // pred_check
        %p176 = pneg %p70
      $region14: #{decoder_forward.5} parent=11 // pred_check_branch
        %178 = sbr.rel (%p176) target = $region16
      $region15: #{decoder_forward.5} parent=11 // pred_region
        _
      $region16: #{decoder_forward.5} parent=11 // pred_fallthru
        _
      // Predicated region
      $region17: #{decoder_forward.5} parent=11 // pred_check
        %p179 = pneg %p91
      $region18: #{decoder_forward.5} parent=11 // pred_check_branch
        %181 = sbr.rel (%p179) target = $region20
      $region19: #{decoder_forward.5} parent=11 // pred_region
        _
      $region20: #{decoder_forward.5} parent=11 // pred_fallthru
        _
      // Predicated region
      $region21: #{decoder_forward.5} parent=11 // pred_check
        %p182 = pneg %p112
      $region22: #{decoder_forward.5} parent=11 // pred_check_branch
        %184 = sbr.rel (%p182) target = $region24
      $region23: #{decoder_forward.5} parent=11 // pred_region
        _
      $region24: #{decoder_forward.5} parent=11 // pred_fallthru
        _
      // Predicated region
      $region25: #{decoder_forward.5} parent=11 // pred_check
        %p185 = pneg %p133
      $region26: #{decoder_forward.5} parent=11 // pred_check_branch
        %187 = sbr.rel (%p185) target = $region28
      $region27: #{decoder_forward.5} parent=11 // pred_region
        _
      $region28: #{decoder_forward.5} parent=11 // pred_fallthru
        _
    $region12: #{decoder_forward.5} parent=5 // pred_fallthru
      _
    %p188 = scmp.lt.s32.totalorder %s11, 4
    // Predicated region
    $region29: #{decoder_forward.5} parent=5 // pred_check
      %p189 = pneg %p188
    $region30: #{decoder_forward.5} parent=5 // pred_check_branch
      %191 = sbr.rel (%p189) target = $region32
    $region31: #{decoder_forward.5} parent=5 // pred_region
      // Predicated region
      $region33: #{decoder_forward.5} parent=31 // pred_check
        %p192 = pneg %p43
      $region34: #{decoder_forward.5} parent=31 // pred_check_branch
        %194 = sbr.rel (%p192) target = $region36
      $region35: #{decoder_forward.5} parent=31 // pred_region
        %p195 = scmp.lt.s32.totalorder %s18, 1
        %s196 = scalar_select %p195, %s18, 1
        %s197 = smul.addr %s196, 108
        %s198 = smul.addr %s197, 4
        %s199 = scalar_lea.vmem %s0, %s198
      $region36: #{decoder_forward.5} parent=31 // pred_fallthru
        _
    $region32: #{decoder_forward.5} parent=5 // pred_fallthru
      _
    %p200 = scmp.le.s32.totalorder 1, %s11
    %p201 = scmp.lt.s32.totalorder %s11, 5
    %p202 = pnand %p200, %p201
    %p203 = pneg %p202
    // Predicated region
    $region37: #{decoder_forward.5} parent=5 // pred_check
      _
    $region38: #{decoder_forward.5} parent=5 // pred_check_branch
      %205 = sbr.rel (%p202) target = $region40
    $region39: #{decoder_forward.5} parent=5 // pred_region
      %s206 = ssub.s32 %s11, 1
      %p207 = scmp.lt.s32.totalorder %s20, 1
      %s208 = scalar_select %p207, %s20, 1
      %s209 = smul.addr %s208, 108
      %s210 = smul.addr %s209, 4
      %s211 = scalar_lea.vmem %s0, %s210
      %p212 = pneg %p49
      %p213 = pneg %p46
      %p214 = pneg %p70
      %p215 = pneg %p67
      %p216 = pneg %p91
      %p217 = pneg %p88
      %p218 = pneg %p112
      %p219 = pneg %p109
      %p220 = pneg %p133
      %p221 = pneg %p130
      %p222 = pneg %p161
      %p223 = pneg %p158
      %p224 = scmp.lt.s32.totalorder %s20, 1
      %s225 = scalar_select %p224, %s20, 1
      %p226 = scmp.lt.s32.totalorder %s21, 1
      %s227 = scalar_select %p226, %s21, 1
      %s228 = smul.addr %s225, 2
      %s229 = sadd.s32 %s227, %s228
      %s230 = smul.addr %s229, 8
      %s231 = scalar_lea.vmem %s5, %s230
      %p232 = scmp.lt.s32.totalorder %s20, 1
      %s233 = scalar_select %p232, %s20, 1
      %s234 = smul.addr %s233, 108
      %s235 = smul.addr %s234, 4
      %s236 = scalar_lea.vmem %s0, %s235
      %p237 = scmp.lt.s32.totalorder %s20, 1
      %s238 = scalar_select %p237, %s20, 1
      %p239 = scmp.lt.s32.totalorder %s21, 1
      %s240 = scalar_select %p239, %s21, 1
      %s241 = smul.addr %s238, 2
      %s242 = sadd.s32 %s240, %s241
      %s243 = smul.addr %s242, 8
      %s244 = scalar_lea.vmem %s5, %s243
      %s246 = smul.u32 %s21, 8
      %s247 = smul.u32 %s246, 6
      %s248 = smul.addr %s247, 4
      %s249 = scalar_lea.vmem %s236, %s248
      %v250 = vld [vmem:[%s249] sm:$0xff]
      %v251 = vld [vmem:[%s249 + $0x8] sm:$0xff]
      %v252 = vld [vmem:[%s249 + $0x18] sm:$0xff]
      %v253 = vld [vmem:[%s249 + $0x20] sm:$0xff]
      %v254 = vld [vmem:[%s249 + $0x30] sm:$0xff]
      %v255 = vld [vmem:[%s249 + $0x38] sm:$0xff]
      %v256 = vld [vmem:[%s249 + $0x48] sm:$0xff]
      %v257 = vld [vmem:[%s249 + $0x50] sm:$0xff]
      %v258 = vld [vmem:[%s249 + $0x60] sm:$0xff]
      %v259 = vld [vmem:[%s249 + $0x68] sm:$0xff]
      %v260 = vld [vmem:[%s249 + $0x78] sm:$0xff]
      %v261 = vld [vmem:[%s249 + $0x80] sm:$0xff]
      %v262 = vld [vmem:[%s249 + $0x90] sm:$0xff]
      %v263 = vld [vmem:[%s249 + $0x98] sm:$0xff]
      %v264 = vld [vmem:[%s249 + $0xa8] sm:$0xff]
      %v265 = vld [vmem:[%s249 + $0xb0] sm:$0xff]
      %v266 = vld [vmem:[%s249 + $0xc0] sm:$0xff]
      %v267 = vld [vmem:[%s249 + $0xc8] sm:$0xff]
      %v268 = vld [vmem:[%s249 + $0xd8] sm:$0xff]
      %v269 = vld [vmem:[%s249 + $0xe0] sm:$0xff]
      %v270 = vld [vmem:[%s1] sm:$0xff]
      %v271 = vld [vmem:[%s1 + $0x8] sm:$0xff]
      %v272 = vld [vmem:[%s1 + $0x10] sm:$0xff]
      %v273 = vld [vmem:[%s1 + $0x18] sm:$0xff]
      %v274 = vld [vmem:[%s1 + $0x20] sm:$0xff]
      %v275 = vld [vmem:[%s1 + $0x28] sm:$0xff]
      %v276 = vld [vmem:[%s1 + $0x30] sm:$0xff]
      %v277 = vld [vmem:[%s1 + $0x38] sm:$0xff]
      %v278 = vld [vmem:[%s1 + $0x40] sm:$0xff]
      %v279 = vld [vmem:[%s1 + $0x48] sm:$0xff]
      %v280 = vld [vmem:[%s1 + $0x50] sm:$0xff]
      %v281 = vld [vmem:[%s1 + $0x58] sm:$0xff]
      %v282 = vld [vmem:[%s1 + $0x60] sm:$0xff]
      %v283 = vld [vmem:[%s1 + $0x68] sm:$0xff]
      %v284 = vld [vmem:[%s1 + $0x70] sm:$0xff]
      %v285 = vld [vmem:[%s1 + $0x78] sm:$0xff]
      %v286 = vld [vmem:[%s1 + $0x80] sm:$0xff]
      %v287 = vld [vmem:[%s1 + $0x88] sm:$0xff]
      %v288 = vld [vmem:[%s1 + $0x90] sm:$0xff]
      %v289 = vld [vmem:[%s1 + $0x98] sm:$0xff]
      %v290 = vld [vmem:[%s1 + $0xa0] sm:$0xff]
      %v291 = vld [vmem:[%s1 + $0xa8] sm:$0xff]
      %v292 = vld [vmem:[%s1 + $0xb0] sm:$0xff]
      %v293 = vld [vmem:[%s1 + $0xb8] sm:$0xff]
      %v294 = vld [vmem:[%s1 + $0xc0] sm:$0xff]
      %v295 = vld [vmem:[%s1 + $0xc8] sm:$0xff]
      %v296 = vld [vmem:[%s1 + $0xd0] sm:$0xff]
      %v297 = vld [vmem:[%s1 + $0xd8] sm:$0xff]
      %v298 = vld [vmem:[%s1 + $0xe0] sm:$0xff]
      %v299 = vld [vmem:[%s1 + $0xe8] sm:$0xff]
      %v300 = vld [vmem:[%s1 + $0xf0] sm:$0xff]
      %v301 = vld [vmem:[%s1 + $0xf8] sm:$0xff]
      %s302 = scalar_lea.vmem %s1, 768
      %v303 = vld [vmem:[%s302] sm:$0xff]
      %v304 = vld [vmem:[%s302 + $0x8] sm:$0xff]
      %v305 = vld [vmem:[%s302 + $0x10] sm:$0xff]
      %v306 = vld [vmem:[%s302 + $0x18] sm:$0xff]
      %v307 = vld [vmem:[%s302 + $0x20] sm:$0xff]
      %v308 = vld [vmem:[%s302 + $0x28] sm:$0xff]
      %v309 = vld [vmem:[%s302 + $0x30] sm:$0xff]
      %v310 = vld [vmem:[%s302 + $0x38] sm:$0xff]
      %v311 = vld [vmem:[%s302 + $0x40] sm:$0xff]
      %v312 = vld [vmem:[%s302 + $0x48] sm:$0xff]
      %v313 = vld [vmem:[%s302 + $0x50] sm:$0xff]
      %v314 = vld [vmem:[%s302 + $0x58] sm:$0xff]
      %v315 = vld [vmem:[%s302 + $0x60] sm:$0xff]
      %v316 = vld [vmem:[%s302 + $0x68] sm:$0xff]
      %v317 = vld [vmem:[%s302 + $0x70] sm:$0xff]
      %v318 = vld [vmem:[%s302 + $0x78] sm:$0xff]
      %v319 = vld [vmem:[%s302 + $0x80] sm:$0xff]
      %v320 = vld [vmem:[%s302 + $0x88] sm:$0xff]
      %v321 = vld [vmem:[%s302 + $0x90] sm:$0xff]
      %v322 = vld [vmem:[%s302 + $0x98] sm:$0xff]
      %v323 = vld [vmem:[%s302 + $0xa0] sm:$0xff]
      %v324 = vld [vmem:[%s302 + $0xa8] sm:$0xff]
      %v325 = vld [vmem:[%s302 + $0xb0] sm:$0xff]
      %v326 = vld [vmem:[%s302 + $0xb8] sm:$0xff]
      %v327 = vld [vmem:[%s302 + $0xc0] sm:$0xff]
      %v328 = vld [vmem:[%s302 + $0xc8] sm:$0xff]
      %v329 = vld [vmem:[%s302 + $0xd0] sm:$0xff]
      %v330 = vld [vmem:[%s302 + $0xd8] sm:$0xff]
      %v331 = vld [vmem:[%s302 + $0xe0] sm:$0xff]
      %v332 = vld [vmem:[%s302 + $0xe8] sm:$0xff]
      %v333 = vld [vmem:[%s302 + $0xf0] sm:$0xff]
      %v334 = vld [vmem:[%s302 + $0xf8] sm:$0xff]
      %v351 = vunpack.c.l.b16 %v252
      %v352 = vunpack.c.h.b16 %v252
      %v353 = vunpack.c.l.b16 %v253
      %v354 = vunpack.c.h.b16 %v253
      %v355 = vunpack.c.l.b16 %v254
      %v356 = vunpack.c.h.b16 %v254
      %v357 = vunpack.c.l.b16 %v255
      %v358 = vunpack.c.h.b16 %v255
      %v359 = vunpack.c.l.b16 %v256
      %v360 = vunpack.c.h.b16 %v256
      %v361 = vunpack.c.l.b16 %v257
      %v362 = vunpack.c.h.b16 %v257
      %v363 = vunpack.c.l.b16 %v258
      %v364 = vunpack.c.h.b16 %v258
      %v365 = vunpack.c.l.b16 %v259
      %v366 = vunpack.c.h.b16 %v259
      %v367 = vunpack.c.l.b16 %v260
      %v368 = vunpack.c.h.b16 %v260
      %v369 = vunpack.c.l.b16 %v261
      %v370 = vunpack.c.h.b16 %v261
      %v371 = vunpack.c.l.b16 %v262
      %v372 = vunpack.c.h.b16 %v262
      %v373 = vunpack.c.l.b16 %v263
      %v374 = vunpack.c.h.b16 %v263
      %v375 = vunpack.c.l.b16 %v264
      %v376 = vunpack.c.h.b16 %v264
      %v377 = vunpack.c.l.b16 %v265
      %v378 = vunpack.c.h.b16 %v265
      %v379 = vunpack.c.l.b16 %v266
      %v380 = vunpack.c.h.b16 %v266
      %v381 = vunpack.c.l.b16 %v267
      %v382 = vunpack.c.h.b16 %v267
      %v383 = vpack.c.b16 %v353, %v351
      %v384 = vpack.c.b16 %v354, %v352
      %v385 = vpack.c.b16 %v357, %v355
      %v386 = vpack.c.b16 %v358, %v356
      %v387 = vpack.c.b16 %v361, %v359
      %v388 = vpack.c.b16 %v362, %v360
      %v389 = vpack.c.b16 %v365, %v363
      %v390 = vpack.c.b16 %v366, %v364
      %v391 = vpack.c.b16 %v369, %v367
      %v392 = vpack.c.b16 %v370, %v368
      %v393 = vpack.c.b16 %v373, %v371
      %v394 = vpack.c.b16 %v374, %v372
      %v395 = vpack.c.b16 %v377, %v375
      %v396 = vpack.c.b16 %v378, %v376
      %v397 = vpack.c.b16 %v381, %v379
      %v398 = vpack.c.b16 %v382, %v380
      %v447 = vunpack.c.l.b16 %v303
      %v448 = vunpack.c.h.b16 %v303
      %v449 = vunpack.c.l.b16 %v304
      %v450 = vunpack.c.h.b16 %v304
      %v451 = vunpack.c.l.b16 %v305
      %v452 = vunpack.c.h.b16 %v305
      %v453 = vunpack.c.l.b16 %v306
      %v454 = vunpack.c.h.b16 %v306
      %v455 = vunpack.c.l.b16 %v307
      %v456 = vunpack.c.h.b16 %v307
      %v457 = vunpack.c.l.b16 %v308
      %v458 = vunpack.c.h.b16 %v308
      %v459 = vunpack.c.l.b16 %v309
      %v460 = vunpack.c.h.b16 %v309
      %v461 = vunpack.c.l.b16 %v310
      %v462 = vunpack.c.h.b16 %v310
      %v463 = vunpack.c.l.b16 %v311
      %v464 = vunpack.c.h.b16 %v311
      %v465 = vunpack.c.l.b16 %v312
      %v466 = vunpack.c.h.b16 %v312
      %v467 = vunpack.c.l.b16 %v313
      %v468 = vunpack.c.h.b16 %v313
      %v469 = vunpack.c.l.b16 %v314
      %v470 = vunpack.c.h.b16 %v314
      %v471 = vunpack.c.l.b16 %v315
      %v472 = vunpack.c.h.b16 %v315
      %v473 = vunpack.c.l.b16 %v316
      %v474 = vunpack.c.h.b16 %v316
      %v475 = vunpack.c.l.b16 %v317
      %v476 = vunpack.c.h.b16 %v317
      %v477 = vunpack.c.l.b16 %v318
      %v478 = vunpack.c.h.b16 %v318
      %v479 = vunpack.c.l.b16 %v319
      %v480 = vunpack.c.h.b16 %v319
      %v481 = vunpack.c.l.b16 %v320
      %v482 = vunpack.c.h.b16 %v320
      %v483 = vunpack.c.l.b16 %v321
      %v484 = vunpack.c.h.b16 %v321
      %v485 = vunpack.c.l.b16 %v322
      %v486 = vunpack.c.h.b16 %v322
      %v487 = vunpack.c.l.b16 %v323
      %v488 = vunpack.c.h.b16 %v323
      %v489 = vunpack.c.l.b16 %v324
      %v490 = vunpack.c.h.b16 %v324
      %v491 = vunpack.c.l.b16 %v325
      %v492 = vunpack.c.h.b16 %v325
      %v493 = vunpack.c.l.b16 %v326
      %v494 = vunpack.c.h.b16 %v326
      %v495 = vunpack.c.l.b16 %v327
      %v496 = vunpack.c.h.b16 %v327
      %v497 = vunpack.c.l.b16 %v328
      %v498 = vunpack.c.h.b16 %v328
      %v499 = vunpack.c.l.b16 %v329
      %v500 = vunpack.c.h.b16 %v329
      %v501 = vunpack.c.l.b16 %v330
      %v502 = vunpack.c.h.b16 %v330
      %v503 = vunpack.c.l.b16 %v331
      %v504 = vunpack.c.h.b16 %v331
      %v505 = vunpack.c.l.b16 %v332
      %v506 = vunpack.c.h.b16 %v332
      %v507 = vunpack.c.l.b16 %v333
      %v508 = vunpack.c.h.b16 %v333
      %v509 = vunpack.c.l.b16 %v334
      %v510 = vunpack.c.h.b16 %v334
      %v511 = vpack.c.b16 %v449, %v447
      %v512 = vpack.c.b16 %v450, %v448
      %v513 = vpack.c.b16 %v453, %v451
      %v514 = vpack.c.b16 %v454, %v452
      %v515 = vpack.c.b16 %v457, %v455
      %v516 = vpack.c.b16 %v458, %v456
      %v517 = vpack.c.b16 %v461, %v459
      %v518 = vpack.c.b16 %v462, %v460
      %v519 = vpack.c.b16 %v465, %v463
      %v520 = vpack.c.b16 %v466, %v464
      %v521 = vpack.c.b16 %v469, %v467
      %v522 = vpack.c.b16 %v470, %v468
      %v523 = vpack.c.b16 %v473, %v471
      %v524 = vpack.c.b16 %v474, %v472
      %v525 = vpack.c.b16 %v477, %v475
      %v526 = vpack.c.b16 %v478, %v476
      %v527 = vpack.c.b16 %v481, %v479
      %v528 = vpack.c.b16 %v482, %v480
      %v529 = vpack.c.b16 %v485, %v483
      %v530 = vpack.c.b16 %v486, %v484
      %v531 = vpack.c.b16 %v489, %v487
      %v532 = vpack.c.b16 %v490, %v488
      %v533 = vpack.c.b16 %v493, %v491
      %v534 = vpack.c.b16 %v494, %v492
      %v535 = vpack.c.b16 %v497, %v495
      %v536 = vpack.c.b16 %v498, %v496
      %v537 = vpack.c.b16 %v501, %v499
      %v538 = vpack.c.b16 %v502, %v500
      %v539 = vpack.c.b16 %v505, %v503
      %v540 = vpack.c.b16 %v506, %v504
      %v541 = vpack.c.b16 %v509, %v507
      %v542 = vpack.c.b16 %v510, %v508
      %575 = vmatprep.subr.bf16.mxu0 %v512
      %576 = vmatpush1.bf16.msra.mxu0 %v511
      %577 = vmatprep.subr.bf16.mxu0 %v514
      %578 = vmatpush1.bf16.msra.mxu0 %v513
      %579 = vmatprep.subr.bf16.mxu0 %v516
      %580 = vmatpush1.bf16.msra.mxu0 %v515
      %581 = vmatprep.subr.bf16.mxu0 %v518
      %582 = vmatpush1.bf16.msra.mxu0 %v517
      %583 = vmatprep.subr.bf16.mxu0 %v520
      %584 = vmatpush1.bf16.msra.mxu0 %v519
      %585 = vmatprep.subr.bf16.mxu0 %v522
      %586 = vmatpush1.bf16.msra.mxu0 %v521
      %587 = vmatprep.subr.bf16.mxu0 %v524
      %588 = vmatpush1.bf16.msra.mxu0 %v523
      %589 = vmatprep.subr.bf16.mxu0 %v526
      %590 = vmatpush1.bf16.msra.mxu0 %v525
      %591 = vmatprep.subr.bf16.mxu0 %v528
      %592 = vmatpush1.bf16.msra.mxu0 %v527
      %593 = vmatprep.subr.bf16.mxu0 %v530
      %594 = vmatpush1.bf16.msra.mxu0 %v529
      %595 = vmatprep.subr.bf16.mxu0 %v532
      %596 = vmatpush1.bf16.msra.mxu0 %v531
      %597 = vmatprep.subr.bf16.mxu0 %v534
      %598 = vmatpush1.bf16.msra.mxu0 %v533
      %599 = vmatprep.subr.bf16.mxu0 %v536
      %600 = vmatpush1.bf16.msra.mxu0 %v535
      %601 = vmatprep.subr.bf16.mxu0 %v538
      %602 = vmatpush1.bf16.msra.mxu0 %v537
      %603 = vmatprep.subr.bf16.mxu0 %v540
      %604 = vmatpush1.bf16.msra.mxu0 %v539
      %605 = vmatprep.subr.bf16.mxu0 %v542
      %606 = vmatpush1.bf16.msra.mxu0 %v541
      %607 = vmatprep.mubr.bf16.mxu0 %v384
      %608 = vmatmul.mubr.bf16.gmra.mrb[0].mxu0 %v383
      %v609 = vpop.f32.mrb[0].mxu0
      %v610 = vadd.f32 0.0, %v609
      %v611 = vpop.f32.mrb[0].mxu0
      %v612 = vadd.f32 0.0, %v611
      %v613 = vpop.f32.mrb[0].mxu0
      %v614 = vadd.f32 0.0, %v613
      %v615 = vpop.f32.mrb[0].mxu0
      %v616 = vadd.f32 0.0, %v615
      %617 = vmatprep.mubr.bf16.mxu0 %v386
      %618 = vmatmul.mubr.bf16.gmra.mrb[0].mxu0 %v385
      %v619 = vpop.f32.mrb[0].mxu0
      %v620 = vadd.f32 0.0, %v619
      %v621 = vpop.f32.mrb[0].mxu0
      %v622 = vadd.f32 0.0, %v621
      %v623 = vpop.f32.mrb[0].mxu0
      %v624 = vadd.f32 0.0, %v623
      %v625 = vpop.f32.mrb[0].mxu0
      %v626 = vadd.f32 0.0, %v625
      %627 = vmatprep.mubr.bf16.mxu0 %v388
      %628 = vmatmul.mubr.bf16.gmra.mrb[0].mxu0 %v387
      %v629 = vpop.f32.mrb[0].mxu0
      %v630 = vadd.f32 0.0, %v629
      %v631 = vpop.f32.mrb[0].mxu0
      %v632 = vadd.f32 0.0, %v631
      %v633 = vpop.f32.mrb[0].mxu0
      %v634 = vadd.f32 0.0, %v633
      %v635 = vpop.f32.mrb[0].mxu0
      %v636 = vadd.f32 0.0, %v635
      %637 = vmatprep.mubr.bf16.mxu0 %v390
      %638 = vmatmul.mubr.bf16.gmra.mrb[0].mxu0 %v389
      %v639 = vpop.f32.mrb[0].mxu0
      %v640 = vadd.f32 0.0, %v639
      %v641 = vpop.f32.mrb[0].mxu0
      %v642 = vadd.f32 0.0, %v641
      %v643 = vpop.f32.mrb[0].mxu0
      %v644 = vadd.f32 0.0, %v643
      %v645 = vpop.f32.mrb[0].mxu0
      %v646 = vadd.f32 0.0, %v645
      %647 = vmatprep.mubr.bf16.mxu0 %v392
      %648 = vmatmul.mubr.bf16.gmra.mrb[0].mxu0 %v391
      %v649 = vpop.f32.mrb[0].mxu0
      %v650 = vadd.f32 0.0, %v649
      %v651 = vpop.f32.mrb[0].mxu0
      %v652 = vadd.f32 0.0, %v651
      %v653 = vpop.f32.mrb[0].mxu0
      %v654 = vadd.f32 0.0, %v653
      %v655 = vpop.f32.mrb[0].mxu0
      %v656 = vadd.f32 0.0, %v655
      %657 = vmatprep.mubr.bf16.mxu0 %v394
      %658 = vmatmul.mubr.bf16.gmra.mrb[0].mxu0 %v393
      %v659 = vpop.f32.mrb[0].mxu0
      %v660 = vadd.f32 0.0, %v659
      %v661 = vpop.f32.mrb[0].mxu0
      %v662 = vadd.f32 0.0, %v661
      %v663 = vpop.f32.mrb[0].mxu0
      %v664 = vadd.f32 0.0, %v663
      %v665 = vpop.f32.mrb[0].mxu0
      %v666 = vadd.f32 0.0, %v665
      %667 = vmatprep.mubr.bf16.mxu0 %v396
      %668 = vmatmul.mubr.bf16.gmra.mrb[0].mxu0 %v395
      %v669 = vpop.f32.mrb[0].mxu0
      %v670 = vadd.f32 0.0, %v669
      %v671 = vpop.f32.mrb[0].mxu0
      %v672 = vadd.f32 0.0, %v671
      %v673 = vpop.f32.mrb[0].mxu0
      %v674 = vadd.f32 0.0, %v673
      %v675 = vpop.f32.mrb[0].mxu0
      %v676 = vadd.f32 0.0, %v675
      %677 = vmatprep.mubr.bf16.mxu0 %v398
      %678 = vmatmul.mubr.bf16.gmra.mrb[0].mxu0 %v397
      %v679 = vpop.f32.mrb[0].mxu0
      %v680 = vadd.f32 0.0, %v679
      %v681 = vpop.f32.mrb[0].mxu0
      %v682 = vadd.f32 0.0, %v681
      %v683 = vpop.f32.mrb[0].mxu0
      %v684 = vadd.f32 0.0, %v683
      %v685 = vpop.f32.mrb[0].mxu0
      %v686 = vadd.f32 0.0, %v685
      %687 = vdwg.mxu0
      %v690 = vunpack.c.l.b16 %v250
      %v691 = vunpack.c.h.b16 %v250
      %v692 = vunpack.c.l.b16 %v251
      %v693 = vunpack.c.h.b16 %v251
      %v694 = vpack.c.b16 %v692, %v690
      %v695 = vpack.c.b16 %v693, %v691
      %v730 = vunpack.c.l.b16 %v270
      %v731 = vunpack.c.h.b16 %v270
      %v732 = vunpack.c.l.b16 %v271
      %v733 = vunpack.c.h.b16 %v271
      %v734 = vunpack.c.l.b16 %v272
      %v735 = vunpack.c.h.b16 %v272
      %v736 = vunpack.c.l.b16 %v273
      %v737 = vunpack.c.h.b16 %v273
      %v738 = vunpack.c.l.b16 %v274
      %v739 = vunpack.c.h.b16 %v274
      %v740 = vunpack.c.l.b16 %v275
      %v741 = vunpack.c.h.b16 %v275
      %v742 = vunpack.c.l.b16 %v276
      %v743 = vunpack.c.h.b16 %v276
      %v744 = vunpack.c.l.b16 %v277
      %v745 = vunpack.c.h.b16 %v277
      %v746 = vunpack.c.l.b16 %v278
      %v747 = vunpack.c.h.b16 %v278
      %v748 = vunpack.c.l.b16 %v279
      %v749 = vunpack.c.h.b16 %v279
      %v750 = vunpack.c.l.b16 %v280
      %v751 = vunpack.c.h.b16 %v280
      %v752 = vunpack.c.l.b16 %v281
      %v753 = vunpack.c.h.b16 %v281
      %v754 = vunpack.c.l.b16 %v282
      %v755 = vunpack.c.h.b16 %v282
      %v756 = vunpack.c.l.b16 %v283
      %v757 = vunpack.c.h.b16 %v283
      %v758 = vunpack.c.l.b16 %v284
      %v759 = vunpack.c.h.b16 %v284
      %v760 = vunpack.c.l.b16 %v285
      %v761 = vunpack.c.h.b16 %v285
      %v762 = vunpack.c.l.b16 %v286
      %v763 = vunpack.c.h.b16 %v286
      %v764 = vunpack.c.l.b16 %v287
      %v765 = vunpack.c.h.b16 %v287
      %v766 = vunpack.c.l.b16 %v288
      %v767 = vunpack.c.h.b16 %v288
      %v768 = vunpack.c.l.b16 %v289
      %v769 = vunpack.c.h.b16 %v289
      %v770 = vunpack.c.l.b16 %v290
      %v771 = vunpack.c.h.b16 %v290
      %v772 = vunpack.c.l.b16 %v291
      %v773 = vunpack.c.h.b16 %v291
      %v774 = vunpack.c.l.b16 %v292
      %v775 = vunpack.c.h.b16 %v292
      %v776 = vunpack.c.l.b16 %v293
      %v777 = vunpack.c.h.b16 %v293
      %v778 = vunpack.c.l.b16 %v294
      %v779 = vunpack.c.h.b16 %v294
      %v780 = vunpack.c.l.b16 %v295
      %v781 = vunpack.c.h.b16 %v295
      %v782 = vunpack.c.l.b16 %v296
      %v783 = vunpack.c.h.b16 %v296
      %v784 = vunpack.c.l.b16 %v297
      %v785 = vunpack.c.h.b16 %v297
      %v786 = vunpack.c.l.b16 %v298
      %v787 = vunpack.c.h.b16 %v298
      %v788 = vunpack.c.l.b16 %v299
      %v789 = vunpack.c.h.b16 %v299
      %v790 = vunpack.c.l.b16 %v300
      %v791 = vunpack.c.h.b16 %v300
      %v792 = vunpack.c.l.b16 %v301
      %v793 = vunpack.c.h.b16 %v301
      %v794 = vpack.c.b16 %v732, %v730
      %v795 = vpack.c.b16 %v733, %v731
      %v796 = vpack.c.b16 %v736, %v734
      %v797 = vpack.c.b16 %v737, %v735
      %v798 = vpack.c.b16 %v740, %v738
      %v799 = vpack.c.b16 %v741, %v739
      %v800 = vpack.c.b16 %v744, %v742
      %v801 = vpack.c.b16 %v745, %v743
      %v802 = vpack.c.b16 %v748, %v746
      %v803 = vpack.c.b16 %v749, %v747
      %v804 = vpack.c.b16 %v752, %v750
      %v805 = vpack.c.b16 %v753, %v751
      %v806 = vpack.c.b16 %v756, %v754
      %v807 = vpack.c.b16 %v757, %v755
      %v808 = vpack.c.b16 %v760, %v758
      %v809 = vpack.c.b16 %v761, %v759
      %v810 = vpack.c.b16 %v764, %v762
      %v811 = vpack.c.b16 %v765, %v763
      %v812 = vpack.c.b16 %v768, %v766
      %v813 = vpack.c.b16 %v769, %v767
      %v814 = vpack.c.b16 %v772, %v770
      %v815 = vpack.c.b16 %v773, %v771
      %v816 = vpack.c.b16 %v776, %v774
      %v817 = vpack.c.b16 %v777, %v775
      %v818 = vpack.c.b16 %v780, %v778
      %v819 = vpack.c.b16 %v781, %v779
      %v820 = vpack.c.b16 %v784, %v782
      %v821 = vpack.c.b16 %v785, %v783
      %v822 = vpack.c.b16 %v788, %v786
      %v823 = vpack.c.b16 %v789, %v787
      %v824 = vpack.c.b16 %v792, %v790
      %v825 = vpack.c.b16 %v793, %v791
      %858 = vmatprep.subr.bf16.mxu0 %v795
      %859 = vmatpush1.bf16.msra.mxu0 %v794
      %860 = vmatprep.subr.bf16.mxu0 %v797
      %861 = vmatpush1.bf16.msra.mxu0 %v796
      %862 = vmatprep.subr.bf16.mxu0 %v799
      %863 = vmatpush1.bf16.msra.mxu0 %v798
      %864 = vmatprep.subr.bf16.mxu0 %v801
      %865 = vmatpush1.bf16.msra.mxu0 %v800
      %866 = vmatprep.subr.bf16.mxu0 %v803
      %867 = vmatpush1.bf16.msra.mxu0 %v802
      %868 = vmatprep.subr.bf16.mxu0 %v805
      %869 = vmatpush1.bf16.msra.mxu0 %v804
      %870 = vmatprep.subr.bf16.mxu0 %v807
      %871 = vmatpush1.bf16.msra.mxu0 %v806
      %872 = vmatprep.subr.bf16.mxu0 %v809
      %873 = vmatpush1.bf16.msra.mxu0 %v808
      %874 = vmatprep.subr.bf16.mxu0 %v811
      %875 = vmatpush1.bf16.msra.mxu0 %v810
      %876 = vmatprep.subr.bf16.mxu0 %v813
      %877 = vmatpush1.bf16.msra.mxu0 %v812
      %878 = vmatprep.subr.bf16.mxu0 %v815
      %879 = vmatpush1.bf16.msra.mxu0 %v814
      %880 = vmatprep.subr.bf16.mxu0 %v817
      %881 = vmatpush1.bf16.msra.mxu0 %v816
      %882 = vmatprep.subr.bf16.mxu0 %v819
      %883 = vmatpush1.bf16.msra.mxu0 %v818
      %884 = vmatprep.subr.bf16.mxu0 %v821
      %885 = vmatpush1.bf16.msra.mxu0 %v820
      %886 = vmatprep.subr.bf16.mxu0 %v823
      %887 = vmatpush1.bf16.msra.mxu0 %v822
      %888 = vmatprep.subr.bf16.mxu0 %v825
      %889 = vmatpush1.bf16.msra.mxu0 %v824
      %890 = vmatprep.mubr.bf16.mxu0 %v695
      %891 = vmatmul.mubr.bf16.gmra.mrb[0].mxu0 %v694
      %v892 = vpop.f32.mrb[0].mxu0
      %v893 = vadd.f32 %v610, %v892
      %v894 = vpop.f32.mrb[0].mxu0
      %v895 = vadd.f32 %v612, %v894
      %v896 = vpop.f32.mrb[0].mxu0
      %v897 = vadd.f32 %v614, %v896
      %v898 = vpop.f32.mrb[0].mxu0
      %v899 = vadd.f32 %v616, %v898
      %900 = vmatprep.mubr.bf16.mxu0 %v384
      %901 = vmatmul.mubr.bf16.gmra.mrb[0].mxu0 %v383
      %v902 = vpop.f32.mrb[0].mxu0
      %v903 = vadd.f32 %v620, %v902
      %v904 = vpop.f32.mrb[0].mxu0
      %v905 = vadd.f32 %v622, %v904
      %v906 = vpop.f32.mrb[0].mxu0
      %v907 = vadd.f32 %v624, %v906
      %v908 = vpop.f32.mrb[0].mxu0
      %v909 = vadd.f32 %v626, %v908
      %910 = vmatprep.mubr.bf16.mxu0 %v386
      %911 = vmatmul.mubr.bf16.gmra.mrb[0].mxu0 %v385
      %v912 = vpop.f32.mrb[0].mxu0
      %v913 = vadd.f32 %v630, %v912
      %v914 = vpop.f32.mrb[0].mxu0
      %v915 = vadd.f32 %v632, %v914
      %v916 = vpop.f32.mrb[0].mxu0
      %v917 = vadd.f32 %v634, %v916
      %v918 = vpop.f32.mrb[0].mxu0
      %v919 = vadd.f32 %v636, %v918
      %920 = vmatprep.mubr.bf16.mxu0 %v388
      %921 = vmatmul.mubr.bf16.gmra.mrb[0].mxu0 %v387
      %v922 = vpop.f32.mrb[0].mxu0
      %v923 = vadd.f32 %v640, %v922
      %v924 = vpop.f32.mrb[0].mxu0
      %v925 = vadd.f32 %v642, %v924
      %v926 = vpop.f32.mrb[0].mxu0
      %v927 = vadd.f32 %v644, %v926
      %v928 = vpop.f32.mrb[0].mxu0
      %v929 = vadd.f32 %v646, %v928
      %930 = vmatprep.mubr.bf16.mxu0 %v390
      %931 = vmatmul.mubr.bf16.gmra.mrb[0].mxu0 %v389
      %v932 = vpop.f32.mrb[0].mxu0
      %v933 = vadd.f32 %v650, %v932
      %v934 = vpop.f32.mrb[0].mxu0
      %v935 = vadd.f32 %v652, %v934
      %v936 = vpop.f32.mrb[0].mxu0
      %v937 = vadd.f32 %v654, %v936
      %v938 = vpop.f32.mrb[0].mxu0
      %v939 = vadd.f32 %v656, %v938
      %940 = vmatprep.mubr.bf16.mxu0 %v392
      %941 = vmatmul.mubr.bf16.gmra.mrb[0].mxu0 %v391
      %v942 = vpop.f32.mrb[0].mxu0
      %v943 = vadd.f32 %v660, %v942
      %v944 = vpop.f32.mrb[0].mxu0
      %v945 = vadd.f32 %v662, %v944
      %v946 = vpop.f32.mrb[0].mxu0
      %v947 = vadd.f32 %v664, %v946
      %v948 = vpop.f32.mrb[0].mxu0
      %v949 = vadd.f32 %v666, %v948
      %950 = vmatprep.mubr.bf16.mxu0 %v394
      %951 = vmatmul.mubr.bf16.gmra.mrb[0].mxu0 %v393
      %v952 = vpop.f32.mrb[0].mxu0
      %v953 = vadd.f32 %v670, %v952
      %v954 = vpop.f32.mrb[0].mxu0
      %v955 = vadd.f32 %v672, %v954
      %v956 = vpop.f32.mrb[0].mxu0
      %v957 = vadd.f32 %v674, %v956
      %v958 = vpop.f32.mrb[0].mxu0
      %v959 = vadd.f32 %v676, %v958
      %960 = vmatprep.mubr.bf16.mxu0 %v396
      %961 = vmatmul.mubr.bf16.gmra.mrb[0].mxu0 %v395
      %v962 = vpop.f32.mrb[0].mxu0
      %v963 = vadd.f32 %v680, %v962
      %v964 = vpop.f32.mrb[0].mxu0
      %v965 = vadd.f32 %v682, %v964
      %v966 = vpop.f32.mrb[0].mxu0
      %v967 = vadd.f32 %v684, %v966
      %v968 = vpop.f32.mrb[0].mxu0
      %v969 = vadd.f32 %v686, %v968
      %970 = vdwg.mxu0
      %s971 = scalar_lea.vmem %s1, 1536
      %v972 = vld [vmem:[%s971] sm:$0xff]
      %v973 = vld [vmem:[%s971 + $0x8] sm:$0xff]
      %v974 = vld [vmem:[%s971 + $0x10] sm:$0xff]
      %v975 = vld [vmem:[%s971 + $0x18] sm:$0xff]
      %v976 = vld [vmem:[%s971 + $0x20] sm:$0xff]
      %v977 = vld [vmem:[%s971 + $0x28] sm:$0xff]
      %v978 = vld [vmem:[%s971 + $0x30] sm:$0xff]
      %v979 = vld [vmem:[%s971 + $0x38] sm:$0xff]
      %v980 = vld [vmem:[%s971 + $0x40] sm:$0xff]
      %v981 = vld [vmem:[%s971 + $0x48] sm:$0xff]
      %v982 = vld [vmem:[%s971 + $0x50] sm:$0xff]
      %v983 = vld [vmem:[%s971 + $0x58] sm:$0xff]
      %v984 = vld [vmem:[%s971 + $0x60] sm:$0xff]
      %v985 = vld [vmem:[%s971 + $0x68] sm:$0xff]
      %v986 = vld [vmem:[%s971 + $0x70] sm:$0xff]
      %v987 = vld [vmem:[%s971 + $0x78] sm:$0xff]
      %v988 = vld [vmem:[%s971 + $0x80] sm:$0xff]
      %v989 = vld [vmem:[%s971 + $0x88] sm:$0xff]
      %v990 = vld [vmem:[%s971 + $0x90] sm:$0xff]
      %v991 = vld [vmem:[%s971 + $0x98] sm:$0xff]
      %v992 = vld [vmem:[%s971 + $0xa0] sm:$0xff]
      %v993 = vld [vmem:[%s971 + $0xa8] sm:$0xff]
      %v994 = vld [vmem:[%s971 + $0xb0] sm:$0xff]
      %v995 = vld [vmem:[%s971 + $0xb8] sm:$0xff]
      %v996 = vld [vmem:[%s971 + $0xc0] sm:$0xff]
      %v997 = vld [vmem:[%s971 + $0xc8] sm:$0xff]
      %v998 = vld [vmem:[%s971 + $0xd0] sm:$0xff]
      %v999 = vld [vmem:[%s971 + $0xd8] sm:$0xff]
      %v1000 = vld [vmem:[%s971 + $0xe0] sm:$0xff]
      %v1001 = vld [vmem:[%s971 + $0xe8] sm:$0xff]
      %v1002 = vld [vmem:[%s971 + $0xf0] sm:$0xff]
      %v1003 = vld [vmem:[%s971 + $0xf8] sm:$0xff]
      %v1006 = vunpack.c.l.b16 %v268
      %v1007 = vunpack.c.h.b16 %v268
      %v1008 = vunpack.c.l.b16 %v269
      %v1009 = vunpack.c.h.b16 %v269
      %v1010 = vpack.c.b16 %v1008, %v1006
      %v1011 = vpack.c.b16 %v1009, %v1007
      %v1046 = vunpack.c.l.b16 %v972
      %v1047 = vunpack.c.h.b16 %v972
      %v1048 = vunpack.c.l.b16 %v973
      %v1049 = vunpack.c.h.b16 %v973
      %v1050 = vunpack.c.l.b16 %v974
      %v1051 = vunpack.c.h.b16 %v974
      %v1052 = vunpack.c.l.b16 %v975
      %v1053 = vunpack.c.h.b16 %v975
      %v1054 = vunpack.c.l.b16 %v976
      %v1055 = vunpack.c.h.b16 %v976
      %v1056 = vunpack.c.l.b16 %v977
      %v1057 = vunpack.c.h.b16 %v977
      %v1058 = vunpack.c.l.b16 %v978
      %v1059 = vunpack.c.h.b16 %v978
      %v1060 = vunpack.c.l.b16 %v979
      %v1061 = vunpack.c.h.b16 %v979
      %v1062 = vunpack.c.l.b16 %v980
      %v1063 = vunpack.c.h.b16 %v980
      %v1064 = vunpack.c.l.b16 %v981
      %v1065 = vunpack.c.h.b16 %v981
      %v1066 = vunpack.c.l.b16 %v982
      %v1067 = vunpack.c.h.b16 %v982
      %v1068 = vunpack.c.l.b16 %v983
      %v1069 = vunpack.c.h.b16 %v983
      %v1070 = vunpack.c.l.b16 %v984
      %v1071 = vunpack.c.h.b16 %v984
      %v1072 = vunpack.c.l.b16 %v985
      %v1073 = vunpack.c.h.b16 %v985
      %v1074 = vunpack.c.l.b16 %v986
      %v1075 = vunpack.c.h.b16 %v986
      %v1076 = vunpack.c.l.b16 %v987
      %v1077 = vunpack.c.h.b16 %v987
      %v1078 = vunpack.c.l.b16 %v988
      %v1079 = vunpack.c.h.b16 %v988
      %v1080 = vunpack.c.l.b16 %v989
      %v1081 = vunpack.c.h.b16 %v989
      %v1082 = vunpack.c.l.b16 %v990
      %v1083 = vunpack.c.h.b16 %v990
      %v1084 = vunpack.c.l.b16 %v991
      %v1085 = vunpack.c.h.b16 %v991
      %v1086 = vunpack.c.l.b16 %v992
      %v1087 = vunpack.c.h.b16 %v992
      %v1088 = vunpack.c.l.b16 %v993
      %v1089 = vunpack.c.h.b16 %v993
      %v1090 = vunpack.c.l.b16 %v994
      %v1091 = vunpack.c.h.b16 %v994
      %v1092 = vunpack.c.l.b16 %v995
      %v1093 = vunpack.c.h.b16 %v995
      %v1094 = vunpack.c.l.b16 %v996
      %v1095 = vunpack.c.h.b16 %v996
      %v1096 = vunpack.c.l.b16 %v997
      %v1097 = vunpack.c.h.b16 %v997
      %v1098 = vunpack.c.l.b16 %v998
      %v1099 = vunpack.c.h.b16 %v998
      %v1100 = vunpack.c.l.b16 %v999
      %v1101 = vunpack.c.h.b16 %v999
      %v1102 = vunpack.c.l.b16 %v1000
      %v1103 = vunpack.c.h.b16 %v1000
      %v1104 = vunpack.c.l.b16 %v1001
      %v1105 = vunpack.c.h.b16 %v1001
      %v1106 = vunpack.c.l.b16 %v1002
      %v1107 = vunpack.c.h.b16 %v1002
      %v1108 = vunpack.c.l.b16 %v1003
      %v1109 = vunpack.c.h.b16 %v1003
      %v1110 = vpack.c.b16 %v1048, %v1046
      %v1111 = vpack.c.b16 %v1049, %v1047
      %v1112 = vpack.c.b16 %v1052, %v1050
      %v1113 = vpack.c.b16 %v1053, %v1051
      %v1114 = vpack.c.b16 %v1056, %v1054
      %v1115 = vpack.c.b16 %v1057, %v1055
      %v1116 = vpack.c.b16 %v1060, %v1058
      %v1117 = vpack.c.b16 %v1061, %v1059
      %v1118 = vpack.c.b16 %v1064, %v1062
      %v1119 = vpack.c.b16 %v1065, %v1063
      %v1120 = vpack.c.b16 %v1068, %v1066
      %v1121 = vpack.c.b16 %v1069, %v1067
      %v1122 = vpack.c.b16 %v1072, %v1070
      %v1123 = vpack.c.b16 %v1073, %v1071
      %v1124 = vpack.c.b16 %v1076, %v1074
      %v1125 = vpack.c.b16 %v1077, %v1075
      %v1126 = vpack.c.b16 %v1080, %v1078
      %v1127 = vpack.c.b16 %v1081, %v1079
      %v1128 = vpack.c.b16 %v1084, %v1082
      %v1129 = vpack.c.b16 %v1085, %v1083
      %v1130 = vpack.c.b16 %v1088, %v1086
      %v1131 = vpack.c.b16 %v1089, %v1087
      %v1132 = vpack.c.b16 %v1092, %v1090
      %v1133 = vpack.c.b16 %v1093, %v1091
      %v1134 = vpack.c.b16 %v1096, %v1094
      %v1135 = vpack.c.b16 %v1097, %v1095
      %v1136 = vpack.c.b16 %v1100, %v1098
      %v1137 = vpack.c.b16 %v1101, %v1099
      %v1138 = vpack.c.b16 %v1104, %v1102
      %v1139 = vpack.c.b16 %v1105, %v1103
      %v1140 = vpack.c.b16 %v1108, %v1106
      %v1141 = vpack.c.b16 %v1109, %v1107
      %1174 = vmatprep.subr.bf16.mxu0 %v1111
      %1175 = vmatpush1.bf16.msra.mxu0 %v1110
      %1176 = vmatprep.subr.bf16.mxu0 %v1113
      %1177 = vmatpush1.bf16.msra.mxu0 %v1112
      %1178 = vmatprep.subr.bf16.mxu0 %v1115
      %1179 = vmatpush1.bf16.msra.mxu0 %v1114
      %1180 = vmatprep.subr.bf16.mxu0 %v1117
      %1181 = vmatpush1.bf16.msra.mxu0 %v1116
      %1182 = vmatprep.subr.bf16.mxu0 %v1119
      %1183 = vmatpush1.bf16.msra.mxu0 %v1118
      %1184 = vmatprep.subr.bf16.mxu0 %v1121
      %1185 = vmatpush1.bf16.msra.mxu0 %v1120
      %1186 = vmatprep.subr.bf16.mxu0 %v1123
      %1187 = vmatpush1.bf16.msra.mxu0 %v1122
      %1188 = vmatprep.subr.bf16.mxu0 %v1125
      %1189 = vmatpush1.bf16.msra.mxu0 %v1124
      %1190 = vmatprep.subr.bf16.mxu0 %v1127
      %1191 = vmatpush1.bf16.msra.mxu0 %v1126
      %1192 = vmatprep.subr.bf16.mxu0 %v1129
      %1193 = vmatpush1.bf16.msra.mxu0 %v1128
      %1194 = vmatprep.subr.bf16.mxu0 %v1131
      %1195 = vmatpush1.bf16.msra.mxu0 %v1130
      %1196 = vmatprep.subr.bf16.mxu0 %v1133
      %1197 = vmatpush1.bf16.msra.mxu0 %v1132
      %1198 = vmatprep.subr.bf16.mxu0 %v1135
      %1199 = vmatpush1.bf16.msra.mxu0 %v1134
      %1200 = vmatprep.subr.bf16.mxu0 %v1137
      %1201 = vmatpush1.bf16.msra.mxu0 %v1136
      %1202 = vmatprep.subr.bf16.mxu0 %v1139
      %1203 = vmatpush1.bf16.msra.mxu0 %v1138
      %1204 = vmatprep.subr.bf16.mxu0 %v1141
      %1205 = vmatpush1.bf16.msra.mxu0 %v1140
      %1206 = vmatprep.mubr.bf16.mxu0 %v386
      %1207 = vmatmul.mubr.bf16.gmra.mrb[0].mxu0 %v385
      %v1208 = vpop.f32.mrb[0].mxu0
      %v1209 = vadd.f32 0.0, %v1208
      %v1210 = vpop.f32.mrb[0].mxu0
      %v1211 = vadd.f32 0.0, %v1210
      %v1212 = vpop.f32.mrb[0].mxu0
      %v1213 = vadd.f32 0.0, %v1212
      %v1214 = vpop.f32.mrb[0].mxu0
      %v1215 = vadd.f32 0.0, %v1214
      %1216 = vmatprep.mubr.bf16.mxu0 %v388
      %1217 = vmatmul.mubr.bf16.gmra.mrb[0].mxu0 %v387
      %v1218 = vpop.f32.mrb[0].mxu0
      %v1219 = vadd.f32 0.0, %v1218
      %v1220 = vpop.f32.mrb[0].mxu0
      %v1221 = vadd.f32 0.0, %v1220
      %v1222 = vpop.f32.mrb[0].mxu0
      %v1223 = vadd.f32 0.0, %v1222
      %v1224 = vpop.f32.mrb[0].mxu0
      %v1225 = vadd.f32 0.0, %v1224
      %1226 = vmatprep.mubr.bf16.mxu0 %v390
      %1227 = vmatmul.mubr.bf16.gmra.mrb[0].mxu0 %v389
      %v1228 = vpop.f32.mrb[0].mxu0
      %v1229 = vadd.f32 0.0, %v1228
      %v1230 = vpop.f32.mrb[0].mxu0
      %v1231 = vadd.f32 0.0, %v1230
      %v1232 = vpop.f32.mrb[0].mxu0
      %v1233 = vadd.f32 0.0, %v1232
      %v1234 = vpop.f32.mrb[0].mxu0
      %v1235 = vadd.f32 0.0, %v1234
      %1236 = vmatprep.mubr.bf16.mxu0 %v392
      %1237 = vmatmul.mubr.bf16.gmra.mrb[0].mxu0 %v391
      %v1238 = vpop.f32.mrb[0].mxu0
      %v1239 = vadd.f32 0.0, %v1238
      %v1240 = vpop.f32.mrb[0].mxu0
      %v1241 = vadd.f32 0.0, %v1240
      %v1242 = vpop.f32.mrb[0].mxu0
      %v1243 = vadd.f32 0.0, %v1242
      %v1244 = vpop.f32.mrb[0].mxu0
      %v1245 = vadd.f32 0.0, %v1244
      %1246 = vmatprep.mubr.bf16.mxu0 %v394
      %1247 = vmatmul.mubr.bf16.gmra.mrb[0].mxu0 %v393
      %v1248 = vpop.f32.mrb[0].mxu0
      %v1249 = vadd.f32 0.0, %v1248
      %v1250 = vpop.f32.mrb[0].mxu0
      %v1251 = vadd.f32 0.0, %v1250
      %v1252 = vpop.f32.mrb[0].mxu0
      %v1253 = vadd.f32 0.0, %v1252
      %v1254 = vpop.f32.mrb[0].mxu0
      %v1255 = vadd.f32 0.0, %v1254
      %1256 = vmatprep.mubr.bf16.mxu0 %v396
      %1257 = vmatmul.mubr.bf16.gmra.mrb[0].mxu0 %v395
      %v1258 = vpop.f32.mrb[0].mxu0
      %v1259 = vadd.f32 0.0, %v1258
      %v1260 = vpop.f32.mrb[0].mxu0
      %v1261 = vadd.f32 0.0, %v1260
      %v1262 = vpop.f32.mrb[0].mxu0
      %v1263 = vadd.f32 0.0, %v1262
      %v1264 = vpop.f32.mrb[0].mxu0
      %v1265 = vadd.f32 0.0, %v1264
      %1266 = vmatprep.mubr.bf16.mxu0 %v398
      %1267 = vmatmul.mubr.bf16.gmra.mrb[0].mxu0 %v397
      %v1268 = vpop.f32.mrb[0].mxu0
      %v1269 = vadd.f32 0.0, %v1268
      %v1270 = vpop.f32.mrb[0].mxu0
      %v1271 = vadd.f32 0.0, %v1270
      %v1272 = vpop.f32.mrb[0].mxu0
      %v1273 = vadd.f32 0.0, %v1272
      %v1274 = vpop.f32.mrb[0].mxu0
      %v1275 = vadd.f32 0.0, %v1274
      %1276 = vmatprep.mubr.bf16.mxu0 %v1011
      %1277 = vmatmul.mubr.bf16.gmra.mrb[0].mxu0 %v1010
      %v1278 = vpop.f32.mrb[0].mxu0
      %v1279 = vadd.f32 0.0, %v1278
      %v1280 = vpop.f32.mrb[0].mxu0
      %v1281 = vadd.f32 0.0, %v1280
      %v1282 = vpop.f32.mrb[0].mxu0
      %v1283 = vadd.f32 0.0, %v1282
      %v1284 = vpop.f32.mrb[0].mxu0
      %v1285 = vadd.f32 0.0, %v1284
      %1286 = vdwg.mxu0
      %v1287 = vadd.f32 %v893, %v1209
      %v1288 = vadd.f32 %v895, %v1211
      %v1289 = vadd.f32 %v897, %v1213
      %v1290 = vadd.f32 %v899, %v1215
      %v1291 = vadd.f32 %v903, %v1219
      %v1292 = vadd.f32 %v905, %v1221
      %v1293 = vadd.f32 %v907, %v1223
      %v1294 = vadd.f32 %v909, %v1225
      %v1295 = vadd.f32 %v913, %v1229
      %v1296 = vadd.f32 %v915, %v1231
      %v1297 = vadd.f32 %v917, %v1233
      %v1298 = vadd.f32 %v919, %v1235
      %v1299 = vadd.f32 %v923, %v1239
      %v1300 = vadd.f32 %v925, %v1241
      %v1301 = vadd.f32 %v927, %v1243
      %v1302 = vadd.f32 %v929, %v1245
      %v1303 = vadd.f32 %v933, %v1249
      %v1304 = vadd.f32 %v935, %v1251
      %v1305 = vadd.f32 %v937, %v1253
      %v1306 = vadd.f32 %v939, %v1255
      %v1307 = vadd.f32 %v943, %v1259
      %v1308 = vadd.f32 %v945, %v1261
      %v1309 = vadd.f32 %v947, %v1263
      %v1310 = vadd.f32 %v949, %v1265
      %v1311 = vadd.f32 %v953, %v1269
      %v1312 = vadd.f32 %v955, %v1271
      %v1313 = vadd.f32 %v957, %v1273
      %v1314 = vadd.f32 %v959, %v1275
      %v1315 = vadd.f32 %v963, %v1279
      %v1316 = vadd.f32 %v965, %v1281
      %v1317 = vadd.f32 %v967, %v1283
      %v1318 = vadd.f32 %v969, %v1285
      %v1319 = vld [vmem:[%s249] sm:$0xff]
      %v1320 = vld [vmem:[%s249 + $0x8] sm:$0xff]
      %v1321 = vld [vmem:[%s249 + $0x10] sm:$0x11]
      %v1322 = vld [vmem:[%s249 + $0x18] sm:$0xff]
      %v1323 = vld [vmem:[%s249 + $0x20] sm:$0xff]
      %v1324 = vld [vmem:[%s249 + $0x28] sm:$0x11]
      %v1325 = vld [vmem:[%s249 + $0x30] sm:$0xff]
      %v1326 = vld [vmem:[%s249 + $0x38] sm:$0xff]
      %v1327 = vld [vmem:[%s249 + $0x40] sm:$0x11]
      %v1328 = vld [vmem:[%s249 + $0x48] sm:$0xff]
      %v1329 = vld [vmem:[%s249 + $0x50] sm:$0xff]
      %v1330 = vld [vmem:[%s249 + $0x58] sm:$0x11]
      %v1331 = vld [vmem:[%s249 + $0x60] sm:$0xff]
      %v1332 = vld [vmem:[%s249 + $0x68] sm:$0xff]
      %v1333 = vld [vmem:[%s249 + $0x70] sm:$0x11]
      %v1334 = vld [vmem:[%s249 + $0x78] sm:$0xff]
      %v1335 = vld [vmem:[%s249 + $0x80] sm:$0xff]
      %v1336 = vld [vmem:[%s249 + $0x88] sm:$0x11]
      %v1337 = vld [vmem:[%s249 + $0x90] sm:$0xff]
      %v1338 = vld [vmem:[%s249 + $0x98] sm:$0xff]
      %v1339 = vld [vmem:[%s249 + $0xa0] sm:$0x11]
      %v1340 = vld [vmem:[%s249 + $0xa8] sm:$0xff]
      %v1341 = vld [vmem:[%s249 + $0xb0] sm:$0xff]
      %v1342 = vld [vmem:[%s249 + $0xb8] sm:$0x11]
      %v1343 = vld [vmem:[%s249 + $0xc0] sm:$0xff]
      %v1344 = vld [vmem:[%s249 + $0xc8] sm:$0xff]
      %v1345 = vld [vmem:[%s249 + $0xd0] sm:$0x11]
      %v1346 = vld [vmem:[%s249 + $0xd8] sm:$0xff]
      %v1347 = vld [vmem:[%s249 + $0xe0] sm:$0xff]
      %v1348 = vld [vmem:[%s249 + $0xe8] sm:$0x11]
      %vm1349 = vsmask.f32 3328
      %vm1350 = vsmask.f32 7440
      %vm1351 = vmor %vm1349, %vm1350
      %v1353 = vshrl.u32 %v1319, 16
      %v1355 = vrot.slane %v1353, 4
      %v1356 = vshll.u32 %v1319, 16
      %v1358 = vrot.slane %v1356, 5
      %v1359 = vor.u32 %v1355, %v1358
      %v1360 = vrot.slane %v1359, 4
      %v1362 = vshll.u32 %v1320, 16
      %v1364 = vrot.slane %v1362, 5
      %v1365 = vsel %vm1351, %v1360, %v1364
      %v1366 = vshrl.u32 %v1320, 16
      %v1368 = vrot.slane %v1366, 4
      %v1369 = vor.u32 %v1368, %v1364
      %v1370 = vrot.slane %v1369, 4
      %v1372 = vshll.u32 %v1321, 16
      %v1374 = vrot.slane %v1372, 5
      %v1375 = vsel %vm1351, %v1370, %v1374
      %v1377 = vshrl.u32 %v1322, 16
      %v1379 = vrot.slane %v1377, 4
      %v1380 = vshll.u32 %v1322, 16
      %v1382 = vrot.slane %v1380, 5
      %v1383 = vor.u32 %v1379, %v1382
      %v1384 = vrot.slane %v1383, 4
      %v1386 = vshll.u32 %v1323, 16
      %v1388 = vrot.slane %v1386, 5
      %v1389 = vsel %vm1351, %v1384, %v1388
      %v1390 = vshrl.u32 %v1323, 16
      %v1392 = vrot.slane %v1390, 4
      %v1393 = vor.u32 %v1392, %v1388
      %v1394 = vrot.slane %v1393, 4
      %v1396 = vshll.u32 %v1324, 16
      %v1398 = vrot.slane %v1396, 5
      %v1399 = vsel %vm1351, %v1394, %v1398
      %v1401 = vshrl.u32 %v1325, 16
      %v1403 = vrot.slane %v1401, 4
      %v1404 = vshll.u32 %v1325, 16
      %v1406 = vrot.slane %v1404, 5
      %v1407 = vor.u32 %v1403, %v1406
      %v1408 = vrot.slane %v1407, 4
      %v1410 = vshll.u32 %v1326, 16
      %v1412 = vrot.slane %v1410, 5
      %v1413 = vsel %vm1351, %v1408, %v1412
      %v1414 = vshrl.u32 %v1326, 16
      %v1416 = vrot.slane %v1414, 4
      %v1417 = vor.u32 %v1416, %v1412
      %v1418 = vrot.slane %v1417, 4
      %v1420 = vshll.u32 %v1327, 16
      %v1422 = vrot.slane %v1420, 5
      %v1423 = vsel %vm1351, %v1418, %v1422
      %v1425 = vshrl.u32 %v1328, 16
      %v1427 = vrot.slane %v1425, 4
      %v1428 = vshll.u32 %v1328, 16
      %v1430 = vrot.slane %v1428, 5
      %v1431 = vor.u32 %v1427, %v1430
      %v1432 = vrot.slane %v1431, 4
      %v1434 = vshll.u32 %v1329, 16
      %v1436 = vrot.slane %v1434, 5
      %v1437 = vsel %vm1351, %v1432, %v1436
      %v1438 = vshrl.u32 %v1329, 16
      %v1440 = vrot.slane %v1438, 4
      %v1441 = vor.u32 %v1440, %v1436
      %v1442 = vrot.slane %v1441, 4
      %v1444 = vshll.u32 %v1330, 16
      %v1446 = vrot.slane %v1444, 5
      %v1447 = vsel %vm1351, %v1442, %v1446
      %v1449 = vshrl.u32 %v1331, 16
      %v1451 = vrot.slane %v1449, 4
      %v1452 = vshll.u32 %v1331, 16
      %v1454 = vrot.slane %v1452, 5
      %v1455 = vor.u32 %v1451, %v1454
      %v1456 = vrot.slane %v1455, 4
      %v1458 = vshll.u32 %v1332, 16
      %v1460 = vrot.slane %v1458, 5
      %v1461 = vsel %vm1351, %v1456, %v1460
      %v1462 = vshrl.u32 %v1332, 16
      %v1464 = vrot.slane %v1462, 4
      %v1465 = vor.u32 %v1464, %v1460
      %v1466 = vrot.slane %v1465, 4
      %v1468 = vshll.u32 %v1333, 16
      %v1470 = vrot.slane %v1468, 5
      %v1471 = vsel %vm1351, %v1466, %v1470
      %v1473 = vshrl.u32 %v1334, 16
      %v1475 = vrot.slane %v1473, 4
      %v1476 = vshll.u32 %v1334, 16
      %v1478 = vrot.slane %v1476, 5
      %v1479 = vor.u32 %v1475, %v1478
      %v1480 = vrot.slane %v1479, 4
      %v1482 = vshll.u32 %v1335, 16
      %v1484 = vrot.slane %v1482, 5
      %v1485 = vsel %vm1351, %v1480, %v1484
      %v1486 = vshrl.u32 %v1335, 16
      %v1488 = vrot.slane %v1486, 4
      %v1489 = vor.u32 %v1488, %v1484
      %v1490 = vrot.slane %v1489, 4
      %v1492 = vshll.u32 %v1336, 16
      %v1494 = vrot.slane %v1492, 5
      %v1495 = vsel %vm1351, %v1490, %v1494
      %v1497 = vshrl.u32 %v1337, 16
      %v1499 = vrot.slane %v1497, 4
      %v1500 = vshll.u32 %v1337, 16
      %v1502 = vrot.slane %v1500, 5
      %v1503 = vor.u32 %v1499, %v1502
      %v1504 = vrot.slane %v1503, 4
      %v1506 = vshll.u32 %v1338, 16
      %v1508 = vrot.slane %v1506, 5
      %v1509 = vsel %vm1351, %v1504, %v1508
      %v1510 = vshrl.u32 %v1338, 16
      %v1512 = vrot.slane %v1510, 4
      %v1513 = vor.u32 %v1512, %v1508
      %v1514 = vrot.slane %v1513, 4
      %v1516 = vshll.u32 %v1339, 16
      %v1518 = vrot.slane %v1516, 5
      %v1519 = vsel %vm1351, %v1514, %v1518
      %v1521 = vshrl.u32 %v1340, 16
      %v1523 = vrot.slane %v1521, 4
      %v1524 = vshll.u32 %v1340, 16
      %v1526 = vrot.slane %v1524, 5
      %v1527 = vor.u32 %v1523, %v1526
      %v1528 = vrot.slane %v1527, 4
      %v1530 = vshll.u32 %v1341, 16
      %v1532 = vrot.slane %v1530, 5
      %v1533 = vsel %vm1351, %v1528, %v1532
      %v1534 = vshrl.u32 %v1341, 16
      %v1536 = vrot.slane %v1534, 4
      %v1537 = vor.u32 %v1536, %v1532
      %v1538 = vrot.slane %v1537, 4
      %v1540 = vshll.u32 %v1342, 16
      %v1542 = vrot.slane %v1540, 5
      %v1543 = vsel %vm1351, %v1538, %v1542
      %s1544 = scalar_lea.vmem %s1, 256
      %v1545 = vld [vmem:[%s1544] sm:$0xff]
      %v1546 = vld [vmem:[%s1544 + $0x8] sm:$0xff]
      %v1547 = vld [vmem:[%s1544 + $0x10] sm:$0xff]
      %v1548 = vld [vmem:[%s1544 + $0x18] sm:$0xff]
      %v1549 = vld [vmem:[%s1544 + $0x20] sm:$0xff]
      %v1550 = vld [vmem:[%s1544 + $0x28] sm:$0xff]
      %v1551 = vld [vmem:[%s1544 + $0x30] sm:$0xff]
      %v1552 = vld [vmem:[%s1544 + $0x38] sm:$0xff]
      %v1553 = vld [vmem:[%s1544 + $0x40] sm:$0xff]
      %v1554 = vld [vmem:[%s1544 + $0x48] sm:$0xff]
      %v1555 = vld [vmem:[%s1544 + $0x50] sm:$0xff]
      %v1556 = vld [vmem:[%s1544 + $0x58] sm:$0xff]
      %v1557 = vld [vmem:[%s1544 + $0x60] sm:$0xff]
      %v1558 = vld [vmem:[%s1544 + $0x68] sm:$0xff]
      %v1559 = vld [vmem:[%s1544 + $0x70] sm:$0xff]
      %v1560 = vld [vmem:[%s1544 + $0x78] sm:$0xff]
      %v1561 = vld [vmem:[%s1544 + $0x80] sm:$0xff]
      %v1562 = vld [vmem:[%s1544 + $0x88] sm:$0xff]
      %v1563 = vld [vmem:[%s1544 + $0x90] sm:$0xff]
      %v1564 = vld [vmem:[%s1544 + $0x98] sm:$0xff]
      %v1565 = vld [vmem:[%s1544 + $0xa0] sm:$0xff]
      %v1566 = vld [vmem:[%s1544 + $0xa8] sm:$0xff]
      %v1567 = vld [vmem:[%s1544 + $0xb0] sm:$0xff]
      %v1568 = vld [vmem:[%s1544 + $0xb8] sm:$0xff]
      %v1569 = vld [vmem:[%s1544 + $0xc0] sm:$0xff]
      %v1570 = vld [vmem:[%s1544 + $0xc8] sm:$0xff]
      %v1571 = vld [vmem:[%s1544 + $0xd0] sm:$0xff]
      %v1572 = vld [vmem:[%s1544 + $0xd8] sm:$0xff]
      %v1573 = vld [vmem:[%s1544 + $0xe0] sm:$0xff]
      %v1574 = vld [vmem:[%s1544 + $0xe8] sm:$0xff]
      %v1575 = vld [vmem:[%s1544 + $0xf0] sm:$0xff]
      %v1576 = vld [vmem:[%s1544 + $0xf8] sm:$0xff]
      %v1577 = vunpack.c.l.b16 %v1365
      %v1578 = vunpack.c.h.b16 %v1365
      %v1579 = vunpack.c.l.b16 %v1375
      %v1580 = vunpack.c.h.b16 %v1375
      %v1581 = vunpack.c.l.b16 %v1389
      %v1582 = vunpack.c.h.b16 %v1389
      %v1583 = vunpack.c.l.b16 %v1399
      %v1584 = vunpack.c.h.b16 %v1399
      %v1585 = vunpack.c.l.b16 %v1413
      %v1586 = vunpack.c.h.b16 %v1413
      %v1587 = vunpack.c.l.b16 %v1423
      %v1588 = vunpack.c.h.b16 %v1423
      %v1589 = vunpack.c.l.b16 %v1437
      %v1590 = vunpack.c.h.b16 %v1437
      %v1591 = vunpack.c.l.b16 %v1447
      %v1592 = vunpack.c.h.b16 %v1447
      %v1593 = vunpack.c.l.b16 %v1461
      %v1594 = vunpack.c.h.b16 %v1461
      %v1595 = vunpack.c.l.b16 %v1471
      %v1596 = vunpack.c.h.b16 %v1471
      %v1597 = vunpack.c.l.b16 %v1485
      %v1598 = vunpack.c.h.b16 %v1485
      %v1599 = vunpack.c.l.b16 %v1495
      %v1600 = vunpack.c.h.b16 %v1495
      %v1601 = vunpack.c.l.b16 %v1509
      %v1602 = vunpack.c.h.b16 %v1509
      %v1603 = vunpack.c.l.b16 %v1519
      %v1604 = vunpack.c.h.b16 %v1519
      %v1605 = vunpack.c.l.b16 %v1533
      %v1606 = vunpack.c.h.b16 %v1533
      %v1607 = vunpack.c.l.b16 %v1543
      %v1608 = vunpack.c.h.b16 %v1543
      %v1609 = vpack.c.b16 %v1579, %v1577
      %v1610 = vpack.c.b16 %v1580, %v1578
      %v1611 = vpack.c.b16 %v1583, %v1581
      %v1612 = vpack.c.b16 %v1584, %v1582
      %v1613 = vpack.c.b16 %v1587, %v1585
      %v1614 = vpack.c.b16 %v1588, %v1586
      %v1615 = vpack.c.b16 %v1591, %v1589
      %v1616 = vpack.c.b16 %v1592, %v1590
      %v1617 = vpack.c.b16 %v1595, %v1593
      %v1618 = vpack.c.b16 %v1596, %v1594
      %v1619 = vpack.c.b16 %v1599, %v1597
      %v1620 = vpack.c.b16 %v1600, %v1598
      %v1621 = vpack.c.b16 %v1603, %v1601
      %v1622 = vpack.c.b16 %v1604, %v1602
      %v1623 = vpack.c.b16 %v1607, %v1605
      %v1624 = vpack.c.b16 %v1608, %v1606
      %v1673 = vunpack.c.l.b16 %v1545
      %v1674 = vunpack.c.h.b16 %v1545
      %v1675 = vunpack.c.l.b16 %v1546
      %v1676 = vunpack.c.h.b16 %v1546
      %v1677 = vunpack.c.l.b16 %v1547
      %v1678 = vunpack.c.h.b16 %v1547
      %v1679 = vunpack.c.l.b16 %v1548
      %v1680 = vunpack.c.h.b16 %v1548
      %v1681 = vunpack.c.l.b16 %v1549
      %v1682 = vunpack.c.h.b16 %v1549
      %v1683 = vunpack.c.l.b16 %v1550
      %v1684 = vunpack.c.h.b16 %v1550
      %v1685 = vunpack.c.l.b16 %v1551
      %v1686 = vunpack.c.h.b16 %v1551
      %v1687 = vunpack.c.l.b16 %v1552
      %v1688 = vunpack.c.h.b16 %v1552
      %v1689 = vunpack.c.l.b16 %v1553
      %v1690 = vunpack.c.h.b16 %v1553
      %v1691 = vunpack.c.l.b16 %v1554
      %v1692 = vunpack.c.h.b16 %v1554
      %v1693 = vunpack.c.l.b16 %v1555
      %v1694 = vunpack.c.h.b16 %v1555
      %v1695 = vunpack.c.l.b16 %v1556
      %v1696 = vunpack.c.h.b16 %v1556
      %v1697 = vunpack.c.l.b16 %v1557
      %v1698 = vunpack.c.h.b16 %v1557
      %v1699 = vunpack.c.l.b16 %v1558
      %v1700 = vunpack.c.h.b16 %v1558
      %v1701 = vunpack.c.l.b16 %v1559
      %v1702 = vunpack.c.h.b16 %v1559
      %v1703 = vunpack.c.l.b16 %v1560
      %v1704 = vunpack.c.h.b16 %v1560
      %v1705 = vunpack.c.l.b16 %v1561
      %v1706 = vunpack.c.h.b16 %v1561
      %v1707 = vunpack.c.l.b16 %v1562
      %v1708 = vunpack.c.h.b16 %v1562
      %v1709 = vunpack.c.l.b16 %v1563
      %v1710 = vunpack.c.h.b16 %v1563
      %v1711 = vunpack.c.l.b16 %v1564
      %v1712 = vunpack.c.h.b16 %v1564
      %v1713 = vunpack.c.l.b16 %v1565
      %v1714 = vunpack.c.h.b16 %v1565
      %v1715 = vunpack.c.l.b16 %v1566
      %v1716 = vunpack.c.h.b16 %v1566
      %v1717 = vunpack.c.l.b16 %v1567
      %v1718 = vunpack.c.h.b16 %v1567
      %v1719 = vunpack.c.l.b16 %v1568
      %v1720 = vunpack.c.h.b16 %v1568
      %v1721 = vunpack.c.l.b16 %v1569
      %v1722 = vunpack.c.h.b16 %v1569
      %v1723 = vunpack.c.l.b16 %v1570
      %v1724 = vunpack.c.h.b16 %v1570
      %v1725 = vunpack.c.l.b16 %v1571
      %v1726 = vunpack.c.h.b16 %v1571
      %v1727 = vunpack.c.l.b16 %v1572
      %v1728 = vunpack.c.h.b16 %v1572
      %v1729 = vunpack.c.l.b16 %v1573
      %v1730 = vunpack.c.h.b16 %v1573
      %v1731 = vunpack.c.l.b16 %v1574
      %v1732 = vunpack.c.h.b16 %v1574
      %v1733 = vunpack.c.l.b16 %v1575
      %v1734 = vunpack.c.h.b16 %v1575
      %v1735 = vunpack.c.l.b16 %v1576
      %v1736 = vunpack.c.h.b16 %v1576
      %v1737 = vpack.c.b16 %v1675, %v1673
      %v1738 = vpack.c.b16 %v1676, %v1674
      %v1739 = vpack.c.b16 %v1679, %v1677
      %v1740 = vpack.c.b16 %v1680, %v1678
      %v1741 = vpack.c.b16 %v1683, %v1681
      %v1742 = vpack.c.b16 %v1684, %v1682
      %v1743 = vpack.c.b16 %v1687, %v1685
      %v1744 = vpack.c.b16 %v1688, %v1686
      %v1745 = vpack.c.b16 %v1691, %v1689
      %v1746 = vpack.c.b16 %v1692, %v1690
      %v1747 = vpack.c.b16 %v1695, %v1693
      %v1748 = vpack.c.b16 %v1696, %v1694
      %v1749 = vpack.c.b16 %v1699, %v1697
      %v1750 = vpack.c.b16 %v1700, %v1698
      %v1751 = vpack.c.b16 %v1703, %v1701
      %v1752 = vpack.c.b16 %v1704, %v1702
      %v1753 = vpack.c.b16 %v1707, %v1705
      %v1754 = vpack.c.b16 %v1708, %v1706
      %v1755 = vpack.c.b16 %v1711, %v1709
      %v1756 = vpack.c.b16 %v1712, %v1710
      %v1757 = vpack.c.b16 %v1715, %v1713
      %v1758 = vpack.c.b16 %v1716, %v1714
      %v1759 = vpack.c.b16 %v1719, %v1717
      %v1760 = vpack.c.b16 %v1720, %v1718
      %v1761 = vpack.c.b16 %v1723, %v1721
      %v1762 = vpack.c.b16 %v1724, %v1722
      %v1763 = vpack.c.b16 %v1727, %v1725
      %v1764 = vpack.c.b16 %v1728, %v1726
      %v1765 = vpack.c.b16 %v1731, %v1729
      %v1766 = vpack.c.b16 %v1732, %v1730
      %v1767 = vpack.c.b16 %v1735, %v1733
      %v1768 = vpack.c.b16 %v1736, %v1734
      %1801 = vmatprep.subr.bf16.mxu0 %v1738
      %1802 = vmatpush1.bf16.msra.mxu0 %v1737
      %1803 = vmatprep.subr.bf16.mxu0 %v1740
      %1804 = vmatpush1.bf16.msra.mxu0 %v1739
      %1805 = vmatprep.subr.bf16.mxu0 %v1742
      %1806 = vmatpush1.bf16.msra.mxu0 %v1741
      %1807 = vmatprep.subr.bf16.mxu0 %v1744
      %1808 = vmatpush1.bf16.msra.mxu0 %v1743
      %1809 = vmatprep.subr.bf16.mxu0 %v1746
      %1810 = vmatpush1.bf16.msra.mxu0 %v1745
      %1811 = vmatprep.subr.bf16.mxu0 %v1748
      %1812 = vmatpush1.bf16.msra.mxu0 %v1747
      %1813 = vmatprep.subr.bf16.mxu0 %v1750
      %1814 = vmatpush1.bf16.msra.mxu0 %v1749
      %1815 = vmatprep.subr.bf16.mxu0 %v1752
      %1816 = vmatpush1.bf16.msra.mxu0 %v1751
      %1817 = vmatprep.subr.bf16.mxu0 %v1754
      %1818 = vmatpush1.bf16.msra.mxu0 %v1753
      %1819 = vmatprep.subr.bf16.mxu0 %v1756
      %1820 = vmatpush1.bf16.msra.mxu0 %v1755
      %1821 = vmatprep.subr.bf16.mxu0 %v1758
      %1822 = vmatpush1.bf16.msra.mxu0 %v1757
      %1823 = vmatprep.subr.bf16.mxu0 %v1760
      %1824 = vmatpush1.bf16.msra.mxu0 %v1759
      %1825 = vmatprep.subr.bf16.mxu0 %v1762
      %1826 = vmatpush1.bf16.msra.mxu0 %v1761
      %1827 = vmatprep.subr.bf16.mxu0 %v1764
      %1828 = vmatpush1.bf16.msra.mxu0 %v1763
      %1829 = vmatprep.subr.bf16.mxu0 %v1766
      %1830 = vmatpush1.bf16.msra.mxu0 %v1765
      %1831 = vmatprep.subr.bf16.mxu0 %v1768
      %1832 = vmatpush1.bf16.msra.mxu0 %v1767
      %1833 = vmatprep.mubr.bf16.mxu0 %v1610
      %1834 = vmatmul.mubr.bf16.gmra.mrb[0].mxu0 %v1609
      %v1835 = vpop.f32.mrb[0].mxu0
      %v1836 = vadd.f32 0.0, %v1835
      %v1837 = vpop.f32.mrb[0].mxu0
      %v1838 = vadd.f32 0.0, %v1837
      %v1839 = vpop.f32.mrb[0].mxu0
      %v1840 = vadd.f32 0.0, %v1839
      %v1841 = vpop.f32.mrb[0].mxu0
      %v1842 = vadd.f32 0.0, %v1841
      %1843 = vmatprep.mubr.bf16.mxu0 %v1612
      %1844 = vmatmul.mubr.bf16.gmra.mrb[0].mxu0 %v1611
      %v1845 = vpop.f32.mrb[0].mxu0
      %v1846 = vadd.f32 0.0, %v1845
      %v1847 = vpop.f32.mrb[0].mxu0
      %v1848 = vadd.f32 0.0, %v1847
      %v1849 = vpop.f32.mrb[0].mxu0
      %v1850 = vadd.f32 0.0, %v1849
      %v1851 = vpop.f32.mrb[0].mxu0
      %v1852 = vadd.f32 0.0, %v1851
      %1853 = vmatprep.mubr.bf16.mxu0 %v1614
      %1854 = vmatmul.mubr.bf16.gmra.mrb[0].mxu0 %v1613
      %v1855 = vpop.f32.mrb[0].mxu0
      %v1856 = vadd.f32 0.0, %v1855
      %v1857 = vpop.f32.mrb[0].mxu0
      %v1858 = vadd.f32 0.0, %v1857
      %v1859 = vpop.f32.mrb[0].mxu0
      %v1860 = vadd.f32 0.0, %v1859
      %v1861 = vpop.f32.mrb[0].mxu0
      %v1862 = vadd.f32 0.0, %v1861
      %1863 = vmatprep.mubr.bf16.mxu0 %v1616
      %1864 = vmatmul.mubr.bf16.gmra.mrb[0].mxu0 %v1615
      %v1865 = vpop.f32.mrb[0].mxu0
      %v1866 = vadd.f32 0.0, %v1865
      %v1867 = vpop.f32.mrb[0].mxu0
      %v1868 = vadd.f32 0.0, %v1867
      %v1869 = vpop.f32.mrb[0].mxu0
      %v1870 = vadd.f32 0.0, %v1869
      %v1871 = vpop.f32.mrb[0].mxu0
      %v1872 = vadd.f32 0.0, %v1871
      %1873 = vmatprep.mubr.bf16.mxu0 %v1618
      %1874 = vmatmul.mubr.bf16.gmra.mrb[0].mxu0 %v1617
      %v1875 = vpop.f32.mrb[0].mxu0
      %v1876 = vadd.f32 0.0, %v1875
      %v1877 = vpop.f32.mrb[0].mxu0
      %v1878 = vadd.f32 0.0, %v1877
      %v1879 = vpop.f32.mrb[0].mxu0
      %v1880 = vadd.f32 0.0, %v1879
      %v1881 = vpop.f32.mrb[0].mxu0
      %v1882 = vadd.f32 0.0, %v1881
      %1883 = vmatprep.mubr.bf16.mxu0 %v1620
      %1884 = vmatmul.mubr.bf16.gmra.mrb[0].mxu0 %v1619
      %v1885 = vpop.f32.mrb[0].mxu0
      %v1886 = vadd.f32 0.0, %v1885
      %v1887 = vpop.f32.mrb[0].mxu0
      %v1888 = vadd.f32 0.0, %v1887
      %v1889 = vpop.f32.mrb[0].mxu0
      %v1890 = vadd.f32 0.0, %v1889
      %v1891 = vpop.f32.mrb[0].mxu0
      %v1892 = vadd.f32 0.0, %v1891
      %1893 = vmatprep.mubr.bf16.mxu0 %v1622
      %1894 = vmatmul.mubr.bf16.gmra.mrb[0].mxu0 %v1621
      %v1895 = vpop.f32.mrb[0].mxu0
      %v1896 = vadd.f32 0.0, %v1895
      %v1897 = vpop.f32.mrb[0].mxu0
      %v1898 = vadd.f32 0.0, %v1897
      %v1899 = vpop.f32.mrb[0].mxu0
      %v1900 = vadd.f32 0.0, %v1899
      %v1901 = vpop.f32.mrb[0].mxu0
      %v1902 = vadd.f32 0.0, %v1901
      %1903 = vmatprep.mubr.bf16.mxu0 %v1624
      %1904 = vmatmul.mubr.bf16.gmra.mrb[0].mxu0 %v1623
      %v1905 = vpop.f32.mrb[0].mxu0
      %v1906 = vadd.f32 0.0, %v1905
      %v1907 = vpop.f32.mrb[0].mxu0
      %v1908 = vadd.f32 0.0, %v1907
      %v1909 = vpop.f32.mrb[0].mxu0
      %v1910 = vadd.f32 0.0, %v1909
      %v1911 = vpop.f32.mrb[0].mxu0
      %v1912 = vadd.f32 0.0, %v1911
      %1913 = vdwg.mxu0
      %v1914 = vadd.f32 %v1287, %v1836
      %v1915 = vadd.f32 %v1288, %v1838
      %v1916 = vadd.f32 %v1289, %v1840
      %v1917 = vadd.f32 %v1290, %v1842
      %v1918 = vadd.f32 %v1291, %v1846
      %v1919 = vadd.f32 %v1292, %v1848
      %v1920 = vadd.f32 %v1293, %v1850
      %v1921 = vadd.f32 %v1294, %v1852
      %v1922 = vadd.f32 %v1295, %v1856
      %v1923 = vadd.f32 %v1296, %v1858
      %v1924 = vadd.f32 %v1297, %v1860
      %v1925 = vadd.f32 %v1298, %v1862
      %v1926 = vadd.f32 %v1299, %v1866
      %v1927 = vadd.f32 %v1300, %v1868
      %v1928 = vadd.f32 %v1301, %v1870
      %v1929 = vadd.f32 %v1302, %v1872
      %v1930 = vadd.f32 %v1303, %v1876
      %v1931 = vadd.f32 %v1304, %v1878
      %v1932 = vadd.f32 %v1305, %v1880
      %v1933 = vadd.f32 %v1306, %v1882
      %v1934 = vadd.f32 %v1307, %v1886
      %v1935 = vadd.f32 %v1308, %v1888
      %v1936 = vadd.f32 %v1309, %v1890
      %v1937 = vadd.f32 %v1310, %v1892
      %v1938 = vadd.f32 %v1311, %v1896
      %v1939 = vadd.f32 %v1312, %v1898
      %v1940 = vadd.f32 %v1313, %v1900
      %v1941 = vadd.f32 %v1314, %v1902
      %v1942 = vadd.f32 %v1315, %v1906
      %v1943 = vadd.f32 %v1316, %v1908
      %v1944 = vadd.f32 %v1317, %v1910
      %v1945 = vadd.f32 %v1318, %v1912
      %v1947 = vshrl.u32 %v1343, 16
      %v1949 = vrot.slane %v1947, 4
      %v1950 = vshll.u32 %v1343, 16
      %v1952 = vrot.slane %v1950, 5
      %v1953 = vor.u32 %v1949, %v1952
      %v1954 = vrot.slane %v1953, 4
      %v1956 = vshll.u32 %v1344, 16
      %v1958 = vrot.slane %v1956, 5
      %v1959 = vsel %vm1351, %v1954, %v1958
      %v1960 = vshrl.u32 %v1344, 16
      %v1962 = vrot.slane %v1960, 4
      %v1963 = vor.u32 %v1962, %v1958
      %v1964 = vrot.slane %v1963, 4
      %v1966 = vshll.u32 %v1345, 16
      %v1968 = vrot.slane %v1966, 5
      %v1969 = vsel %vm1351, %v1964, %v1968
      %s1970 = scalar_lea.vmem %s1, 1024
      %v1971 = vld [vmem:[%s1970] sm:$0xff]
      %v1972 = vld [vmem:[%s1970 + $0x8] sm:$0xff]
      %v1973 = vld [vmem:[%s1970 + $0x10] sm:$0xff]
      %v1974 = vld [vmem:[%s1970 + $0x18] sm:$0xff]
      %v1975 = vld [vmem:[%s1970 + $0x20] sm:$0xff]
      %v1976 = vld [vmem:[%s1970 + $0x28] sm:$0xff]
      %v1977 = vld [vmem:[%s1970 + $0x30] sm:$0xff]
      %v1978 = vld [vmem:[%s1970 + $0x38] sm:$0xff]
      %v1979 = vld [vmem:[%s1970 + $0x40] sm:$0xff]
      %v1980 = vld [vmem:[%s1970 + $0x48] sm:$0xff]
      %v1981 = vld [vmem:[%s1970 + $0x50] sm:$0xff]
      %v1982 = vld [vmem:[%s1970 + $0x58] sm:$0xff]
      %v1983 = vld [vmem:[%s1970 + $0x60] sm:$0xff]
      %v1984 = vld [vmem:[%s1970 + $0x68] sm:$0xff]
      %v1985 = vld [vmem:[%s1970 + $0x70] sm:$0xff]
      %v1986 = vld [vmem:[%s1970 + $0x78] sm:$0xff]
      %v1987 = vld [vmem:[%s1970 + $0x80] sm:$0xff]
      %v1988 = vld [vmem:[%s1970 + $0x88] sm:$0xff]
      %v1989 = vld [vmem:[%s1970 + $0x90] sm:$0xff]
      %v1990 = vld [vmem:[%s1970 + $0x98] sm:$0xff]
      %v1991 = vld [vmem:[%s1970 + $0xa0] sm:$0xff]
      %v1992 = vld [vmem:[%s1970 + $0xa8] sm:$0xff]
      %v1993 = vld [vmem:[%s1970 + $0xb0] sm:$0xff]
      %v1994 = vld [vmem:[%s1970 + $0xb8] sm:$0xff]
      %v1995 = vld [vmem:[%s1970 + $0xc0] sm:$0xff]
      %v1996 = vld [vmem:[%s1970 + $0xc8] sm:$0xff]
      %v1997 = vld [vmem:[%s1970 + $0xd0] sm:$0xff]
      %v1998 = vld [vmem:[%s1970 + $0xd8] sm:$0xff]
      %v1999 = vld [vmem:[%s1970 + $0xe0] sm:$0xff]
      %v2000 = vld [vmem:[%s1970 + $0xe8] sm:$0xff]
      %v2001 = vld [vmem:[%s1970 + $0xf0] sm:$0xff]
      %v2002 = vld [vmem:[%s1970 + $0xf8] sm:$0xff]
      %v2003 = vunpack.c.l.b16 %v1959
      %v2004 = vunpack.c.h.b16 %v1959
      %v2005 = vunpack.c.l.b16 %v1969
      %v2006 = vunpack.c.h.b16 %v1969
      %v2007 = vpack.c.b16 %v2005, %v2003
      %v2008 = vpack.c.b16 %v2006, %v2004
      %v2043 = vunpack.c.l.b16 %v1971
      %v2044 = vunpack.c.h.b16 %v1971
      %v2045 = vunpack.c.l.b16 %v1972
      %v2046 = vunpack.c.h.b16 %v1972
      %v2047 = vunpack.c.l.b16 %v1973
      %v2048 = vunpack.c.h.b16 %v1973
      %v2049 = vunpack.c.l.b16 %v1974
      %v2050 = vunpack.c.h.b16 %v1974
      %v2051 = vunpack.c.l.b16 %v1975
      %v2052 = vunpack.c.h.b16 %v1975
      %v2053 = vunpack.c.l.b16 %v1976
      %v2054 = vunpack.c.h.b16 %v1976
      %v2055 = vunpack.c.l.b16 %v1977
      %v2056 = vunpack.c.h.b16 %v1977
      %v2057 = vunpack.c.l.b16 %v1978
      %v2058 = vunpack.c.h.b16 %v1978
      %v2059 = vunpack.c.l.b16 %v1979
      %v2060 = vunpack.c.h.b16 %v1979
      %v2061 = vunpack.c.l.b16 %v1980
      %v2062 = vunpack.c.h.b16 %v1980
      %v2063 = vunpack.c.l.b16 %v1981
      %v2064 = vunpack.c.h.b16 %v1981
      %v2065 = vunpack.c.l.b16 %v1982
      %v2066 = vunpack.c.h.b16 %v1982
      %v2067 = vunpack.c.l.b16 %v1983
      %v2068 = vunpack.c.h.b16 %v1983
      %v2069 = vunpack.c.l.b16 %v1984
      %v2070 = vunpack.c.h.b16 %v1984
      %v2071 = vunpack.c.l.b16 %v1985
      %v2072 = vunpack.c.h.b16 %v1985
      %v2073 = vunpack.c.l.b16 %v1986
      %v2074 = vunpack.c.h.b16 %v1986
      %v2075 = vunpack.c.l.b16 %v1987
      %v2076 = vunpack.c.h.b16 %v1987
      %v2077 = vunpack.c.l.b16 %v1988
      %v2078 = vunpack.c.h.b16 %v1988
      %v2079 = vunpack.c.l.b16 %v1989
      %v2080 = vunpack.c.h.b16 %v1989
      %v2081 = vunpack.c.l.b16 %v1990
      %v2082 = vunpack.c.h.b16 %v1990
      %v2083 = vunpack.c.l.b16 %v1991
      %v2084 = vunpack.c.h.b16 %v1991
      %v2085 = vunpack.c.l.b16 %v1992
      %v2086 = vunpack.c.h.b16 %v1992
      %v2087 = vunpack.c.l.b16 %v1993
      %v2088 = vunpack.c.h.b16 %v1993
      %v2089 = vunpack.c.l.b16 %v1994
      %v2090 = vunpack.c.h.b16 %v1994
      %v2091 = vunpack.c.l.b16 %v1995
      %v2092 = vunpack.c.h.b16 %v1995
      %v2093 = vunpack.c.l.b16 %v1996
      %v2094 = vunpack.c.h.b16 %v1996
      %v2095 = vunpack.c.l.b16 %v1997
      %v2096 = vunpack.c.h.b16 %v1997
      %v2097 = vunpack.c.l.b16 %v1998
      %v2098 = vunpack.c.h.b16 %v1998
      %v2099 = vunpack.c.l.b16 %v1999
      %v2100 = vunpack.c.h.b16 %v1999
      %v2101 = vunpack.c.l.b16 %v2000
      %v2102 = vunpack.c.h.b16 %v2000
      %v2103 = vunpack.c.l.b16 %v2001
      %v2104 = vunpack.c.h.b16 %v2001
      %v2105 = vunpack.c.l.b16 %v2002
      %v2106 = vunpack.c.h.b16 %v2002
      %v2107 = vpack.c.b16 %v2045, %v2043
      %v2108 = vpack.c.b16 %v2046, %v2044
      %v2109 = vpack.c.b16 %v2049, %v2047
      %v2110 = vpack.c.b16 %v2050, %v2048
      %v2111 = vpack.c.b16 %v2053, %v2051
      %v2112 = vpack.c.b16 %v2054, %v2052
      %v2113 = vpack.c.b16 %v2057, %v2055
      %v2114 = vpack.c.b16 %v2058, %v2056
      %v2115 = vpack.c.b16 %v2061, %v2059
      %v2116 = vpack.c.b16 %v2062, %v2060
      %v2117 = vpack.c.b16 %v2065, %v2063
      %v2118 = vpack.c.b16 %v2066, %v2064
      %v2119 = vpack.c.b16 %v2069, %v2067
      %v2120 = vpack.c.b16 %v2070, %v2068
      %v2121 = vpack.c.b16 %v2073, %v2071
      %v2122 = vpack.c.b16 %v2074, %v2072
      %v2123 = vpack.c.b16 %v2077, %v2075
      %v2124 = vpack.c.b16 %v2078, %v2076
      %v2125 = vpack.c.b16 %v2081, %v2079
      %v2126 = vpack.c.b16 %v2082, %v2080
      %v2127 = vpack.c.b16 %v2085, %v2083
      %v2128 = vpack.c.b16 %v2086, %v2084
      %v2129 = vpack.c.b16 %v2089, %v2087
      %v2130 = vpack.c.b16 %v2090, %v2088
      %v2131 = vpack.c.b16 %v2093, %v2091
      %v2132 = vpack.c.b16 %v2094, %v2092
      %v2133 = vpack.c.b16 %v2097, %v2095
      %v2134 = vpack.c.b16 %v2098, %v2096
      %v2135 = vpack.c.b16 %v2101, %v2099
      %v2136 = vpack.c.b16 %v2102, %v2100
      %v2137 = vpack.c.b16 %v2105, %v2103
      %v2138 = vpack.c.b16 %v2106, %v2104
      %2171 = vmatprep.subr.bf16.mxu0 %v2108
      %2172 = vmatpush1.bf16.msra.mxu0 %v2107
      %2173 = vmatprep.subr.bf16.mxu0 %v2110
      %2174 = vmatpush1.bf16.msra.mxu0 %v2109
      %2175 = vmatprep.subr.bf16.mxu0 %v2112
      %2176 = vmatpush1.bf16.msra.mxu0 %v2111
      %2177 = vmatprep.subr.bf16.mxu0 %v2114
      %2178 = vmatpush1.bf16.msra.mxu0 %v2113
      %2179 = vmatprep.subr.bf16.mxu0 %v2116
      %2180 = vmatpush1.bf16.msra.mxu0 %v2115
      %2181 = vmatprep.subr.bf16.mxu0 %v2118
      %2182 = vmatpush1.bf16.msra.mxu0 %v2117
      %2183 = vmatprep.subr.bf16.mxu0 %v2120
      %2184 = vmatpush1.bf16.msra.mxu0 %v2119
      %2185 = vmatprep.subr.bf16.mxu0 %v2122
      %2186 = vmatpush1.bf16.msra.mxu0 %v2121
      %2187 = vmatprep.subr.bf16.mxu0 %v2124
      %2188 = vmatpush1.bf16.msra.mxu0 %v2123
      %2189 = vmatprep.subr.bf16.mxu0 %v2126
      %2190 = vmatpush1.bf16.msra.mxu0 %v2125
      %2191 = vmatprep.subr.bf16.mxu0 %v2128
      %2192 = vmatpush1.bf16.msra.mxu0 %v2127
      %2193 = vmatprep.subr.bf16.mxu0 %v2130
      %2194 = vmatpush1.bf16.msra.mxu0 %v2129
      %2195 = vmatprep.subr.bf16.mxu0 %v2132
      %2196 = vmatpush1.bf16.msra.mxu0 %v2131
      %2197 = vmatprep.subr.bf16.mxu0 %v2134
      %2198 = vmatpush1.bf16.msra.mxu0 %v2133
      %2199 = vmatprep.subr.bf16.mxu0 %v2136
      %2200 = vmatpush1.bf16.msra.mxu0 %v2135
      %2201 = vmatprep.subr.bf16.mxu0 %v2138
      %2202 = vmatpush1.bf16.msra.mxu0 %v2137
      %2203 = vmatprep.mubr.bf16.mxu0 %v1612
      %2204 = vmatmul.mubr.bf16.gmra.mrb[0].mxu0 %v1611
      %v2205 = vpop.f32.mrb[0].mxu0
      %v2206 = vadd.f32 0.0, %v2205
      %v2207 = vpop.f32.mrb[0].mxu0
      %v2208 = vadd.f32 0.0, %v2207
      %v2209 = vpop.f32.mrb[0].mxu0
      %v2210 = vadd.f32 0.0, %v2209
      %v2211 = vpop.f32.mrb[0].mxu0
      %v2212 = vadd.f32 0.0, %v2211
      %2213 = vmatprep.mubr.bf16.mxu0 %v1614
      %2214 = vmatmul.mubr.bf16.gmra.mrb[0].mxu0 %v1613
      %v2215 = vpop.f32.mrb[0].mxu0
      %v2216 = vadd.f32 0.0, %v2215
      %v2217 = vpop.f32.mrb[0].mxu0
      %v2218 = vadd.f32 0.0, %v2217
      %v2219 = vpop.f32.mrb[0].mxu0
      %v2220 = vadd.f32 0.0, %v2219
      %v2221 = vpop.f32.mrb[0].mxu0
      %v2222 = vadd.f32 0.0, %v2221
      %2223 = vmatprep.mubr.bf16.mxu0 %v1616
      %2224 = vmatmul.mubr.bf16.gmra.mrb[0].mxu0 %v1615
      %v2225 = vpop.f32.mrb[0].mxu0
      %v2226 = vadd.f32 0.0, %v2225
      %v2227 = vpop.f32.mrb[0].mxu0
      %v2228 = vadd.f32 0.0, %v2227
      %v2229 = vpop.f32.mrb[0].mxu0
      %v2230 = vadd.f32 0.0, %v2229
      %v2231 = vpop.f32.mrb[0].mxu0
      %v2232 = vadd.f32 0.0, %v2231
      %2233 = vmatprep.mubr.bf16.mxu0 %v1618
      %2234 = vmatmul.mubr.bf16.gmra.mrb[0].mxu0 %v1617
      %v2235 = vpop.f32.mrb[0].mxu0
      %v2236 = vadd.f32 0.0, %v2235
      %v2237 = vpop.f32.mrb[0].mxu0
      %v2238 = vadd.f32 0.0, %v2237
      %v2239 = vpop.f32.mrb[0].mxu0
      %v2240 = vadd.f32 0.0, %v2239
      %v2241 = vpop.f32.mrb[0].mxu0
      %v2242 = vadd.f32 0.0, %v2241
      %2243 = vmatprep.mubr.bf16.mxu0 %v1620
      %2244 = vmatmul.mubr.bf16.gmra.mrb[0].mxu0 %v1619
      %v2245 = vpop.f32.mrb[0].mxu0
      %v2246 = vadd.f32 0.0, %v2245
      %v2247 = vpop.f32.mrb[0].mxu0
      %v2248 = vadd.f32 0.0, %v2247
      %v2249 = vpop.f32.mrb[0].mxu0
      %v2250 = vadd.f32 0.0, %v2249
      %v2251 = vpop.f32.mrb[0].mxu0
      %v2252 = vadd.f32 0.0, %v2251
      %2253 = vmatprep.mubr.bf16.mxu0 %v1622
      %2254 = vmatmul.mubr.bf16.gmra.mrb[0].mxu0 %v1621
      %v2255 = vpop.f32.mrb[0].mxu0
      %v2256 = vadd.f32 0.0, %v2255
      %v2257 = vpop.f32.mrb[0].mxu0
      %v2258 = vadd.f32 0.0, %v2257
      %v2259 = vpop.f32.mrb[0].mxu0
      %v2260 = vadd.f32 0.0, %v2259
      %v2261 = vpop.f32.mrb[0].mxu0
      %v2262 = vadd.f32 0.0, %v2261
      %2263 = vmatprep.mubr.bf16.mxu0 %v1624
      %2264 = vmatmul.mubr.bf16.gmra.mrb[0].mxu0 %v1623
      %v2265 = vpop.f32.mrb[0].mxu0
      %v2266 = vadd.f32 0.0, %v2265
      %v2267 = vpop.f32.mrb[0].mxu0
      %v2268 = vadd.f32 0.0, %v2267
      %v2269 = vpop.f32.mrb[0].mxu0
      %v2270 = vadd.f32 0.0, %v2269
      %v2271 = vpop.f32.mrb[0].mxu0
      %v2272 = vadd.f32 0.0, %v2271
      %2273 = vmatprep.mubr.bf16.mxu0 %v2008
      %2274 = vmatmul.mubr.bf16.gmra.mrb[0].mxu0 %v2007
      %v2275 = vpop.f32.mrb[0].mxu0
      %v2276 = vadd.f32 0.0, %v2275
      %v2277 = vpop.f32.mrb[0].mxu0
      %v2278 = vadd.f32 0.0, %v2277
      %v2279 = vpop.f32.mrb[0].mxu0
      %v2280 = vadd.f32 0.0, %v2279
      %v2281 = vpop.f32.mrb[0].mxu0
      %v2282 = vadd.f32 0.0, %v2281
      %2283 = vdwg.mxu0
      %v2284 = vadd.f32 %v1914, %v2206
      %v2285 = vadd.f32 %v1915, %v2208
      %v2286 = vadd.f32 %v1916, %v2210
      %v2287 = vadd.f32 %v1917, %v2212
      %v2288 = vadd.f32 %v1918, %v2216
      %v2289 = vadd.f32 %v1919, %v2218
      %v2290 = vadd.f32 %v1920, %v2220
      %v2291 = vadd.f32 %v1921, %v2222
      %v2292 = vadd.f32 %v1922, %v2226
      %v2293 = vadd.f32 %v1923, %v2228
      %v2294 = vadd.f32 %v1924, %v2230
      %v2295 = vadd.f32 %v1925, %v2232
      %v2296 = vadd.f32 %v1926, %v2236
      %v2297 = vadd.f32 %v1927, %v2238
      %v2298 = vadd.f32 %v1928, %v2240
      %v2299 = vadd.f32 %v1929, %v2242
      %v2300 = vadd.f32 %v1930, %v2246
      %v2301 = vadd.f32 %v1931, %v2248
      %v2302 = vadd.f32 %v1932, %v2250
      %v2303 = vadd.f32 %v1933, %v2252
      %v2304 = vadd.f32 %v1934, %v2256
      %v2305 = vadd.f32 %v1935, %v2258
      %v2306 = vadd.f32 %v1936, %v2260
      %v2307 = vadd.f32 %v1937, %v2262
      %v2308 = vadd.f32 %v1938, %v2266
      %v2309 = vadd.f32 %v1939, %v2268
      %v2310 = vadd.f32 %v1940, %v2270
      %v2311 = vadd.f32 %v1941, %v2272
      %v2312 = vadd.f32 %v1942, %v2276
      %v2313 = vadd.f32 %v1943, %v2278
      %v2314 = vadd.f32 %v1944, %v2280
      %v2315 = vadd.f32 %v1945, %v2282
      %v2317 = vshrl.u32 %v1346, 16
      %v2319 = vrot.slane %v2317, 4
      %v2320 = vshll.u32 %v1346, 16
      %v2322 = vrot.slane %v2320, 5
      %v2323 = vor.u32 %v2319, %v2322
      %v2324 = vrot.slane %v2323, 4
      %v2326 = vshll.u32 %v1347, 16
      %v2328 = vrot.slane %v2326, 5
      %v2329 = vsel %vm1351, %v2324, %v2328
      %v2330 = vshrl.u32 %v1347, 16
      %v2332 = vrot.slane %v2330, 4
      %v2333 = vor.u32 %v2332, %v2328
      %v2334 = vrot.slane %v2333, 4
      %v2336 = vshll.u32 %v1348, 16
      %v2338 = vrot.slane %v2336, 5
      %v2339 = vsel %vm1351, %v2334, %v2338
      %s2340 = scalar_lea.vmem %s1, 1792
      %v2341 = vld [vmem:[%s2340] sm:$0xff]
      %v2342 = vld [vmem:[%s2340 + $0x8] sm:$0xff]
      %v2343 = vld [vmem:[%s2340 + $0x10] sm:$0xff]
      %v2344 = vld [vmem:[%s2340 + $0x18] sm:$0xff]
      %v2345 = vld [vmem:[%s2340 + $0x20] sm:$0xff]
      %v2346 = vld [vmem:[%s2340 + $0x28] sm:$0xff]
      %v2347 = vld [vmem:[%s2340 + $0x30] sm:$0xff]
      %v2348 = vld [vmem:[%s2340 + $0x38] sm:$0xff]
      %v2349 = vld [vmem:[%s2340 + $0x40] sm:$0xff]
      %v2350 = vld [vmem:[%s2340 + $0x48] sm:$0xff]
      %v2351 = vld [vmem:[%s2340 + $0x50] sm:$0xff]
      %v2352 = vld [vmem:[%s2340 + $0x58] sm:$0xff]
      %v2353 = vld [vmem:[%s2340 + $0x60] sm:$0xff]
      %v2354 = vld [vmem:[%s2340 + $0x68] sm:$0xff]
      %v2355 = vld [vmem:[%s2340 + $0x70] sm:$0xff]
      %v2356 = vld [vmem:[%s2340 + $0x78] sm:$0xff]
      %v2357 = vld [vmem:[%s2340 + $0x80] sm:$0xff]
      %v2358 = vld [vmem:[%s2340 + $0x88] sm:$0xff]
      %v2359 = vld [vmem:[%s2340 + $0x90] sm:$0xff]
      %v2360 = vld [vmem:[%s2340 + $0x98] sm:$0xff]
      %v2361 = vld [vmem:[%s2340 + $0xa0] sm:$0xff]
      %v2362 = vld [vmem:[%s2340 + $0xa8] sm:$0xff]
      %v2363 = vld [vmem:[%s2340 + $0xb0] sm:$0xff]
      %v2364 = vld [vmem:[%s2340 + $0xb8] sm:$0xff]
      %v2365 = vld [vmem:[%s2340 + $0xc0] sm:$0xff]
      %v2366 = vld [vmem:[%s2340 + $0xc8] sm:$0xff]
      %v2367 = vld [vmem:[%s2340 + $0xd0] sm:$0xff]
      %v2368 = vld [vmem:[%s2340 + $0xd8] sm:$0xff]
      %v2369 = vld [vmem:[%s2340 + $0xe0] sm:$0xff]
      %v2370 = vld [vmem:[%s2340 + $0xe8] sm:$0xff]
      %v2371 = vld [vmem:[%s2340 + $0xf0] sm:$0xff]
      %v2372 = vld [vmem:[%s2340 + $0xf8] sm:$0xff]
      %v2373 = vunpack.c.l.b16 %v2329
      %v2374 = vunpack.c.h.b16 %v2329
      %v2375 = vunpack.c.l.b16 %v2339
      %v2376 = vunpack.c.h.b16 %v2339
      %v2377 = vpack.c.b16 %v2375, %v2373
      %v2378 = vpack.c.b16 %v2376, %v2374
      %v2413 = vunpack.c.l.b16 %v2341
      %v2414 = vunpack.c.h.b16 %v2341
      %v2415 = vunpack.c.l.b16 %v2342
      %v2416 = vunpack.c.h.b16 %v2342
      %v2417 = vunpack.c.l.b16 %v2343
      %v2418 = vunpack.c.h.b16 %v2343
      %v2419 = vunpack.c.l.b16 %v2344
      %v2420 = vunpack.c.h.b16 %v2344
      %v2421 = vunpack.c.l.b16 %v2345
      %v2422 = vunpack.c.h.b16 %v2345
      %v2423 = vunpack.c.l.b16 %v2346
      %v2424 = vunpack.c.h.b16 %v2346
      %v2425 = vunpack.c.l.b16 %v2347
      %v2426 = vunpack.c.h.b16 %v2347
      %v2427 = vunpack.c.l.b16 %v2348
      %v2428 = vunpack.c.h.b16 %v2348
      %v2429 = vunpack.c.l.b16 %v2349
      %v2430 = vunpack.c.h.b16 %v2349
      %v2431 = vunpack.c.l.b16 %v2350
      %v2432 = vunpack.c.h.b16 %v2350
      %v2433 = vunpack.c.l.b16 %v2351
      %v2434 = vunpack.c.h.b16 %v2351
      %v2435 = vunpack.c.l.b16 %v2352
      %v2436 = vunpack.c.h.b16 %v2352
      %v2437 = vunpack.c.l.b16 %v2353
      %v2438 = vunpack.c.h.b16 %v2353
      %v2439 = vunpack.c.l.b16 %v2354
      %v2440 = vunpack.c.h.b16 %v2354
      %v2441 = vunpack.c.l.b16 %v2355
      %v2442 = vunpack.c.h.b16 %v2355
      %v2443 = vunpack.c.l.b16 %v2356
      %v2444 = vunpack.c.h.b16 %v2356
      %v2445 = vunpack.c.l.b16 %v2357
      %v2446 = vunpack.c.h.b16 %v2357
      %v2447 = vunpack.c.l.b16 %v2358
      %v2448 = vunpack.c.h.b16 %v2358
      %v2449 = vunpack.c.l.b16 %v2359
      %v2450 = vunpack.c.h.b16 %v2359
      %v2451 = vunpack.c.l.b16 %v2360
      %v2452 = vunpack.c.h.b16 %v2360
      %v2453 = vunpack.c.l.b16 %v2361
      %v2454 = vunpack.c.h.b16 %v2361
      %v2455 = vunpack.c.l.b16 %v2362
      %v2456 = vunpack.c.h.b16 %v2362
      %v2457 = vunpack.c.l.b16 %v2363
      %v2458 = vunpack.c.h.b16 %v2363
      %v2459 = vunpack.c.l.b16 %v2364
      %v2460 = vunpack.c.h.b16 %v2364
      %v2461 = vunpack.c.l.b16 %v2365
      %v2462 = vunpack.c.h.b16 %v2365
      %v2463 = vunpack.c.l.b16 %v2366
      %v2464 = vunpack.c.h.b16 %v2366
      %v2465 = vunpack.c.l.b16 %v2367
      %v2466 = vunpack.c.h.b16 %v2367
      %v2467 = vunpack.c.l.b16 %v2368
      %v2468 = vunpack.c.h.b16 %v2368
      %v2469 = vunpack.c.l.b16 %v2369
      %v2470 = vunpack.c.h.b16 %v2369
      %v2471 = vunpack.c.l.b16 %v2370
      %v2472 = vunpack.c.h.b16 %v2370
      %v2473 = vunpack.c.l.b16 %v2371
      %v2474 = vunpack.c.h.b16 %v2371
      %v2475 = vunpack.c.l.b16 %v2372
      %v2476 = vunpack.c.h.b16 %v2372
      %v2477 = vpack.c.b16 %v2415, %v2413
      %v2478 = vpack.c.b16 %v2416, %v2414
      %v2479 = vpack.c.b16 %v2419, %v2417
      %v2480 = vpack.c.b16 %v2420, %v2418
      %v2481 = vpack.c.b16 %v2423, %v2421
      %v2482 = vpack.c.b16 %v2424, %v2422
      %v2483 = vpack.c.b16 %v2427, %v2425
      %v2484 = vpack.c.b16 %v2428, %v2426
      %v2485 = vpack.c.b16 %v2431, %v2429
      %v2486 = vpack.c.b16 %v2432, %v2430
      %v2487 = vpack.c.b16 %v2435, %v2433
      %v2488 = vpack.c.b16 %v2436, %v2434
      %v2489 = vpack.c.b16 %v2439, %v2437
      %v2490 = vpack.c.b16 %v2440, %v2438
      %v2491 = vpack.c.b16 %v2443, %v2441
      %v2492 = vpack.c.b16 %v2444, %v2442
      %v2493 = vpack.c.b16 %v2447, %v2445
      %v2494 = vpack.c.b16 %v2448, %v2446
      %v2495 = vpack.c.b16 %v2451, %v2449
      %v2496 = vpack.c.b16 %v2452, %v2450
      %v2497 = vpack.c.b16 %v2455, %v2453
      %v2498 = vpack.c.b16 %v2456, %v2454
      %v2499 = vpack.c.b16 %v2459, %v2457
      %v2500 = vpack.c.b16 %v2460, %v2458
      %v2501 = vpack.c.b16 %v2463, %v2461
      %v2502 = vpack.c.b16 %v2464, %v2462
      %v2503 = vpack.c.b16 %v2467, %v2465
      %v2504 = vpack.c.b16 %v2468, %v2466
      %v2505 = vpack.c.b16 %v2471, %v2469
      %v2506 = vpack.c.b16 %v2472, %v2470
      %v2507 = vpack.c.b16 %v2475, %v2473
      %v2508 = vpack.c.b16 %v2476, %v2474
      %2541 = vmatprep.subr.bf16.mxu0 %v2478
      %2542 = vmatpush1.bf16.msra.mxu0 %v2477
      %2543 = vmatprep.subr.bf16.mxu0 %v2480
      %2544 = vmatpush1.bf16.msra.mxu0 %v2479
      %2545 = vmatprep.subr.bf16.mxu0 %v2482
      %2546 = vmatpush1.bf16.msra.mxu0 %v2481
      %2547 = vmatprep.subr.bf16.mxu0 %v2484
      %2548 = vmatpush1.bf16.msra.mxu0 %v2483
      %2549 = vmatprep.subr.bf16.mxu0 %v2486
      %2550 = vmatpush1.bf16.msra.mxu0 %v2485
      %2551 = vmatprep.subr.bf16.mxu0 %v2488
      %2552 = vmatpush1.bf16.msra.mxu0 %v2487
      %2553 = vmatprep.subr.bf16.mxu0 %v2490
      %2554 = vmatpush1.bf16.msra.mxu0 %v2489
      %2555 = vmatprep.subr.bf16.mxu0 %v2492
      %2556 = vmatpush1.bf16.msra.mxu0 %v2491
      %2557 = vmatprep.subr.bf16.mxu0 %v2494
      %2558 = vmatpush1.bf16.msra.mxu0 %v2493
      %2559 = vmatprep.subr.bf16.mxu0 %v2496
      %2560 = vmatpush1.bf16.msra.mxu0 %v2495
      %2561 = vmatprep.subr.bf16.mxu0 %v2498
      %2562 = vmatpush1.bf16.msra.mxu0 %v2497
      %2563 = vmatprep.subr.bf16.mxu0 %v2500
      %2564 = vmatpush1.bf16.msra.mxu0 %v2499
      %2565 = vmatprep.subr.bf16.mxu0 %v2502
      %2566 = vmatpush1.bf16.msra.mxu0 %v2501
      %2567 = vmatprep.subr.bf16.mxu0 %v2504
      %2568 = vmatpush1.bf16.msra.mxu0 %v2503
      %2569 = vmatprep.subr.bf16.mxu0 %v2506
      %2570 = vmatpush1.bf16.msra.mxu0 %v2505
      %2571 = vmatprep.subr.bf16.mxu0 %v2508
      %2572 = vmatpush1.bf16.msra.mxu0 %v2507
      %2573 = vmatprep.mubr.bf16.mxu0 %v1614
      %2574 = vmatmul.mubr.bf16.gmra.mrb[0].mxu0 %v1613
      %v2575 = vpop.f32.mrb[0].mxu0
      %v2576 = vadd.f32 0.0, %v2575
      %v2577 = vpop.f32.mrb[0].mxu0
      %v2578 = vadd.f32 0.0, %v2577
      %v2579 = vpop.f32.mrb[0].mxu0
      %v2580 = vadd.f32 0.0, %v2579
      %v2581 = vpop.f32.mrb[0].mxu0
      %v2582 = vadd.f32 0.0, %v2581
      %2583 = vmatprep.mubr.bf16.mxu0 %v1616
      %2584 = vmatmul.mubr.bf16.gmra.mrb[0].mxu0 %v1615
      %v2585 = vpop.f32.mrb[0].mxu0
      %v2586 = vadd.f32 0.0, %v2585
      %v2587 = vpop.f32.mrb[0].mxu0
      %v2588 = vadd.f32 0.0, %v2587
      %v2589 = vpop.f32.mrb[0].mxu0
      %v2590 = vadd.f32 0.0, %v2589
      %v2591 = vpop.f32.mrb[0].mxu0
      %v2592 = vadd.f32 0.0, %v2591
      %2593 = vmatprep.mubr.bf16.mxu0 %v1618
      %2594 = vmatmul.mubr.bf16.gmra.mrb[0].mxu0 %v1617
      %v2595 = vpop.f32.mrb[0].mxu0
      %v2596 = vadd.f32 0.0, %v2595
      %v2597 = vpop.f32.mrb[0].mxu0
      %v2598 = vadd.f32 0.0, %v2597
      %v2599 = vpop.f32.mrb[0].mxu0
      %v2600 = vadd.f32 0.0, %v2599
      %v2601 = vpop.f32.mrb[0].mxu0
      %v2602 = vadd.f32 0.0, %v2601
      %2603 = vmatprep.mubr.bf16.mxu0 %v1620
      %2604 = vmatmul.mubr.bf16.gmra.mrb[0].mxu0 %v1619
      %v2605 = vpop.f32.mrb[0].mxu0
      %v2606 = vadd.f32 0.0, %v2605
      %v2607 = vpop.f32.mrb[0].mxu0
      %v2608 = vadd.f32 0.0, %v2607
      %v2609 = vpop.f32.mrb[0].mxu0
      %v2610 = vadd.f32 0.0, %v2609
      %v2611 = vpop.f32.mrb[0].mxu0
      %v2612 = vadd.f32 0.0, %v2611
      %2613 = vmatprep.mubr.bf16.mxu0 %v1622
      %2614 = vmatmul.mubr.bf16.gmra.mrb[0].mxu0 %v1621
      %v2615 = vpop.f32.mrb[0].mxu0
      %v2616 = vadd.f32 0.0, %v2615
      %v2617 = vpop.f32.mrb[0].mxu0
      %v2618 = vadd.f32 0.0, %v2617
      %v2619 = vpop.f32.mrb[0].mxu0
      %v2620 = vadd.f32 0.0, %v2619
      %v2621 = vpop.f32.mrb[0].mxu0
      %v2622 = vadd.f32 0.0, %v2621
      %2623 = vmatprep.mubr.bf16.mxu0 %v1624
      %2624 = vmatmul.mubr.bf16.gmra.mrb[0].mxu0 %v1623
      %v2625 = vpop.f32.mrb[0].mxu0
      %v2626 = vadd.f32 0.0, %v2625
      %v2627 = vpop.f32.mrb[0].mxu0
      %v2628 = vadd.f32 0.0, %v2627
      %v2629 = vpop.f32.mrb[0].mxu0
      %v2630 = vadd.f32 0.0, %v2629
      %v2631 = vpop.f32.mrb[0].mxu0
      %v2632 = vadd.f32 0.0, %v2631
      %2633 = vmatprep.mubr.bf16.mxu0 %v2008
      %2634 = vmatmul.mubr.bf16.gmra.mrb[0].mxu0 %v2007
      %v2635 = vpop.f32.mrb[0].mxu0
      %v2636 = vadd.f32 0.0, %v2635
      %v2637 = vpop.f32.mrb[0].mxu0
      %v2638 = vadd.f32 0.0, %v2637
      %v2639 = vpop.f32.mrb[0].mxu0
      %v2640 = vadd.f32 0.0, %v2639
      %v2641 = vpop.f32.mrb[0].mxu0
      %v2642 = vadd.f32 0.0, %v2641
      %2643 = vmatprep.mubr.bf16.mxu0 %v2378
      %2644 = vmatmul.mubr.bf16.gmra.mrb[0].mxu0 %v2377
      %v2645 = vpop.f32.mrb[0].mxu0
      %v2646 = vadd.f32 0.0, %v2645
      %v2647 = vpop.f32.mrb[0].mxu0
      %v2648 = vadd.f32 0.0, %v2647
      %v2649 = vpop.f32.mrb[0].mxu0
      %v2650 = vadd.f32 0.0, %v2649
      %v2651 = vpop.f32.mrb[0].mxu0
      %v2652 = vadd.f32 0.0, %v2651
      %2653 = vdwg.mxu0
      %v2654 = vadd.f32 %v2284, %v2576
      %v2655 = vadd.f32 %v2285, %v2578
      %v2656 = vadd.f32 %v2286, %v2580
      %v2657 = vadd.f32 %v2287, %v2582
      %v2658 = vadd.f32 %v2288, %v2586
      %v2659 = vadd.f32 %v2289, %v2588
      %v2660 = vadd.f32 %v2290, %v2590
      %v2661 = vadd.f32 %v2291, %v2592
      %v2662 = vadd.f32 %v2292, %v2596
      %v2663 = vadd.f32 %v2293, %v2598
      %v2664 = vadd.f32 %v2294, %v2600
      %v2665 = vadd.f32 %v2295, %v2602
      %v2666 = vadd.f32 %v2296, %v2606
      %v2667 = vadd.f32 %v2297, %v2608
      %v2668 = vadd.f32 %v2298, %v2610
      %v2669 = vadd.f32 %v2299, %v2612
      %v2670 = vadd.f32 %v2300, %v2616
      %v2671 = vadd.f32 %v2301, %v2618
      %v2672 = vadd.f32 %v2302, %v2620
      %v2673 = vadd.f32 %v2303, %v2622
      %v2674 = vadd.f32 %v2304, %v2626
      %v2675 = vadd.f32 %v2305, %v2628
      %v2676 = vadd.f32 %v2306, %v2630
      %v2677 = vadd.f32 %v2307, %v2632
      %v2678 = vadd.f32 %v2308, %v2636
      %v2679 = vadd.f32 %v2309, %v2638
      %v2680 = vadd.f32 %v2310, %v2640
      %v2681 = vadd.f32 %v2311, %v2642
      %v2682 = vadd.f32 %v2312, %v2646
      %v2683 = vadd.f32 %v2313, %v2648
      %v2684 = vadd.f32 %v2314, %v2650
      %v2685 = vadd.f32 %v2315, %v2652
      %v2686 = vld [vmem:[%s249] sm:$0xee]
      %v2687 = vld [vmem:[%s249 + $0x18] sm:$0xee]
      %v2688 = vld [vmem:[%s249 + $0x30] sm:$0xee]
      %v2689 = vld [vmem:[%s249 + $0x48] sm:$0xee]
      %v2690 = vld [vmem:[%s249 + $0x60] sm:$0xee]
      %v2691 = vld [vmem:[%s249 + $0x78] sm:$0xee]
      %v2692 = vld [vmem:[%s249 + $0x90] sm:$0xee]
      %v2693 = vld [vmem:[%s249 + $0xa8] sm:$0xee]
      %v2694 = vld [vmem:[%s249 + $0xc0] sm:$0xee]
      %v2695 = vld [vmem:[%s249 + $0xd8] sm:$0xee]
      %vm2720 = vcmask 1042432
      %vm2721 = vcmask 1046532
      %vm2722 = vmor %vm2720, %vm2721
      %v2723 = vrot.slane %v2686, 5
      %v2724 = vrot.slane %v2723, 4
      %v2725 = vrot.slane %v1320, 5
      %v2726 = vsel %vm2722, %v2724, %v2725
      %v2727 = vrot.slane %v2725, 4
      %v2728 = vrot.slane %v1321, 5
      %v2729 = vsel %vm2722, %v2727, %v2728
      %v2730 = vrot.slane %v2687, 5
      %v2731 = vrot.slane %v2730, 4
      %v2732 = vrot.slane %v1323, 5
      %v2733 = vsel %vm2722, %v2731, %v2732
      %v2734 = vrot.slane %v2732, 4
      %v2735 = vrot.slane %v1324, 5
      %v2736 = vsel %vm2722, %v2734, %v2735
      %v2737 = vrot.slane %v2688, 5
      %v2738 = vrot.slane %v2737, 4
      %v2739 = vrot.slane %v1326, 5
      %v2740 = vsel %vm2722, %v2738, %v2739
      %v2741 = vrot.slane %v2739, 4
      %v2742 = vrot.slane %v1327, 5
      %v2743 = vsel %vm2722, %v2741, %v2742
      %v2744 = vrot.slane %v2689, 5
      %v2745 = vrot.slane %v2744, 4
      %v2746 = vrot.slane %v1329, 5
      %v2747 = vsel %vm2722, %v2745, %v2746
      %v2748 = vrot.slane %v2746, 4
      %v2749 = vrot.slane %v1330, 5
      %v2750 = vsel %vm2722, %v2748, %v2749
      %v2751 = vrot.slane %v2690, 5
      %v2752 = vrot.slane %v2751, 4
      %v2753 = vrot.slane %v1332, 5
      %v2754 = vsel %vm2722, %v2752, %v2753
      %v2755 = vrot.slane %v2753, 4
      %v2756 = vrot.slane %v1333, 5
      %v2757 = vsel %vm2722, %v2755, %v2756
      %v2758 = vrot.slane %v2691, 5
      %v2759 = vrot.slane %v2758, 4
      %v2760 = vrot.slane %v1335, 5
      %v2761 = vsel %vm2722, %v2759, %v2760
      %v2762 = vrot.slane %v2760, 4
      %v2763 = vrot.slane %v1336, 5
      %v2764 = vsel %vm2722, %v2762, %v2763
      %v2765 = vrot.slane %v2692, 5
      %v2766 = vrot.slane %v2765, 4
      %v2767 = vrot.slane %v1338, 5
      %v2768 = vsel %vm2722, %v2766, %v2767
      %v2769 = vrot.slane %v2767, 4
      %v2770 = vrot.slane %v1339, 5
      %v2771 = vsel %vm2722, %v2769, %v2770
      %v2772 = vrot.slane %v2693, 5
      %v2773 = vrot.slane %v2772, 4
      %v2774 = vrot.slane %v1341, 5
      %v2775 = vsel %vm2722, %v2773, %v2774
      %v2776 = vrot.slane %v2774, 4
      %v2777 = vrot.slane %v1342, 5
      %v2778 = vsel %vm2722, %v2776, %v2777
      %s2779 = scalar_lea.vmem %s1, 512
      %v2780 = vld [vmem:[%s2779] sm:$0xff]
      %v2781 = vld [vmem:[%s2779 + $0x8] sm:$0xff]
      %v2782 = vld [vmem:[%s2779 + $0x10] sm:$0xff]
      %v2783 = vld [vmem:[%s2779 + $0x18] sm:$0xff]
      %v2784 = vld [vmem:[%s2779 + $0x20] sm:$0xff]
      %v2785 = vld [vmem:[%s2779 + $0x28] sm:$0xff]
      %v2786 = vld [vmem:[%s2779 + $0x30] sm:$0xff]
      %v2787 = vld [vmem:[%s2779 + $0x38] sm:$0xff]
      %v2788 = vld [vmem:[%s2779 + $0x40] sm:$0xff]
      %v2789 = vld [vmem:[%s2779 + $0x48] sm:$0xff]
      %v2790 = vld [vmem:[%s2779 + $0x50] sm:$0xff]
      %v2791 = vld [vmem:[%s2779 + $0x58] sm:$0xff]
      %v2792 = vld [vmem:[%s2779 + $0x60] sm:$0xff]
      %v2793 = vld [vmem:[%s2779 + $0x68] sm:$0xff]
      %v2794 = vld [vmem:[%s2779 + $0x70] sm:$0xff]
      %v2795 = vld [vmem:[%s2779 + $0x78] sm:$0xff]
      %v2796 = vld [vmem:[%s2779 + $0x80] sm:$0xff]
      %v2797 = vld [vmem:[%s2779 + $0x88] sm:$0xff]
      %v2798 = vld [vmem:[%s2779 + $0x90] sm:$0xff]
      %v2799 = vld [vmem:[%s2779 + $0x98] sm:$0xff]
      %v2800 = vld [vmem:[%s2779 + $0xa0] sm:$0xff]
      %v2801 = vld [vmem:[%s2779 + $0xa8] sm:$0xff]
      %v2802 = vld [vmem:[%s2779 + $0xb0] sm:$0xff]
      %v2803 = vld [vmem:[%s2779 + $0xb8] sm:$0xff]
      %v2804 = vld [vmem:[%s2779 + $0xc0] sm:$0xff]
      %v2805 = vld [vmem:[%s2779 + $0xc8] sm:$0xff]
      %v2806 = vld [vmem:[%s2779 + $0xd0] sm:$0xff]
      %v2807 = vld [vmem:[%s2779 + $0xd8] sm:$0xff]
      %v2808 = vld [vmem:[%s2779 + $0xe0] sm:$0xff]
      %v2809 = vld [vmem:[%s2779 + $0xe8] sm:$0xff]
      %v2810 = vld [vmem:[%s2779 + $0xf0] sm:$0xff]
      %v2811 = vld [vmem:[%s2779 + $0xf8] sm:$0xff]
      %v2812 = vunpack.c.l.b16 %v2726
      %v2813 = vunpack.c.h.b16 %v2726
      %v2814 = vunpack.c.l.b16 %v2729
      %v2815 = vunpack.c.h.b16 %v2729
      %v2816 = vunpack.c.l.b16 %v2733
      %v2817 = vunpack.c.h.b16 %v2733
      %v2818 = vunpack.c.l.b16 %v2736
      %v2819 = vunpack.c.h.b16 %v2736
      %v2820 = vunpack.c.l.b16 %v2740
      %v2821 = vunpack.c.h.b16 %v2740
      %v2822 = vunpack.c.l.b16 %v2743
      %v2823 = vunpack.c.h.b16 %v2743
      %v2824 = vunpack.c.l.b16 %v2747
      %v2825 = vunpack.c.h.b16 %v2747
      %v2826 = vunpack.c.l.b16 %v2750
      %v2827 = vunpack.c.h.b16 %v2750
      %v2828 = vunpack.c.l.b16 %v2754
      %v2829 = vunpack.c.h.b16 %v2754
      %v2830 = vunpack.c.l.b16 %v2757
      %v2831 = vunpack.c.h.b16 %v2757
      %v2832 = vunpack.c.l.b16 %v2761
      %v2833 = vunpack.c.h.b16 %v2761
      %v2834 = vunpack.c.l.b16 %v2764
      %v2835 = vunpack.c.h.b16 %v2764
      %v2836 = vunpack.c.l.b16 %v2768
      %v2837 = vunpack.c.h.b16 %v2768
      %v2838 = vunpack.c.l.b16 %v2771
      %v2839 = vunpack.c.h.b16 %v2771
      %v2840 = vunpack.c.l.b16 %v2775
      %v2841 = vunpack.c.h.b16 %v2775
      %v2842 = vunpack.c.l.b16 %v2778
      %v2843 = vunpack.c.h.b16 %v2778
      %v2844 = vpack.c.b16 %v2814, %v2812
      %v2845 = vpack.c.b16 %v2815, %v2813
      %v2846 = vpack.c.b16 %v2818, %v2816
      %v2847 = vpack.c.b16 %v2819, %v2817
      %v2848 = vpack.c.b16 %v2822, %v2820
      %v2849 = vpack.c.b16 %v2823, %v2821
      %v2850 = vpack.c.b16 %v2826, %v2824
      %v2851 = vpack.c.b16 %v2827, %v2825
      %v2852 = vpack.c.b16 %v2830, %v2828
      %v2853 = vpack.c.b16 %v2831, %v2829
      %v2854 = vpack.c.b16 %v2834, %v2832
      %v2855 = vpack.c.b16 %v2835, %v2833
      %v2856 = vpack.c.b16 %v2838, %v2836
      %v2857 = vpack.c.b16 %v2839, %v2837
      %v2858 = vpack.c.b16 %v2842, %v2840
      %v2859 = vpack.c.b16 %v2843, %v2841
      %v2908 = vunpack.c.l.b16 %v2780
      %v2909 = vunpack.c.h.b16 %v2780
      %v2910 = vunpack.c.l.b16 %v2781
      %v2911 = vunpack.c.h.b16 %v2781
      %v2912 = vunpack.c.l.b16 %v2782
      %v2913 = vunpack.c.h.b16 %v2782
      %v2914 = vunpack.c.l.b16 %v2783
      %v2915 = vunpack.c.h.b16 %v2783
      %v2916 = vunpack.c.l.b16 %v2784
      %v2917 = vunpack.c.h.b16 %v2784
      %v2918 = vunpack.c.l.b16 %v2785
      %v2919 = vunpack.c.h.b16 %v2785
      %v2920 = vunpack.c.l.b16 %v2786
      %v2921 = vunpack.c.h.b16 %v2786
      %v2922 = vunpack.c.l.b16 %v2787
      %v2923 = vunpack.c.h.b16 %v2787
      %v2924 = vunpack.c.l.b16 %v2788
      %v2925 = vunpack.c.h.b16 %v2788
      %v2926 = vunpack.c.l.b16 %v2789
      %v2927 = vunpack.c.h.b16 %v2789
      %v2928 = vunpack.c.l.b16 %v2790
      %v2929 = vunpack.c.h.b16 %v2790
      %v2930 = vunpack.c.l.b16 %v2791
      %v2931 = vunpack.c.h.b16 %v2791
      %v2932 = vunpack.c.l.b16 %v2792
      %v2933 = vunpack.c.h.b16 %v2792
      %v2934 = vunpack.c.l.b16 %v2793
      %v2935 = vunpack.c.h.b16 %v2793
      %v2936 = vunpack.c.l.b16 %v2794
      %v2937 = vunpack.c.h.b16 %v2794
      %v2938 = vunpack.c.l.b16 %v2795
      %v2939 = vunpack.c.h.b16 %v2795
      %v2940 = vunpack.c.l.b16 %v2796
      %v2941 = vunpack.c.h.b16 %v2796
      %v2942 = vunpack.c.l.b16 %v2797
      %v2943 = vunpack.c.h.b16 %v2797
      %v2944 = vunpack.c.l.b16 %v2798
      %v2945 = vunpack.c.h.b16 %v2798
      %v2946 = vunpack.c.l.b16 %v2799
      %v2947 = vunpack.c.h.b16 %v2799
      %v2948 = vunpack.c.l.b16 %v2800
      %v2949 = vunpack.c.h.b16 %v2800
      %v2950 = vunpack.c.l.b16 %v2801
      %v2951 = vunpack.c.h.b16 %v2801
      %v2952 = vunpack.c.l.b16 %v2802
      %v2953 = vunpack.c.h.b16 %v2802
      %v2954 = vunpack.c.l.b16 %v2803
      %v2955 = vunpack.c.h.b16 %v2803
      %v2956 = vunpack.c.l.b16 %v2804
      %v2957 = vunpack.c.h.b16 %v2804
      %v2958 = vunpack.c.l.b16 %v2805
      %v2959 = vunpack.c.h.b16 %v2805
      %v2960 = vunpack.c.l.b16 %v2806
      %v2961 = vunpack.c.h.b16 %v2806
      %v2962 = vunpack.c.l.b16 %v2807
      %v2963 = vunpack.c.h.b16 %v2807
      %v2964 = vunpack.c.l.b16 %v2808
      %v2965 = vunpack.c.h.b16 %v2808
      %v2966 = vunpack.c.l.b16 %v2809
      %v2967 = vunpack.c.h.b16 %v2809
      %v2968 = vunpack.c.l.b16 %v2810
      %v2969 = vunpack.c.h.b16 %v2810
      %v2970 = vunpack.c.l.b16 %v2811
      %v2971 = vunpack.c.h.b16 %v2811
      %v2972 = vpack.c.b16 %v2910, %v2908
      %v2973 = vpack.c.b16 %v2911, %v2909
      %v2974 = vpack.c.b16 %v2914, %v2912
      %v2975 = vpack.c.b16 %v2915, %v2913
      %v2976 = vpack.c.b16 %v2918, %v2916
      %v2977 = vpack.c.b16 %v2919, %v2917
      %v2978 = vpack.c.b16 %v2922, %v2920
      %v2979 = vpack.c.b16 %v2923, %v2921
      %v2980 = vpack.c.b16 %v2926, %v2924
      %v2981 = vpack.c.b16 %v2927, %v2925
      %v2982 = vpack.c.b16 %v2930, %v2928
      %v2983 = vpack.c.b16 %v2931, %v2929
      %v2984 = vpack.c.b16 %v2934, %v2932
      %v2985 = vpack.c.b16 %v2935, %v2933
      %v2986 = vpack.c.b16 %v2938, %v2936
      %v2987 = vpack.c.b16 %v2939, %v2937
      %v2988 = vpack.c.b16 %v2942, %v2940
      %v2989 = vpack.c.b16 %v2943, %v2941
      %v2990 = vpack.c.b16 %v2946, %v2944
      %v2991 = vpack.c.b16 %v2947, %v2945
      %v2992 = vpack.c.b16 %v2950, %v2948
      %v2993 = vpack.c.b16 %v2951, %v2949
      %v2994 = vpack.c.b16 %v2954, %v2952
      %v2995 = vpack.c.b16 %v2955, %v2953
      %v2996 = vpack.c.b16 %v2958, %v2956
      %v2997 = vpack.c.b16 %v2959, %v2957
      %v2998 = vpack.c.b16 %v2962, %v2960
      %v2999 = vpack.c.b16 %v2963, %v2961
      %v3000 = vpack.c.b16 %v2966, %v2964
      %v3001 = vpack.c.b16 %v2967, %v2965
      %v3002 = vpack.c.b16 %v2970, %v2968
      %v3003 = vpack.c.b16 %v2971, %v2969
      %3036 = vmatprep.subr.bf16.mxu0 %v2973
      %3037 = vmatpush1.bf16.msra.mxu0 %v2972
      %3038 = vmatprep.subr.bf16.mxu0 %v2975
      %3039 = vmatpush1.bf16.msra.mxu0 %v2974
      %3040 = vmatprep.subr.bf16.mxu0 %v2977
      %3041 = vmatpush1.bf16.msra.mxu0 %v2976
      %3042 = vmatprep.subr.bf16.mxu0 %v2979
      %3043 = vmatpush1.bf16.msra.mxu0 %v2978
      %3044 = vmatprep.subr.bf16.mxu0 %v2981
      %3045 = vmatpush1.bf16.msra.mxu0 %v2980
      %3046 = vmatprep.subr.bf16.mxu0 %v2983
      %3047 = vmatpush1.bf16.msra.mxu0 %v2982
      %3048 = vmatprep.subr.bf16.mxu0 %v2985
      %3049 = vmatpush1.bf16.msra.mxu0 %v2984
      %3050 = vmatprep.subr.bf16.mxu0 %v2987
      %3051 = vmatpush1.bf16.msra.mxu0 %v2986
      %3052 = vmatprep.subr.bf16.mxu0 %v2989
      %3053 = vmatpush1.bf16.msra.mxu0 %v2988
      %3054 = vmatprep.subr.bf16.mxu0 %v2991
      %3055 = vmatpush1.bf16.msra.mxu0 %v2990
      %3056 = vmatprep.subr.bf16.mxu0 %v2993
      %3057 = vmatpush1.bf16.msra.mxu0 %v2992
      %3058 = vmatprep.subr.bf16.mxu0 %v2995
      %3059 = vmatpush1.bf16.msra.mxu0 %v2994
      %3060 = vmatprep.subr.bf16.mxu0 %v2997
      %3061 = vmatpush1.bf16.msra.mxu0 %v2996
      %3062 = vmatprep.subr.bf16.mxu0 %v2999
      %3063 = vmatpush1.bf16.msra.mxu0 %v2998
      %3064 = vmatprep.subr.bf16.mxu0 %v3001
      %3065 = vmatpush1.bf16.msra.mxu0 %v3000
      %3066 = vmatprep.subr.bf16.mxu0 %v3003
      %3067 = vmatpush1.bf16.msra.mxu0 %v3002
      %3068 = vmatprep.mubr.bf16.mxu0 %v2845
      %3069 = vmatmul.mubr.bf16.gmra.mrb[0].mxu0 %v2844
      %v3070 = vpop.f32.mrb[0].mxu0
      %v3071 = vadd.f32 0.0, %v3070
      %v3072 = vpop.f32.mrb[0].mxu0
      %v3073 = vadd.f32 0.0, %v3072
      %v3074 = vpop.f32.mrb[0].mxu0
      %v3075 = vadd.f32 0.0, %v3074
      %v3076 = vpop.f32.mrb[0].mxu0
      %v3077 = vadd.f32 0.0, %v3076
      %3078 = vmatprep.mubr.bf16.mxu0 %v2847
      %3079 = vmatmul.mubr.bf16.gmra.mrb[0].mxu0 %v2846
      %v3080 = vpop.f32.mrb[0].mxu0
      %v3081 = vadd.f32 0.0, %v3080
      %v3082 = vpop.f32.mrb[0].mxu0
      %v3083 = vadd.f32 0.0, %v3082
      %v3084 = vpop.f32.mrb[0].mxu0
      %v3085 = vadd.f32 0.0, %v3084
      %v3086 = vpop.f32.mrb[0].mxu0
      %v3087 = vadd.f32 0.0, %v3086
      %3088 = vmatprep.mubr.bf16.mxu0 %v2849
      %3089 = vmatmul.mubr.bf16.gmra.mrb[0].mxu0 %v2848
      %v3090 = vpop.f32.mrb[0].mxu0
      %v3091 = vadd.f32 0.0, %v3090
      %v3092 = vpop.f32.mrb[0].mxu0
      %v3093 = vadd.f32 0.0, %v3092
      %v3094 = vpop.f32.mrb[0].mxu0
      %v3095 = vadd.f32 0.0, %v3094
      %v3096 = vpop.f32.mrb[0].mxu0
      %v3097 = vadd.f32 0.0, %v3096
      %3098 = vmatprep.mubr.bf16.mxu0 %v2851
      %3099 = vmatmul.mubr.bf16.gmra.mrb[0].mxu0 %v2850
      %v3100 = vpop.f32.mrb[0].mxu0
      %v3101 = vadd.f32 0.0, %v3100
      %v3102 = vpop.f32.mrb[0].mxu0
      %v3103 = vadd.f32 0.0, %v3102
      %v3104 = vpop.f32.mrb[0].mxu0
      %v3105 = vadd.f32 0.0, %v3104
      %v3106 = vpop.f32.mrb[0].mxu0
      %v3107 = vadd.f32 0.0, %v3106
      %3108 = vmatprep.mubr.bf16.mxu0 %v2853
      %3109 = vmatmul.mubr.bf16.gmra.mrb[0].mxu0 %v2852
      %v3110 = vpop.f32.mrb[0].mxu0
      %v3111 = vadd.f32 0.0, %v3110
      %v3112 = vpop.f32.mrb[0].mxu0
      %v3113 = vadd.f32 0.0, %v3112
      %v3114 = vpop.f32.mrb[0].mxu0
      %v3115 = vadd.f32 0.0, %v3114
      %v3116 = vpop.f32.mrb[0].mxu0
      %v3117 = vadd.f32 0.0, %v3116
      %3118 = vmatprep.mubr.bf16.mxu0 %v2855
      %3119 = vmatmul.mubr.bf16.gmra.mrb[0].mxu0 %v2854
      %v3120 = vpop.f32.mrb[0].mxu0
      %v3121 = vadd.f32 0.0, %v3120
      %v3122 = vpop.f32.mrb[0].mxu0
      %v3123 = vadd.f32 0.0, %v3122
      %v3124 = vpop.f32.mrb[0].mxu0
      %v3125 = vadd.f32 0.0, %v3124
      %v3126 = vpop.f32.mrb[0].mxu0
      %v3127 = vadd.f32 0.0, %v3126
      %3128 = vmatprep.mubr.bf16.mxu0 %v2857
      %3129 = vmatmul.mubr.bf16.gmra.mrb[0].mxu0 %v2856
      %v3130 = vpop.f32.mrb[0].mxu0
      %v3131 = vadd.f32 0.0, %v3130
      %v3132 = vpop.f32.mrb[0].mxu0
      %v3133 = vadd.f32 0.0, %v3132
      %v3134 = vpop.f32.mrb[0].mxu0
      %v3135 = vadd.f32 0.0, %v3134
      %v3136 = vpop.f32.mrb[0].mxu0
      %v3137 = vadd.f32 0.0, %v3136
      %3138 = vmatprep.mubr.bf16.mxu0 %v2859
      %3139 = vmatmul.mubr.bf16.gmra.mrb[0].mxu0 %v2858
      %v3140 = vpop.f32.mrb[0].mxu0
      %v3141 = vadd.f32 0.0, %v3140
      %v3142 = vpop.f32.mrb[0].mxu0
      %v3143 = vadd.f32 0.0, %v3142
      %v3144 = vpop.f32.mrb[0].mxu0
      %v3145 = vadd.f32 0.0, %v3144
      %v3146 = vpop.f32.mrb[0].mxu0
      %v3147 = vadd.f32 0.0, %v3146
      %3148 = vdwg.mxu0
      %v3149 = vadd.f32 %v2654, %v3071
      %v3150 = vadd.f32 %v2655, %v3073
      %v3151 = vadd.f32 %v2656, %v3075
      %v3152 = vadd.f32 %v2657, %v3077
      %v3153 = vadd.f32 %v2658, %v3081
      %v3154 = vadd.f32 %v2659, %v3083
      %v3155 = vadd.f32 %v2660, %v3085
      %v3156 = vadd.f32 %v2661, %v3087
      %v3157 = vadd.f32 %v2662, %v3091
      %v3158 = vadd.f32 %v2663, %v3093
      %v3159 = vadd.f32 %v2664, %v3095
      %v3160 = vadd.f32 %v2665, %v3097
      %v3161 = vadd.f32 %v2666, %v3101
      %v3162 = vadd.f32 %v2667, %v3103
      %v3163 = vadd.f32 %v2668, %v3105
      %v3164 = vadd.f32 %v2669, %v3107
      %v3165 = vadd.f32 %v2670, %v3111
      %v3166 = vadd.f32 %v2671, %v3113
      %v3167 = vadd.f32 %v2672, %v3115
      %v3168 = vadd.f32 %v2673, %v3117
      %v3169 = vadd.f32 %v2674, %v3121
      %v3170 = vadd.f32 %v2675, %v3123
      %v3171 = vadd.f32 %v2676, %v3125
      %v3172 = vadd.f32 %v2677, %v3127
      %v3173 = vadd.f32 %v2678, %v3131
      %v3174 = vadd.f32 %v2679, %v3133
      %v3175 = vadd.f32 %v2680, %v3135
      %v3176 = vadd.f32 %v2681, %v3137
      %v3177 = vadd.f32 %v2682, %v3141
      %v3178 = vadd.f32 %v2683, %v3143
      %v3179 = vadd.f32 %v2684, %v3145
      %v3180 = vadd.f32 %v2685, %v3147
      %v3184 = vrot.slane %v2694, 5
      %v3185 = vrot.slane %v3184, 4
      %v3186 = vrot.slane %v1344, 5
      %v3187 = vsel %vm2722, %v3185, %v3186
      %v3188 = vrot.slane %v3186, 4
      %v3189 = vrot.slane %v1345, 5
      %v3190 = vsel %vm2722, %v3188, %v3189
      %s3191 = scalar_lea.vmem %s1, 1280
      %v3192 = vld [vmem:[%s3191] sm:$0xff]
      %v3193 = vld [vmem:[%s3191 + $0x8] sm:$0xff]
      %v3194 = vld [vmem:[%s3191 + $0x10] sm:$0xff]
      %v3195 = vld [vmem:[%s3191 + $0x18] sm:$0xff]
      %v3196 = vld [vmem:[%s3191 + $0x20] sm:$0xff]
      %v3197 = vld [vmem:[%s3191 + $0x28] sm:$0xff]
      %v3198 = vld [vmem:[%s3191 + $0x30] sm:$0xff]
      %v3199 = vld [vmem:[%s3191 + $0x38] sm:$0xff]
      %v3200 = vld [vmem:[%s3191 + $0x40] sm:$0xff]
      %v3201 = vld [vmem:[%s3191 + $0x48] sm:$0xff]
      %v3202 = vld [vmem:[%s3191 + $0x50] sm:$0xff]
      %v3203 = vld [vmem:[%s3191 + $0x58] sm:$0xff]
      %v3204 = vld [vmem:[%s3191 + $0x60] sm:$0xff]
      %v3205 = vld [vmem:[%s3191 + $0x68] sm:$0xff]
      %v3206 = vld [vmem:[%s3191 + $0x70] sm:$0xff]
      %v3207 = vld [vmem:[%s3191 + $0x78] sm:$0xff]
      %v3208 = vld [vmem:[%s3191 + $0x80] sm:$0xff]
      %v3209 = vld [vmem:[%s3191 + $0x88] sm:$0xff]
      %v3210 = vld [vmem:[%s3191 + $0x90] sm:$0xff]
      %v3211 = vld [vmem:[%s3191 + $0x98] sm:$0xff]
      %v3212 = vld [vmem:[%s3191 + $0xa0] sm:$0xff]
      %v3213 = vld [vmem:[%s3191 + $0xa8] sm:$0xff]
      %v3214 = vld [vmem:[%s3191 + $0xb0] sm:$0xff]
      %v3215 = vld [vmem:[%s3191 + $0xb8] sm:$0xff]
      %v3216 = vld [vmem:[%s3191 + $0xc0] sm:$0xff]
      %v3217 = vld [vmem:[%s3191 + $0xc8] sm:$0xff]
      %v3218 = vld [vmem:[%s3191 + $0xd0] sm:$0xff]
      %v3219 = vld [vmem:[%s3191 + $0xd8] sm:$0xff]
      %v3220 = vld [vmem:[%s3191 + $0xe0] sm:$0xff]
      %v3221 = vld [vmem:[%s3191 + $0xe8] sm:$0xff]
      %v3222 = vld [vmem:[%s3191 + $0xf0] sm:$0xff]
      %v3223 = vld [vmem:[%s3191 + $0xf8] sm:$0xff]
      %v3224 = vunpack.c.l.b16 %v3187
      %v3225 = vunpack.c.h.b16 %v3187
      %v3226 = vunpack.c.l.b16 %v3190
      %v3227 = vunpack.c.h.b16 %v3190
      %v3228 = vpack.c.b16 %v3226, %v3224
      %v3229 = vpack.c.b16 %v3227, %v3225
      %v3264 = vunpack.c.l.b16 %v3192
      %v3265 = vunpack.c.h.b16 %v3192
      %v3266 = vunpack.c.l.b16 %v3193
      %v3267 = vunpack.c.h.b16 %v3193
      %v3268 = vunpack.c.l.b16 %v3194
      %v3269 = vunpack.c.h.b16 %v3194
      %v3270 = vunpack.c.l.b16 %v3195
      %v3271 = vunpack.c.h.b16 %v3195
      %v3272 = vunpack.c.l.b16 %v3196
      %v3273 = vunpack.c.h.b16 %v3196
      %v3274 = vunpack.c.l.b16 %v3197
      %v3275 = vunpack.c.h.b16 %v3197
      %v3276 = vunpack.c.l.b16 %v3198
      %v3277 = vunpack.c.h.b16 %v3198
      %v3278 = vunpack.c.l.b16 %v3199
      %v3279 = vunpack.c.h.b16 %v3199
      %v3280 = vunpack.c.l.b16 %v3200
      %v3281 = vunpack.c.h.b16 %v3200
      %v3282 = vunpack.c.l.b16 %v3201
      %v3283 = vunpack.c.h.b16 %v3201
      %v3284 = vunpack.c.l.b16 %v3202
      %v3285 = vunpack.c.h.b16 %v3202
      %v3286 = vunpack.c.l.b16 %v3203
      %v3287 = vunpack.c.h.b16 %v3203
      %v3288 = vunpack.c.l.b16 %v3204
      %v3289 = vunpack.c.h.b16 %v3204
      %v3290 = vunpack.c.l.b16 %v3205
      %v3291 = vunpack.c.h.b16 %v3205
      %v3292 = vunpack.c.l.b16 %v3206
      %v3293 = vunpack.c.h.b16 %v3206
      %v3294 = vunpack.c.l.b16 %v3207
      %v3295 = vunpack.c.h.b16 %v3207
      %v3296 = vunpack.c.l.b16 %v3208
      %v3297 = vunpack.c.h.b16 %v3208
      %v3298 = vunpack.c.l.b16 %v3209
      %v3299 = vunpack.c.h.b16 %v3209
      %v3300 = vunpack.c.l.b16 %v3210
      %v3301 = vunpack.c.h.b16 %v3210
      %v3302 = vunpack.c.l.b16 %v3211
      %v3303 = vunpack.c.h.b16 %v3211
      %v3304 = vunpack.c.l.b16 %v3212
      %v3305 = vunpack.c.h.b16 %v3212
      %v3306 = vunpack.c.l.b16 %v3213
      %v3307 = vunpack.c.h.b16 %v3213
      %v3308 = vunpack.c.l.b16 %v3214
      %v3309 = vunpack.c.h.b16 %v3214
      %v3310 = vunpack.c.l.b16 %v3215
      %v3311 = vunpack.c.h.b16 %v3215
      %v3312 = vunpack.c.l.b16 %v3216
      %v3313 = vunpack.c.h.b16 %v3216
      %v3314 = vunpack.c.l.b16 %v3217
      %v3315 = vunpack.c.h.b16 %v3217
      %v3316 = vunpack.c.l.b16 %v3218
      %v3317 = vunpack.c.h.b16 %v3218
      %v3318 = vunpack.c.l.b16 %v3219
      %v3319 = vunpack.c.h.b16 %v3219
      %v3320 = vunpack.c.l.b16 %v3220
      %v3321 = vunpack.c.h.b16 %v3220
      %v3322 = vunpack.c.l.b16 %v3221
      %v3323 = vunpack.c.h.b16 %v3221
      %v3324 = vunpack.c.l.b16 %v3222
      %v3325 = vunpack.c.h.b16 %v3222
      %v3326 = vunpack.c.l.b16 %v3223
      %v3327 = vunpack.c.h.b16 %v3223
      %v3328 = vpack.c.b16 %v3266, %v3264
      %v3329 = vpack.c.b16 %v3267, %v3265
      %v3330 = vpack.c.b16 %v3270, %v3268
      %v3331 = vpack.c.b16 %v3271, %v3269
      %v3332 = vpack.c.b16 %v3274, %v3272
      %v3333 = vpack.c.b16 %v3275, %v3273
      %v3334 = vpack.c.b16 %v3278, %v3276
      %v3335 = vpack.c.b16 %v3279, %v3277
      %v3336 = vpack.c.b16 %v3282, %v3280
      %v3337 = vpack.c.b16 %v3283, %v3281
      %v3338 = vpack.c.b16 %v3286, %v3284
      %v3339 = vpack.c.b16 %v3287, %v3285
      %v3340 = vpack.c.b16 %v3290, %v3288
      %v3341 = vpack.c.b16 %v3291, %v3289
      %v3342 = vpack.c.b16 %v3294, %v3292
      %v3343 = vpack.c.b16 %v3295, %v3293
      %v3344 = vpack.c.b16 %v3298, %v3296
      %v3345 = vpack.c.b16 %v3299, %v3297
      %v3346 = vpack.c.b16 %v3302, %v3300
      %v3347 = vpack.c.b16 %v3303, %v3301
      %v3348 = vpack.c.b16 %v3306, %v3304
      %v3349 = vpack.c.b16 %v3307, %v3305
      %v3350 = vpack.c.b16 %v3310, %v3308
      %v3351 = vpack.c.b16 %v3311, %v3309
      %v3352 = vpack.c.b16 %v3314, %v3312
      %v3353 = vpack.c.b16 %v3315, %v3313
      %v3354 = vpack.c.b16 %v3318, %v3316
      %v3355 = vpack.c.b16 %v3319, %v3317
      %v3356 = vpack.c.b16 %v3322, %v3320
      %v3357 = vpack.c.b16 %v3323, %v3321
      %v3358 = vpack.c.b16 %v3326, %v3324
      %v3359 = vpack.c.b16 %v3327, %v3325
      %3392 = vmatprep.subr.bf16.mxu0 %v3329
      %3393 = vmatpush1.bf16.msra.mxu0 %v3328
      %3394 = vmatprep.subr.bf16.mxu0 %v3331
      %3395 = vmatpush1.bf16.msra.mxu0 %v3330
      %3396 = vmatprep.subr.bf16.mxu0 %v3333
      %3397 = vmatpush1.bf16.msra.mxu0 %v3332
      %3398 = vmatprep.subr.bf16.mxu0 %v3335
      %3399 = vmatpush1.bf16.msra.mxu0 %v3334
      %3400 = vmatprep.subr.bf16.mxu0 %v3337
      %3401 = vmatpush1.bf16.msra.mxu0 %v3336
      %3402 = vmatprep.subr.bf16.mxu0 %v3339
      %3403 = vmatpush1.bf16.msra.mxu0 %v3338
      %3404 = vmatprep.subr.bf16.mxu0 %v3341
      %3405 = vmatpush1.bf16.msra.mxu0 %v3340
      %3406 = vmatprep.subr.bf16.mxu0 %v3343
      %3407 = vmatpush1.bf16.msra.mxu0 %v3342
      %3408 = vmatprep.subr.bf16.mxu0 %v3345
      %3409 = vmatpush1.bf16.msra.mxu0 %v3344
      %3410 = vmatprep.subr.bf16.mxu0 %v3347
      %3411 = vmatpush1.bf16.msra.mxu0 %v3346
      %3412 = vmatprep.subr.bf16.mxu0 %v3349
      %3413 = vmatpush1.bf16.msra.mxu0 %v3348
      %3414 = vmatprep.subr.bf16.mxu0 %v3351
      %3415 = vmatpush1.bf16.msra.mxu0 %v3350
      %3416 = vmatprep.subr.bf16.mxu0 %v3353
      %3417 = vmatpush1.bf16.msra.mxu0 %v3352
      %3418 = vmatprep.subr.bf16.mxu0 %v3355
      %3419 = vmatpush1.bf16.msra.mxu0 %v3354
      %3420 = vmatprep.subr.bf16.mxu0 %v3357
      %3421 = vmatpush1.bf16.msra.mxu0 %v3356
      %3422 = vmatprep.subr.bf16.mxu0 %v3359
      %3423 = vmatpush1.bf16.msra.mxu0 %v3358
      %3424 = vmatprep.mubr.bf16.mxu0 %v2847
      %3425 = vmatmul.mubr.bf16.gmra.mrb[0].mxu0 %v2846
      %v3426 = vpop.f32.mrb[0].mxu0
      %v3427 = vadd.f32 0.0, %v3426
      %v3428 = vpop.f32.mrb[0].mxu0
      %v3429 = vadd.f32 0.0, %v3428
      %v3430 = vpop.f32.mrb[0].mxu0
      %v3431 = vadd.f32 0.0, %v3430
      %v3432 = vpop.f32.mrb[0].mxu0
      %v3433 = vadd.f32 0.0, %v3432
      %3434 = vmatprep.mubr.bf16.mxu0 %v2849
      %3435 = vmatmul.mubr.bf16.gmra.mrb[0].mxu0 %v2848
      %v3436 = vpop.f32.mrb[0].mxu0
      %v3437 = vadd.f32 0.0, %v3436
      %v3438 = vpop.f32.mrb[0].mxu0
      %v3439 = vadd.f32 0.0, %v3438
      %v3440 = vpop.f32.mrb[0].mxu0
      %v3441 = vadd.f32 0.0, %v3440
      %v3442 = vpop.f32.mrb[0].mxu0
      %v3443 = vadd.f32 0.0, %v3442
      %3444 = vmatprep.mubr.bf16.mxu0 %v2851
      %3445 = vmatmul.mubr.bf16.gmra.mrb[0].mxu0 %v2850
      %v3446 = vpop.f32.mrb[0].mxu0
      %v3447 = vadd.f32 0.0, %v3446
      %v3448 = vpop.f32.mrb[0].mxu0
      %v3449 = vadd.f32 0.0, %v3448
      %v3450 = vpop.f32.mrb[0].mxu0
      %v3451 = vadd.f32 0.0, %v3450
      %v3452 = vpop.f32.mrb[0].mxu0
      %v3453 = vadd.f32 0.0, %v3452
      %3454 = vmatprep.mubr.bf16.mxu0 %v2853
      %3455 = vmatmul.mubr.bf16.gmra.mrb[0].mxu0 %v2852
      %v3456 = vpop.f32.mrb[0].mxu0
      %v3457 = vadd.f32 0.0, %v3456
      %v3458 = vpop.f32.mrb[0].mxu0
      %v3459 = vadd.f32 0.0, %v3458
      %v3460 = vpop.f32.mrb[0].mxu0
      %v3461 = vadd.f32 0.0, %v3460
      %v3462 = vpop.f32.mrb[0].mxu0
      %v3463 = vadd.f32 0.0, %v3462
      %3464 = vmatprep.mubr.bf16.mxu0 %v2855
      %3465 = vmatmul.mubr.bf16.gmra.mrb[0].mxu0 %v2854
      %v3466 = vpop.f32.mrb[0].mxu0
      %v3467 = vadd.f32 0.0, %v3466
      %v3468 = vpop.f32.mrb[0].mxu0
      %v3469 = vadd.f32 0.0, %v3468
      %v3470 = vpop.f32.mrb[0].mxu0
      %v3471 = vadd.f32 0.0, %v3470
      %v3472 = vpop.f32.mrb[0].mxu0
      %v3473 = vadd.f32 0.0, %v3472
      %3474 = vmatprep.mubr.bf16.mxu0 %v2857
      %3475 = vmatmul.mubr.bf16.gmra.mrb[0].mxu0 %v2856
      %v3476 = vpop.f32.mrb[0].mxu0
      %v3477 = vadd.f32 0.0, %v3476
      %v3478 = vpop.f32.mrb[0].mxu0
      %v3479 = vadd.f32 0.0, %v3478
      %v3480 = vpop.f32.mrb[0].mxu0
      %v3481 = vadd.f32 0.0, %v3480
      %v3482 = vpop.f32.mrb[0].mxu0
      %v3483 = vadd.f32 0.0, %v3482
      %3484 = vmatprep.mubr.bf16.mxu0 %v2859
      %3485 = vmatmul.mubr.bf16.gmra.mrb[0].mxu0 %v2858
      %v3486 = vpop.f32.mrb[0].mxu0
      %v3487 = vadd.f32 0.0, %v3486
      %v3488 = vpop.f32.mrb[0].mxu0
      %v3489 = vadd.f32 0.0, %v3488
      %v3490 = vpop.f32.mrb[0].mxu0
      %v3491 = vadd.f32 0.0, %v3490
      %v3492 = vpop.f32.mrb[0].mxu0
      %v3493 = vadd.f32 0.0, %v3492
      %3494 = vmatprep.mubr.bf16.mxu0 %v3229
      %3495 = vmatmul.mubr.bf16.gmra.mrb[0].mxu0 %v3228
      %v3496 = vpop.f32.mrb[0].mxu0
      %v3497 = vadd.f32 0.0, %v3496
      %v3498 = vpop.f32.mrb[0].mxu0
      %v3499 = vadd.f32 0.0, %v3498
      %v3500 = vpop.f32.mrb[0].mxu0
      %v3501 = vadd.f32 0.0, %v3500
      %v3502 = vpop.f32.mrb[0].mxu0
      %v3503 = vadd.f32 0.0, %v3502
      %3504 = vdwg.mxu0
      %v3505 = vadd.f32 %v3149, %v3427
      %v3506 = vadd.f32 %v3150, %v3429
      %v3507 = vadd.f32 %v3151, %v3431
      %v3508 = vadd.f32 %v3152, %v3433
      %v3509 = vadd.f32 %v3153, %v3437
      %v3510 = vadd.f32 %v3154, %v3439
      %v3511 = vadd.f32 %v3155, %v3441
      %v3512 = vadd.f32 %v3156, %v3443
      %v3513 = vadd.f32 %v3157, %v3447
      %v3514 = vadd.f32 %v3158, %v3449
      %v3515 = vadd.f32 %v3159, %v3451
      %v3516 = vadd.f32 %v3160, %v3453
      %v3517 = vadd.f32 %v3161, %v3457
      %v3518 = vadd.f32 %v3162, %v3459
      %v3519 = vadd.f32 %v3163, %v3461
      %v3520 = vadd.f32 %v3164, %v3463
      %v3521 = vadd.f32 %v3165, %v3467
      %v3522 = vadd.f32 %v3166, %v3469
      %v3523 = vadd.f32 %v3167, %v3471
      %v3524 = vadd.f32 %v3168, %v3473
      %v3525 = vadd.f32 %v3169, %v3477
      %v3526 = vadd.f32 %v3170, %v3479
      %v3527 = vadd.f32 %v3171, %v3481
      %v3528 = vadd.f32 %v3172, %v3483
      %v3529 = vadd.f32 %v3173, %v3487
      %v3530 = vadd.f32 %v3174, %v3489
      %v3531 = vadd.f32 %v3175, %v3491
      %v3532 = vadd.f32 %v3176, %v3493
      %v3533 = vadd.f32 %v3177, %v3497
      %v3534 = vadd.f32 %v3178, %v3499
      %v3535 = vadd.f32 %v3179, %v3501
      %v3536 = vadd.f32 %v3180, %v3503
      %v3540 = vrot.slane %v2695, 5
      %v3541 = vrot.slane %v3540, 4
      %v3542 = vrot.slane %v1347, 5
      %v3543 = vsel %vm2722, %v3541, %v3542
      %v3544 = vrot.slane %v3542, 4
      %v3545 = vrot.slane %v1348, 5
      %v3546 = vsel %vm2722, %v3544, %v3545
      %s3547 = scalar_lea.vmem %s1, 2048
      %v3548 = vld [vmem:[%s3547] sm:$0xff]
      %v3549 = vld [vmem:[%s3547 + $0x8] sm:$0xff]
      %v3550 = vld [vmem:[%s3547 + $0x10] sm:$0xff]
      %v3551 = vld [vmem:[%s3547 + $0x18] sm:$0xff]
      %v3552 = vld [vmem:[%s3547 + $0x20] sm:$0xff]
      %v3553 = vld [vmem:[%s3547 + $0x28] sm:$0xff]
      %v3554 = vld [vmem:[%s3547 + $0x30] sm:$0xff]
      %v3555 = vld [vmem:[%s3547 + $0x38] sm:$0xff]
      %v3556 = vld [vmem:[%s3547 + $0x40] sm:$0xff]
      %v3557 = vld [vmem:[%s3547 + $0x48] sm:$0xff]
      %v3558 = vld [vmem:[%s3547 + $0x50] sm:$0xff]
      %v3559 = vld [vmem:[%s3547 + $0x58] sm:$0xff]
      %v3560 = vld [vmem:[%s3547 + $0x60] sm:$0xff]
      %v3561 = vld [vmem:[%s3547 + $0x68] sm:$0xff]
      %v3562 = vld [vmem:[%s3547 + $0x70] sm:$0xff]
      %v3563 = vld [vmem:[%s3547 + $0x78] sm:$0xff]
      %v3564 = vld [vmem:[%s3547 + $0x80] sm:$0xff]
      %v3565 = vld [vmem:[%s3547 + $0x88] sm:$0xff]
      %v3566 = vld [vmem:[%s3547 + $0x90] sm:$0xff]
      %v3567 = vld [vmem:[%s3547 + $0x98] sm:$0xff]
      %v3568 = vld [vmem:[%s3547 + $0xa0] sm:$0xff]
      %v3569 = vld [vmem:[%s3547 + $0xa8] sm:$0xff]
      %v3570 = vld [vmem:[%s3547 + $0xb0] sm:$0xff]
      %v3571 = vld [vmem:[%s3547 + $0xb8] sm:$0xff]
      %v3572 = vld [vmem:[%s3547 + $0xc0] sm:$0xff]
      %v3573 = vld [vmem:[%s3547 + $0xc8] sm:$0xff]
      %v3574 = vld [vmem:[%s3547 + $0xd0] sm:$0xff]
      %v3575 = vld [vmem:[%s3547 + $0xd8] sm:$0xff]
      %v3576 = vld [vmem:[%s3547 + $0xe0] sm:$0xff]
      %v3577 = vld [vmem:[%s3547 + $0xe8] sm:$0xff]
      %v3578 = vld [vmem:[%s3547 + $0xf0] sm:$0xff]
      %v3579 = vld [vmem:[%s3547 + $0xf8] sm:$0xff]
      %v3580 = vunpack.c.l.b16 %v3543
      %v3581 = vunpack.c.h.b16 %v3543
      %v3582 = vunpack.c.l.b16 %v3546
      %v3583 = vunpack.c.h.b16 %v3546
      %v3584 = vpack.c.b16 %v3582, %v3580
      %v3585 = vpack.c.b16 %v3583, %v3581
      %v3620 = vunpack.c.l.b16 %v3548
      %v3621 = vunpack.c.h.b16 %v3548
      %v3622 = vunpack.c.l.b16 %v3549
      %v3623 = vunpack.c.h.b16 %v3549
      %v3624 = vunpack.c.l.b16 %v3550
      %v3625 = vunpack.c.h.b16 %v3550
      %v3626 = vunpack.c.l.b16 %v3551
      %v3627 = vunpack.c.h.b16 %v3551
      %v3628 = vunpack.c.l.b16 %v3552
      %v3629 = vunpack.c.h.b16 %v3552
      %v3630 = vunpack.c.l.b16 %v3553
      %v3631 = vunpack.c.h.b16 %v3553
      %v3632 = vunpack.c.l.b16 %v3554
      %v3633 = vunpack.c.h.b16 %v3554
      %v3634 = vunpack.c.l.b16 %v3555
      %v3635 = vunpack.c.h.b16 %v3555
      %v3636 = vunpack.c.l.b16 %v3556
      %v3637 = vunpack.c.h.b16 %v3556
      %v3638 = vunpack.c.l.b16 %v3557
      %v3639 = vunpack.c.h.b16 %v3557
      %v3640 = vunpack.c.l.b16 %v3558
      %v3641 = vunpack.c.h.b16 %v3558
      %v3642 = vunpack.c.l.b16 %v3559
      %v3643 = vunpack.c.h.b16 %v3559
      %v3644 = vunpack.c.l.b16 %v3560
      %v3645 = vunpack.c.h.b16 %v3560
      %v3646 = vunpack.c.l.b16 %v3561
      %v3647 = vunpack.c.h.b16 %v3561
      %v3648 = vunpack.c.l.b16 %v3562
      %v3649 = vunpack.c.h.b16 %v3562
      %v3650 = vunpack.c.l.b16 %v3563
      %v3651 = vunpack.c.h.b16 %v3563
      %v3652 = vunpack.c.l.b16 %v3564
      %v3653 = vunpack.c.h.b16 %v3564
      %v3654 = vunpack.c.l.b16 %v3565
      %v3655 = vunpack.c.h.b16 %v3565
      %v3656 = vunpack.c.l.b16 %v3566
      %v3657 = vunpack.c.h.b16 %v3566
      %v3658 = vunpack.c.l.b16 %v3567
      %v3659 = vunpack.c.h.b16 %v3567
      %v3660 = vunpack.c.l.b16 %v3568
      %v3661 = vunpack.c.h.b16 %v3568
      %v3662 = vunpack.c.l.b16 %v3569
      %v3663 = vunpack.c.h.b16 %v3569
      %v3664 = vunpack.c.l.b16 %v3570
      %v3665 = vunpack.c.h.b16 %v3570
      %v3666 = vunpack.c.l.b16 %v3571
      %v3667 = vunpack.c.h.b16 %v3571
      %v3668 = vunpack.c.l.b16 %v3572
      %v3669 = vunpack.c.h.b16 %v3572
      %v3670 = vunpack.c.l.b16 %v3573
      %v3671 = vunpack.c.h.b16 %v3573
      %v3672 = vunpack.c.l.b16 %v3574
      %v3673 = vunpack.c.h.b16 %v3574
      %v3674 = vunpack.c.l.b16 %v3575
      %v3675 = vunpack.c.h.b16 %v3575
      %v3676 = vunpack.c.l.b16 %v3576
      %v3677 = vunpack.c.h.b16 %v3576
      %v3678 = vunpack.c.l.b16 %v3577
      %v3679 = vunpack.c.h.b16 %v3577
      %v3680 = vunpack.c.l.b16 %v3578
      %v3681 = vunpack.c.h.b16 %v3578
      %v3682 = vunpack.c.l.b16 %v3579
      %v3683 = vunpack.c.h.b16 %v3579
      %v3684 = vpack.c.b16 %v3622, %v3620
      %v3685 = vpack.c.b16 %v3623, %v3621
      %v3686 = vpack.c.b16 %v3626, %v3624
      %v3687 = vpack.c.b16 %v3627, %v3625
      %v3688 = vpack.c.b16 %v3630, %v3628
      %v3689 = vpack.c.b16 %v3631, %v3629
      %v3690 = vpack.c.b16 %v3634, %v3632
      %v3691 = vpack.c.b16 %v3635, %v3633
      %v3692 = vpack.c.b16 %v3638, %v3636
      %v3693 = vpack.c.b16 %v3639, %v3637
      %v3694 = vpack.c.b16 %v3642, %v3640
      %v3695 = vpack.c.b16 %v3643, %v3641
      %v3696 = vpack.c.b16 %v3646, %v3644
      %v3697 = vpack.c.b16 %v3647, %v3645
      %v3698 = vpack.c.b16 %v3650, %v3648
      %v3699 = vpack.c.b16 %v3651, %v3649
      %v3700 = vpack.c.b16 %v3654, %v3652
      %v3701 = vpack.c.b16 %v3655, %v3653
      %v3702 = vpack.c.b16 %v3658, %v3656
      %v3703 = vpack.c.b16 %v3659, %v3657
      %v3704 = vpack.c.b16 %v3662, %v3660
      %v3705 = vpack.c.b16 %v3663, %v3661
      %v3706 = vpack.c.b16 %v3666, %v3664
      %v3707 = vpack.c.b16 %v3667, %v3665
      %v3708 = vpack.c.b16 %v3670, %v3668
      %v3709 = vpack.c.b16 %v3671, %v3669
      %v3710 = vpack.c.b16 %v3674, %v3672
      %v3711 = vpack.c.b16 %v3675, %v3673
      %v3712 = vpack.c.b16 %v3678, %v3676
      %v3713 = vpack.c.b16 %v3679, %v3677
      %v3714 = vpack.c.b16 %v3682, %v3680
      %v3715 = vpack.c.b16 %v3683, %v3681
      %3748 = vmatprep.subr.bf16.mxu0 %v3685
      %3749 = vmatpush1.bf16.msra.mxu0 %v3684
      %3750 = vmatprep.subr.bf16.mxu0 %v3687
      %3751 = vmatpush1.bf16.msra.mxu0 %v3686
      %3752 = vmatprep.subr.bf16.mxu0 %v3689
      %3753 = vmatpush1.bf16.msra.mxu0 %v3688
      %3754 = vmatprep.subr.bf16.mxu0 %v3691
      %3755 = vmatpush1.bf16.msra.mxu0 %v3690
      %3756 = vmatprep.subr.bf16.mxu0 %v3693
      %3757 = vmatpush1.bf16.msra.mxu0 %v3692
      %3758 = vmatprep.subr.bf16.mxu0 %v3695
      %3759 = vmatpush1.bf16.msra.mxu0 %v3694
      %3760 = vmatprep.subr.bf16.mxu0 %v3697
      %3761 = vmatpush1.bf16.msra.mxu0 %v3696
      %3762 = vmatprep.subr.bf16.mxu0 %v3699
      %3763 = vmatpush1.bf16.msra.mxu0 %v3698
      %3764 = vmatprep.subr.bf16.mxu0 %v3701
      %3765 = vmatpush1.bf16.msra.mxu0 %v3700
      %3766 = vmatprep.subr.bf16.mxu0 %v3703
      %3767 = vmatpush1.bf16.msra.mxu0 %v3702
      %3768 = vmatprep.subr.bf16.mxu0 %v3705
      %3769 = vmatpush1.bf16.msra.mxu0 %v3704
      %3770 = vmatprep.subr.bf16.mxu0 %v3707
      %3771 = vmatpush1.bf16.msra.mxu0 %v3706
      %3772 = vmatprep.subr.bf16.mxu0 %v3709
      %3773 = vmatpush1.bf16.msra.mxu0 %v3708
      %3774 = vmatprep.subr.bf16.mxu0 %v3711
      %3775 = vmatpush1.bf16.msra.mxu0 %v3710
      %3776 = vmatprep.subr.bf16.mxu0 %v3713
      %3777 = vmatpush1.bf16.msra.mxu0 %v3712
      %3778 = vmatprep.subr.bf16.mxu0 %v3715
      %3779 = vmatpush1.bf16.msra.mxu0 %v3714
      %3780 = vmatprep.mubr.bf16.mxu0 %v2849
      %3781 = vmatmul.mubr.bf16.gmra.mrb[0].mxu0 %v2848
      %v3782 = vpop.f32.mrb[0].mxu0
      %v3783 = vadd.f32 0.0, %v3782
      %v3784 = vpop.f32.mrb[0].mxu0
      %v3785 = vadd.f32 0.0, %v3784
      %v3786 = vpop.f32.mrb[0].mxu0
      %v3787 = vadd.f32 0.0, %v3786
      %v3788 = vpop.f32.mrb[0].mxu0
      %v3789 = vadd.f32 0.0, %v3788
      %3790 = vmatprep.mubr.bf16.mxu0 %v2851
      %3791 = vmatmul.mubr.bf16.gmra.mrb[0].mxu0 %v2850
      %v3792 = vpop.f32.mrb[0].mxu0
      %v3793 = vadd.f32 0.0, %v3792
      %v3794 = vpop.f32.mrb[0].mxu0
      %v3795 = vadd.f32 0.0, %v3794
      %v3796 = vpop.f32.mrb[0].mxu0
      %v3797 = vadd.f32 0.0, %v3796
      %v3798 = vpop.f32.mrb[0].mxu0
      %v3799 = vadd.f32 0.0, %v3798
      %3800 = vmatprep.mubr.bf16.mxu0 %v2853
      %3801 = vmatmul.mubr.bf16.gmra.mrb[0].mxu0 %v2852
      %v3802 = vpop.f32.mrb[0].mxu0
      %v3803 = vadd.f32 0.0, %v3802
      %v3804 = vpop.f32.mrb[0].mxu0
      %v3805 = vadd.f32 0.0, %v3804
      %v3806 = vpop.f32.mrb[0].mxu0
      %v3807 = vadd.f32 0.0, %v3806
      %v3808 = vpop.f32.mrb[0].mxu0
      %v3809 = vadd.f32 0.0, %v3808
      %3810 = vmatprep.mubr.bf16.mxu0 %v2855
      %3811 = vmatmul.mubr.bf16.gmra.mrb[0].mxu0 %v2854
      %v3812 = vpop.f32.mrb[0].mxu0
      %v3813 = vadd.f32 0.0, %v3812
      %v3814 = vpop.f32.mrb[0].mxu0
      %v3815 = vadd.f32 0.0, %v3814
      %v3816 = vpop.f32.mrb[0].mxu0
      %v3817 = vadd.f32 0.0, %v3816
      %v3818 = vpop.f32.mrb[0].mxu0
      %v3819 = vadd.f32 0.0, %v3818
      %3820 = vmatprep.mubr.bf16.mxu0 %v2857
      %3821 = vmatmul.mubr.bf16.gmra.mrb[0].mxu0 %v2856
      %v3822 = vpop.f32.mrb[0].mxu0
      %v3823 = vadd.f32 0.0, %v3822
      %v3824 = vpop.f32.mrb[0].mxu0
      %v3825 = vadd.f32 0.0, %v3824
      %v3826 = vpop.f32.mrb[0].mxu0
      %v3827 = vadd.f32 0.0, %v3826
      %v3828 = vpop.f32.mrb[0].mxu0
      %v3829 = vadd.f32 0.0, %v3828
      %3830 = vmatprep.mubr.bf16.mxu0 %v2859
      %3831 = vmatmul.mubr.bf16.gmra.mrb[0].mxu0 %v2858
      %v3832 = vpop.f32.mrb[0].mxu0
      %v3833 = vadd.f32 0.0, %v3832
      %v3834 = vpop.f32.mrb[0].mxu0
      %v3835 = vadd.f32 0.0, %v3834
      %v3836 = vpop.f32.mrb[0].mxu0
      %v3837 = vadd.f32 0.0, %v3836
      %v3838 = vpop.f32.mrb[0].mxu0
      %v3839 = vadd.f32 0.0, %v3838
      %3840 = vmatprep.mubr.bf16.mxu0 %v3229
      %3841 = vmatmul.mubr.bf16.gmra.mrb[0].mxu0 %v3228
      %v3842 = vpop.f32.mrb[0].mxu0
      %v3843 = vadd.f32 0.0, %v3842
      %v3844 = vpop.f32.mrb[0].mxu0
      %v3845 = vadd.f32 0.0, %v3844
      %v3846 = vpop.f32.mrb[0].mxu0
      %v3847 = vadd.f32 0.0, %v3846
      %v3848 = vpop.f32.mrb[0].mxu0
      %v3849 = vadd.f32 0.0, %v3848
      %3850 = vmatprep.mubr.bf16.mxu0 %v3585
      %3851 = vmatmul.mubr.bf16.gmra.mrb[0].mxu0 %v3584
      %v3852 = vpop.f32.mrb[0].mxu0
      %v3853 = vadd.f32 0.0, %v3852
      %v3854 = vpop.f32.mrb[0].mxu0
      %v3855 = vadd.f32 0.0, %v3854
      %v3856 = vpop.f32.mrb[0].mxu0
      %v3857 = vadd.f32 0.0, %v3856
      %v3858 = vpop.f32.mrb[0].mxu0
      %v3859 = vadd.f32 0.0, %v3858
      %3860 = vdwg.mxu0
      %v3861 = vadd.f32 %v3505, %v3783
      %v3862 = vadd.f32 %v3506, %v3785
      %v3863 = vadd.f32 %v3507, %v3787
      %v3864 = vadd.f32 %v3508, %v3789
      %v3865 = vadd.f32 %v3509, %v3793
      %v3866 = vadd.f32 %v3510, %v3795
      %v3867 = vadd.f32 %v3511, %v3797
      %v3868 = vadd.f32 %v3512, %v3799
      %v3869 = vadd.f32 %v3513, %v3803
      %v3870 = vadd.f32 %v3514, %v3805
      %v3871 = vadd.f32 %v3515, %v3807
      %v3872 = vadd.f32 %v3516, %v3809
      %v3873 = vadd.f32 %v3517, %v3813
      %v3874 = vadd.f32 %v3518, %v3815
      %v3875 = vadd.f32 %v3519, %v3817
      %v3876 = vadd.f32 %v3520, %v3819
      %v3877 = vadd.f32 %v3521, %v3823
      %v3878 = vadd.f32 %v3522, %v3825
      %v3879 = vadd.f32 %v3523, %v3827
      %v3880 = vadd.f32 %v3524, %v3829
      %v3881 = vadd.f32 %v3525, %v3833
      %v3882 = vadd.f32 %v3526, %v3835
      %v3883 = vadd.f32 %v3527, %v3837
      %v3884 = vadd.f32 %v3528, %v3839
      %v3885 = vadd.f32 %v3529, %v3843
      %v3886 = vadd.f32 %v3530, %v3845
      %v3887 = vadd.f32 %v3531, %v3847
      %v3888 = vadd.f32 %v3532, %v3849
      %v3889 = vadd.f32 %v3533, %v3853
      %v3890 = vadd.f32 %v3534, %v3855
      %v3891 = vadd.f32 %v3535, %v3857
      %v3892 = vadd.f32 %v3536, %v3859
      %v3893 = vld [vmem:[%s2] sm:$0x3]
      %v3895 = vlaneseq
      %v3896 = vshrl.u32 %v3895, 7
      %v3897 = vsub.s32 0, %v3896
      %v3898 = vrot.slane %v3893, %v3897
      %v3899 = vlaneseq
      %v3900 = vshrl.u32 %v3899, 7
      %v3901 = vsub.s32 1, %v3900
      %v3902 = vrot.slane %v3893, %v3901
      %v3905 = vadd.f32 %v3861, %v3898
      %v3906 = vadd.f32 %v3862, %v3902
      %v3907 = vadd.f32 %v3863, %v3898
      %v3908 = vadd.f32 %v3864, %v3902
      %v3909 = vadd.f32 %v3865, %v3898
      %v3910 = vadd.f32 %v3866, %v3902
      %v3911 = vadd.f32 %v3867, %v3898
      %v3912 = vadd.f32 %v3868, %v3902
      %v3913 = vadd.f32 %v3869, %v3898
      %v3914 = vadd.f32 %v3870, %v3902
      %v3915 = vadd.f32 %v3871, %v3898
      %v3916 = vadd.f32 %v3872, %v3902
      %v3917 = vadd.f32 %v3873, %v3898
      %v3918 = vadd.f32 %v3874, %v3902
      %v3919 = vadd.f32 %v3875, %v3898
      %v3920 = vadd.f32 %v3876, %v3902
      %v3921 = vadd.f32 %v3877, %v3898
      %v3922 = vadd.f32 %v3878, %v3902
      %v3923 = vadd.f32 %v3879, %v3898
      %v3924 = vadd.f32 %v3880, %v3902
      %v3925 = vadd.f32 %v3881, %v3898
      %v3926 = vadd.f32 %v3882, %v3902
      %v3927 = vadd.f32 %v3883, %v3898
      %v3928 = vadd.f32 %v3884, %v3902
      %v3929 = vadd.f32 %v3885, %v3898
      %v3930 = vadd.f32 %v3886, %v3902
      %v3931 = vadd.f32 %v3887, %v3898
      %v3932 = vadd.f32 %v3888, %v3902
      %v3933 = vadd.f32 %v3889, %v3898
      %v3934 = vadd.f32 %v3890, %v3902
      %v3935 = vadd.f32 %v3891, %v3898
      %v3936 = vadd.f32 %v3892, %v3902
      %v3937 = vmax.f32 %v3905, 0.0
      %v3938 = vmax.f32 %v3906, 0.0
      %v3939 = vmax.f32 %v3907, 0.0
      %v3940 = vmax.f32 %v3908, 0.0
      %v3941 = vmax.f32 %v3909, 0.0
      %v3942 = vmax.f32 %v3910, 0.0
      %v3943 = vmax.f32 %v3911, 0.0
      %v3944 = vmax.f32 %v3912, 0.0
      %v3945 = vmax.f32 %v3913, 0.0
      %v3946 = vmax.f32 %v3914, 0.0
      %v3947 = vmax.f32 %v3915, 0.0
      %v3948 = vmax.f32 %v3916, 0.0
      %v3949 = vmax.f32 %v3917, 0.0
      %v3950 = vmax.f32 %v3918, 0.0
      %v3951 = vmax.f32 %v3919, 0.0
      %v3952 = vmax.f32 %v3920, 0.0
      %v3953 = vmax.f32 %v3921, 0.0
      %v3954 = vmax.f32 %v3922, 0.0
      %v3955 = vmax.f32 %v3923, 0.0
      %v3956 = vmax.f32 %v3924, 0.0
      %v3957 = vmax.f32 %v3925, 0.0
      %v3958 = vmax.f32 %v3926, 0.0
      %v3959 = vmax.f32 %v3927, 0.0
      %v3960 = vmax.f32 %v3928, 0.0
      %v3961 = vmax.f32 %v3929, 0.0
      %v3962 = vmax.f32 %v3930, 0.0
      %v3963 = vmax.f32 %v3931, 0.0
      %v3964 = vmax.f32 %v3932, 0.0
      %v3965 = vmax.f32 %v3933, 0.0
      %v3966 = vmax.f32 %v3934, 0.0
      %v3967 = vmax.f32 %v3935, 0.0
      %v3968 = vmax.f32 %v3936, 0.0
      %v3969 = vpack.c.bf16 %v3939, %v3937
      %v3970 = vpack.c.bf16 %v3940, %v3938
      %v3971 = vpack.c.bf16 %v3943, %v3941
      %v3972 = vpack.c.bf16 %v3944, %v3942
      %v3973 = vpack.c.bf16 %v3947, %v3945
      %v3974 = vpack.c.bf16 %v3948, %v3946
      %v3975 = vpack.c.bf16 %v3951, %v3949
      %v3976 = vpack.c.bf16 %v3952, %v3950
      %v3977 = vpack.c.bf16 %v3955, %v3953
      %v3978 = vpack.c.bf16 %v3956, %v3954
      %v3979 = vpack.c.bf16 %v3959, %v3957
      %v3980 = vpack.c.bf16 %v3960, %v3958
      %v3981 = vpack.c.bf16 %v3963, %v3961
      %v3982 = vpack.c.bf16 %v3964, %v3962
      %v3983 = vpack.c.bf16 %v3967, %v3965
      %v3984 = vpack.c.bf16 %v3968, %v3966
      %v3985 = vld [vmem:[%s3] sm:$0xff]
      %v3986 = vld [vmem:[%s4] sm:$0xff]
      %3988 = vset.pattern.permute.xlu0 0
      %3989 = vperm.xlu0 %3988, %v3986
      %v3990 = vpop.permute.xlu0 %3989
      %v3993 = vunpack.c.l.b16 %v3985
      %v3994 = vunpack.c.h.b16 %v3985
      %v3995 = vpack.c.b16 %v3993, %v3993
      %v3996 = vpack.c.b16 %v3994, %v3994
      %3999 = vmatprep.subr.bf16.mxu0 %v3970
      %4000 = vmatpush1.bf16.xpose.msra.mxu0 %v3969
      %4001 = vmatprep.subr.bf16.mxu0 %v3972
      %4002 = vmatpush1.bf16.xpose.msra.mxu0 %v3971
      %4003 = vmatprep.subr.bf16.mxu0 %v3974
      %4004 = vmatpush1.bf16.xpose.msra.mxu0 %v3973
      %4005 = vmatprep.subr.bf16.mxu0 %v3976
      %4006 = vmatpush1.bf16.xpose.msra.mxu0 %v3975
      %4007 = vmatprep.subr.bf16.mxu0 %v3978
      %4008 = vmatpush1.bf16.xpose.msra.mxu0 %v3977
      %4009 = vmatprep.subr.bf16.mxu0 %v3980
      %4010 = vmatpush1.bf16.xpose.msra.mxu0 %v3979
      %4011 = vmatprep.subr.bf16.mxu0 %v3982
      %4012 = vmatpush1.bf16.xpose.msra.mxu0 %v3981
      %4013 = vmatprep.subr.bf16.mxu0 %v3984
      %4014 = vmatpush1.bf16.xpose.msra.mxu0 %v3983
      %4015 = vmatprep.subr.bf16.mxu0 0
      %4016 = vmatpush1.bf16.xpose.msra.mxu0 0
      %4017 = vmatprep.subr.bf16.mxu0 0
      %4018 = vmatpush1.bf16.xpose.msra.mxu0 0
      %4019 = vmatprep.subr.bf16.mxu0 0
      %4020 = vmatpush1.bf16.xpose.msra.mxu0 0
      %4021 = vmatprep.subr.bf16.mxu0 0
      %4022 = vmatpush1.bf16.xpose.msra.mxu0 0
      %4023 = vmatprep.subr.bf16.mxu0 0
      %4024 = vmatpush1.bf16.xpose.msra.mxu0 0
      %4025 = vmatprep.subr.bf16.mxu0 0
      %4026 = vmatpush1.bf16.xpose.msra.mxu0 0
      %4027 = vmatprep.subr.bf16.mxu0 0
      %4028 = vmatpush1.bf16.xpose.msra.mxu0 0
      %4029 = vmatprep.subr.bf16.mxu0 0
      %4030 = vmatpush1.bf16.xpose.msra.mxu0 0
      %4031 = vmatprep.mubr.bf16.mxu0 %v3996
      %4032 = vmatmul.mubr.bf16.gmra.mrb[0].mxu0 %v3995
      %v4033 = vpop.f32.mrb[0].mxu0
      %v4034 = vadd.f32 %v3990, %v4033
      %v4035 = vpop.f32.mrb[0].mxu0
      %v4036 = vpop.f32.mrb[0].mxu0
      %v4037 = vpop.f32.mrb[0].mxu0
      %4038 = vdwg.mxu0
      %4039 = vst [vmem:[%s244] sm:$0xff] %v4034
      %p4040 = scmp.lt.s32.totalorder %s20, 1
      %s4041 = scalar_select %p4040, %s20, 1
      %p4042 = scmp.lt.s32.totalorder %s21, 1
      %s4043 = scalar_select %p4042, %s21, 1
      %s4044 = smul.addr %s4041, 2
      %s4045 = sadd.s32 %s4043, %s4044
      %s4046 = smul.addr %s4045, 8
      %s4047 = scalar_lea.vmem %s5, %s4046
      // Predicated region
      $region41: #{decoder_forward.5} parent=39 // pred_check
        %p4048 = pneg %p158
      $region42: #{decoder_forward.5} parent=39 // pred_check_branch
        %4050 = sbr.rel (%p4048) target = $region44
      $region43: #{decoder_forward.5} parent=39 // pred_region
        _
      $region44: #{decoder_forward.5} parent=39 // pred_fallthru
        _
    $region40: #{decoder_forward.5} parent=5 // pred_fallthru
      _
    %p4051 = scmp.le.s32.totalorder 2, %s11
    // Predicated region
    $region45: #{decoder_forward.5} parent=5 // pred_check
      %p4052 = pneg %p4051
    $region46: #{decoder_forward.5} parent=5 // pred_check_branch
      %4054 = sbr.rel (%p4052) target = $region48
    $region47: #{decoder_forward.5} parent=5 // pred_region
      %s4055 = ssub.s32 %s11, 2
      // Predicated region
      $region49: #{decoder_forward.5} parent=47 // pred_check
        %p4056 = pneg %p164
      $region50: #{decoder_forward.5} parent=47 // pred_check_branch
        %4058 = sbr.rel (%p4056) target = $region52
      $region51: #{decoder_forward.5} parent=47 // pred_region
        %p4059 = scmp.lt.s32.totalorder %s22, 1
        %s4060 = scalar_select %p4059, %s22, 1
        %p4061 = scmp.lt.s32.totalorder %s23, 1
        %s4062 = scalar_select %p4061, %s23, 1
        %s4063 = smul.addr %s4060, 2
        %s4064 = sadd.s32 %s4062, %s4063
        %s4065 = smul.addr %s4064, 8
        %s4066 = scalar_lea.vmem %s5, %s4065
      $region52: #{decoder_forward.5} parent=47 // pred_fallthru
        _
    $region48: #{decoder_forward.5} parent=5 // pred_fallthru
      _
  $region6: #{decoder_forward.5} parent=0 // loop_footer
    %s15 = sadd.s32 1, %s11
  $region7: #{decoder_forward.5} parent=0 // loop_footer_branch
    %10 = sbr.rel target = $region3
  $region8: #{decoder_forward.5} parent=0 // loop_exit
    _

</llo_original>
